<compile_context>
chip_gen: v7x
topology: tpu7x:2x2x1
jax: 0.10.0
libtpu: 0.0.40
codegen_flags: <defaults>
</compile_context>

<pallas_src>
import jax
import jax.numpy as jnp
from jax import lax
from jax.experimental import pallas as pl
from jax.experimental.pallas import tpu as pltpu

# ---- small synthetic stand-in for the original `config` module -------------
PLACE_DIM = 50      # vocabulary size (place_dim)
PL_D = 16           # config.pl_d       (embedding dim)
HIDDEN = 32         # config.hidden_neurons
SEQ_LEN = 8         # original model hard-codes 300 in linear3; small here
CLASSES = 14
DENSE = 256         # linear3 output features
BATCH = 2

B_TILE = 128        # batch rows per grid step (fills the 128-row MXU tile)
OUT_PAD = 128       # lane-dense output width (multiple of 128, >= CLASSES)
NEG_BIG = -1e30     # bias for padded class lanes -> exp underflows to exactly 0


def lstm_head_kernel(xg_ref, whh_ref, w3_ref, b3_ref, w4_ref, b4_ref,
                     out_ref, dens_ref):
    """One batch tile: LSTM recurrence with on-the-fly linear3 accumulation,
    then ReLU, linear4 and an exactly-normalized softmax."""
    T, Bt, fourH = xg_ref.shape
    H = whh_ref.shape[0]                      # whh_ref is [H, 4H]

    # tanh-only gate trick: sigmoid(x) = 0.5 * tanh(0.5 * x) + 0.5.
    # scale = 0.5 on the i/f/o lanes, 1.0 on the g lanes; after one full-width
    # tanh the same scale + (1 - scale) bias reconstructs sigmoid/tanh per lane.
    lane = lax.broadcasted_iota(jnp.int32, (Bt, fourH), 1)
    g_mask = (lane >= 2 * H) & (lane < 3 * H)
    scale = jnp.where(g_mask, 1.0, 0.5).astype(jnp.float32)   # hoisted (no per-iter broadcast)
    bias = 1.0 - scale

    whh = whh_ref[...]                        # [H, 4H] f32, hoisted into vregs
    dens_ref[...] = jnp.zeros_like(dens_ref)  # linear3 f32 accumulator

    def step(t, carry):
        h, c = carry
        # only this matmul sits on the serial critical path; default (single
        # pass) MXU precision instead of the old 3-pass Precision.HIGHEST
        gates = xg_ref[t] + jnp.dot(h, whh, preferred_element_type=jnp.float32)
        th = jnp.tanh(gates * scale)          # ONE full-width EUP pass per step
        act = th * scale + bias               # i,f,o -> sigmoid ; g -> tanh (VPU FMA)
        i_g = act[:, 0 * H:1 * H]
        f_g = act[:, 1 * H:2 * H]
        g_g = act[:, 2 * H:3 * H]
        o_g = act[:, 3 * H:4 * H]
        c = f_g * c + i_g * g_g
        h = o_g * jnp.tanh(c)
        # linear3 accumulated on the fly: no [Bt, T*H] scratch and no masked
        # 32-lane stores; this [Bt,H]@[H,256] hides behind the h@W_hh chain.
        dens_ref[...] += jnp.dot(h.astype(jnp.bfloat16), w3_ref[t],
                                 preferred_element_type=jnp.float32)
        return h, c

    h0 = jnp.zeros((Bt, H), jnp.float32)
    c0 = jnp.zeros((Bt, H), jnp.float32)
    # T is small and static here; at the real T=300 use unroll=False (or a
    # modest factor) to keep code size / vreg live ranges bounded.
    lax.fori_loop(0, T, step, (h0, c0), unroll=True)

    # ---- linear3 bias + ReLU ------------------------------------------------
    dens = jnp.maximum(dens_ref[...] + b3_ref[...], 0.0)

    # ---- linear4 + softmax (padded class lanes carry -1e30 bias -> exp = 0) -
    logits = jnp.dot(dens.astype(jnp.bfloat16), w4_ref[...],
                     preferred_element_type=jnp.float32) + b4_ref[...]
    m = jnp.max(logits, axis=1, keepdims=True)
    e = jnp.exp(logits - m)
    # exact normalization (approx reciprocal previously broke sum-to-1 < 1e-3)
    out_ref[...] = e / jnp.sum(e, axis=1, keepdims=True)


def prepare_params(params):
    """One-time weight prep (fold, transpose, cast, pad) hoisted out of forward."""
    H = params["w_hh"].shape[1]
    T = SEQ_LEN

    # Fuse the input projection into the embedding table:
    #   xg_table[v] = embedding[v] @ W_ih^T + (b_ih + b_hh)   -> [vocab+1, 4H]
    # padding_idx=0 has a zero embedding row, so xg_table[0] == bias, exactly
    # what the reference computes for padded tokens.  The gathered input is
    # already lane-dense (4H == 128) gate pre-activations.
    b_gates = (params["b_ih"] + params["b_hh"]).astype(jnp.float32)
    xg_table = (params["embedding"].astype(jnp.float32)
                @ params["w_ih"].T.astype(jnp.float32)) + b_gates

    w4_T = params["w4"].T                                           # [256, CLASSES]
    classes = w4_T.shape[1]
    w4_pad = jnp.zeros((w4_T.shape[0], OUT_PAD), jnp.bfloat16)
    w4_pad = w4_pad.at[:, :classes].set(w4_T.astype(jnp.bfloat16))
    b4_pad = jnp.full((1, OUT_PAD), NEG_BIG, jnp.float32)
    b4_pad = b4_pad.at[:, :classes].set(params["b4"].astype(jnp.float32))

    return dict(
        xg_table=xg_table,                                          # [vocab+1, 4H] f32
        w_hh_T=params["w_hh"].T.astype(jnp.float32),                # [H, 4H] f32
        w3_T=params["w3"].T.reshape(T, H, DENSE).astype(jnp.bfloat16),  # [T, H, 256]
        b3=params["b3"].reshape(1, -1).astype(jnp.float32),         # [1, 256]
        w4_T=w4_pad,                                                # [256, OUT_PAD]
        b4=b4_pad,                                                  # [1, OUT_PAD]
    )


def classification_rnn2_forward(inputs_arrays, traj_lens, prepared):
    """Non-attention, unidirectional forward (the module's default flags)."""
    del traj_lens  # unused by the reference forward when isAttention=False
    B, T = inputs_arrays.shape
    H, fourH = prepared["w_hh_T"].shape

    b_pad = ((B + B_TILE - 1) // B_TILE) * B_TILE
    if b_pad != B:   # pad with index 0 == padding_idx -> bias-only gate pre-acts
        inputs_arrays = jnp.pad(inputs_arrays, ((0, b_pad - B), (0, 0)))

    # fused-table gather, laid out time-major so the kernel reads xg_ref[t] as
    # one lane-dense [B_TILE, 4H] block per step.
    xg = prepared["xg_table"][inputs_arrays.T]                      # [T, b_pad, 4H] f32
    # TODO(synk): pass xg as bf16 at the real T=300 shape to halve HBM traffic
    # and the double-buffered VMEM footprint (validate error first).

    def resident(shape):
        # constant index_map -> block stays VMEM-resident across the grid
        return pl.BlockSpec(shape, lambda i, _s=shape: tuple(0 for _ in _s))

    flops = b_pad * (T * (2 * H * fourH + 2 * H * DENSE + 12 * fourH)
                     + 2 * DENSE * OUT_PAD + 4 * OUT_PAD)
    transcendentals = b_pad * (T * (fourH + H) + OUT_PAD)
    bytes_accessed = (xg.size * 4 + prepared["w3_T"].size * 2
                      + prepared["w4_T"].size * 2 + b_pad * OUT_PAD * 4)

    out = pl.pallas_call(
        lstm_head_kernel,
        out_shape=jax.ShapeDtypeStruct((b_pad, OUT_PAD), jnp.float32),
        grid_spec=pltpu.PrefetchScalarGridSpec(
            num_scalar_prefetch=0,
            grid=(b_pad // B_TILE,),
            in_specs=[
                pl.BlockSpec((T, B_TILE, fourH), lambda i: (0, i, 0)),  # xg (batch-tiled)
                resident((H, fourH)),              # W_hh^T  (resident)
                resident((T, H, DENSE)),           # W3^T    (time-major)
                resident((1, DENSE)),              # b3
                resident((DENSE, OUT_PAD)),        # W4^T    (lane-padded)
                resident((1, OUT_PAD)),            # b4      (lane-padded)
            ],
            out_specs=pl.BlockSpec((B_TILE, OUT_PAD), lambda i: (i, 0)),
            scratch_shapes=[pltpu.VMEM((B_TILE, DENSE), jnp.float32)],  # linear3 acc
        ),
        compiler_params=pltpu.CompilerParams(
            dimension_semantics=("parallel",)),   # batch tiles split across TCs (v7x)
        cost_estimate=pl.CostEstimate(flops=flops,
                                      transcendentals=transcendentals,
                                      bytes_accessed=bytes_accessed),
    )(xg, prepared["w_hh_T"], prepared["w3_T"], prepared["b3"],
      prepared["w4_T"], prepared["b4"])

    return out[:B, :CLASSES]


def _reference_forward(inputs_arrays, params):
    """Pure-JAX f32 reference (mirrors the PyTorch math) for correctness check."""
    emb = params["embedding"][inputs_arrays].astype(jnp.float32)  # [B, T, D]
    B, T, _ = emb.shape
    H = HIDDEN
    h = jnp.zeros((B, H), jnp.float32)
    c = jnp.zeros((B, H), jnp.float32)
    b = params["b_ih"] + params["b_hh"]
    outs = []
    for t in range(T):
        gates = (emb[:, t, :] @ params["w_ih"].T + h @ params["w_hh"].T + b)
        i_g = jax.nn.sigmoid(gates[:, 0:H])
        f_g = jax.nn.sigmoid(gates[:, H:2 * H])
        g_g = jnp.tanh(gates[:, 2 * H:3 * H])
        o_g = jax.nn.sigmoid(gates[:, 3 * H:4 * H])
        c = f_g * c + i_g * g_g
        h = o_g * jnp.tanh(c)
        outs.append(h)
    flat = jnp.stack(outs, axis=1).reshape(B, -1)                 # [B, T*H]
    dens = jnp.maximum(flat @ params["w3"].T + params["b3"], 0.0)
    logits = dens @ params["w4"].T + params["b4"]
    return jax.nn.softmax(logits, axis=1)


if __name__ == "__main__":
    key = jax.random.PRNGKey(0)
    ks = jax.random.split(key, 9)
    fourH = 4 * HIDDEN
    in3 = HIDDEN * SEQ_LEN

    # Embedding: N(0,1), padding row (index 0) zeroed (padding_idx=0).
    embedding = jax.random.normal(ks[0], (PLACE_DIM + 1, PL_D), jnp.float32)
    embedding = embedding.at[0].set(0.0)

    # LSTM weights, initialized as in the module's __init__.
    bound_ih = (6.0 / PL_D) ** 0.5                                  # kaiming_uniform_
    w_ih = jax.random.uniform(ks[1], (fourH, PL_D), jnp.float32, -bound_ih, bound_ih)
    w_hh = jnp.linalg.qr(jax.random.normal(ks[2], (fourH, HIDDEN), jnp.float32))[0]  # orthogonal_
    b_ih = jnp.zeros((fourH,), jnp.float32)                         # zeros_
    b_hh = jnp.concatenate([jnp.zeros(HIDDEN), jnp.ones(HIDDEN),    # forget bias = 1
                            jnp.zeros(HIDDEN), jnp.zeros(HIDDEN)]).astype(jnp.float32)

    # Dense heads (default-style uniform init).
    b3b = 1.0 / (in3 ** 0.5)
    w3 = jax.random.uniform(ks[3], (DENSE, in3), jnp.float32, -b3b, b3b)
    b3 = jax.random.uniform(ks[4], (DENSE,), jnp.float32, -b3b, b3b)
    b4b = 1.0 / (DENSE ** 0.5)
    w4 = jax.random.uniform(ks[5], (CLASSES, DENSE), jnp.float32, -b4b, b4b)
    b4 = jax.random.uniform(ks[6], (CLASSES,), jnp.float32, -b4b, b4b)

    params = dict(embedding=embedding, w_ih=w_ih, w_hh=w_hh, b_ih=b_ih, b_hh=b_hh,
                  w3=w3, b3=b3, w4=w4, b4=b4)
    prepared = prepare_params(params)        # one-time fold/transpose/cast/pad

    inputs_arrays = jax.random.randint(ks[7], (BATCH, SEQ_LEN), 0, PLACE_DIM + 1,
                                       dtype=jnp.int32)
    traj_lens = jnp.full((BATCH,), SEQ_LEN, dtype=jnp.int32)  # unused in this path

    fwd = jax.jit(classification_rnn2_forward)
    out = fwd(inputs_arrays, traj_lens, prepared)
    out = jax.block_until_ready(out)

    ref = _reference_forward(inputs_arrays, params)
    assert out.shape == (BATCH, CLASSES)
    # exact softmax normalization (padded lanes contribute exactly 0)
    assert jnp.allclose(jnp.sum(out, axis=1), 1.0, atol=1e-4)
    # bf16 MXU operands (f32 accumulation) on the dense layers / recurrence
    assert jnp.allclose(out, ref, atol=5e-3, rtol=5e-3)

    print("KERNEL_OK")
</pallas_src>

<mosaic_0001>
module attributes {stable_mosaic.version = 11 : i64} {
  func.func @lstm_head_kernel(%arg0: i32, %arg1: memref<8x128x128xf32, #tpu.memory_space<vmem>>, %arg2: memref<32x128xf32, #tpu.memory_space<vmem>>, %arg3: memref<8x32x256xbf16, #tpu.memory_space<vmem>>, %arg4: memref<1x256xf32, #tpu.memory_space<vmem>>, %arg5: memref<256x128xbf16, #tpu.memory_space<vmem>>, %arg6: memref<1x128xf32, #tpu.memory_space<vmem>>, %arg7: memref<128x128xf32, #tpu.memory_space<vmem>>, %arg8: memref<128x256xf32, #tpu.memory_space<vmem>>) attributes {dimension_semantics = [#tpu.dimension_semantics<parallel>], iteration_bounds = array<i64: 1>, scalar_prefetch = 0 : i64, scratch_operands = 1 : i64, tpu.core_type = #tpu.core_type<tc>, window_params = [{transform_indices = @transform_0, window_bounds = array<i64: 8, 128, 128>}, {pipeline_mode = #tpu.pipeline_mode<synchronous>, transform_indices = @transform_1, window_bounds = array<i64: 32, 128>}, {pipeline_mode = #tpu.pipeline_mode<synchronous>, transform_indices = @transform_2, window_bounds = array<i64: 8, 32, 256>}, {pipeline_mode = #tpu.pipeline_mode<synchronous>, transform_indices = @transform_3, window_bounds = array<i64: 1, 256>}, {pipeline_mode = #tpu.pipeline_mode<synchronous>, transform_indices = @transform_4, window_bounds = array<i64: 256, 128>}, {pipeline_mode = #tpu.pipeline_mode<synchronous>, transform_indices = @transform_5, window_bounds = array<i64: 1, 128>}, {transform_indices = @transform_6, window_bounds = array<i64: 128, 128>}]} {
    %0 = tpu.iota {dimensions = array<i32: 1>} : vector<128x128xi32>
    %c64_i32 = arith.constant 64 : i32
    %1 = vector.broadcast %c64_i32 : i32 to vector<128x128xi32>
    %2 = arith.cmpi sge, %0, %1 : vector<128x128xi32>
    %c96_i32 = arith.constant 96 : i32
    %3 = vector.broadcast %c96_i32 : i32 to vector<128x128xi32>
    %4 = arith.cmpi slt, %0, %3 : vector<128x128xi32>
    %5 = arith.andi %2, %4 : vector<128x128xi1>
    %cst = arith.constant 1.000000e+00 : f32
    %cst_0 = arith.constant 5.000000e-01 : f32
    %6 = vector.broadcast %cst : f32 to vector<128x128xf32>
    %7 = vector.broadcast %cst_0 : f32 to vector<128x128xf32>
    %8 = arith.select %5, %6, %7 : vector<128x128xi1>, vector<128x128xf32>
    %cst_1 = arith.constant 1.000000e+00 : f32
    %9 = vector.broadcast %cst_1 : f32 to vector<128x128xf32>
    %10 = arith.subf %9, %8 : vector<128x128xf32>
    %c0 = arith.constant 0 : index
    %c0_2 = arith.constant 0 : index
    %11 = vector.load %arg2[%c0, %c0_2] : memref<32x128xf32, #tpu.memory_space<vmem>>, vector<32x128xf32>
    %cst_3 = arith.constant 0.000000e+00 : f32
    %12 = vector.broadcast %cst_3 : f32 to vector<128x256xf32>
    %c0_4 = arith.constant 0 : index
    %c0_5 = arith.constant 0 : index
    %13 = vector.load %arg8[%c0_4, %c0_5] : memref<128x256xf32, #tpu.memory_space<vmem>>, vector<128x256xf32>
    tpu.vector_store %arg8[%c0_4, %c0_5], %12 {strides = array<i32>} : memref<128x256xf32, #tpu.memory_space<vmem>>, vector<128x256xf32>,
    %cst_6 = arith.constant 0.000000e+00 : f32
    %14 = vector.broadcast %cst_6 : f32 to vector<128x32xf32>
    %cst_7 = arith.constant 0.000000e+00 : f32
    %15 = vector.broadcast %cst_7 : f32 to vector<128x32xf32>
    %c0_i32 = arith.constant 0 : i32
    %16 = arith.index_cast %c0_i32 : i32 to index
    %c0_8 = arith.constant 0 : index
    %c0_9 = arith.constant 0 : index
    %17 = vector.load %arg1[%16, %c0_8, %c0_9] : memref<8x128x128xf32, #tpu.memory_space<vmem>>, vector<1x128x128xf32>
    %18 = vector.shape_cast %17 : vector<1x128x128xf32> to vector<128x128xf32>
    %cst_10 = arith.constant dense<0.000000e+00> : vector<128x128xf32>
    %19 = tpu.matmul %14, %11, %cst_10 {dimension_numbers = #tpu.dot_dimension_numbers<[1], [0], [0], [1], [0, 0, 1, 1], [], []>} : vector<128x32xf32>, vector<32x128xf32>, vector<128x128xf32> -> vector<128x128xf32>
    %20 = arith.addf %18, %19 : vector<128x128xf32>
    %21 = arith.mulf %20, %8 : vector<128x128xf32>
    %22 = math.tanh %21 : vector<128x128xf32>
    %23 = arith.mulf %22, %8 : vector<128x128xf32>
    %24 = arith.addf %23, %10 : vector<128x128xf32>
    %25 = vector.extract_strided_slice %24 {offsets = [0, 0], sizes = [128, 32], strides = [1, 1]} : vector<128x128xf32> to vector<128x32xf32>
    %26 = vector.extract_strided_slice %24 {offsets = [0, 32], sizes = [128, 32], strides = [1, 1]} : vector<128x128xf32> to vector<128x32xf32>
    %27 = vector.extract_strided_slice %24 {offsets = [0, 64], sizes = [128, 32], strides = [1, 1]} : vector<128x128xf32> to vector<128x32xf32>
    %28 = vector.extract_strided_slice %24 {offsets = [0, 96], sizes = [128, 32], strides = [1, 1]} : vector<128x128xf32> to vector<128x32xf32>
    %29 = arith.mulf %26, %15 : vector<128x32xf32>
    %30 = arith.mulf %25, %27 : vector<128x32xf32>
    %31 = arith.addf %29, %30 : vector<128x32xf32>
    %32 = math.tanh %31 : vector<128x32xf32>
    %33 = arith.mulf %28, %32 : vector<128x32xf32>
    %c0_11 = arith.constant 0 : index
    %c0_12 = arith.constant 0 : index
    %34 = vector.load %arg8[%c0_11, %c0_12] : memref<128x256xf32, #tpu.memory_space<vmem>>, vector<128x256xf32>
    %35 = arith.truncf %33 : vector<128x32xf32> to vector<128x32xbf16>
    %36 = arith.index_cast %c0_i32 : i32 to index
    %c0_13 = arith.constant 0 : index
    %c0_14 = arith.constant 0 : index
    %37 = vector.load %arg3[%36, %c0_13, %c0_14] : memref<8x32x256xbf16, #tpu.memory_space<vmem>>, vector<1x32x256xbf16>
    %38 = vector.shape_cast %37 : vector<1x32x256xbf16> to vector<32x256xbf16>
    %cst_15 = arith.constant dense<0.000000e+00> : vector<128x256xf32>
    %39 = tpu.matmul %35, %38, %cst_15 {dimension_numbers = #tpu.dot_dimension_numbers<[1], [0], [0], [1], [0, 0, 1, 1], [], []>} : vector<128x32xbf16>, vector<32x256xbf16>, vector<128x256xf32> -> vector<128x256xf32>
    %40 = arith.addf %34, %39 : vector<128x256xf32>
    %c0_16 = arith.constant 0 : index
    %c0_17 = arith.constant 0 : index
    %41 = vector.load %arg8[%c0_16, %c0_17] : memref<128x256xf32, #tpu.memory_space<vmem>>, vector<128x256xf32>
    tpu.vector_store %arg8[%c0_16, %c0_17], %40 {strides = array<i32>} : memref<128x256xf32, #tpu.memory_space<vmem>>, vector<128x256xf32>,
    %c1_i32 = arith.constant 1 : i32
    %42 = arith.index_cast %c1_i32 : i32 to index
    %c0_18 = arith.constant 0 : index
    %c0_19 = arith.constant 0 : index
    %43 = vector.load %arg1[%42, %c0_18, %c0_19] : memref<8x128x128xf32, #tpu.memory_space<vmem>>, vector<1x128x128xf32>
    %44 = vector.shape_cast %43 : vector<1x128x128xf32> to vector<128x128xf32>
    %cst_20 = arith.constant dense<0.000000e+00> : vector<128x128xf32>
    %45 = tpu.matmul %33, %11, %cst_20 {dimension_numbers = #tpu.dot_dimension_numbers<[1], [0], [0], [1], [0, 0, 1, 1], [], []>} : vector<128x32xf32>, vector<32x128xf32>, vector<128x128xf32> -> vector<128x128xf32>
    %46 = arith.addf %44, %45 : vector<128x128xf32>
    %47 = arith.mulf %46, %8 : vector<128x128xf32>
    %48 = math.tanh %47 : vector<128x128xf32>
    %49 = arith.mulf %48, %8 : vector<128x128xf32>
    %50 = arith.addf %49, %10 : vector<128x128xf32>
    %51 = vector.extract_strided_slice %50 {offsets = [0, 0], sizes = [128, 32], strides = [1, 1]} : vector<128x128xf32> to vector<128x32xf32>
    %52 = vector.extract_strided_slice %50 {offsets = [0, 32], sizes = [128, 32], strides = [1, 1]} : vector<128x128xf32> to vector<128x32xf32>
    %53 = vector.extract_strided_slice %50 {offsets = [0, 64], sizes = [128, 32], strides = [1, 1]} : vector<128x128xf32> to vector<128x32xf32>
    %54 = vector.extract_strided_slice %50 {offsets = [0, 96], sizes = [128, 32], strides = [1, 1]} : vector<128x128xf32> to vector<128x32xf32>
    %55 = arith.mulf %52, %31 : vector<128x32xf32>
    %56 = arith.mulf %51, %53 : vector<128x32xf32>
    %57 = arith.addf %55, %56 : vector<128x32xf32>
    %58 = math.tanh %57 : vector<128x32xf32>
    %59 = arith.mulf %54, %58 : vector<128x32xf32>
    %c0_21 = arith.constant 0 : index
    %c0_22 = arith.constant 0 : index
    %60 = vector.load %arg8[%c0_21, %c0_22] : memref<128x256xf32, #tpu.memory_space<vmem>>, vector<128x256xf32>
    %61 = arith.truncf %59 : vector<128x32xf32> to vector<128x32xbf16>
    %62 = arith.index_cast %c1_i32 : i32 to index
    %c0_23 = arith.constant 0 : index
    %c0_24 = arith.constant 0 : index
    %63 = vector.load %arg3[%62, %c0_23, %c0_24] : memref<8x32x256xbf16, #tpu.memory_space<vmem>>, vector<1x32x256xbf16>
    %64 = vector.shape_cast %63 : vector<1x32x256xbf16> to vector<32x256xbf16>
    %cst_25 = arith.constant dense<0.000000e+00> : vector<128x256xf32>
    %65 = tpu.matmul %61, %64, %cst_25 {dimension_numbers = #tpu.dot_dimension_numbers<[1], [0], [0], [1], [0, 0, 1, 1], [], []>} : vector<128x32xbf16>, vector<32x256xbf16>, vector<128x256xf32> -> vector<128x256xf32>
    %66 = arith.addf %60, %65 : vector<128x256xf32>
    %c0_26 = arith.constant 0 : index
    %c0_27 = arith.constant 0 : index
    %67 = vector.load %arg8[%c0_26, %c0_27] : memref<128x256xf32, #tpu.memory_space<vmem>>, vector<128x256xf32>
    tpu.vector_store %arg8[%c0_26, %c0_27], %66 {strides = array<i32>} : memref<128x256xf32, #tpu.memory_space<vmem>>, vector<128x256xf32>,
    %c2_i32 = arith.constant 2 : i32
    %68 = arith.index_cast %c2_i32 : i32 to index
    %c0_28 = arith.constant 0 : index
    %c0_29 = arith.constant 0 : index
    %69 = vector.load %arg1[%68, %c0_28, %c0_29] : memref<8x128x128xf32, #tpu.memory_space<vmem>>, vector<1x128x128xf32>
    %70 = vector.shape_cast %69 : vector<1x128x128xf32> to vector<128x128xf32>
    %cst_30 = arith.constant dense<0.000000e+00> : vector<128x128xf32>
    %71 = tpu.matmul %59, %11, %cst_30 {dimension_numbers = #tpu.dot_dimension_numbers<[1], [0], [0], [1], [0, 0, 1, 1], [], []>} : vector<128x32xf32>, vector<32x128xf32>, vector<128x128xf32> -> vector<128x128xf32>
    %72 = arith.addf %70, %71 : vector<128x128xf32>
    %73 = arith.mulf %72, %8 : vector<128x128xf32>
    %74 = math.tanh %73 : vector<128x128xf32>
    %75 = arith.mulf %74, %8 : vector<128x128xf32>
    %76 = arith.addf %75, %10 : vector<128x128xf32>
    %77 = vector.extract_strided_slice %76 {offsets = [0, 0], sizes = [128, 32], strides = [1, 1]} : vector<128x128xf32> to vector<128x32xf32>
    %78 = vector.extract_strided_slice %76 {offsets = [0, 32], sizes = [128, 32], strides = [1, 1]} : vector<128x128xf32> to vector<128x32xf32>
    %79 = vector.extract_strided_slice %76 {offsets = [0, 64], sizes = [128, 32], strides = [1, 1]} : vector<128x128xf32> to vector<128x32xf32>
    %80 = vector.extract_strided_slice %76 {offsets = [0, 96], sizes = [128, 32], strides = [1, 1]} : vector<128x128xf32> to vector<128x32xf32>
    %81 = arith.mulf %78, %57 : vector<128x32xf32>
    %82 = arith.mulf %77, %79 : vector<128x32xf32>
    %83 = arith.addf %81, %82 : vector<128x32xf32>
    %84 = math.tanh %83 : vector<128x32xf32>
    %85 = arith.mulf %80, %84 : vector<128x32xf32>
    %c0_31 = arith.constant 0 : index
    %c0_32 = arith.constant 0 : index
    %86 = vector.load %arg8[%c0_31, %c0_32] : memref<128x256xf32, #tpu.memory_space<vmem>>, vector<128x256xf32>
    %87 = arith.truncf %85 : vector<128x32xf32> to vector<128x32xbf16>
    %88 = arith.index_cast %c2_i32 : i32 to index
    %c0_33 = arith.constant 0 : index
    %c0_34 = arith.constant 0 : index
    %89 = vector.load %arg3[%88, %c0_33, %c0_34] : memref<8x32x256xbf16, #tpu.memory_space<vmem>>, vector<1x32x256xbf16>
    %90 = vector.shape_cast %89 : vector<1x32x256xbf16> to vector<32x256xbf16>
    %cst_35 = arith.constant dense<0.000000e+00> : vector<128x256xf32>
    %91 = tpu.matmul %87, %90, %cst_35 {dimension_numbers = #tpu.dot_dimension_numbers<[1], [0], [0], [1], [0, 0, 1, 1], [], []>} : vector<128x32xbf16>, vector<32x256xbf16>, vector<128x256xf32> -> vector<128x256xf32>
    %92 = arith.addf %86, %91 : vector<128x256xf32>
    %c0_36 = arith.constant 0 : index
    %c0_37 = arith.constant 0 : index
    %93 = vector.load %arg8[%c0_36, %c0_37] : memref<128x256xf32, #tpu.memory_space<vmem>>, vector<128x256xf32>
    tpu.vector_store %arg8[%c0_36, %c0_37], %92 {strides = array<i32>} : memref<128x256xf32, #tpu.memory_space<vmem>>, vector<128x256xf32>,
    %c3_i32 = arith.constant 3 : i32
    %94 = arith.index_cast %c3_i32 : i32 to index
    %c0_38 = arith.constant 0 : index
    %c0_39 = arith.constant 0 : index
    %95 = vector.load %arg1[%94, %c0_38, %c0_39] : memref<8x128x128xf32, #tpu.memory_space<vmem>>, vector<1x128x128xf32>
    %96 = vector.shape_cast %95 : vector<1x128x128xf32> to vector<128x128xf32>
    %cst_40 = arith.constant dense<0.000000e+00> : vector<128x128xf32>
    %97 = tpu.matmul %85, %11, %cst_40 {dimension_numbers = #tpu.dot_dimension_numbers<[1], [0], [0], [1], [0, 0, 1, 1], [], []>} : vector<128x32xf32>, vector<32x128xf32>, vector<128x128xf32> -> vector<128x128xf32>
    %98 = arith.addf %96, %97 : vector<128x128xf32>
    %99 = arith.mulf %98, %8 : vector<128x128xf32>
    %100 = math.tanh %99 : vector<128x128xf32>
    %101 = arith.mulf %100, %8 : vector<128x128xf32>
    %102 = arith.addf %101, %10 : vector<128x128xf32>
    %103 = vector.extract_strided_slice %102 {offsets = [0, 0], sizes = [128, 32], strides = [1, 1]} : vector<128x128xf32> to vector<128x32xf32>
    %104 = vector.extract_strided_slice %102 {offsets = [0, 32], sizes = [128, 32], strides = [1, 1]} : vector<128x128xf32> to vector<128x32xf32>
    %105 = vector.extract_strided_slice %102 {offsets = [0, 64], sizes = [128, 32], strides = [1, 1]} : vector<128x128xf32> to vector<128x32xf32>
    %106 = vector.extract_strided_slice %102 {offsets = [0, 96], sizes = [128, 32], strides = [1, 1]} : vector<128x128xf32> to vector<128x32xf32>
    %107 = arith.mulf %104, %83 : vector<128x32xf32>
    %108 = arith.mulf %103, %105 : vector<128x32xf32>
    %109 = arith.addf %107, %108 : vector<128x32xf32>
    %110 = math.tanh %109 : vector<128x32xf32>
    %111 = arith.mulf %106, %110 : vector<128x32xf32>
    %c0_41 = arith.constant 0 : index
    %c0_42 = arith.constant 0 : index
    %112 = vector.load %arg8[%c0_41, %c0_42] : memref<128x256xf32, #tpu.memory_space<vmem>>, vector<128x256xf32>
    %113 = arith.truncf %111 : vector<128x32xf32> to vector<128x32xbf16>
    %114 = arith.index_cast %c3_i32 : i32 to index
    %c0_43 = arith.constant 0 : index
    %c0_44 = arith.constant 0 : index
    %115 = vector.load %arg3[%114, %c0_43, %c0_44] : memref<8x32x256xbf16, #tpu.memory_space<vmem>>, vector<1x32x256xbf16>
    %116 = vector.shape_cast %115 : vector<1x32x256xbf16> to vector<32x256xbf16>
    %cst_45 = arith.constant dense<0.000000e+00> : vector<128x256xf32>
    %117 = tpu.matmul %113, %116, %cst_45 {dimension_numbers = #tpu.dot_dimension_numbers<[1], [0], [0], [1], [0, 0, 1, 1], [], []>} : vector<128x32xbf16>, vector<32x256xbf16>, vector<128x256xf32> -> vector<128x256xf32>
    %118 = arith.addf %112, %117 : vector<128x256xf32>
    %c0_46 = arith.constant 0 : index
    %c0_47 = arith.constant 0 : index
    %119 = vector.load %arg8[%c0_46, %c0_47] : memref<128x256xf32, #tpu.memory_space<vmem>>, vector<128x256xf32>
    tpu.vector_store %arg8[%c0_46, %c0_47], %118 {strides = array<i32>} : memref<128x256xf32, #tpu.memory_space<vmem>>, vector<128x256xf32>,
    %c4_i32 = arith.constant 4 : i32
    %120 = arith.index_cast %c4_i32 : i32 to index
    %c0_48 = arith.constant 0 : index
    %c0_49 = arith.constant 0 : index
    %121 = vector.load %arg1[%120, %c0_48, %c0_49] : memref<8x128x128xf32, #tpu.memory_space<vmem>>, vector<1x128x128xf32>
    %122 = vector.shape_cast %121 : vector<1x128x128xf32> to vector<128x128xf32>
    %cst_50 = arith.constant dense<0.000000e+00> : vector<128x128xf32>
    %123 = tpu.matmul %111, %11, %cst_50 {dimension_numbers = #tpu.dot_dimension_numbers<[1], [0], [0], [1], [0, 0, 1, 1], [], []>} : vector<128x32xf32>, vector<32x128xf32>, vector<128x128xf32> -> vector<128x128xf32>
    %124 = arith.addf %122, %123 : vector<128x128xf32>
    %125 = arith.mulf %124, %8 : vector<128x128xf32>
    %126 = math.tanh %125 : vector<128x128xf32>
    %127 = arith.mulf %126, %8 : vector<128x128xf32>
    %128 = arith.addf %127, %10 : vector<128x128xf32>
    %129 = vector.extract_strided_slice %128 {offsets = [0, 0], sizes = [128, 32], strides = [1, 1]} : vector<128x128xf32> to vector<128x32xf32>
    %130 = vector.extract_strided_slice %128 {offsets = [0, 32], sizes = [128, 32], strides = [1, 1]} : vector<128x128xf32> to vector<128x32xf32>
    %131 = vector.extract_strided_slice %128 {offsets = [0, 64], sizes = [128, 32], strides = [1, 1]} : vector<128x128xf32> to vector<128x32xf32>
    %132 = vector.extract_strided_slice %128 {offsets = [0, 96], sizes = [128, 32], strides = [1, 1]} : vector<128x128xf32> to vector<128x32xf32>
    %133 = arith.mulf %130, %109 : vector<128x32xf32>
    %134 = arith.mulf %129, %131 : vector<128x32xf32>
    %135 = arith.addf %133, %134 : vector<128x32xf32>
    %136 = math.tanh %135 : vector<128x32xf32>
    %137 = arith.mulf %132, %136 : vector<128x32xf32>
    %c0_51 = arith.constant 0 : index
    %c0_52 = arith.constant 0 : index
    %138 = vector.load %arg8[%c0_51, %c0_52] : memref<128x256xf32, #tpu.memory_space<vmem>>, vector<128x256xf32>
    %139 = arith.truncf %137 : vector<128x32xf32> to vector<128x32xbf16>
    %140 = arith.index_cast %c4_i32 : i32 to index
    %c0_53 = arith.constant 0 : index
    %c0_54 = arith.constant 0 : index
    %141 = vector.load %arg3[%140, %c0_53, %c0_54] : memref<8x32x256xbf16, #tpu.memory_space<vmem>>, vector<1x32x256xbf16>
    %142 = vector.shape_cast %141 : vector<1x32x256xbf16> to vector<32x256xbf16>
    %cst_55 = arith.constant dense<0.000000e+00> : vector<128x256xf32>
    %143 = tpu.matmul %139, %142, %cst_55 {dimension_numbers = #tpu.dot_dimension_numbers<[1], [0], [0], [1], [0, 0, 1, 1], [], []>} : vector<128x32xbf16>, vector<32x256xbf16>, vector<128x256xf32> -> vector<128x256xf32>
    %144 = arith.addf %138, %143 : vector<128x256xf32>
    %c0_56 = arith.constant 0 : index
    %c0_57 = arith.constant 0 : index
    %145 = vector.load %arg8[%c0_56, %c0_57] : memref<128x256xf32, #tpu.memory_space<vmem>>, vector<128x256xf32>
    tpu.vector_store %arg8[%c0_56, %c0_57], %144 {strides = array<i32>} : memref<128x256xf32, #tpu.memory_space<vmem>>, vector<128x256xf32>,
    %c5_i32 = arith.constant 5 : i32
    %146 = arith.index_cast %c5_i32 : i32 to index
    %c0_58 = arith.constant 0 : index
    %c0_59 = arith.constant 0 : index
    %147 = vector.load %arg1[%146, %c0_58, %c0_59] : memref<8x128x128xf32, #tpu.memory_space<vmem>>, vector<1x128x128xf32>
    %148 = vector.shape_cast %147 : vector<1x128x128xf32> to vector<128x128xf32>
    %cst_60 = arith.constant dense<0.000000e+00> : vector<128x128xf32>
    %149 = tpu.matmul %137, %11, %cst_60 {dimension_numbers = #tpu.dot_dimension_numbers<[1], [0], [0], [1], [0, 0, 1, 1], [], []>} : vector<128x32xf32>, vector<32x128xf32>, vector<128x128xf32> -> vector<128x128xf32>
    %150 = arith.addf %148, %149 : vector<128x128xf32>
    %151 = arith.mulf %150, %8 : vector<128x128xf32>
    %152 = math.tanh %151 : vector<128x128xf32>
    %153 = arith.mulf %152, %8 : vector<128x128xf32>
    %154 = arith.addf %153, %10 : vector<128x128xf32>
    %155 = vector.extract_strided_slice %154 {offsets = [0, 0], sizes = [128, 32], strides = [1, 1]} : vector<128x128xf32> to vector<128x32xf32>
    %156 = vector.extract_strided_slice %154 {offsets = [0, 32], sizes = [128, 32], strides = [1, 1]} : vector<128x128xf32> to vector<128x32xf32>
    %157 = vector.extract_strided_slice %154 {offsets = [0, 64], sizes = [128, 32], strides = [1, 1]} : vector<128x128xf32> to vector<128x32xf32>
    %158 = vector.extract_strided_slice %154 {offsets = [0, 96], sizes = [128, 32], strides = [1, 1]} : vector<128x128xf32> to vector<128x32xf32>
    %159 = arith.mulf %156, %135 : vector<128x32xf32>
    %160 = arith.mulf %155, %157 : vector<128x32xf32>
    %161 = arith.addf %159, %160 : vector<128x32xf32>
    %162 = math.tanh %161 : vector<128x32xf32>
    %163 = arith.mulf %158, %162 : vector<128x32xf32>
    %c0_61 = arith.constant 0 : index
    %c0_62 = arith.constant 0 : index
    %164 = vector.load %arg8[%c0_61, %c0_62] : memref<128x256xf32, #tpu.memory_space<vmem>>, vector<128x256xf32>
    %165 = arith.truncf %163 : vector<128x32xf32> to vector<128x32xbf16>
    %166 = arith.index_cast %c5_i32 : i32 to index
    %c0_63 = arith.constant 0 : index
    %c0_64 = arith.constant 0 : index
    %167 = vector.load %arg3[%166, %c0_63, %c0_64] : memref<8x32x256xbf16, #tpu.memory_space<vmem>>, vector<1x32x256xbf16>
    %168 = vector.shape_cast %167 : vector<1x32x256xbf16> to vector<32x256xbf16>
    %cst_65 = arith.constant dense<0.000000e+00> : vector<128x256xf32>
    %169 = tpu.matmul %165, %168, %cst_65 {dimension_numbers = #tpu.dot_dimension_numbers<[1], [0], [0], [1], [0, 0, 1, 1], [], []>} : vector<128x32xbf16>, vector<32x256xbf16>, vector<128x256xf32> -> vector<128x256xf32>
    %170 = arith.addf %164, %169 : vector<128x256xf32>
    %c0_66 = arith.constant 0 : index
    %c0_67 = arith.constant 0 : index
    %171 = vector.load %arg8[%c0_66, %c0_67] : memref<128x256xf32, #tpu.memory_space<vmem>>, vector<128x256xf32>
    tpu.vector_store %arg8[%c0_66, %c0_67], %170 {strides = array<i32>} : memref<128x256xf32, #tpu.memory_space<vmem>>, vector<128x256xf32>,
    %c6_i32 = arith.constant 6 : i32
    %172 = arith.index_cast %c6_i32 : i32 to index
    %c0_68 = arith.constant 0 : index
    %c0_69 = arith.constant 0 : index
    %173 = vector.load %arg1[%172, %c0_68, %c0_69] : memref<8x128x128xf32, #tpu.memory_space<vmem>>, vector<1x128x128xf32>
    %174 = vector.shape_cast %173 : vector<1x128x128xf32> to vector<128x128xf32>
    %cst_70 = arith.constant dense<0.000000e+00> : vector<128x128xf32>
    %175 = tpu.matmul %163, %11, %cst_70 {dimension_numbers = #tpu.dot_dimension_numbers<[1], [0], [0], [1], [0, 0, 1, 1], [], []>} : vector<128x32xf32>, vector<32x128xf32>, vector<128x128xf32> -> vector<128x128xf32>
    %176 = arith.addf %174, %175 : vector<128x128xf32>
    %177 = arith.mulf %176, %8 : vector<128x128xf32>
    %178 = math.tanh %177 : vector<128x128xf32>
    %179 = arith.mulf %178, %8 : vector<128x128xf32>
    %180 = arith.addf %179, %10 : vector<128x128xf32>
    %181 = vector.extract_strided_slice %180 {offsets = [0, 0], sizes = [128, 32], strides = [1, 1]} : vector<128x128xf32> to vector<128x32xf32>
    %182 = vector.extract_strided_slice %180 {offsets = [0, 32], sizes = [128, 32], strides = [1, 1]} : vector<128x128xf32> to vector<128x32xf32>
    %183 = vector.extract_strided_slice %180 {offsets = [0, 64], sizes = [128, 32], strides = [1, 1]} : vector<128x128xf32> to vector<128x32xf32>
    %184 = vector.extract_strided_slice %180 {offsets = [0, 96], sizes = [128, 32], strides = [1, 1]} : vector<128x128xf32> to vector<128x32xf32>
    %185 = arith.mulf %182, %161 : vector<128x32xf32>
    %186 = arith.mulf %181, %183 : vector<128x32xf32>
    %187 = arith.addf %185, %186 : vector<128x32xf32>
    %188 = math.tanh %187 : vector<128x32xf32>
    %189 = arith.mulf %184, %188 : vector<128x32xf32>
    %c0_71 = arith.constant 0 : index
    %c0_72 = arith.constant 0 : index
    %190 = vector.load %arg8[%c0_71, %c0_72] : memref<128x256xf32, #tpu.memory_space<vmem>>, vector<128x256xf32>
    %191 = arith.truncf %189 : vector<128x32xf32> to vector<128x32xbf16>
    %192 = arith.index_cast %c6_i32 : i32 to index
    %c0_73 = arith.constant 0 : index
    %c0_74 = arith.constant 0 : index
    %193 = vector.load %arg3[%192, %c0_73, %c0_74] : memref<8x32x256xbf16, #tpu.memory_space<vmem>>, vector<1x32x256xbf16>
    %194 = vector.shape_cast %193 : vector<1x32x256xbf16> to vector<32x256xbf16>
    %cst_75 = arith.constant dense<0.000000e+00> : vector<128x256xf32>
    %195 = tpu.matmul %191, %194, %cst_75 {dimension_numbers = #tpu.dot_dimension_numbers<[1], [0], [0], [1], [0, 0, 1, 1], [], []>} : vector<128x32xbf16>, vector<32x256xbf16>, vector<128x256xf32> -> vector<128x256xf32>
    %196 = arith.addf %190, %195 : vector<128x256xf32>
    %c0_76 = arith.constant 0 : index
    %c0_77 = arith.constant 0 : index
    %197 = vector.load %arg8[%c0_76, %c0_77] : memref<128x256xf32, #tpu.memory_space<vmem>>, vector<128x256xf32>
    tpu.vector_store %arg8[%c0_76, %c0_77], %196 {strides = array<i32>} : memref<128x256xf32, #tpu.memory_space<vmem>>, vector<128x256xf32>,
    %c7_i32 = arith.constant 7 : i32
    %198 = arith.index_cast %c7_i32 : i32 to index
    %c0_78 = arith.constant 0 : index
    %c0_79 = arith.constant 0 : index
    %199 = vector.load %arg1[%198, %c0_78, %c0_79] : memref<8x128x128xf32, #tpu.memory_space<vmem>>, vector<1x128x128xf32>
    %200 = vector.shape_cast %199 : vector<1x128x128xf32> to vector<128x128xf32>
    %cst_80 = arith.constant dense<0.000000e+00> : vector<128x128xf32>
    %201 = tpu.matmul %189, %11, %cst_80 {dimension_numbers = #tpu.dot_dimension_numbers<[1], [0], [0], [1], [0, 0, 1, 1], [], []>} : vector<128x32xf32>, vector<32x128xf32>, vector<128x128xf32> -> vector<128x128xf32>
    %202 = arith.addf %200, %201 : vector<128x128xf32>
    %203 = arith.mulf %202, %8 : vector<128x128xf32>
    %204 = math.tanh %203 : vector<128x128xf32>
    %205 = arith.mulf %204, %8 : vector<128x128xf32>
    %206 = arith.addf %205, %10 : vector<128x128xf32>
    %207 = vector.extract_strided_slice %206 {offsets = [0, 0], sizes = [128, 32], strides = [1, 1]} : vector<128x128xf32> to vector<128x32xf32>
    %208 = vector.extract_strided_slice %206 {offsets = [0, 32], sizes = [128, 32], strides = [1, 1]} : vector<128x128xf32> to vector<128x32xf32>
    %209 = vector.extract_strided_slice %206 {offsets = [0, 64], sizes = [128, 32], strides = [1, 1]} : vector<128x128xf32> to vector<128x32xf32>
    %210 = vector.extract_strided_slice %206 {offsets = [0, 96], sizes = [128, 32], strides = [1, 1]} : vector<128x128xf32> to vector<128x32xf32>
    %211 = arith.mulf %208, %187 : vector<128x32xf32>
    %212 = arith.mulf %207, %209 : vector<128x32xf32>
    %213 = arith.addf %211, %212 : vector<128x32xf32>
    %214 = math.tanh %213 : vector<128x32xf32>
    %215 = arith.mulf %210, %214 : vector<128x32xf32>
    %c0_81 = arith.constant 0 : index
    %c0_82 = arith.constant 0 : index
    %216 = vector.load %arg8[%c0_81, %c0_82] : memref<128x256xf32, #tpu.memory_space<vmem>>, vector<128x256xf32>
    %217 = arith.truncf %215 : vector<128x32xf32> to vector<128x32xbf16>
    %218 = arith.index_cast %c7_i32 : i32 to index
    %c0_83 = arith.constant 0 : index
    %c0_84 = arith.constant 0 : index
    %219 = vector.load %arg3[%218, %c0_83, %c0_84] : memref<8x32x256xbf16, #tpu.memory_space<vmem>>, vector<1x32x256xbf16>
    %220 = vector.shape_cast %219 : vector<1x32x256xbf16> to vector<32x256xbf16>
    %cst_85 = arith.constant dense<0.000000e+00> : vector<128x256xf32>
    %221 = tpu.matmul %217, %220, %cst_85 {dimension_numbers = #tpu.dot_dimension_numbers<[1], [0], [0], [1], [0, 0, 1, 1], [], []>} : vector<128x32xbf16>, vector<32x256xbf16>, vector<128x256xf32> -> vector<128x256xf32>
    %222 = arith.addf %216, %221 : vector<128x256xf32>
    %c0_86 = arith.constant 0 : index
    %c0_87 = arith.constant 0 : index
    %223 = vector.load %arg8[%c0_86, %c0_87] : memref<128x256xf32, #tpu.memory_space<vmem>>, vector<128x256xf32>
    tpu.vector_store %arg8[%c0_86, %c0_87], %222 {strides = array<i32>} : memref<128x256xf32, #tpu.memory_space<vmem>>, vector<128x256xf32>,
    %c8_i32 = arith.constant 8 : i32
    %c0_88 = arith.constant 0 : index
    %c0_89 = arith.constant 0 : index
    %224 = vector.load %arg8[%c0_88, %c0_89] : memref<128x256xf32, #tpu.memory_space<vmem>>, vector<128x256xf32>
    %c0_90 = arith.constant 0 : index
    %c0_91 = arith.constant 0 : index
    %225 = vector.load %arg4[%c0_90, %c0_91] : memref<1x256xf32, #tpu.memory_space<vmem>>, vector<1x256xf32>
    %226 = vector.broadcast %225 : vector<1x256xf32> to vector<128x256xf32>
    %227 = arith.addf %224, %226 : vector<128x256xf32>
    %cst_92 = arith.constant 0.000000e+00 : f32
    %228 = vector.broadcast %cst_92 : f32 to vector<128x256xf32>
    %229 = arith.maximumf %227, %228 : vector<128x256xf32>
    %230 = arith.truncf %229 : vector<128x256xf32> to vector<128x256xbf16>
    %c0_93 = arith.constant 0 : index
    %c0_94 = arith.constant 0 : index
    %231 = vector.load %arg5[%c0_93, %c0_94] : memref<256x128xbf16, #tpu.memory_space<vmem>>, vector<256x128xbf16>
    %cst_95 = arith.constant dense<0.000000e+00> : vector<128x128xf32>
    %232 = tpu.matmul %230, %231, %cst_95 {dimension_numbers = #tpu.dot_dimension_numbers<[1], [0], [0], [1], [0, 0, 1, 1], [], []>} : vector<128x256xbf16>, vector<256x128xbf16>, vector<128x128xf32> -> vector<128x128xf32>
    %c0_96 = arith.constant 0 : index
    %c0_97 = arith.constant 0 : index
    %233 = vector.load %arg6[%c0_96, %c0_97] : memref<1x128xf32, #tpu.memory_space<vmem>>, vector<1x128xf32>
    %234 = vector.broadcast %233 : vector<1x128xf32> to vector<128x128xf32>
    %235 = arith.addf %232, %234 : vector<128x128xf32>
    %cst_98 = arith.constant dense<0xFF800000> : vector<128xf32>
    %236 = vector.multi_reduction <maximumf>, %235, %cst_98 [1] : vector<128x128xf32> to vector<128xf32>
    %237 = vector.shape_cast %236 : vector<128xf32> to vector<128x1xf32>
    %238 = vector.broadcast %237 : vector<128x1xf32> to vector<128x128xf32>
    %239 = arith.subf %235, %238 : vector<128x128xf32>
    %240 = math.exp %239 : vector<128x128xf32>
    %cst_99 = arith.constant dense<0.000000e+00> : vector<128xf32>
    %241 = vector.multi_reduction <add>, %240, %cst_99 [1] : vector<128x128xf32> to vector<128xf32>
    %242 = vector.shape_cast %241 : vector<128xf32> to vector<128x1xf32>
    %243 = vector.broadcast %242 : vector<128x1xf32> to vector<128x128xf32>
    %244 = arith.divf %240, %243 : vector<128x128xf32>
    %c0_100 = arith.constant 0 : index
    %c0_101 = arith.constant 0 : index
    %245 = vector.load %arg7[%c0_100, %c0_101] : memref<128x128xf32, #tpu.memory_space<vmem>>, vector<128x128xf32>
    tpu.vector_store %arg7[%c0_100, %c0_101], %244 {strides = array<i32>} : memref<128x128xf32, #tpu.memory_space<vmem>>, vector<128x128xf32>,
    return
  }
  func.func @transform_0(%arg0: i32) -> (i32, i32, i32) {
    %c0_i32 = arith.constant 0 : i32
    %c0_i32_0 = arith.constant 0 : i32
    %c0_i32_1 = arith.constant 0 : i32
    return %c0_i32, %arg0, %c0_i32_0 : i32, i32, i32
  }
  func.func @transform_1(%arg0: i32) -> (i32, i32) {
    %c0_i32 = arith.constant 0 : i32
    %c0_i32_0 = arith.constant 0 : i32
    %c0_i32_1 = arith.constant 0 : i32
    return %c0_i32, %c0_i32_0 : i32, i32
  }
  func.func @transform_2(%arg0: i32) -> (i32, i32, i32) {
    %c0_i32 = arith.constant 0 : i32
    %c0_i32_0 = arith.constant 0 : i32
    %c0_i32_1 = arith.constant 0 : i32
    %c0_i32_2 = arith.constant 0 : i32
    return %c0_i32, %c0_i32_0, %c0_i32_1 : i32, i32, i32
  }
  func.func @transform_3(%arg0: i32) -> (i32, i32) {
    %c0_i32 = arith.constant 0 : i32
    %c0_i32_0 = arith.constant 0 : i32
    %c0_i32_1 = arith.constant 0 : i32
    return %c0_i32, %c0_i32_0 : i32, i32
  }
  func.func @transform_4(%arg0: i32) -> (i32, i32) {
    %c0_i32 = arith.constant 0 : i32
    %c0_i32_0 = arith.constant 0 : i32
    %c0_i32_1 = arith.constant 0 : i32
    return %c0_i32, %c0_i32_0 : i32, i32
  }
  func.func @transform_5(%arg0: i32) -> (i32, i32) {
    %c0_i32 = arith.constant 0 : i32
    %c0_i32_0 = arith.constant 0 : i32
    %c0_i32_1 = arith.constant 0 : i32
    return %c0_i32, %c0_i32_0 : i32, i32
  }
  func.func @transform_6(%arg0: i32) -> (i32, i32) {
    %c0_i32 = arith.constant 0 : i32
    %c0_i32_0 = arith.constant 0 : i32
    return %arg0, %c0_i32 : i32, i32
  }
}

</mosaic_0001>

<llo_original>
// kernel: classification_rnn2_forward.1
$region0: #{classification_rnn2_forward.1}
  #allocation0 [shape = 'u32[]', space=smem, size = 0x4, offset = 0x4, fixed_abs, tag = 'smem constant byte address 0x4 - core index']
  #allocation1 [shape = 'u32[144,128]{1,0:T(1,128)}', space=vmem, size = 0x12000, scoped, tag = 'internal scratch']
  #allocation2 [shape = 'f32[128,256]{1,0:T(8,128)}', space=vmem, size = 0x20000, scoped, tag = 'scratch operand']
  %s0 = inlined_call_operand.vmem [shape: f32[8,128,128], index: 0, kind: input, shape index: {}]
  %s1 = inlined_call_operand.vmem [shape: f32[32,128], index: 1, kind: input, shape index: {}]
  %s2 = inlined_call_operand.vmem [shape: bf16[8,32,256], index: 2, kind: input, shape index: {}]
  %s3 = inlined_call_operand.vmem [shape: f32[1,256], index: 3, kind: input, shape index: {}]
  %s4 = inlined_call_operand.vmem [shape: bf16[256,128], index: 4, kind: input, shape index: {}]
  %s5 = inlined_call_operand.vmem [shape: f32[1,128], index: 5, kind: input, shape index: {}]
  %s6 = inlined_call_operand.vmem [shape: f32[128,128], index: 6, kind: output, shape index: {}]
  %s7 = sld [smem:[#allocation0]]
  $region34: #{classification_rnn2_forward.1} parent=0
    _
  %s9 = ssub.s32 1, %s7
  %s10 = scalar_select 0, %s9, %s7
  // Predicated region
  $region2: #{classification_rnn2_forward.1} parent=0 // pred_check
    _
  $region3: #{classification_rnn2_forward.1} parent=0 // pred_check_branch
    %12 = sbr.rel (0) target = $region5
  $region4: #{classification_rnn2_forward.1} parent=0 // pred_region
    _
  $region5: #{classification_rnn2_forward.1} parent=0 // pred_fallthru
    _
  // Predicated region
  $region6: #{classification_rnn2_forward.1} parent=0 // pred_check
    _
  $region7: #{classification_rnn2_forward.1} parent=0 // pred_check_branch
    %14 = sbr.rel (0) target = $region9
  $region8: #{classification_rnn2_forward.1} parent=0 // pred_region
    _
  $region9: #{classification_rnn2_forward.1} parent=0 // pred_fallthru
    _
  // Predicated region
  $region10: #{classification_rnn2_forward.1} parent=0 // pred_check
    _
  $region11: #{classification_rnn2_forward.1} parent=0 // pred_check_branch
    %16 = sbr.rel (0) target = $region13
  $region12: #{classification_rnn2_forward.1} parent=0 // pred_region
    _
  $region13: #{classification_rnn2_forward.1} parent=0 // pred_fallthru
    _
  // Predicated region
  $region14: #{classification_rnn2_forward.1} parent=0 // pred_check
    _
  $region15: #{classification_rnn2_forward.1} parent=0 // pred_check_branch
    %18 = sbr.rel (0) target = $region17
  $region16: #{classification_rnn2_forward.1} parent=0 // pred_region
    _
  $region17: #{classification_rnn2_forward.1} parent=0 // pred_fallthru
    _
  // Predicated region
  $region18: #{classification_rnn2_forward.1} parent=0 // pred_check
    _
  $region19: #{classification_rnn2_forward.1} parent=0 // pred_check_branch
    %20 = sbr.rel (0) target = $region21
  $region20: #{classification_rnn2_forward.1} parent=0 // pred_region
    _
  $region21: #{classification_rnn2_forward.1} parent=0 // pred_fallthru
    _
  // Predicated region
  $region22: #{classification_rnn2_forward.1} parent=0 // pred_check
    _
  $region23: #{classification_rnn2_forward.1} parent=0 // pred_check_branch
    %22 = sbr.rel (0) target = $region25
  $region24: #{classification_rnn2_forward.1} parent=0 // pred_region
    _
  $region25: #{classification_rnn2_forward.1} parent=0 // pred_fallthru
    _
  %v24 = vlaneseq
  %v25 = vand.u32 %v24, 127
  %vm26 = vcmp.ge.s32.totalorder %v25, 64
  %vm27 = vcmp.lt.s32.totalorder %v25, 96
  %vm28 = vmand %vm26, %vm27
  %v29 = vsel %vm28, 1.0, 0.5
  %v30 = vsub.f32 1.0, %v29
  %v31 = vld [vmem:[%s1] sm:$0xff]
  %v32 = vld [vmem:[%s1 + $0x8] sm:$0xff]
  %v33 = vld [vmem:[%s1 + $0x10] sm:$0xff]
  %v34 = vld [vmem:[%s1 + $0x18] sm:$0xff]
  %35 = vst [vmem:[#allocation2] sm:$0xff] 0.0
  %36 = vst [vmem:[#allocation2 + $0x8] sm:$0xff] 0.0
  %37 = vst [vmem:[#allocation2 + $0x10] sm:$0xff] 0.0
  %38 = vst [vmem:[#allocation2 + $0x18] sm:$0xff] 0.0
  %39 = vst [vmem:[#allocation2 + $0x20] sm:$0xff] 0.0
  %40 = vst [vmem:[#allocation2 + $0x28] sm:$0xff] 0.0
  %41 = vst [vmem:[#allocation2 + $0x30] sm:$0xff] 0.0
  %42 = vst [vmem:[#allocation2 + $0x38] sm:$0xff] 0.0
  %43 = vst [vmem:[#allocation2 + $0x40] sm:$0xff] 0.0
  %44 = vst [vmem:[#allocation2 + $0x48] sm:$0xff] 0.0
  %45 = vst [vmem:[#allocation2 + $0x50] sm:$0xff] 0.0
  %46 = vst [vmem:[#allocation2 + $0x58] sm:$0xff] 0.0
  %47 = vst [vmem:[#allocation2 + $0x60] sm:$0xff] 0.0
  %48 = vst [vmem:[#allocation2 + $0x68] sm:$0xff] 0.0
  %49 = vst [vmem:[#allocation2 + $0x70] sm:$0xff] 0.0
  %50 = vst [vmem:[#allocation2 + $0x78] sm:$0xff] 0.0
  %51 = vst [vmem:[#allocation2 + $0x80] sm:$0xff] 0.0
  %52 = vst [vmem:[#allocation2 + $0x88] sm:$0xff] 0.0
  %53 = vst [vmem:[#allocation2 + $0x90] sm:$0xff] 0.0
  %54 = vst [vmem:[#allocation2 + $0x98] sm:$0xff] 0.0
  %55 = vst [vmem:[#allocation2 + $0xa0] sm:$0xff] 0.0
  %56 = vst [vmem:[#allocation2 + $0xa8] sm:$0xff] 0.0
  %57 = vst [vmem:[#allocation2 + $0xb0] sm:$0xff] 0.0
  %58 = vst [vmem:[#allocation2 + $0xb8] sm:$0xff] 0.0
  %59 = vst [vmem:[#allocation2 + $0xc0] sm:$0xff] 0.0
  %60 = vst [vmem:[#allocation2 + $0xc8] sm:$0xff] 0.0
  %61 = vst [vmem:[#allocation2 + $0xd0] sm:$0xff] 0.0
  %62 = vst [vmem:[#allocation2 + $0xd8] sm:$0xff] 0.0
  %63 = vst [vmem:[#allocation2 + $0xe0] sm:$0xff] 0.0
  %64 = vst [vmem:[#allocation2 + $0xe8] sm:$0xff] 0.0
  %65 = vst [vmem:[#allocation2 + $0xf0] sm:$0xff] 0.0
  %66 = vst [vmem:[#allocation2 + $0xf8] sm:$0xff] 0.0
  %v67 = vld [vmem:[%s0] sm:$0xff]
  %v68 = vld [vmem:[%s0 + $0x8] sm:$0xff]
  %v69 = vld [vmem:[%s0 + $0x10] sm:$0xff]
  %v70 = vld [vmem:[%s0 + $0x18] sm:$0xff]
  %v71 = vld [vmem:[%s0 + $0x20] sm:$0xff]
  %v72 = vld [vmem:[%s0 + $0x28] sm:$0xff]
  %v73 = vld [vmem:[%s0 + $0x30] sm:$0xff]
  %v74 = vld [vmem:[%s0 + $0x38] sm:$0xff]
  %v75 = vld [vmem:[%s0 + $0x40] sm:$0xff]
  %v76 = vld [vmem:[%s0 + $0x48] sm:$0xff]
  %v77 = vld [vmem:[%s0 + $0x50] sm:$0xff]
  %v78 = vld [vmem:[%s0 + $0x58] sm:$0xff]
  %v79 = vld [vmem:[%s0 + $0x60] sm:$0xff]
  %v80 = vld [vmem:[%s0 + $0x68] sm:$0xff]
  %v81 = vld [vmem:[%s0 + $0x70] sm:$0xff]
  %v82 = vld [vmem:[%s0 + $0x78] sm:$0xff]
  %vm83 = vcmask 261120
  %v85 = vsel %vm83, 0.0, 0
  %87 = vmatprep.subr.mxu0 0.0
  %88 = vmatpush1.msra.mxu0 %v31
  %89 = vmatprep.subr.mxu0 0.0
  %90 = vmatpush1.msra.mxu0 %v32
  %91 = vmatprep.subr.mxu0 0.0
  %92 = vmatpush1.msra.mxu0 %v33
  %93 = vmatprep.subr.mxu0 0.0
  %94 = vmatpush1.msra.mxu0 %v34
  %95 = vmatprep.subr.mxu0 0.0
  %96 = vmatpush1.msra.mxu0 0.0
  %97 = vmatprep.subr.mxu0 0.0
  %98 = vmatpush1.msra.mxu0 0.0
  %99 = vmatprep.subr.mxu0 0.0
  %100 = vmatpush1.msra.mxu0 0.0
  %101 = vmatprep.subr.mxu0 0.0
  %102 = vmatpush1.msra.mxu0 0.0
  %103 = vmatprep.subr.mxu0 0.0
  %104 = vmatpush1.msra.mxu0 0.0
  %105 = vmatprep.subr.mxu0 0.0
  %106 = vmatpush1.msra.mxu0 0.0
  %107 = vmatprep.subr.mxu0 0.0
  %108 = vmatpush1.msra.mxu0 0.0
  %109 = vmatprep.subr.mxu0 0.0
  %110 = vmatpush1.msra.mxu0 0.0
  %111 = vmatprep.subr.mxu0 0.0
  %112 = vmatpush1.msra.mxu0 0.0
  %113 = vmatprep.subr.mxu0 0.0
  %114 = vmatpush1.msra.mxu0 0.0
  %115 = vmatprep.subr.mxu0 0.0
  %116 = vmatpush1.msra.mxu0 0.0
  %117 = vmatprep.subr.mxu0 0.0
  %118 = vmatpush1.msra.mxu0 0.0
  %119 = vmatprep.subr.mxu0 0.0
  %120 = vmatpush1.msra.mxu0 0.0
  %121 = vmatprep.subr.mxu0 0.0
  %122 = vmatpush1.msra.mxu0 0.0
  %123 = vmatprep.subr.mxu0 0.0
  %124 = vmatpush1.msra.mxu0 0.0
  %125 = vmatprep.subr.mxu0 0.0
  %126 = vmatpush1.msra.mxu0 0.0
  %127 = vmatprep.subr.mxu0 0.0
  %128 = vmatpush1.msra.mxu0 0.0
  %129 = vmatprep.subr.mxu0 0.0
  %130 = vmatpush1.msra.mxu0 0.0
  %131 = vmatprep.subr.mxu0 0.0
  %132 = vmatpush1.msra.mxu0 0.0
  %133 = vmatprep.subr.mxu0 0.0
  %134 = vmatpush1.msra.mxu0 0.0
  %135 = vmatprep.subr.mxu0 0.0
  %136 = vmatpush1.msra.mxu0 0.0
  %137 = vmatprep.subr.mxu0 0.0
  %138 = vmatpush1.msra.mxu0 0.0
  %139 = vmatprep.subr.mxu0 0.0
  %140 = vmatpush1.msra.mxu0 0.0
  %141 = vmatprep.subr.mxu0 0.0
  %142 = vmatpush1.msra.mxu0 0.0
  %143 = vmatprep.subr.mxu0 0.0
  %144 = vmatpush1.msra.mxu0 0.0
  %145 = vmatprep.subr.mxu0 0.0
  %146 = vmatpush1.msra.mxu0 0.0
  %147 = vmatprep.subr.mxu0 0.0
  %148 = vmatpush1.msra.mxu0 0.0
  %149 = vmatprep.subr.mxu0 0.0
  %150 = vmatpush1.msra.mxu0 0.0
  %151 = vmatprep.mubr.f32.mxu0 0.0
  %152 = vmatmul.mubr.f32.gmra.mrb[0].mxu0 %v85
  %v153 = vpop.f32.mrb[0].mxu0
  %v154 = vadd.f32 0.0, %v153
  %v155 = vpop.f32.mrb[0].mxu0
  %156 = vmatprep.mubr.f32.mxu0 0.0
  %157 = vmatmul.mubr.f32.gmra.mrb[0].mxu0 %v85
  %v158 = vpop.f32.mrb[0].mxu0
  %v159 = vadd.f32 0.0, %v158
  %v160 = vpop.f32.mrb[0].mxu0
  %161 = vmatprep.mubr.f32.mxu0 0.0
  %162 = vmatmul.mubr.f32.gmra.mrb[0].mxu0 %v85
  %v163 = vpop.f32.mrb[0].mxu0
  %v164 = vadd.f32 0.0, %v163
  %v165 = vpop.f32.mrb[0].mxu0
  %166 = vmatprep.mubr.f32.mxu0 0.0
  %167 = vmatmul.mubr.f32.gmra.mrb[0].mxu0 %v85
  %v168 = vpop.f32.mrb[0].mxu0
  %v169 = vadd.f32 0.0, %v168
  %v170 = vpop.f32.mrb[0].mxu0
  %171 = vmatprep.mubr.f32.mxu0 0.0
  %172 = vmatmul.mubr.f32.gmra.mrb[0].mxu0 %v85
  %v173 = vpop.f32.mrb[0].mxu0
  %v174 = vadd.f32 0.0, %v173
  %v175 = vpop.f32.mrb[0].mxu0
  %176 = vmatprep.mubr.f32.mxu0 0.0
  %177 = vmatmul.mubr.f32.gmra.mrb[0].mxu0 %v85
  %v178 = vpop.f32.mrb[0].mxu0
  %v179 = vadd.f32 0.0, %v178
  %v180 = vpop.f32.mrb[0].mxu0
  %181 = vmatprep.mubr.f32.mxu0 0.0
  %182 = vmatmul.mubr.f32.gmra.mrb[0].mxu0 %v85
  %v183 = vpop.f32.mrb[0].mxu0
  %v184 = vadd.f32 0.0, %v183
  %v185 = vpop.f32.mrb[0].mxu0
  %186 = vmatprep.mubr.f32.mxu0 0.0
  %187 = vmatmul.mubr.f32.gmra.mrb[0].mxu0 %v85
  %v188 = vpop.f32.mrb[0].mxu0
  %v189 = vadd.f32 0.0, %v188
  %v190 = vpop.f32.mrb[0].mxu0
  %191 = vmatprep.mubr.f32.mxu0 0.0
  %192 = vmatmul.mubr.f32.gmra.mrb[0].mxu0 %v85
  %v193 = vpop.f32.mrb[0].mxu0
  %v194 = vadd.f32 0.0, %v193
  %v195 = vpop.f32.mrb[0].mxu0
  %196 = vmatprep.mubr.f32.mxu0 0.0
  %197 = vmatmul.mubr.f32.gmra.mrb[0].mxu0 %v85
  %v198 = vpop.f32.mrb[0].mxu0
  %v199 = vadd.f32 0.0, %v198
  %v200 = vpop.f32.mrb[0].mxu0
  %201 = vmatprep.mubr.f32.mxu0 0.0
  %202 = vmatmul.mubr.f32.gmra.mrb[0].mxu0 %v85
  %v203 = vpop.f32.mrb[0].mxu0
  %v204 = vadd.f32 0.0, %v203
  %v205 = vpop.f32.mrb[0].mxu0
  %206 = vmatprep.mubr.f32.mxu0 0.0
  %207 = vmatmul.mubr.f32.gmra.mrb[0].mxu0 %v85
  %v208 = vpop.f32.mrb[0].mxu0
  %v209 = vadd.f32 0.0, %v208
  %v210 = vpop.f32.mrb[0].mxu0
  %211 = vmatprep.mubr.f32.mxu0 0.0
  %212 = vmatmul.mubr.f32.gmra.mrb[0].mxu0 %v85
  %v213 = vpop.f32.mrb[0].mxu0
  %v214 = vadd.f32 0.0, %v213
  %v215 = vpop.f32.mrb[0].mxu0
  %216 = vmatprep.mubr.f32.mxu0 0.0
  %217 = vmatmul.mubr.f32.gmra.mrb[0].mxu0 %v85
  %v218 = vpop.f32.mrb[0].mxu0
  %v219 = vadd.f32 0.0, %v218
  %v220 = vpop.f32.mrb[0].mxu0
  %221 = vmatprep.mubr.f32.mxu0 0.0
  %222 = vmatmul.mubr.f32.gmra.mrb[0].mxu0 %v85
  %v223 = vpop.f32.mrb[0].mxu0
  %v224 = vadd.f32 0.0, %v223
  %v225 = vpop.f32.mrb[0].mxu0
  %226 = vmatprep.mubr.f32.mxu0 0.0
  %227 = vmatmul.mubr.f32.gmra.mrb[0].mxu0 %v85
  %v228 = vpop.f32.mrb[0].mxu0
  %v229 = vadd.f32 0.0, %v228
  %v230 = vpop.f32.mrb[0].mxu0
  %231 = vdwg.mxu0
  %v232 = vadd.f32 %v67, %v154
  %v233 = vadd.f32 %v68, %v159
  %v234 = vadd.f32 %v69, %v164
  %v235 = vadd.f32 %v70, %v169
  %v236 = vadd.f32 %v71, %v174
  %v237 = vadd.f32 %v72, %v179
  %v238 = vadd.f32 %v73, %v184
  %v239 = vadd.f32 %v74, %v189
  %v240 = vadd.f32 %v75, %v194
  %v241 = vadd.f32 %v76, %v199
  %v242 = vadd.f32 %v77, %v204
  %v243 = vadd.f32 %v78, %v209
  %v244 = vadd.f32 %v79, %v214
  %v245 = vadd.f32 %v80, %v219
  %v246 = vadd.f32 %v81, %v224
  %v247 = vadd.f32 %v82, %v229
  %v248 = vmul.f32 %v232, %v29
  %v249 = vmul.f32 %v233, %v29
  %v250 = vmul.f32 %v234, %v29
  %v251 = vmul.f32 %v235, %v29
  %v252 = vmul.f32 %v236, %v29
  %v253 = vmul.f32 %v237, %v29
  %v254 = vmul.f32 %v238, %v29
  %v255 = vmul.f32 %v239, %v29
  %v256 = vmul.f32 %v240, %v29
  %v257 = vmul.f32 %v241, %v29
  %v258 = vmul.f32 %v242, %v29
  %v259 = vmul.f32 %v243, %v29
  %v260 = vmul.f32 %v244, %v29
  %v261 = vmul.f32 %v245, %v29
  %v262 = vmul.f32 %v246, %v29
  %v263 = vmul.f32 %v247, %v29
  %v264 = vtanh.pop %v248
  %v265 = vtanh.pop %v249
  %v266 = vtanh.pop %v250
  %v267 = vtanh.pop %v251
  %v268 = vtanh.pop %v252
  %v269 = vtanh.pop %v253
  %v270 = vtanh.pop %v254
  %v271 = vtanh.pop %v255
  %v272 = vtanh.pop %v256
  %v273 = vtanh.pop %v257
  %v274 = vtanh.pop %v258
  %v275 = vtanh.pop %v259
  %v276 = vtanh.pop %v260
  %v277 = vtanh.pop %v261
  %v278 = vtanh.pop %v262
  %v279 = vtanh.pop %v263
  %v280 = vmul.f32 %v264, %v29
  %v281 = vmul.f32 %v265, %v29
  %v282 = vmul.f32 %v266, %v29
  %v283 = vmul.f32 %v267, %v29
  %v284 = vmul.f32 %v268, %v29
  %v285 = vmul.f32 %v269, %v29
  %v286 = vmul.f32 %v270, %v29
  %v287 = vmul.f32 %v271, %v29
  %v288 = vmul.f32 %v272, %v29
  %v289 = vmul.f32 %v273, %v29
  %v290 = vmul.f32 %v274, %v29
  %v291 = vmul.f32 %v275, %v29
  %v292 = vmul.f32 %v276, %v29
  %v293 = vmul.f32 %v277, %v29
  %v294 = vmul.f32 %v278, %v29
  %v295 = vmul.f32 %v279, %v29
  %v296 = vadd.f32 %v280, %v30
  %v297 = vadd.f32 %v281, %v30
  %v298 = vadd.f32 %v282, %v30
  %v299 = vadd.f32 %v283, %v30
  %v300 = vadd.f32 %v284, %v30
  %v301 = vadd.f32 %v285, %v30
  %v302 = vadd.f32 %v286, %v30
  %v303 = vadd.f32 %v287, %v30
  %v304 = vadd.f32 %v288, %v30
  %v305 = vadd.f32 %v289, %v30
  %v306 = vadd.f32 %v290, %v30
  %v307 = vadd.f32 %v291, %v30
  %v308 = vadd.f32 %v292, %v30
  %v309 = vadd.f32 %v293, %v30
  %v310 = vadd.f32 %v294, %v30
  %v311 = vadd.f32 %v295, %v30
  %v312 = vmul.f32 %v296, 0.0
  %v313 = vmul.f32 %v297, 0.0
  %v314 = vmul.f32 %v298, 0.0
  %v315 = vmul.f32 %v299, 0.0
  %v316 = vmul.f32 %v300, 0.0
  %v317 = vmul.f32 %v301, 0.0
  %v318 = vmul.f32 %v302, 0.0
  %v319 = vmul.f32 %v303, 0.0
  %v320 = vmul.f32 %v304, 0.0
  %v321 = vmul.f32 %v305, 0.0
  %v322 = vmul.f32 %v306, 0.0
  %v323 = vmul.f32 %v307, 0.0
  %v324 = vmul.f32 %v308, 0.0
  %v325 = vmul.f32 %v309, 0.0
  %v326 = vmul.f32 %v310, 0.0
  %v327 = vmul.f32 %v311, 0.0
  %344 = vrot.lane.b32.xlu0 %v296, 64
  %v345 = vpop.permute.xlu0 %344
  %346 = vrot.lane.b32.xlu0 %v297, 64
  %v347 = vpop.permute.xlu0 %346
  %348 = vrot.lane.b32.xlu0 %v298, 64
  %v349 = vpop.permute.xlu0 %348
  %350 = vrot.lane.b32.xlu0 %v299, 64
  %v351 = vpop.permute.xlu0 %350
  %352 = vrot.lane.b32.xlu0 %v300, 64
  %v353 = vpop.permute.xlu0 %352
  %354 = vrot.lane.b32.xlu0 %v301, 64
  %v355 = vpop.permute.xlu0 %354
  %356 = vrot.lane.b32.xlu0 %v302, 64
  %v357 = vpop.permute.xlu0 %356
  %358 = vrot.lane.b32.xlu0 %v303, 64
  %v359 = vpop.permute.xlu0 %358
  %360 = vrot.lane.b32.xlu0 %v304, 64
  %v361 = vpop.permute.xlu0 %360
  %362 = vrot.lane.b32.xlu0 %v305, 64
  %v363 = vpop.permute.xlu0 %362
  %364 = vrot.lane.b32.xlu0 %v306, 64
  %v365 = vpop.permute.xlu0 %364
  %366 = vrot.lane.b32.xlu0 %v307, 64
  %v367 = vpop.permute.xlu0 %366
  %368 = vrot.lane.b32.xlu0 %v308, 64
  %v369 = vpop.permute.xlu0 %368
  %370 = vrot.lane.b32.xlu0 %v309, 64
  %v371 = vpop.permute.xlu0 %370
  %372 = vrot.lane.b32.xlu0 %v310, 64
  %v373 = vpop.permute.xlu0 %372
  %374 = vrot.lane.b32.xlu0 %v311, 64
  %v375 = vpop.permute.xlu0 %374
  %v392 = vmul.f32 %v296, %v345
  %v393 = vmul.f32 %v297, %v347
  %v394 = vmul.f32 %v298, %v349
  %v395 = vmul.f32 %v299, %v351
  %v396 = vmul.f32 %v300, %v353
  %v397 = vmul.f32 %v301, %v355
  %v398 = vmul.f32 %v302, %v357
  %v399 = vmul.f32 %v303, %v359
  %v400 = vmul.f32 %v304, %v361
  %v401 = vmul.f32 %v305, %v363
  %v402 = vmul.f32 %v306, %v365
  %v403 = vmul.f32 %v307, %v367
  %v404 = vmul.f32 %v308, %v369
  %v405 = vmul.f32 %v309, %v371
  %v406 = vmul.f32 %v310, %v373
  %v407 = vmul.f32 %v311, %v375
  %424 = vrot.lane.b32.xlu0 %v392, 32
  %v425 = vpop.permute.xlu0 %424
  %426 = vrot.lane.b32.xlu0 %v393, 32
  %v427 = vpop.permute.xlu0 %426
  %428 = vrot.lane.b32.xlu0 %v394, 32
  %v429 = vpop.permute.xlu0 %428
  %430 = vrot.lane.b32.xlu0 %v395, 32
  %v431 = vpop.permute.xlu0 %430
  %432 = vrot.lane.b32.xlu0 %v396, 32
  %v433 = vpop.permute.xlu0 %432
  %434 = vrot.lane.b32.xlu0 %v397, 32
  %v435 = vpop.permute.xlu0 %434
  %436 = vrot.lane.b32.xlu0 %v398, 32
  %v437 = vpop.permute.xlu0 %436
  %438 = vrot.lane.b32.xlu0 %v399, 32
  %v439 = vpop.permute.xlu0 %438
  %440 = vrot.lane.b32.xlu0 %v400, 32
  %v441 = vpop.permute.xlu0 %440
  %442 = vrot.lane.b32.xlu0 %v401, 32
  %v443 = vpop.permute.xlu0 %442
  %444 = vrot.lane.b32.xlu0 %v402, 32
  %v445 = vpop.permute.xlu0 %444
  %446 = vrot.lane.b32.xlu0 %v403, 32
  %v447 = vpop.permute.xlu0 %446
  %448 = vrot.lane.b32.xlu0 %v404, 32
  %v449 = vpop.permute.xlu0 %448
  %450 = vrot.lane.b32.xlu0 %v405, 32
  %v451 = vpop.permute.xlu0 %450
  %452 = vrot.lane.b32.xlu0 %v406, 32
  %v453 = vpop.permute.xlu0 %452
  %454 = vrot.lane.b32.xlu0 %v407, 32
  %v455 = vpop.permute.xlu0 %454
  %v472 = vadd.f32 %v312, %v425
  %v473 = vadd.f32 %v313, %v427
  %v474 = vadd.f32 %v314, %v429
  %v475 = vadd.f32 %v315, %v431
  %v476 = vadd.f32 %v316, %v433
  %v477 = vadd.f32 %v317, %v435
  %v478 = vadd.f32 %v318, %v437
  %v479 = vadd.f32 %v319, %v439
  %v480 = vadd.f32 %v320, %v441
  %v481 = vadd.f32 %v321, %v443
  %v482 = vadd.f32 %v322, %v445
  %v483 = vadd.f32 %v323, %v447
  %v484 = vadd.f32 %v324, %v449
  %v485 = vadd.f32 %v325, %v451
  %v486 = vadd.f32 %v326, %v453
  %v487 = vadd.f32 %v327, %v455
  %v488 = vtanh.pop %v472
  %v489 = vtanh.pop %v473
  %v490 = vtanh.pop %v474
  %v491 = vtanh.pop %v475
  %v492 = vtanh.pop %v476
  %v493 = vtanh.pop %v477
  %v494 = vtanh.pop %v478
  %v495 = vtanh.pop %v479
  %v496 = vtanh.pop %v480
  %v497 = vtanh.pop %v481
  %v498 = vtanh.pop %v482
  %v499 = vtanh.pop %v483
  %v500 = vtanh.pop %v484
  %v501 = vtanh.pop %v485
  %v502 = vtanh.pop %v486
  %v503 = vtanh.pop %v487
  %520 = vrot.lane.b32.xlu0 %v488, 64
  %v521 = vpop.permute.xlu0 %520
  %522 = vrot.lane.b32.xlu0 %v489, 64
  %v523 = vpop.permute.xlu0 %522
  %524 = vrot.lane.b32.xlu0 %v490, 64
  %v525 = vpop.permute.xlu0 %524
  %526 = vrot.lane.b32.xlu0 %v491, 64
  %v527 = vpop.permute.xlu0 %526
  %528 = vrot.lane.b32.xlu0 %v492, 64
  %v529 = vpop.permute.xlu0 %528
  %530 = vrot.lane.b32.xlu0 %v493, 64
  %v531 = vpop.permute.xlu0 %530
  %532 = vrot.lane.b32.xlu0 %v494, 64
  %v533 = vpop.permute.xlu0 %532
  %534 = vrot.lane.b32.xlu0 %v495, 64
  %v535 = vpop.permute.xlu0 %534
  %536 = vrot.lane.b32.xlu0 %v496, 64
  %v537 = vpop.permute.xlu0 %536
  %538 = vrot.lane.b32.xlu0 %v497, 64
  %v539 = vpop.permute.xlu0 %538
  %540 = vrot.lane.b32.xlu0 %v498, 64
  %v541 = vpop.permute.xlu0 %540
  %542 = vrot.lane.b32.xlu0 %v499, 64
  %v543 = vpop.permute.xlu0 %542
  %544 = vrot.lane.b32.xlu0 %v500, 64
  %v545 = vpop.permute.xlu0 %544
  %546 = vrot.lane.b32.xlu0 %v501, 64
  %v547 = vpop.permute.xlu0 %546
  %548 = vrot.lane.b32.xlu0 %v502, 64
  %v549 = vpop.permute.xlu0 %548
  %550 = vrot.lane.b32.xlu0 %v503, 64
  %v551 = vpop.permute.xlu0 %550
  %v568 = vmul.f32 %v296, %v521
  %v569 = vmul.f32 %v297, %v523
  %v570 = vmul.f32 %v298, %v525
  %v571 = vmul.f32 %v299, %v527
  %v572 = vmul.f32 %v300, %v529
  %v573 = vmul.f32 %v301, %v531
  %v574 = vmul.f32 %v302, %v533
  %v575 = vmul.f32 %v303, %v535
  %v576 = vmul.f32 %v304, %v537
  %v577 = vmul.f32 %v305, %v539
  %v578 = vmul.f32 %v306, %v541
  %v579 = vmul.f32 %v307, %v543
  %v580 = vmul.f32 %v308, %v545
  %v581 = vmul.f32 %v309, %v547
  %v582 = vmul.f32 %v310, %v549
  %v583 = vmul.f32 %v311, %v551
  %v584 = vld [vmem:[#allocation2] sm:$0xff]
  %v585 = vld [vmem:[#allocation2 + $0x8] sm:$0xff]
  %v586 = vld [vmem:[#allocation2 + $0x10] sm:$0xff]
  %v587 = vld [vmem:[#allocation2 + $0x18] sm:$0xff]
  %v588 = vld [vmem:[#allocation2 + $0x20] sm:$0xff]
  %v589 = vld [vmem:[#allocation2 + $0x28] sm:$0xff]
  %v590 = vld [vmem:[#allocation2 + $0x30] sm:$0xff]
  %v591 = vld [vmem:[#allocation2 + $0x38] sm:$0xff]
  %v592 = vld [vmem:[#allocation2 + $0x40] sm:$0xff]
  %v593 = vld [vmem:[#allocation2 + $0x48] sm:$0xff]
  %v594 = vld [vmem:[#allocation2 + $0x50] sm:$0xff]
  %v595 = vld [vmem:[#allocation2 + $0x58] sm:$0xff]
  %v596 = vld [vmem:[#allocation2 + $0x60] sm:$0xff]
  %v597 = vld [vmem:[#allocation2 + $0x68] sm:$0xff]
  %v598 = vld [vmem:[#allocation2 + $0x70] sm:$0xff]
  %v599 = vld [vmem:[#allocation2 + $0x78] sm:$0xff]
  %v600 = vld [vmem:[#allocation2 + $0x80] sm:$0xff]
  %v601 = vld [vmem:[#allocation2 + $0x88] sm:$0xff]
  %v602 = vld [vmem:[#allocation2 + $0x90] sm:$0xff]
  %v603 = vld [vmem:[#allocation2 + $0x98] sm:$0xff]
  %v604 = vld [vmem:[#allocation2 + $0xa0] sm:$0xff]
  %v605 = vld [vmem:[#allocation2 + $0xa8] sm:$0xff]
  %v606 = vld [vmem:[#allocation2 + $0xb0] sm:$0xff]
  %v607 = vld [vmem:[#allocation2 + $0xb8] sm:$0xff]
  %v608 = vld [vmem:[#allocation2 + $0xc0] sm:$0xff]
  %v609 = vld [vmem:[#allocation2 + $0xc8] sm:$0xff]
  %v610 = vld [vmem:[#allocation2 + $0xd0] sm:$0xff]
  %v611 = vld [vmem:[#allocation2 + $0xd8] sm:$0xff]
  %v612 = vld [vmem:[#allocation2 + $0xe0] sm:$0xff]
  %v613 = vld [vmem:[#allocation2 + $0xe8] sm:$0xff]
  %v614 = vld [vmem:[#allocation2 + $0xf0] sm:$0xff]
  %v615 = vld [vmem:[#allocation2 + $0xf8] sm:$0xff]
  %v616 = vpack.c.bf16 %v569, %v568
  %v617 = vpack.c.bf16 %v571, %v570
  %v618 = vpack.c.bf16 %v573, %v572
  %v619 = vpack.c.bf16 %v575, %v574
  %v620 = vpack.c.bf16 %v577, %v576
  %v621 = vpack.c.bf16 %v579, %v578
  %v622 = vpack.c.bf16 %v581, %v580
  %v623 = vpack.c.bf16 %v583, %v582
  %v624 = vld [vmem:[%s2] sm:$0xff]
  %v625 = vld [vmem:[%s2 + $0x8] sm:$0xff]
  %v626 = vld [vmem:[%s2 + $0x10] sm:$0xff]
  %v627 = vld [vmem:[%s2 + $0x18] sm:$0xff]
  %636 = vrot.lane.b32.xlu0 %v616, 32
  %v637 = vpop.permute.xlu0 %636
  %638 = vrot.lane.b32.xlu0 %v617, 32
  %v639 = vpop.permute.xlu0 %638
  %640 = vrot.lane.b32.xlu0 %v618, 32
  %v641 = vpop.permute.xlu0 %640
  %642 = vrot.lane.b32.xlu0 %v619, 32
  %v643 = vpop.permute.xlu0 %642
  %644 = vrot.lane.b32.xlu0 %v620, 32
  %v645 = vpop.permute.xlu0 %644
  %646 = vrot.lane.b32.xlu0 %v621, 32
  %v647 = vpop.permute.xlu0 %646
  %648 = vrot.lane.b32.xlu0 %v622, 32
  %v649 = vpop.permute.xlu0 %648
  %650 = vrot.lane.b32.xlu0 %v623, 32
  %v651 = vpop.permute.xlu0 %650
  %v656 = vunpack.c.l.b16 %v624
  %v657 = vunpack.c.h.b16 %v624
  %v658 = vunpack.c.l.b16 %v625
  %v659 = vunpack.c.h.b16 %v625
  %v660 = vunpack.c.l.b16 %v626
  %v661 = vunpack.c.h.b16 %v626
  %v662 = vunpack.c.l.b16 %v627
  %v663 = vunpack.c.h.b16 %v627
  %v664 = vpack.c.b16 %v658, %v656
  %v665 = vpack.c.b16 %v659, %v657
  %v666 = vpack.c.b16 %v662, %v660
  %v667 = vpack.c.b16 %v663, %v661
  %v673 = vsel %vm83, %v637, 0
  %v676 = vsel %vm83, %v639, 0
  %v679 = vsel %vm83, %v641, 0
  %v682 = vsel %vm83, %v643, 0
  %v685 = vsel %vm83, %v645, 0
  %v688 = vsel %vm83, %v647, 0
  %v691 = vsel %vm83, %v649, 0
  %v694 = vsel %vm83, %v651, 0
  %696 = vmatprep.subr.bf16.mxu0 %v665
  %697 = vmatpush1.bf16.msra.mxu0 %v664
  %698 = vmatprep.subr.bf16.mxu0 %v667
  %699 = vmatpush1.bf16.msra.mxu0 %v666
  %700 = vmatprep.subr.bf16.mxu0 0
  %701 = vmatpush1.bf16.msra.mxu0 0
  %702 = vmatprep.subr.bf16.mxu0 0
  %703 = vmatpush1.bf16.msra.mxu0 0
  %704 = vmatprep.subr.bf16.mxu0 0
  %705 = vmatpush1.bf16.msra.mxu0 0
  %706 = vmatprep.subr.bf16.mxu0 0
  %707 = vmatpush1.bf16.msra.mxu0 0
  %708 = vmatprep.subr.bf16.mxu0 0
  %709 = vmatpush1.bf16.msra.mxu0 0
  %710 = vmatprep.subr.bf16.mxu0 0
  %711 = vmatpush1.bf16.msra.mxu0 0
  %712 = vmatprep.subr.bf16.mxu0 0
  %713 = vmatpush1.bf16.msra.mxu0 0
  %714 = vmatprep.subr.bf16.mxu0 0
  %715 = vmatpush1.bf16.msra.mxu0 0
  %716 = vmatprep.subr.bf16.mxu0 0
  %717 = vmatpush1.bf16.msra.mxu0 0
  %718 = vmatprep.subr.bf16.mxu0 0
  %719 = vmatpush1.bf16.msra.mxu0 0
  %720 = vmatprep.subr.bf16.mxu0 0
  %721 = vmatpush1.bf16.msra.mxu0 0
  %722 = vmatprep.subr.bf16.mxu0 0
  %723 = vmatpush1.bf16.msra.mxu0 0
  %724 = vmatprep.subr.bf16.mxu0 0
  %725 = vmatpush1.bf16.msra.mxu0 0
  %726 = vmatprep.subr.bf16.mxu0 0
  %727 = vmatpush1.bf16.msra.mxu0 0
  %728 = vmatprep.mubr.bf16.mxu0 0
  %729 = vmatmul.mubr.bf16.gmra.mrb[0].mxu0 %v673
  %v730 = vpop.f32.mrb[0].mxu0
  %v731 = vadd.f32 0.0, %v730
  %v732 = vpop.f32.mrb[0].mxu0
  %v733 = vadd.f32 0.0, %v732
  %v734 = vpop.f32.mrb[0].mxu0
  %v735 = vadd.f32 0.0, %v734
  %v736 = vpop.f32.mrb[0].mxu0
  %v737 = vadd.f32 0.0, %v736
  %738 = vmatprep.mubr.bf16.mxu0 0
  %739 = vmatmul.mubr.bf16.gmra.mrb[0].mxu0 %v676
  %v740 = vpop.f32.mrb[0].mxu0
  %v741 = vadd.f32 0.0, %v740
  %v742 = vpop.f32.mrb[0].mxu0
  %v743 = vadd.f32 0.0, %v742
  %v744 = vpop.f32.mrb[0].mxu0
  %v745 = vadd.f32 0.0, %v744
  %v746 = vpop.f32.mrb[0].mxu0
  %v747 = vadd.f32 0.0, %v746
  %748 = vmatprep.mubr.bf16.mxu0 0
  %749 = vmatmul.mubr.bf16.gmra.mrb[0].mxu0 %v679
  %v750 = vpop.f32.mrb[0].mxu0
  %v751 = vadd.f32 0.0, %v750
  %v752 = vpop.f32.mrb[0].mxu0
  %v753 = vadd.f32 0.0, %v752
  %v754 = vpop.f32.mrb[0].mxu0
  %v755 = vadd.f32 0.0, %v754
  %v756 = vpop.f32.mrb[0].mxu0
  %v757 = vadd.f32 0.0, %v756
  %758 = vmatprep.mubr.bf16.mxu0 0
  %759 = vmatmul.mubr.bf16.gmra.mrb[0].mxu0 %v682
  %v760 = vpop.f32.mrb[0].mxu0
  %v761 = vadd.f32 0.0, %v760
  %v762 = vpop.f32.mrb[0].mxu0
  %v763 = vadd.f32 0.0, %v762
  %v764 = vpop.f32.mrb[0].mxu0
  %v765 = vadd.f32 0.0, %v764
  %v766 = vpop.f32.mrb[0].mxu0
  %v767 = vadd.f32 0.0, %v766
  %768 = vmatprep.mubr.bf16.mxu0 0
  %769 = vmatmul.mubr.bf16.gmra.mrb[0].mxu0 %v685
  %v770 = vpop.f32.mrb[0].mxu0
  %v771 = vadd.f32 0.0, %v770
  %v772 = vpop.f32.mrb[0].mxu0
  %v773 = vadd.f32 0.0, %v772
  %v774 = vpop.f32.mrb[0].mxu0
  %v775 = vadd.f32 0.0, %v774
  %v776 = vpop.f32.mrb[0].mxu0
  %v777 = vadd.f32 0.0, %v776
  %778 = vmatprep.mubr.bf16.mxu0 0
  %779 = vmatmul.mubr.bf16.gmra.mrb[0].mxu0 %v688
  %v780 = vpop.f32.mrb[0].mxu0
  %v781 = vadd.f32 0.0, %v780
  %v782 = vpop.f32.mrb[0].mxu0
  %v783 = vadd.f32 0.0, %v782
  %v784 = vpop.f32.mrb[0].mxu0
  %v785 = vadd.f32 0.0, %v784
  %v786 = vpop.f32.mrb[0].mxu0
  %v787 = vadd.f32 0.0, %v786
  %788 = vmatprep.mubr.bf16.mxu0 0
  %789 = vmatmul.mubr.bf16.gmra.mrb[0].mxu0 %v691
  %v790 = vpop.f32.mrb[0].mxu0
  %v791 = vadd.f32 0.0, %v790
  %v792 = vpop.f32.mrb[0].mxu0
  %v793 = vadd.f32 0.0, %v792
  %v794 = vpop.f32.mrb[0].mxu0
  %v795 = vadd.f32 0.0, %v794
  %v796 = vpop.f32.mrb[0].mxu0
  %v797 = vadd.f32 0.0, %v796
  %798 = vmatprep.mubr.bf16.mxu0 0
  %799 = vmatmul.mubr.bf16.gmra.mrb[0].mxu0 %v694
  %v800 = vpop.f32.mrb[0].mxu0
  %v801 = vadd.f32 0.0, %v800
  %v802 = vpop.f32.mrb[0].mxu0
  %v803 = vadd.f32 0.0, %v802
  %v804 = vpop.f32.mrb[0].mxu0
  %v805 = vadd.f32 0.0, %v804
  %v806 = vpop.f32.mrb[0].mxu0
  %v807 = vadd.f32 0.0, %v806
  %808 = vdwg.mxu0
  %v809 = vadd.f32 %v584, %v731
  %v810 = vadd.f32 %v585, %v733
  %v811 = vadd.f32 %v586, %v735
  %v812 = vadd.f32 %v587, %v737
  %v813 = vadd.f32 %v588, %v741
  %v814 = vadd.f32 %v589, %v743
  %v815 = vadd.f32 %v590, %v745
  %v816 = vadd.f32 %v591, %v747
  %v817 = vadd.f32 %v592, %v751
  %v818 = vadd.f32 %v593, %v753
  %v819 = vadd.f32 %v594, %v755
  %v820 = vadd.f32 %v595, %v757
  %v821 = vadd.f32 %v596, %v761
  %v822 = vadd.f32 %v597, %v763
  %v823 = vadd.f32 %v598, %v765
  %v824 = vadd.f32 %v599, %v767
  %v825 = vadd.f32 %v600, %v771
  %v826 = vadd.f32 %v601, %v773
  %v827 = vadd.f32 %v602, %v775
  %v828 = vadd.f32 %v603, %v777
  %v829 = vadd.f32 %v604, %v781
  %v830 = vadd.f32 %v605, %v783
  %v831 = vadd.f32 %v606, %v785
  %v832 = vadd.f32 %v607, %v787
  %v833 = vadd.f32 %v608, %v791
  %v834 = vadd.f32 %v609, %v793
  %v835 = vadd.f32 %v610, %v795
  %v836 = vadd.f32 %v611, %v797
  %v837 = vadd.f32 %v612, %v801
  %v838 = vadd.f32 %v613, %v803
  %v839 = vadd.f32 %v614, %v805
  %v840 = vadd.f32 %v615, %v807
  %841 = vst [vmem:[#allocation2] sm:$0xff] %v809
  %842 = vst [vmem:[#allocation2 + $0x8] sm:$0xff] %v810
  %843 = vst [vmem:[#allocation2 + $0x10] sm:$0xff] %v811
  %844 = vst [vmem:[#allocation2 + $0x18] sm:$0xff] %v812
  %845 = vst [vmem:[#allocation2 + $0x20] sm:$0xff] %v813
  %846 = vst [vmem:[#allocation2 + $0x28] sm:$0xff] %v814
  %847 = vst [vmem:[#allocation2 + $0x30] sm:$0xff] %v815
  %848 = vst [vmem:[#allocation2 + $0x38] sm:$0xff] %v816
  %849 = vst [vmem:[#allocation2 + $0x40] sm:$0xff] %v817
  %850 = vst [vmem:[#allocation2 + $0x48] sm:$0xff] %v818
  %851 = vst [vmem:[#allocation2 + $0x50] sm:$0xff] %v819
  %852 = vst [vmem:[#allocation2 + $0x58] sm:$0xff] %v820
  %853 = vst [vmem:[#allocation2 + $0x60] sm:$0xff] %v821
  %854 = vst [vmem:[#allocation2 + $0x68] sm:$0xff] %v822
  %855 = vst [vmem:[#allocation2 + $0x70] sm:$0xff] %v823
  %856 = vst [vmem:[#allocation2 + $0x78] sm:$0xff] %v824
  %857 = vst [vmem:[#allocation2 + $0x80] sm:$0xff] %v825
  %858 = vst [vmem:[#allocation2 + $0x88] sm:$0xff] %v826
  %859 = vst [vmem:[#allocation2 + $0x90] sm:$0xff] %v827
  %860 = vst [vmem:[#allocation2 + $0x98] sm:$0xff] %v828
  %861 = vst [vmem:[#allocation2 + $0xa0] sm:$0xff] %v829
  %862 = vst [vmem:[#allocation2 + $0xa8] sm:$0xff] %v830
  %863 = vst [vmem:[#allocation2 + $0xb0] sm:$0xff] %v831
  %864 = vst [vmem:[#allocation2 + $0xb8] sm:$0xff] %v832
  %865 = vst [vmem:[#allocation2 + $0xc0] sm:$0xff] %v833
  %866 = vst [vmem:[#allocation2 + $0xc8] sm:$0xff] %v834
  %867 = vst [vmem:[#allocation2 + $0xd0] sm:$0xff] %v835
  %868 = vst [vmem:[#allocation2 + $0xd8] sm:$0xff] %v836
  %869 = vst [vmem:[#allocation2 + $0xe0] sm:$0xff] %v837
  %870 = vst [vmem:[#allocation2 + $0xe8] sm:$0xff] %v838
  %871 = vst [vmem:[#allocation2 + $0xf0] sm:$0xff] %v839
  %872 = vst [vmem:[#allocation2 + $0xf8] sm:$0xff] %v840
  %s873 = scalar_lea.vmem %s0, 128
  %v874 = vld [vmem:[%s873] sm:$0xff]
  %v875 = vld [vmem:[%s873 + $0x8] sm:$0xff]
  %v876 = vld [vmem:[%s873 + $0x10] sm:$0xff]
  %v877 = vld [vmem:[%s873 + $0x18] sm:$0xff]
  %v878 = vld [vmem:[%s873 + $0x20] sm:$0xff]
  %v879 = vld [vmem:[%s873 + $0x28] sm:$0xff]
  %v880 = vld [vmem:[%s873 + $0x30] sm:$0xff]
  %v881 = vld [vmem:[%s873 + $0x38] sm:$0xff]
  %v882 = vld [vmem:[%s873 + $0x40] sm:$0xff]
  %v883 = vld [vmem:[%s873 + $0x48] sm:$0xff]
  %v884 = vld [vmem:[%s873 + $0x50] sm:$0xff]
  %v885 = vld [vmem:[%s873 + $0x58] sm:$0xff]
  %v886 = vld [vmem:[%s873 + $0x60] sm:$0xff]
  %v887 = vld [vmem:[%s873 + $0x68] sm:$0xff]
  %v888 = vld [vmem:[%s873 + $0x70] sm:$0xff]
  %v889 = vld [vmem:[%s873 + $0x78] sm:$0xff]
  %906 = vrot.lane.b32.xlu0 %v568, 32
  %v907 = vpop.permute.xlu0 %906
  %908 = vrot.lane.b32.xlu0 %v569, 32
  %v909 = vpop.permute.xlu0 %908
  %910 = vrot.lane.b32.xlu0 %v570, 32
  %v911 = vpop.permute.xlu0 %910
  %912 = vrot.lane.b32.xlu0 %v571, 32
  %v913 = vpop.permute.xlu0 %912
  %914 = vrot.lane.b32.xlu0 %v572, 32
  %v915 = vpop.permute.xlu0 %914
  %916 = vrot.lane.b32.xlu0 %v573, 32
  %v917 = vpop.permute.xlu0 %916
  %918 = vrot.lane.b32.xlu0 %v574, 32
  %v919 = vpop.permute.xlu0 %918
  %920 = vrot.lane.b32.xlu0 %v575, 32
  %v921 = vpop.permute.xlu0 %920
  %922 = vrot.lane.b32.xlu0 %v576, 32
  %v923 = vpop.permute.xlu0 %922
  %924 = vrot.lane.b32.xlu0 %v577, 32
  %v925 = vpop.permute.xlu0 %924
  %926 = vrot.lane.b32.xlu0 %v578, 32
  %v927 = vpop.permute.xlu0 %926
  %928 = vrot.lane.b32.xlu0 %v579, 32
  %v929 = vpop.permute.xlu0 %928
  %930 = vrot.lane.b32.xlu0 %v580, 32
  %v931 = vpop.permute.xlu0 %930
  %932 = vrot.lane.b32.xlu0 %v581, 32
  %v933 = vpop.permute.xlu0 %932
  %934 = vrot.lane.b32.xlu0 %v582, 32
  %v935 = vpop.permute.xlu0 %934
  %936 = vrot.lane.b32.xlu0 %v583, 32
  %v937 = vpop.permute.xlu0 %936
  %v938 = vsel %vm83, %v907, 0
  %v940 = vsel %vm83, %v909, 0
  %v942 = vsel %vm83, %v911, 0
  %v944 = vsel %vm83, %v913, 0
  %v946 = vsel %vm83, %v915, 0
  %v948 = vsel %vm83, %v917, 0
  %v950 = vsel %vm83, %v919, 0
  %v952 = vsel %vm83, %v921, 0
  %v954 = vsel %vm83, %v923, 0
  %v956 = vsel %vm83, %v925, 0
  %v958 = vsel %vm83, %v927, 0
  %v960 = vsel %vm83, %v929, 0
  %v962 = vsel %vm83, %v931, 0
  %v964 = vsel %vm83, %v933, 0
  %v966 = vsel %vm83, %v935, 0
  %v968 = vsel %vm83, %v937, 0
  %970 = vmatprep.subr.mxu0 0.0
  %971 = vmatpush1.msra.mxu0 %v31
  %972 = vmatprep.subr.mxu0 0.0
  %973 = vmatpush1.msra.mxu0 %v32
  %974 = vmatprep.subr.mxu0 0.0
  %975 = vmatpush1.msra.mxu0 %v33
  %976 = vmatprep.subr.mxu0 0.0
  %977 = vmatpush1.msra.mxu0 %v34
  %978 = vmatprep.subr.mxu0 0.0
  %979 = vmatpush1.msra.mxu0 0.0
  %980 = vmatprep.subr.mxu0 0.0
  %981 = vmatpush1.msra.mxu0 0.0
  %982 = vmatprep.subr.mxu0 0.0
  %983 = vmatpush1.msra.mxu0 0.0
  %984 = vmatprep.subr.mxu0 0.0
  %985 = vmatpush1.msra.mxu0 0.0
  %986 = vmatprep.subr.mxu0 0.0
  %987 = vmatpush1.msra.mxu0 0.0
  %988 = vmatprep.subr.mxu0 0.0
  %989 = vmatpush1.msra.mxu0 0.0
  %990 = vmatprep.subr.mxu0 0.0
  %991 = vmatpush1.msra.mxu0 0.0
  %992 = vmatprep.subr.mxu0 0.0
  %993 = vmatpush1.msra.mxu0 0.0
  %994 = vmatprep.subr.mxu0 0.0
  %995 = vmatpush1.msra.mxu0 0.0
  %996 = vmatprep.subr.mxu0 0.0
  %997 = vmatpush1.msra.mxu0 0.0
  %998 = vmatprep.subr.mxu0 0.0
  %999 = vmatpush1.msra.mxu0 0.0
  %1000 = vmatprep.subr.mxu0 0.0
  %1001 = vmatpush1.msra.mxu0 0.0
  %1002 = vmatprep.subr.mxu0 0.0
  %1003 = vmatpush1.msra.mxu0 0.0
  %1004 = vmatprep.subr.mxu0 0.0
  %1005 = vmatpush1.msra.mxu0 0.0
  %1006 = vmatprep.subr.mxu0 0.0
  %1007 = vmatpush1.msra.mxu0 0.0
  %1008 = vmatprep.subr.mxu0 0.0
  %1009 = vmatpush1.msra.mxu0 0.0
  %1010 = vmatprep.subr.mxu0 0.0
  %1011 = vmatpush1.msra.mxu0 0.0
  %1012 = vmatprep.subr.mxu0 0.0
  %1013 = vmatpush1.msra.mxu0 0.0
  %1014 = vmatprep.subr.mxu0 0.0
  %1015 = vmatpush1.msra.mxu0 0.0
  %1016 = vmatprep.subr.mxu0 0.0
  %1017 = vmatpush1.msra.mxu0 0.0
  %1018 = vmatprep.subr.mxu0 0.0
  %1019 = vmatpush1.msra.mxu0 0.0
  %1020 = vmatprep.subr.mxu0 0.0
  %1021 = vmatpush1.msra.mxu0 0.0
  %1022 = vmatprep.subr.mxu0 0.0
  %1023 = vmatpush1.msra.mxu0 0.0
  %1024 = vmatprep.subr.mxu0 0.0
  %1025 = vmatpush1.msra.mxu0 0.0
  %1026 = vmatprep.subr.mxu0 0.0
  %1027 = vmatpush1.msra.mxu0 0.0
  %1028 = vmatprep.subr.mxu0 0.0
  %1029 = vmatpush1.msra.mxu0 0.0
  %1030 = vmatprep.subr.mxu0 0.0
  %1031 = vmatpush1.msra.mxu0 0.0
  %1032 = vmatprep.subr.mxu0 0.0
  %1033 = vmatpush1.msra.mxu0 0.0
  %1034 = vmatprep.mubr.f32.mxu0 0.0
  %1035 = vmatmul.mubr.f32.gmra.mrb[0].mxu0 %v938
  %v1036 = vpop.f32.mrb[0].mxu0
  %v1037 = vadd.f32 0.0, %v1036
  %v1038 = vpop.f32.mrb[0].mxu0
  %1039 = vmatprep.mubr.f32.mxu0 0.0
  %1040 = vmatmul.mubr.f32.gmra.mrb[0].mxu0 %v940
  %v1041 = vpop.f32.mrb[0].mxu0
  %v1042 = vadd.f32 0.0, %v1041
  %v1043 = vpop.f32.mrb[0].mxu0
  %1044 = vmatprep.mubr.f32.mxu0 0.0
  %1045 = vmatmul.mubr.f32.gmra.mrb[0].mxu0 %v942
  %v1046 = vpop.f32.mrb[0].mxu0
  %v1047 = vadd.f32 0.0, %v1046
  %v1048 = vpop.f32.mrb[0].mxu0
  %1049 = vmatprep.mubr.f32.mxu0 0.0
  %1050 = vmatmul.mubr.f32.gmra.mrb[0].mxu0 %v944
  %v1051 = vpop.f32.mrb[0].mxu0
  %v1052 = vadd.f32 0.0, %v1051
  %v1053 = vpop.f32.mrb[0].mxu0
  %1054 = vmatprep.mubr.f32.mxu0 0.0
  %1055 = vmatmul.mubr.f32.gmra.mrb[0].mxu0 %v946
  %v1056 = vpop.f32.mrb[0].mxu0
  %v1057 = vadd.f32 0.0, %v1056
  %v1058 = vpop.f32.mrb[0].mxu0
  %1059 = vmatprep.mubr.f32.mxu0 0.0
  %1060 = vmatmul.mubr.f32.gmra.mrb[0].mxu0 %v948
  %v1061 = vpop.f32.mrb[0].mxu0
  %v1062 = vadd.f32 0.0, %v1061
  %v1063 = vpop.f32.mrb[0].mxu0
  %1064 = vmatprep.mubr.f32.mxu0 0.0
  %1065 = vmatmul.mubr.f32.gmra.mrb[0].mxu0 %v950
  %v1066 = vpop.f32.mrb[0].mxu0
  %v1067 = vadd.f32 0.0, %v1066
  %v1068 = vpop.f32.mrb[0].mxu0
  %1069 = vmatprep.mubr.f32.mxu0 0.0
  %1070 = vmatmul.mubr.f32.gmra.mrb[0].mxu0 %v952
  %v1071 = vpop.f32.mrb[0].mxu0
  %v1072 = vadd.f32 0.0, %v1071
  %v1073 = vpop.f32.mrb[0].mxu0
  %1074 = vmatprep.mubr.f32.mxu0 0.0
  %1075 = vmatmul.mubr.f32.gmra.mrb[0].mxu0 %v954
  %v1076 = vpop.f32.mrb[0].mxu0
  %v1077 = vadd.f32 0.0, %v1076
  %v1078 = vpop.f32.mrb[0].mxu0
  %1079 = vmatprep.mubr.f32.mxu0 0.0
  %1080 = vmatmul.mubr.f32.gmra.mrb[0].mxu0 %v956
  %v1081 = vpop.f32.mrb[0].mxu0
  %v1082 = vadd.f32 0.0, %v1081
  %v1083 = vpop.f32.mrb[0].mxu0
  %1084 = vmatprep.mubr.f32.mxu0 0.0
  %1085 = vmatmul.mubr.f32.gmra.mrb[0].mxu0 %v958
  %v1086 = vpop.f32.mrb[0].mxu0
  %v1087 = vadd.f32 0.0, %v1086
  %v1088 = vpop.f32.mrb[0].mxu0
  %1089 = vmatprep.mubr.f32.mxu0 0.0
  %1090 = vmatmul.mubr.f32.gmra.mrb[0].mxu0 %v960
  %v1091 = vpop.f32.mrb[0].mxu0
  %v1092 = vadd.f32 0.0, %v1091
  %v1093 = vpop.f32.mrb[0].mxu0
  %1094 = vmatprep.mubr.f32.mxu0 0.0
  %1095 = vmatmul.mubr.f32.gmra.mrb[0].mxu0 %v962
  %v1096 = vpop.f32.mrb[0].mxu0
  %v1097 = vadd.f32 0.0, %v1096
  %v1098 = vpop.f32.mrb[0].mxu0
  %1099 = vmatprep.mubr.f32.mxu0 0.0
  %1100 = vmatmul.mubr.f32.gmra.mrb[0].mxu0 %v964
  %v1101 = vpop.f32.mrb[0].mxu0
  %v1102 = vadd.f32 0.0, %v1101
  %v1103 = vpop.f32.mrb[0].mxu0
  %1104 = vmatprep.mubr.f32.mxu0 0.0
  %1105 = vmatmul.mubr.f32.gmra.mrb[0].mxu0 %v966
  %v1106 = vpop.f32.mrb[0].mxu0
  %v1107 = vadd.f32 0.0, %v1106
  %v1108 = vpop.f32.mrb[0].mxu0
  %1109 = vmatprep.mubr.f32.mxu0 0.0
  %1110 = vmatmul.mubr.f32.gmra.mrb[0].mxu0 %v968
  %v1111 = vpop.f32.mrb[0].mxu0
  %v1112 = vadd.f32 0.0, %v1111
  %v1113 = vpop.f32.mrb[0].mxu0
  %1114 = vdwg.mxu0
  %v1115 = vadd.f32 %v874, %v1037
  %v1116 = vadd.f32 %v875, %v1042
  %v1117 = vadd.f32 %v876, %v1047
  %v1118 = vadd.f32 %v877, %v1052
  %v1119 = vadd.f32 %v878, %v1057
  %v1120 = vadd.f32 %v879, %v1062
  %v1121 = vadd.f32 %v880, %v1067
  %v1122 = vadd.f32 %v881, %v1072
  %v1123 = vadd.f32 %v882, %v1077
  %v1124 = vadd.f32 %v883, %v1082
  %v1125 = vadd.f32 %v884, %v1087
  %v1126 = vadd.f32 %v885, %v1092
  %v1127 = vadd.f32 %v886, %v1097
  %v1128 = vadd.f32 %v887, %v1102
  %v1129 = vadd.f32 %v888, %v1107
  %v1130 = vadd.f32 %v889, %v1112
  %v1131 = vmul.f32 %v1115, %v29
  %v1132 = vmul.f32 %v1116, %v29
  %v1133 = vmul.f32 %v1117, %v29
  %v1134 = vmul.f32 %v1118, %v29
  %v1135 = vmul.f32 %v1119, %v29
  %v1136 = vmul.f32 %v1120, %v29
  %v1137 = vmul.f32 %v1121, %v29
  %v1138 = vmul.f32 %v1122, %v29
  %v1139 = vmul.f32 %v1123, %v29
  %v1140 = vmul.f32 %v1124, %v29
  %v1141 = vmul.f32 %v1125, %v29
  %v1142 = vmul.f32 %v1126, %v29
  %v1143 = vmul.f32 %v1127, %v29
  %v1144 = vmul.f32 %v1128, %v29
  %v1145 = vmul.f32 %v1129, %v29
  %v1146 = vmul.f32 %v1130, %v29
  %v1147 = vtanh.pop %v1131
  %v1148 = vtanh.pop %v1132
  %v1149 = vtanh.pop %v1133
  %v1150 = vtanh.pop %v1134
  %v1151 = vtanh.pop %v1135
  %v1152 = vtanh.pop %v1136
  %v1153 = vtanh.pop %v1137
  %v1154 = vtanh.pop %v1138
  %v1155 = vtanh.pop %v1139
  %v1156 = vtanh.pop %v1140
  %v1157 = vtanh.pop %v1141
  %v1158 = vtanh.pop %v1142
  %v1159 = vtanh.pop %v1143
  %v1160 = vtanh.pop %v1144
  %v1161 = vtanh.pop %v1145
  %v1162 = vtanh.pop %v1146
  %v1163 = vmul.f32 %v1147, %v29
  %v1164 = vmul.f32 %v1148, %v29
  %v1165 = vmul.f32 %v1149, %v29
  %v1166 = vmul.f32 %v1150, %v29
  %v1167 = vmul.f32 %v1151, %v29
  %v1168 = vmul.f32 %v1152, %v29
  %v1169 = vmul.f32 %v1153, %v29
  %v1170 = vmul.f32 %v1154, %v29
  %v1171 = vmul.f32 %v1155, %v29
  %v1172 = vmul.f32 %v1156, %v29
  %v1173 = vmul.f32 %v1157, %v29
  %v1174 = vmul.f32 %v1158, %v29
  %v1175 = vmul.f32 %v1159, %v29
  %v1176 = vmul.f32 %v1160, %v29
  %v1177 = vmul.f32 %v1161, %v29
  %v1178 = vmul.f32 %v1162, %v29
  %v1179 = vadd.f32 %v1163, %v30
  %v1180 = vadd.f32 %v1164, %v30
  %v1181 = vadd.f32 %v1165, %v30
  %v1182 = vadd.f32 %v1166, %v30
  %v1183 = vadd.f32 %v1167, %v30
  %v1184 = vadd.f32 %v1168, %v30
  %v1185 = vadd.f32 %v1169, %v30
  %v1186 = vadd.f32 %v1170, %v30
  %v1187 = vadd.f32 %v1171, %v30
  %v1188 = vadd.f32 %v1172, %v30
  %v1189 = vadd.f32 %v1173, %v30
  %v1190 = vadd.f32 %v1174, %v30
  %v1191 = vadd.f32 %v1175, %v30
  %v1192 = vadd.f32 %v1176, %v30
  %v1193 = vadd.f32 %v1177, %v30
  %v1194 = vadd.f32 %v1178, %v30
  %v1195 = vmul.f32 %v1179, %v472
  %v1196 = vmul.f32 %v1180, %v473
  %v1197 = vmul.f32 %v1181, %v474
  %v1198 = vmul.f32 %v1182, %v475
  %v1199 = vmul.f32 %v1183, %v476
  %v1200 = vmul.f32 %v1184, %v477
  %v1201 = vmul.f32 %v1185, %v478
  %v1202 = vmul.f32 %v1186, %v479
  %v1203 = vmul.f32 %v1187, %v480
  %v1204 = vmul.f32 %v1188, %v481
  %v1205 = vmul.f32 %v1189, %v482
  %v1206 = vmul.f32 %v1190, %v483
  %v1207 = vmul.f32 %v1191, %v484
  %v1208 = vmul.f32 %v1192, %v485
  %v1209 = vmul.f32 %v1193, %v486
  %v1210 = vmul.f32 %v1194, %v487
  %1227 = vrot.lane.b32.xlu0 %v1179, 64
  %v1228 = vpop.permute.xlu0 %1227
  %1229 = vrot.lane.b32.xlu0 %v1180, 64
  %v1230 = vpop.permute.xlu0 %1229
  %1231 = vrot.lane.b32.xlu0 %v1181, 64
  %v1232 = vpop.permute.xlu0 %1231
  %1233 = vrot.lane.b32.xlu0 %v1182, 64
  %v1234 = vpop.permute.xlu0 %1233
  %1235 = vrot.lane.b32.xlu0 %v1183, 64
  %v1236 = vpop.permute.xlu0 %1235
  %1237 = vrot.lane.b32.xlu0 %v1184, 64
  %v1238 = vpop.permute.xlu0 %1237
  %1239 = vrot.lane.b32.xlu0 %v1185, 64
  %v1240 = vpop.permute.xlu0 %1239
  %1241 = vrot.lane.b32.xlu0 %v1186, 64
  %v1242 = vpop.permute.xlu0 %1241
  %1243 = vrot.lane.b32.xlu0 %v1187, 64
  %v1244 = vpop.permute.xlu0 %1243
  %1245 = vrot.lane.b32.xlu0 %v1188, 64
  %v1246 = vpop.permute.xlu0 %1245
  %1247 = vrot.lane.b32.xlu0 %v1189, 64
  %v1248 = vpop.permute.xlu0 %1247
  %1249 = vrot.lane.b32.xlu0 %v1190, 64
  %v1250 = vpop.permute.xlu0 %1249
  %1251 = vrot.lane.b32.xlu0 %v1191, 64
  %v1252 = vpop.permute.xlu0 %1251
  %1253 = vrot.lane.b32.xlu0 %v1192, 64
  %v1254 = vpop.permute.xlu0 %1253
  %1255 = vrot.lane.b32.xlu0 %v1193, 64
  %v1256 = vpop.permute.xlu0 %1255
  %1257 = vrot.lane.b32.xlu0 %v1194, 64
  %v1258 = vpop.permute.xlu0 %1257
  %v1275 = vmul.f32 %v1179, %v1228
  %v1276 = vmul.f32 %v1180, %v1230
  %v1277 = vmul.f32 %v1181, %v1232
  %v1278 = vmul.f32 %v1182, %v1234
  %v1279 = vmul.f32 %v1183, %v1236
  %v1280 = vmul.f32 %v1184, %v1238
  %v1281 = vmul.f32 %v1185, %v1240
  %v1282 = vmul.f32 %v1186, %v1242
  %v1283 = vmul.f32 %v1187, %v1244
  %v1284 = vmul.f32 %v1188, %v1246
  %v1285 = vmul.f32 %v1189, %v1248
  %v1286 = vmul.f32 %v1190, %v1250
  %v1287 = vmul.f32 %v1191, %v1252
  %v1288 = vmul.f32 %v1192, %v1254
  %v1289 = vmul.f32 %v1193, %v1256
  %v1290 = vmul.f32 %v1194, %v1258
  %1307 = vrot.lane.b32.xlu0 %v1275, 32
  %v1308 = vpop.permute.xlu0 %1307
  %1309 = vrot.lane.b32.xlu0 %v1276, 32
  %v1310 = vpop.permute.xlu0 %1309
  %1311 = vrot.lane.b32.xlu0 %v1277, 32
  %v1312 = vpop.permute.xlu0 %1311
  %1313 = vrot.lane.b32.xlu0 %v1278, 32
  %v1314 = vpop.permute.xlu0 %1313
  %1315 = vrot.lane.b32.xlu0 %v1279, 32
  %v1316 = vpop.permute.xlu0 %1315
  %1317 = vrot.lane.b32.xlu0 %v1280, 32
  %v1318 = vpop.permute.xlu0 %1317
  %1319 = vrot.lane.b32.xlu0 %v1281, 32
  %v1320 = vpop.permute.xlu0 %1319
  %1321 = vrot.lane.b32.xlu0 %v1282, 32
  %v1322 = vpop.permute.xlu0 %1321
  %1323 = vrot.lane.b32.xlu0 %v1283, 32
  %v1324 = vpop.permute.xlu0 %1323
  %1325 = vrot.lane.b32.xlu0 %v1284, 32
  %v1326 = vpop.permute.xlu0 %1325
  %1327 = vrot.lane.b32.xlu0 %v1285, 32
  %v1328 = vpop.permute.xlu0 %1327
  %1329 = vrot.lane.b32.xlu0 %v1286, 32
  %v1330 = vpop.permute.xlu0 %1329
  %1331 = vrot.lane.b32.xlu0 %v1287, 32
  %v1332 = vpop.permute.xlu0 %1331
  %1333 = vrot.lane.b32.xlu0 %v1288, 32
  %v1334 = vpop.permute.xlu0 %1333
  %1335 = vrot.lane.b32.xlu0 %v1289, 32
  %v1336 = vpop.permute.xlu0 %1335
  %1337 = vrot.lane.b32.xlu0 %v1290, 32
  %v1338 = vpop.permute.xlu0 %1337
  %v1355 = vadd.f32 %v1195, %v1308
  %v1356 = vadd.f32 %v1196, %v1310
  %v1357 = vadd.f32 %v1197, %v1312
  %v1358 = vadd.f32 %v1198, %v1314
  %v1359 = vadd.f32 %v1199, %v1316
  %v1360 = vadd.f32 %v1200, %v1318
  %v1361 = vadd.f32 %v1201, %v1320
  %v1362 = vadd.f32 %v1202, %v1322
  %v1363 = vadd.f32 %v1203, %v1324
  %v1364 = vadd.f32 %v1204, %v1326
  %v1365 = vadd.f32 %v1205, %v1328
  %v1366 = vadd.f32 %v1206, %v1330
  %v1367 = vadd.f32 %v1207, %v1332
  %v1368 = vadd.f32 %v1208, %v1334
  %v1369 = vadd.f32 %v1209, %v1336
  %v1370 = vadd.f32 %v1210, %v1338
  %v1371 = vtanh.pop %v1355
  %v1372 = vtanh.pop %v1356
  %v1373 = vtanh.pop %v1357
  %v1374 = vtanh.pop %v1358
  %v1375 = vtanh.pop %v1359
  %v1376 = vtanh.pop %v1360
  %v1377 = vtanh.pop %v1361
  %v1378 = vtanh.pop %v1362
  %v1379 = vtanh.pop %v1363
  %v1380 = vtanh.pop %v1364
  %v1381 = vtanh.pop %v1365
  %v1382 = vtanh.pop %v1366
  %v1383 = vtanh.pop %v1367
  %v1384 = vtanh.pop %v1368
  %v1385 = vtanh.pop %v1369
  %v1386 = vtanh.pop %v1370
  %1403 = vrot.lane.b32.xlu0 %v1371, 64
  %v1404 = vpop.permute.xlu0 %1403
  %1405 = vrot.lane.b32.xlu0 %v1372, 64
  %v1406 = vpop.permute.xlu0 %1405
  %1407 = vrot.lane.b32.xlu0 %v1373, 64
  %v1408 = vpop.permute.xlu0 %1407
  %1409 = vrot.lane.b32.xlu0 %v1374, 64
  %v1410 = vpop.permute.xlu0 %1409
  %1411 = vrot.lane.b32.xlu0 %v1375, 64
  %v1412 = vpop.permute.xlu0 %1411
  %1413 = vrot.lane.b32.xlu0 %v1376, 64
  %v1414 = vpop.permute.xlu0 %1413
  %1415 = vrot.lane.b32.xlu0 %v1377, 64
  %v1416 = vpop.permute.xlu0 %1415
  %1417 = vrot.lane.b32.xlu0 %v1378, 64
  %v1418 = vpop.permute.xlu0 %1417
  %1419 = vrot.lane.b32.xlu0 %v1379, 64
  %v1420 = vpop.permute.xlu0 %1419
  %1421 = vrot.lane.b32.xlu0 %v1380, 64
  %v1422 = vpop.permute.xlu0 %1421
  %1423 = vrot.lane.b32.xlu0 %v1381, 64
  %v1424 = vpop.permute.xlu0 %1423
  %1425 = vrot.lane.b32.xlu0 %v1382, 64
  %v1426 = vpop.permute.xlu0 %1425
  %1427 = vrot.lane.b32.xlu0 %v1383, 64
  %v1428 = vpop.permute.xlu0 %1427
  %1429 = vrot.lane.b32.xlu0 %v1384, 64
  %v1430 = vpop.permute.xlu0 %1429
  %1431 = vrot.lane.b32.xlu0 %v1385, 64
  %v1432 = vpop.permute.xlu0 %1431
  %1433 = vrot.lane.b32.xlu0 %v1386, 64
  %v1434 = vpop.permute.xlu0 %1433
  %v1451 = vmul.f32 %v1179, %v1404
  %v1452 = vmul.f32 %v1180, %v1406
  %v1453 = vmul.f32 %v1181, %v1408
  %v1454 = vmul.f32 %v1182, %v1410
  %v1455 = vmul.f32 %v1183, %v1412
  %v1456 = vmul.f32 %v1184, %v1414
  %v1457 = vmul.f32 %v1185, %v1416
  %v1458 = vmul.f32 %v1186, %v1418
  %v1459 = vmul.f32 %v1187, %v1420
  %v1460 = vmul.f32 %v1188, %v1422
  %v1461 = vmul.f32 %v1189, %v1424
  %v1462 = vmul.f32 %v1190, %v1426
  %v1463 = vmul.f32 %v1191, %v1428
  %v1464 = vmul.f32 %v1192, %v1430
  %v1465 = vmul.f32 %v1193, %v1432
  %v1466 = vmul.f32 %v1194, %v1434
  %v1467 = vld [vmem:[#allocation2] sm:$0xff]
  %v1468 = vld [vmem:[#allocation2 + $0x8] sm:$0xff]
  %v1469 = vld [vmem:[#allocation2 + $0x10] sm:$0xff]
  %v1470 = vld [vmem:[#allocation2 + $0x18] sm:$0xff]
  %v1471 = vld [vmem:[#allocation2 + $0x20] sm:$0xff]
  %v1472 = vld [vmem:[#allocation2 + $0x28] sm:$0xff]
  %v1473 = vld [vmem:[#allocation2 + $0x30] sm:$0xff]
  %v1474 = vld [vmem:[#allocation2 + $0x38] sm:$0xff]
  %v1475 = vld [vmem:[#allocation2 + $0x40] sm:$0xff]
  %v1476 = vld [vmem:[#allocation2 + $0x48] sm:$0xff]
  %v1477 = vld [vmem:[#allocation2 + $0x50] sm:$0xff]
  %v1478 = vld [vmem:[#allocation2 + $0x58] sm:$0xff]
  %v1479 = vld [vmem:[#allocation2 + $0x60] sm:$0xff]
  %v1480 = vld [vmem:[#allocation2 + $0x68] sm:$0xff]
  %v1481 = vld [vmem:[#allocation2 + $0x70] sm:$0xff]
  %v1482 = vld [vmem:[#allocation2 + $0x78] sm:$0xff]
  %v1483 = vld [vmem:[#allocation2 + $0x80] sm:$0xff]
  %v1484 = vld [vmem:[#allocation2 + $0x88] sm:$0xff]
  %v1485 = vld [vmem:[#allocation2 + $0x90] sm:$0xff]
  %v1486 = vld [vmem:[#allocation2 + $0x98] sm:$0xff]
  %v1487 = vld [vmem:[#allocation2 + $0xa0] sm:$0xff]
  %v1488 = vld [vmem:[#allocation2 + $0xa8] sm:$0xff]
  %v1489 = vld [vmem:[#allocation2 + $0xb0] sm:$0xff]
  %v1490 = vld [vmem:[#allocation2 + $0xb8] sm:$0xff]
  %v1491 = vld [vmem:[#allocation2 + $0xc0] sm:$0xff]
  %v1492 = vld [vmem:[#allocation2 + $0xc8] sm:$0xff]
  %v1493 = vld [vmem:[#allocation2 + $0xd0] sm:$0xff]
  %v1494 = vld [vmem:[#allocation2 + $0xd8] sm:$0xff]
  %v1495 = vld [vmem:[#allocation2 + $0xe0] sm:$0xff]
  %v1496 = vld [vmem:[#allocation2 + $0xe8] sm:$0xff]
  %v1497 = vld [vmem:[#allocation2 + $0xf0] sm:$0xff]
  %v1498 = vld [vmem:[#allocation2 + $0xf8] sm:$0xff]
  %v1499 = vpack.c.bf16 %v1452, %v1451
  %v1500 = vpack.c.bf16 %v1454, %v1453
  %v1501 = vpack.c.bf16 %v1456, %v1455
  %v1502 = vpack.c.bf16 %v1458, %v1457
  %v1503 = vpack.c.bf16 %v1460, %v1459
  %v1504 = vpack.c.bf16 %v1462, %v1461
  %v1505 = vpack.c.bf16 %v1464, %v1463
  %v1506 = vpack.c.bf16 %v1466, %v1465
  %s1507 = scalar_lea.vmem %s2, 32
  %v1508 = vld [vmem:[%s1507] sm:$0xff]
  %v1509 = vld [vmem:[%s1507 + $0x8] sm:$0xff]
  %v1510 = vld [vmem:[%s1507 + $0x10] sm:$0xff]
  %v1511 = vld [vmem:[%s1507 + $0x18] sm:$0xff]
  %1520 = vrot.lane.b32.xlu0 %v1499, 32
  %v1521 = vpop.permute.xlu0 %1520
  %1522 = vrot.lane.b32.xlu0 %v1500, 32
  %v1523 = vpop.permute.xlu0 %1522
  %1524 = vrot.lane.b32.xlu0 %v1501, 32
  %v1525 = vpop.permute.xlu0 %1524
  %1526 = vrot.lane.b32.xlu0 %v1502, 32
  %v1527 = vpop.permute.xlu0 %1526
  %1528 = vrot.lane.b32.xlu0 %v1503, 32
  %v1529 = vpop.permute.xlu0 %1528
  %1530 = vrot.lane.b32.xlu0 %v1504, 32
  %v1531 = vpop.permute.xlu0 %1530
  %1532 = vrot.lane.b32.xlu0 %v1505, 32
  %v1533 = vpop.permute.xlu0 %1532
  %1534 = vrot.lane.b32.xlu0 %v1506, 32
  %v1535 = vpop.permute.xlu0 %1534
  %v1540 = vunpack.c.l.b16 %v1508
  %v1541 = vunpack.c.h.b16 %v1508
  %v1542 = vunpack.c.l.b16 %v1509
  %v1543 = vunpack.c.h.b16 %v1509
  %v1544 = vunpack.c.l.b16 %v1510
  %v1545 = vunpack.c.h.b16 %v1510
  %v1546 = vunpack.c.l.b16 %v1511
  %v1547 = vunpack.c.h.b16 %v1511
  %v1548 = vpack.c.b16 %v1542, %v1540
  %v1549 = vpack.c.b16 %v1543, %v1541
  %v1550 = vpack.c.b16 %v1546, %v1544
  %v1551 = vpack.c.b16 %v1547, %v1545
  %v1557 = vsel %vm83, %v1521, 0
  %v1560 = vsel %vm83, %v1523, 0
  %v1563 = vsel %vm83, %v1525, 0
  %v1566 = vsel %vm83, %v1527, 0
  %v1569 = vsel %vm83, %v1529, 0
  %v1572 = vsel %vm83, %v1531, 0
  %v1575 = vsel %vm83, %v1533, 0
  %v1578 = vsel %vm83, %v1535, 0
  %1580 = vmatprep.subr.bf16.mxu0 %v1549
  %1581 = vmatpush1.bf16.msra.mxu0 %v1548
  %1582 = vmatprep.subr.bf16.mxu0 %v1551
  %1583 = vmatpush1.bf16.msra.mxu0 %v1550
  %1584 = vmatprep.subr.bf16.mxu0 0
  %1585 = vmatpush1.bf16.msra.mxu0 0
  %1586 = vmatprep.subr.bf16.mxu0 0
  %1587 = vmatpush1.bf16.msra.mxu0 0
  %1588 = vmatprep.subr.bf16.mxu0 0
  %1589 = vmatpush1.bf16.msra.mxu0 0
  %1590 = vmatprep.subr.bf16.mxu0 0
  %1591 = vmatpush1.bf16.msra.mxu0 0
  %1592 = vmatprep.subr.bf16.mxu0 0
  %1593 = vmatpush1.bf16.msra.mxu0 0
  %1594 = vmatprep.subr.bf16.mxu0 0
  %1595 = vmatpush1.bf16.msra.mxu0 0
  %1596 = vmatprep.subr.bf16.mxu0 0
  %1597 = vmatpush1.bf16.msra.mxu0 0
  %1598 = vmatprep.subr.bf16.mxu0 0
  %1599 = vmatpush1.bf16.msra.mxu0 0
  %1600 = vmatprep.subr.bf16.mxu0 0
  %1601 = vmatpush1.bf16.msra.mxu0 0
  %1602 = vmatprep.subr.bf16.mxu0 0
  %1603 = vmatpush1.bf16.msra.mxu0 0
  %1604 = vmatprep.subr.bf16.mxu0 0
  %1605 = vmatpush1.bf16.msra.mxu0 0
  %1606 = vmatprep.subr.bf16.mxu0 0
  %1607 = vmatpush1.bf16.msra.mxu0 0
  %1608 = vmatprep.subr.bf16.mxu0 0
  %1609 = vmatpush1.bf16.msra.mxu0 0
  %1610 = vmatprep.subr.bf16.mxu0 0
  %1611 = vmatpush1.bf16.msra.mxu0 0
  %1612 = vmatprep.mubr.bf16.mxu0 0
  %1613 = vmatmul.mubr.bf16.gmra.mrb[0].mxu0 %v1557
  %v1614 = vpop.f32.mrb[0].mxu0
  %v1615 = vadd.f32 0.0, %v1614
  %v1616 = vpop.f32.mrb[0].mxu0
  %v1617 = vadd.f32 0.0, %v1616
  %v1618 = vpop.f32.mrb[0].mxu0
  %v1619 = vadd.f32 0.0, %v1618
  %v1620 = vpop.f32.mrb[0].mxu0
  %v1621 = vadd.f32 0.0, %v1620
  %1622 = vmatprep.mubr.bf16.mxu0 0
  %1623 = vmatmul.mubr.bf16.gmra.mrb[0].mxu0 %v1560
  %v1624 = vpop.f32.mrb[0].mxu0
  %v1625 = vadd.f32 0.0, %v1624
  %v1626 = vpop.f32.mrb[0].mxu0
  %v1627 = vadd.f32 0.0, %v1626
  %v1628 = vpop.f32.mrb[0].mxu0
  %v1629 = vadd.f32 0.0, %v1628
  %v1630 = vpop.f32.mrb[0].mxu0
  %v1631 = vadd.f32 0.0, %v1630
  %1632 = vmatprep.mubr.bf16.mxu0 0
  %1633 = vmatmul.mubr.bf16.gmra.mrb[0].mxu0 %v1563
  %v1634 = vpop.f32.mrb[0].mxu0
  %v1635 = vadd.f32 0.0, %v1634
  %v1636 = vpop.f32.mrb[0].mxu0
  %v1637 = vadd.f32 0.0, %v1636
  %v1638 = vpop.f32.mrb[0].mxu0
  %v1639 = vadd.f32 0.0, %v1638
  %v1640 = vpop.f32.mrb[0].mxu0
  %v1641 = vadd.f32 0.0, %v1640
  %1642 = vmatprep.mubr.bf16.mxu0 0
  %1643 = vmatmul.mubr.bf16.gmra.mrb[0].mxu0 %v1566
  %v1644 = vpop.f32.mrb[0].mxu0
  %v1645 = vadd.f32 0.0, %v1644
  %v1646 = vpop.f32.mrb[0].mxu0
  %v1647 = vadd.f32 0.0, %v1646
  %v1648 = vpop.f32.mrb[0].mxu0
  %v1649 = vadd.f32 0.0, %v1648
  %v1650 = vpop.f32.mrb[0].mxu0
  %v1651 = vadd.f32 0.0, %v1650
  %1652 = vmatprep.mubr.bf16.mxu0 0
  %1653 = vmatmul.mubr.bf16.gmra.mrb[0].mxu0 %v1569
  %v1654 = vpop.f32.mrb[0].mxu0
  %v1655 = vadd.f32 0.0, %v1654
  %v1656 = vpop.f32.mrb[0].mxu0
  %v1657 = vadd.f32 0.0, %v1656
  %v1658 = vpop.f32.mrb[0].mxu0
  %v1659 = vadd.f32 0.0, %v1658
  %v1660 = vpop.f32.mrb[0].mxu0
  %v1661 = vadd.f32 0.0, %v1660
  %1662 = vmatprep.mubr.bf16.mxu0 0
  %1663 = vmatmul.mubr.bf16.gmra.mrb[0].mxu0 %v1572
  %v1664 = vpop.f32.mrb[0].mxu0
  %v1665 = vadd.f32 0.0, %v1664
  %v1666 = vpop.f32.mrb[0].mxu0
  %v1667 = vadd.f32 0.0, %v1666
  %v1668 = vpop.f32.mrb[0].mxu0
  %v1669 = vadd.f32 0.0, %v1668
  %v1670 = vpop.f32.mrb[0].mxu0
  %v1671 = vadd.f32 0.0, %v1670
  %1672 = vmatprep.mubr.bf16.mxu0 0
  %1673 = vmatmul.mubr.bf16.gmra.mrb[0].mxu0 %v1575
  %v1674 = vpop.f32.mrb[0].mxu0
  %v1675 = vadd.f32 0.0, %v1674
  %v1676 = vpop.f32.mrb[0].mxu0
  %v1677 = vadd.f32 0.0, %v1676
  %v1678 = vpop.f32.mrb[0].mxu0
  %v1679 = vadd.f32 0.0, %v1678
  %v1680 = vpop.f32.mrb[0].mxu0
  %v1681 = vadd.f32 0.0, %v1680
  %1682 = vmatprep.mubr.bf16.mxu0 0
  %1683 = vmatmul.mubr.bf16.gmra.mrb[0].mxu0 %v1578
  %v1684 = vpop.f32.mrb[0].mxu0
  %v1685 = vadd.f32 0.0, %v1684
  %v1686 = vpop.f32.mrb[0].mxu0
  %v1687 = vadd.f32 0.0, %v1686
  %v1688 = vpop.f32.mrb[0].mxu0
  %v1689 = vadd.f32 0.0, %v1688
  %v1690 = vpop.f32.mrb[0].mxu0
  %v1691 = vadd.f32 0.0, %v1690
  %1692 = vdwg.mxu0
  %v1693 = vadd.f32 %v1467, %v1615
  %v1694 = vadd.f32 %v1468, %v1617
  %v1695 = vadd.f32 %v1469, %v1619
  %v1696 = vadd.f32 %v1470, %v1621
  %v1697 = vadd.f32 %v1471, %v1625
  %v1698 = vadd.f32 %v1472, %v1627
  %v1699 = vadd.f32 %v1473, %v1629
  %v1700 = vadd.f32 %v1474, %v1631
  %v1701 = vadd.f32 %v1475, %v1635
  %v1702 = vadd.f32 %v1476, %v1637
  %v1703 = vadd.f32 %v1477, %v1639
  %v1704 = vadd.f32 %v1478, %v1641
  %v1705 = vadd.f32 %v1479, %v1645
  %v1706 = vadd.f32 %v1480, %v1647
  %v1707 = vadd.f32 %v1481, %v1649
  %v1708 = vadd.f32 %v1482, %v1651
  %v1709 = vadd.f32 %v1483, %v1655
  %v1710 = vadd.f32 %v1484, %v1657
  %v1711 = vadd.f32 %v1485, %v1659
  %v1712 = vadd.f32 %v1486, %v1661
  %v1713 = vadd.f32 %v1487, %v1665
  %v1714 = vadd.f32 %v1488, %v1667
  %v1715 = vadd.f32 %v1489, %v1669
  %v1716 = vadd.f32 %v1490, %v1671
  %v1717 = vadd.f32 %v1491, %v1675
  %v1718 = vadd.f32 %v1492, %v1677
  %v1719 = vadd.f32 %v1493, %v1679
  %v1720 = vadd.f32 %v1494, %v1681
  %v1721 = vadd.f32 %v1495, %v1685
  %v1722 = vadd.f32 %v1496, %v1687
  %v1723 = vadd.f32 %v1497, %v1689
  %v1724 = vadd.f32 %v1498, %v1691
  %1725 = vst [vmem:[#allocation2] sm:$0xff] %v1693
  %1726 = vst [vmem:[#allocation2 + $0x8] sm:$0xff] %v1694
  %1727 = vst [vmem:[#allocation2 + $0x10] sm:$0xff] %v1695
  %1728 = vst [vmem:[#allocation2 + $0x18] sm:$0xff] %v1696
  %1729 = vst [vmem:[#allocation2 + $0x20] sm:$0xff] %v1697
  %1730 = vst [vmem:[#allocation2 + $0x28] sm:$0xff] %v1698
  %1731 = vst [vmem:[#allocation2 + $0x30] sm:$0xff] %v1699
  %1732 = vst [vmem:[#allocation2 + $0x38] sm:$0xff] %v1700
  %1733 = vst [vmem:[#allocation2 + $0x40] sm:$0xff] %v1701
  %1734 = vst [vmem:[#allocation2 + $0x48] sm:$0xff] %v1702
  %1735 = vst [vmem:[#allocation2 + $0x50] sm:$0xff] %v1703
  %1736 = vst [vmem:[#allocation2 + $0x58] sm:$0xff] %v1704
  %1737 = vst [vmem:[#allocation2 + $0x60] sm:$0xff] %v1705
  %1738 = vst [vmem:[#allocation2 + $0x68] sm:$0xff] %v1706
  %1739 = vst [vmem:[#allocation2 + $0x70] sm:$0xff] %v1707
  %1740 = vst [vmem:[#allocation2 + $0x78] sm:$0xff] %v1708
  %1741 = vst [vmem:[#allocation2 + $0x80] sm:$0xff] %v1709
  %1742 = vst [vmem:[#allocation2 + $0x88] sm:$0xff] %v1710
  %1743 = vst [vmem:[#allocation2 + $0x90] sm:$0xff] %v1711
  %1744 = vst [vmem:[#allocation2 + $0x98] sm:$0xff] %v1712
  %1745 = vst [vmem:[#allocation2 + $0xa0] sm:$0xff] %v1713
  %1746 = vst [vmem:[#allocation2 + $0xa8] sm:$0xff] %v1714
  %1747 = vst [vmem:[#allocation2 + $0xb0] sm:$0xff] %v1715
  %1748 = vst [vmem:[#allocation2 + $0xb8] sm:$0xff] %v1716
  %1749 = vst [vmem:[#allocation2 + $0xc0] sm:$0xff] %v1717
  %1750 = vst [vmem:[#allocation2 + $0xc8] sm:$0xff] %v1718
  %1751 = vst [vmem:[#allocation2 + $0xd0] sm:$0xff] %v1719
  %1752 = vst [vmem:[#allocation2 + $0xd8] sm:$0xff] %v1720
  %1753 = vst [vmem:[#allocation2 + $0xe0] sm:$0xff] %v1721
  %1754 = vst [vmem:[#allocation2 + $0xe8] sm:$0xff] %v1722
  %1755 = vst [vmem:[#allocation2 + $0xf0] sm:$0xff] %v1723
  %1756 = vst [vmem:[#allocation2 + $0xf8] sm:$0xff] %v1724
  %s1757 = scalar_lea.vmem %s0, 256
  %v1758 = vld [vmem:[%s1757] sm:$0xff]
  %v1759 = vld [vmem:[%s1757 + $0x8] sm:$0xff]
  %v1760 = vld [vmem:[%s1757 + $0x10] sm:$0xff]
  %v1761 = vld [vmem:[%s1757 + $0x18] sm:$0xff]
  %v1762 = vld [vmem:[%s1757 + $0x20] sm:$0xff]
  %v1763 = vld [vmem:[%s1757 + $0x28] sm:$0xff]
  %v1764 = vld [vmem:[%s1757 + $0x30] sm:$0xff]
  %v1765 = vld [vmem:[%s1757 + $0x38] sm:$0xff]
  %v1766 = vld [vmem:[%s1757 + $0x40] sm:$0xff]
  %v1767 = vld [vmem:[%s1757 + $0x48] sm:$0xff]
  %v1768 = vld [vmem:[%s1757 + $0x50] sm:$0xff]
  %v1769 = vld [vmem:[%s1757 + $0x58] sm:$0xff]
  %v1770 = vld [vmem:[%s1757 + $0x60] sm:$0xff]
  %v1771 = vld [vmem:[%s1757 + $0x68] sm:$0xff]
  %v1772 = vld [vmem:[%s1757 + $0x70] sm:$0xff]
  %v1773 = vld [vmem:[%s1757 + $0x78] sm:$0xff]
  %1790 = vrot.lane.b32.xlu0 %v1451, 32
  %v1791 = vpop.permute.xlu0 %1790
  %1792 = vrot.lane.b32.xlu0 %v1452, 32
  %v1793 = vpop.permute.xlu0 %1792
  %1794 = vrot.lane.b32.xlu0 %v1453, 32
  %v1795 = vpop.permute.xlu0 %1794
  %1796 = vrot.lane.b32.xlu0 %v1454, 32
  %v1797 = vpop.permute.xlu0 %1796
  %1798 = vrot.lane.b32.xlu0 %v1455, 32
  %v1799 = vpop.permute.xlu0 %1798
  %1800 = vrot.lane.b32.xlu0 %v1456, 32
  %v1801 = vpop.permute.xlu0 %1800
  %1802 = vrot.lane.b32.xlu0 %v1457, 32
  %v1803 = vpop.permute.xlu0 %1802
  %1804 = vrot.lane.b32.xlu0 %v1458, 32
  %v1805 = vpop.permute.xlu0 %1804
  %1806 = vrot.lane.b32.xlu0 %v1459, 32
  %v1807 = vpop.permute.xlu0 %1806
  %1808 = vrot.lane.b32.xlu0 %v1460, 32
  %v1809 = vpop.permute.xlu0 %1808
  %1810 = vrot.lane.b32.xlu0 %v1461, 32
  %v1811 = vpop.permute.xlu0 %1810
  %1812 = vrot.lane.b32.xlu0 %v1462, 32
  %v1813 = vpop.permute.xlu0 %1812
  %1814 = vrot.lane.b32.xlu0 %v1463, 32
  %v1815 = vpop.permute.xlu0 %1814
  %1816 = vrot.lane.b32.xlu0 %v1464, 32
  %v1817 = vpop.permute.xlu0 %1816
  %1818 = vrot.lane.b32.xlu0 %v1465, 32
  %v1819 = vpop.permute.xlu0 %1818
  %1820 = vrot.lane.b32.xlu0 %v1466, 32
  %v1821 = vpop.permute.xlu0 %1820
  %v1822 = vsel %vm83, %v1791, 0
  %v1824 = vsel %vm83, %v1793, 0
  %v1826 = vsel %vm83, %v1795, 0
  %v1828 = vsel %vm83, %v1797, 0
  %v1830 = vsel %vm83, %v1799, 0
  %v1832 = vsel %vm83, %v1801, 0
  %v1834 = vsel %vm83, %v1803, 0
  %v1836 = vsel %vm83, %v1805, 0
  %v1838 = vsel %vm83, %v1807, 0
  %v1840 = vsel %vm83, %v1809, 0
  %v1842 = vsel %vm83, %v1811, 0
  %v1844 = vsel %vm83, %v1813, 0
  %v1846 = vsel %vm83, %v1815, 0
  %v1848 = vsel %vm83, %v1817, 0
  %v1850 = vsel %vm83, %v1819, 0
  %v1852 = vsel %vm83, %v1821, 0
  %1854 = vmatprep.subr.mxu0 0.0
  %1855 = vmatpush1.msra.mxu0 %v31
  %1856 = vmatprep.subr.mxu0 0.0
  %1857 = vmatpush1.msra.mxu0 %v32
  %1858 = vmatprep.subr.mxu0 0.0
  %1859 = vmatpush1.msra.mxu0 %v33
  %1860 = vmatprep.subr.mxu0 0.0
  %1861 = vmatpush1.msra.mxu0 %v34
  %1862 = vmatprep.subr.mxu0 0.0
  %1863 = vmatpush1.msra.mxu0 0.0
  %1864 = vmatprep.subr.mxu0 0.0
  %1865 = vmatpush1.msra.mxu0 0.0
  %1866 = vmatprep.subr.mxu0 0.0
  %1867 = vmatpush1.msra.mxu0 0.0
  %1868 = vmatprep.subr.mxu0 0.0
  %1869 = vmatpush1.msra.mxu0 0.0
  %1870 = vmatprep.subr.mxu0 0.0
  %1871 = vmatpush1.msra.mxu0 0.0
  %1872 = vmatprep.subr.mxu0 0.0
  %1873 = vmatpush1.msra.mxu0 0.0
  %1874 = vmatprep.subr.mxu0 0.0
  %1875 = vmatpush1.msra.mxu0 0.0
  %1876 = vmatprep.subr.mxu0 0.0
  %1877 = vmatpush1.msra.mxu0 0.0
  %1878 = vmatprep.subr.mxu0 0.0
  %1879 = vmatpush1.msra.mxu0 0.0
  %1880 = vmatprep.subr.mxu0 0.0
  %1881 = vmatpush1.msra.mxu0 0.0
  %1882 = vmatprep.subr.mxu0 0.0
  %1883 = vmatpush1.msra.mxu0 0.0
  %1884 = vmatprep.subr.mxu0 0.0
  %1885 = vmatpush1.msra.mxu0 0.0
  %1886 = vmatprep.subr.mxu0 0.0
  %1887 = vmatpush1.msra.mxu0 0.0
  %1888 = vmatprep.subr.mxu0 0.0
  %1889 = vmatpush1.msra.mxu0 0.0
  %1890 = vmatprep.subr.mxu0 0.0
  %1891 = vmatpush1.msra.mxu0 0.0
  %1892 = vmatprep.subr.mxu0 0.0
  %1893 = vmatpush1.msra.mxu0 0.0
  %1894 = vmatprep.subr.mxu0 0.0
  %1895 = vmatpush1.msra.mxu0 0.0
  %1896 = vmatprep.subr.mxu0 0.0
  %1897 = vmatpush1.msra.mxu0 0.0
  %1898 = vmatprep.subr.mxu0 0.0
  %1899 = vmatpush1.msra.mxu0 0.0
  %1900 = vmatprep.subr.mxu0 0.0
  %1901 = vmatpush1.msra.mxu0 0.0
  %1902 = vmatprep.subr.mxu0 0.0
  %1903 = vmatpush1.msra.mxu0 0.0
  %1904 = vmatprep.subr.mxu0 0.0
  %1905 = vmatpush1.msra.mxu0 0.0
  %1906 = vmatprep.subr.mxu0 0.0
  %1907 = vmatpush1.msra.mxu0 0.0
  %1908 = vmatprep.subr.mxu0 0.0
  %1909 = vmatpush1.msra.mxu0 0.0
  %1910 = vmatprep.subr.mxu0 0.0
  %1911 = vmatpush1.msra.mxu0 0.0
  %1912 = vmatprep.subr.mxu0 0.0
  %1913 = vmatpush1.msra.mxu0 0.0
  %1914 = vmatprep.subr.mxu0 0.0
  %1915 = vmatpush1.msra.mxu0 0.0
  %1916 = vmatprep.subr.mxu0 0.0
  %1917 = vmatpush1.msra.mxu0 0.0
  %1918 = vmatprep.mubr.f32.mxu0 0.0
  %1919 = vmatmul.mubr.f32.gmra.mrb[0].mxu0 %v1822
  %v1920 = vpop.f32.mrb[0].mxu0
  %v1921 = vadd.f32 0.0, %v1920
  %v1922 = vpop.f32.mrb[0].mxu0
  %1923 = vmatprep.mubr.f32.mxu0 0.0
  %1924 = vmatmul.mubr.f32.gmra.mrb[0].mxu0 %v1824
  %v1925 = vpop.f32.mrb[0].mxu0
  %v1926 = vadd.f32 0.0, %v1925
  %v1927 = vpop.f32.mrb[0].mxu0
  %1928 = vmatprep.mubr.f32.mxu0 0.0
  %1929 = vmatmul.mubr.f32.gmra.mrb[0].mxu0 %v1826
  %v1930 = vpop.f32.mrb[0].mxu0
  %v1931 = vadd.f32 0.0, %v1930
  %v1932 = vpop.f32.mrb[0].mxu0
  %1933 = vmatprep.mubr.f32.mxu0 0.0
  %1934 = vmatmul.mubr.f32.gmra.mrb[0].mxu0 %v1828
  %v1935 = vpop.f32.mrb[0].mxu0
  %v1936 = vadd.f32 0.0, %v1935
  %v1937 = vpop.f32.mrb[0].mxu0
  %1938 = vmatprep.mubr.f32.mxu0 0.0
  %1939 = vmatmul.mubr.f32.gmra.mrb[0].mxu0 %v1830
  %v1940 = vpop.f32.mrb[0].mxu0
  %v1941 = vadd.f32 0.0, %v1940
  %v1942 = vpop.f32.mrb[0].mxu0
  %1943 = vmatprep.mubr.f32.mxu0 0.0
  %1944 = vmatmul.mubr.f32.gmra.mrb[0].mxu0 %v1832
  %v1945 = vpop.f32.mrb[0].mxu0
  %v1946 = vadd.f32 0.0, %v1945
  %v1947 = vpop.f32.mrb[0].mxu0
  %1948 = vmatprep.mubr.f32.mxu0 0.0
  %1949 = vmatmul.mubr.f32.gmra.mrb[0].mxu0 %v1834
  %v1950 = vpop.f32.mrb[0].mxu0
  %v1951 = vadd.f32 0.0, %v1950
  %v1952 = vpop.f32.mrb[0].mxu0
  %1953 = vmatprep.mubr.f32.mxu0 0.0
  %1954 = vmatmul.mubr.f32.gmra.mrb[0].mxu0 %v1836
  %v1955 = vpop.f32.mrb[0].mxu0
  %v1956 = vadd.f32 0.0, %v1955
  %v1957 = vpop.f32.mrb[0].mxu0
  %1958 = vmatprep.mubr.f32.mxu0 0.0
  %1959 = vmatmul.mubr.f32.gmra.mrb[0].mxu0 %v1838
  %v1960 = vpop.f32.mrb[0].mxu0
  %v1961 = vadd.f32 0.0, %v1960
  %v1962 = vpop.f32.mrb[0].mxu0
  %1963 = vmatprep.mubr.f32.mxu0 0.0
  %1964 = vmatmul.mubr.f32.gmra.mrb[0].mxu0 %v1840
  %v1965 = vpop.f32.mrb[0].mxu0
  %v1966 = vadd.f32 0.0, %v1965
  %v1967 = vpop.f32.mrb[0].mxu0
  %1968 = vmatprep.mubr.f32.mxu0 0.0
  %1969 = vmatmul.mubr.f32.gmra.mrb[0].mxu0 %v1842
  %v1970 = vpop.f32.mrb[0].mxu0
  %v1971 = vadd.f32 0.0, %v1970
  %v1972 = vpop.f32.mrb[0].mxu0
  %1973 = vmatprep.mubr.f32.mxu0 0.0
  %1974 = vmatmul.mubr.f32.gmra.mrb[0].mxu0 %v1844
  %v1975 = vpop.f32.mrb[0].mxu0
  %v1976 = vadd.f32 0.0, %v1975
  %v1977 = vpop.f32.mrb[0].mxu0
  %1978 = vmatprep.mubr.f32.mxu0 0.0
  %1979 = vmatmul.mubr.f32.gmra.mrb[0].mxu0 %v1846
  %v1980 = vpop.f32.mrb[0].mxu0
  %v1981 = vadd.f32 0.0, %v1980
  %v1982 = vpop.f32.mrb[0].mxu0
  %1983 = vmatprep.mubr.f32.mxu0 0.0
  %1984 = vmatmul.mubr.f32.gmra.mrb[0].mxu0 %v1848
  %v1985 = vpop.f32.mrb[0].mxu0
  %v1986 = vadd.f32 0.0, %v1985
  %v1987 = vpop.f32.mrb[0].mxu0
  %1988 = vmatprep.mubr.f32.mxu0 0.0
  %1989 = vmatmul.mubr.f32.gmra.mrb[0].mxu0 %v1850
  %v1990 = vpop.f32.mrb[0].mxu0
  %v1991 = vadd.f32 0.0, %v1990
  %v1992 = vpop.f32.mrb[0].mxu0
  %1993 = vmatprep.mubr.f32.mxu0 0.0
  %1994 = vmatmul.mubr.f32.gmra.mrb[0].mxu0 %v1852
  %v1995 = vpop.f32.mrb[0].mxu0
  %v1996 = vadd.f32 0.0, %v1995
  %v1997 = vpop.f32.mrb[0].mxu0
  %1998 = vdwg.mxu0
  %v1999 = vadd.f32 %v1758, %v1921
  %v2000 = vadd.f32 %v1759, %v1926
  %v2001 = vadd.f32 %v1760, %v1931
  %v2002 = vadd.f32 %v1761, %v1936
  %v2003 = vadd.f32 %v1762, %v1941
  %v2004 = vadd.f32 %v1763, %v1946
  %v2005 = vadd.f32 %v1764, %v1951
  %v2006 = vadd.f32 %v1765, %v1956
  %v2007 = vadd.f32 %v1766, %v1961
  %v2008 = vadd.f32 %v1767, %v1966
  %v2009 = vadd.f32 %v1768, %v1971
  %v2010 = vadd.f32 %v1769, %v1976
  %v2011 = vadd.f32 %v1770, %v1981
  %v2012 = vadd.f32 %v1771, %v1986
  %v2013 = vadd.f32 %v1772, %v1991
  %v2014 = vadd.f32 %v1773, %v1996
  %v2015 = vmul.f32 %v1999, %v29
  %v2016 = vmul.f32 %v2000, %v29
  %v2017 = vmul.f32 %v2001, %v29
  %v2018 = vmul.f32 %v2002, %v29
  %v2019 = vmul.f32 %v2003, %v29
  %v2020 = vmul.f32 %v2004, %v29
  %v2021 = vmul.f32 %v2005, %v29
  %v2022 = vmul.f32 %v2006, %v29
  %v2023 = vmul.f32 %v2007, %v29
  %v2024 = vmul.f32 %v2008, %v29
  %v2025 = vmul.f32 %v2009, %v29
  %v2026 = vmul.f32 %v2010, %v29
  %v2027 = vmul.f32 %v2011, %v29
  %v2028 = vmul.f32 %v2012, %v29
  %v2029 = vmul.f32 %v2013, %v29
  %v2030 = vmul.f32 %v2014, %v29
  %v2031 = vtanh.pop %v2015
  %v2032 = vtanh.pop %v2016
  %v2033 = vtanh.pop %v2017
  %v2034 = vtanh.pop %v2018
  %v2035 = vtanh.pop %v2019
  %v2036 = vtanh.pop %v2020
  %v2037 = vtanh.pop %v2021
  %v2038 = vtanh.pop %v2022
  %v2039 = vtanh.pop %v2023
  %v2040 = vtanh.pop %v2024
  %v2041 = vtanh.pop %v2025
  %v2042 = vtanh.pop %v2026
  %v2043 = vtanh.pop %v2027
  %v2044 = vtanh.pop %v2028
  %v2045 = vtanh.pop %v2029
  %v2046 = vtanh.pop %v2030
  %v2047 = vmul.f32 %v2031, %v29
  %v2048 = vmul.f32 %v2032, %v29
  %v2049 = vmul.f32 %v2033, %v29
  %v2050 = vmul.f32 %v2034, %v29
  %v2051 = vmul.f32 %v2035, %v29
  %v2052 = vmul.f32 %v2036, %v29
  %v2053 = vmul.f32 %v2037, %v29
  %v2054 = vmul.f32 %v2038, %v29
  %v2055 = vmul.f32 %v2039, %v29
  %v2056 = vmul.f32 %v2040, %v29
  %v2057 = vmul.f32 %v2041, %v29
  %v2058 = vmul.f32 %v2042, %v29
  %v2059 = vmul.f32 %v2043, %v29
  %v2060 = vmul.f32 %v2044, %v29
  %v2061 = vmul.f32 %v2045, %v29
  %v2062 = vmul.f32 %v2046, %v29
  %v2063 = vadd.f32 %v2047, %v30
  %v2064 = vadd.f32 %v2048, %v30
  %v2065 = vadd.f32 %v2049, %v30
  %v2066 = vadd.f32 %v2050, %v30
  %v2067 = vadd.f32 %v2051, %v30
  %v2068 = vadd.f32 %v2052, %v30
  %v2069 = vadd.f32 %v2053, %v30
  %v2070 = vadd.f32 %v2054, %v30
  %v2071 = vadd.f32 %v2055, %v30
  %v2072 = vadd.f32 %v2056, %v30
  %v2073 = vadd.f32 %v2057, %v30
  %v2074 = vadd.f32 %v2058, %v30
  %v2075 = vadd.f32 %v2059, %v30
  %v2076 = vadd.f32 %v2060, %v30
  %v2077 = vadd.f32 %v2061, %v30
  %v2078 = vadd.f32 %v2062, %v30
  %v2079 = vmul.f32 %v2063, %v1355
  %v2080 = vmul.f32 %v2064, %v1356
  %v2081 = vmul.f32 %v2065, %v1357
  %v2082 = vmul.f32 %v2066, %v1358
  %v2083 = vmul.f32 %v2067, %v1359
  %v2084 = vmul.f32 %v2068, %v1360
  %v2085 = vmul.f32 %v2069, %v1361
  %v2086 = vmul.f32 %v2070, %v1362
  %v2087 = vmul.f32 %v2071, %v1363
  %v2088 = vmul.f32 %v2072, %v1364
  %v2089 = vmul.f32 %v2073, %v1365
  %v2090 = vmul.f32 %v2074, %v1366
  %v2091 = vmul.f32 %v2075, %v1367
  %v2092 = vmul.f32 %v2076, %v1368
  %v2093 = vmul.f32 %v2077, %v1369
  %v2094 = vmul.f32 %v2078, %v1370
  %2111 = vrot.lane.b32.xlu0 %v2063, 64
  %v2112 = vpop.permute.xlu0 %2111
  %2113 = vrot.lane.b32.xlu0 %v2064, 64
  %v2114 = vpop.permute.xlu0 %2113
  %2115 = vrot.lane.b32.xlu0 %v2065, 64
  %v2116 = vpop.permute.xlu0 %2115
  %2117 = vrot.lane.b32.xlu0 %v2066, 64
  %v2118 = vpop.permute.xlu0 %2117
  %2119 = vrot.lane.b32.xlu0 %v2067, 64
  %v2120 = vpop.permute.xlu0 %2119
  %2121 = vrot.lane.b32.xlu0 %v2068, 64
  %v2122 = vpop.permute.xlu0 %2121
  %2123 = vrot.lane.b32.xlu0 %v2069, 64
  %v2124 = vpop.permute.xlu0 %2123
  %2125 = vrot.lane.b32.xlu0 %v2070, 64
  %v2126 = vpop.permute.xlu0 %2125
  %2127 = vrot.lane.b32.xlu0 %v2071, 64
  %v2128 = vpop.permute.xlu0 %2127
  %2129 = vrot.lane.b32.xlu0 %v2072, 64
  %v2130 = vpop.permute.xlu0 %2129
  %2131 = vrot.lane.b32.xlu0 %v2073, 64
  %v2132 = vpop.permute.xlu0 %2131
  %2133 = vrot.lane.b32.xlu0 %v2074, 64
  %v2134 = vpop.permute.xlu0 %2133
  %2135 = vrot.lane.b32.xlu0 %v2075, 64
  %v2136 = vpop.permute.xlu0 %2135
  %2137 = vrot.lane.b32.xlu0 %v2076, 64
  %v2138 = vpop.permute.xlu0 %2137
  %2139 = vrot.lane.b32.xlu0 %v2077, 64
  %v2140 = vpop.permute.xlu0 %2139
  %2141 = vrot.lane.b32.xlu0 %v2078, 64
  %v2142 = vpop.permute.xlu0 %2141
  %v2159 = vmul.f32 %v2063, %v2112
  %v2160 = vmul.f32 %v2064, %v2114
  %v2161 = vmul.f32 %v2065, %v2116
  %v2162 = vmul.f32 %v2066, %v2118
  %v2163 = vmul.f32 %v2067, %v2120
  %v2164 = vmul.f32 %v2068, %v2122
  %v2165 = vmul.f32 %v2069, %v2124
  %v2166 = vmul.f32 %v2070, %v2126
  %v2167 = vmul.f32 %v2071, %v2128
  %v2168 = vmul.f32 %v2072, %v2130
  %v2169 = vmul.f32 %v2073, %v2132
  %v2170 = vmul.f32 %v2074, %v2134
  %v2171 = vmul.f32 %v2075, %v2136
  %v2172 = vmul.f32 %v2076, %v2138
  %v2173 = vmul.f32 %v2077, %v2140
  %v2174 = vmul.f32 %v2078, %v2142
  %2191 = vrot.lane.b32.xlu0 %v2159, 32
  %v2192 = vpop.permute.xlu0 %2191
  %2193 = vrot.lane.b32.xlu0 %v2160, 32
  %v2194 = vpop.permute.xlu0 %2193
  %2195 = vrot.lane.b32.xlu0 %v2161, 32
  %v2196 = vpop.permute.xlu0 %2195
  %2197 = vrot.lane.b32.xlu0 %v2162, 32
  %v2198 = vpop.permute.xlu0 %2197
  %2199 = vrot.lane.b32.xlu0 %v2163, 32
  %v2200 = vpop.permute.xlu0 %2199
  %2201 = vrot.lane.b32.xlu0 %v2164, 32
  %v2202 = vpop.permute.xlu0 %2201
  %2203 = vrot.lane.b32.xlu0 %v2165, 32
  %v2204 = vpop.permute.xlu0 %2203
  %2205 = vrot.lane.b32.xlu0 %v2166, 32
  %v2206 = vpop.permute.xlu0 %2205
  %2207 = vrot.lane.b32.xlu0 %v2167, 32
  %v2208 = vpop.permute.xlu0 %2207
  %2209 = vrot.lane.b32.xlu0 %v2168, 32
  %v2210 = vpop.permute.xlu0 %2209
  %2211 = vrot.lane.b32.xlu0 %v2169, 32
  %v2212 = vpop.permute.xlu0 %2211
  %2213 = vrot.lane.b32.xlu0 %v2170, 32
  %v2214 = vpop.permute.xlu0 %2213
  %2215 = vrot.lane.b32.xlu0 %v2171, 32
  %v2216 = vpop.permute.xlu0 %2215
  %2217 = vrot.lane.b32.xlu0 %v2172, 32
  %v2218 = vpop.permute.xlu0 %2217
  %2219 = vrot.lane.b32.xlu0 %v2173, 32
  %v2220 = vpop.permute.xlu0 %2219
  %2221 = vrot.lane.b32.xlu0 %v2174, 32
  %v2222 = vpop.permute.xlu0 %2221
  %v2239 = vadd.f32 %v2079, %v2192
  %v2240 = vadd.f32 %v2080, %v2194
  %v2241 = vadd.f32 %v2081, %v2196
  %v2242 = vadd.f32 %v2082, %v2198
  %v2243 = vadd.f32 %v2083, %v2200
  %v2244 = vadd.f32 %v2084, %v2202
  %v2245 = vadd.f32 %v2085, %v2204
  %v2246 = vadd.f32 %v2086, %v2206
  %v2247 = vadd.f32 %v2087, %v2208
  %v2248 = vadd.f32 %v2088, %v2210
  %v2249 = vadd.f32 %v2089, %v2212
  %v2250 = vadd.f32 %v2090, %v2214
  %v2251 = vadd.f32 %v2091, %v2216
  %v2252 = vadd.f32 %v2092, %v2218
  %v2253 = vadd.f32 %v2093, %v2220
  %v2254 = vadd.f32 %v2094, %v2222
  %v2255 = vtanh.pop %v2239
  %v2256 = vtanh.pop %v2240
  %v2257 = vtanh.pop %v2241
  %v2258 = vtanh.pop %v2242
  %v2259 = vtanh.pop %v2243
  %v2260 = vtanh.pop %v2244
  %v2261 = vtanh.pop %v2245
  %v2262 = vtanh.pop %v2246
  %v2263 = vtanh.pop %v2247
  %v2264 = vtanh.pop %v2248
  %v2265 = vtanh.pop %v2249
  %v2266 = vtanh.pop %v2250
  %v2267 = vtanh.pop %v2251
  %v2268 = vtanh.pop %v2252
  %v2269 = vtanh.pop %v2253
  %v2270 = vtanh.pop %v2254
  %2287 = vrot.lane.b32.xlu0 %v2255, 64
  %v2288 = vpop.permute.xlu0 %2287
  %2289 = vrot.lane.b32.xlu0 %v2256, 64
  %v2290 = vpop.permute.xlu0 %2289
  %2291 = vrot.lane.b32.xlu0 %v2257, 64
  %v2292 = vpop.permute.xlu0 %2291
  %2293 = vrot.lane.b32.xlu0 %v2258, 64
  %v2294 = vpop.permute.xlu0 %2293
  %2295 = vrot.lane.b32.xlu0 %v2259, 64
  %v2296 = vpop.permute.xlu0 %2295
  %2297 = vrot.lane.b32.xlu0 %v2260, 64
  %v2298 = vpop.permute.xlu0 %2297
  %2299 = vrot.lane.b32.xlu0 %v2261, 64
  %v2300 = vpop.permute.xlu0 %2299
  %2301 = vrot.lane.b32.xlu0 %v2262, 64
  %v2302 = vpop.permute.xlu0 %2301
  %2303 = vrot.lane.b32.xlu0 %v2263, 64
  %v2304 = vpop.permute.xlu0 %2303
  %2305 = vrot.lane.b32.xlu0 %v2264, 64
  %v2306 = vpop.permute.xlu0 %2305
  %2307 = vrot.lane.b32.xlu0 %v2265, 64
  %v2308 = vpop.permute.xlu0 %2307
  %2309 = vrot.lane.b32.xlu0 %v2266, 64
  %v2310 = vpop.permute.xlu0 %2309
  %2311 = vrot.lane.b32.xlu0 %v2267, 64
  %v2312 = vpop.permute.xlu0 %2311
  %2313 = vrot.lane.b32.xlu0 %v2268, 64
  %v2314 = vpop.permute.xlu0 %2313
  %2315 = vrot.lane.b32.xlu0 %v2269, 64
  %v2316 = vpop.permute.xlu0 %2315
  %2317 = vrot.lane.b32.xlu0 %v2270, 64
  %v2318 = vpop.permute.xlu0 %2317
  %v2335 = vmul.f32 %v2063, %v2288
  %v2336 = vmul.f32 %v2064, %v2290
  %v2337 = vmul.f32 %v2065, %v2292
  %v2338 = vmul.f32 %v2066, %v2294
  %v2339 = vmul.f32 %v2067, %v2296
  %v2340 = vmul.f32 %v2068, %v2298
  %v2341 = vmul.f32 %v2069, %v2300
  %v2342 = vmul.f32 %v2070, %v2302
  %v2343 = vmul.f32 %v2071, %v2304
  %v2344 = vmul.f32 %v2072, %v2306
  %v2345 = vmul.f32 %v2073, %v2308
  %v2346 = vmul.f32 %v2074, %v2310
  %v2347 = vmul.f32 %v2075, %v2312
  %v2348 = vmul.f32 %v2076, %v2314
  %v2349 = vmul.f32 %v2077, %v2316
  %v2350 = vmul.f32 %v2078, %v2318
  %v2351 = vld [vmem:[#allocation2] sm:$0xff]
  %v2352 = vld [vmem:[#allocation2 + $0x8] sm:$0xff]
  %v2353 = vld [vmem:[#allocation2 + $0x10] sm:$0xff]
  %v2354 = vld [vmem:[#allocation2 + $0x18] sm:$0xff]
  %v2355 = vld [vmem:[#allocation2 + $0x20] sm:$0xff]
  %v2356 = vld [vmem:[#allocation2 + $0x28] sm:$0xff]
  %v2357 = vld [vmem:[#allocation2 + $0x30] sm:$0xff]
  %v2358 = vld [vmem:[#allocation2 + $0x38] sm:$0xff]
  %v2359 = vld [vmem:[#allocation2 + $0x40] sm:$0xff]
  %v2360 = vld [vmem:[#allocation2 + $0x48] sm:$0xff]
  %v2361 = vld [vmem:[#allocation2 + $0x50] sm:$0xff]
  %v2362 = vld [vmem:[#allocation2 + $0x58] sm:$0xff]
  %v2363 = vld [vmem:[#allocation2 + $0x60] sm:$0xff]
  %v2364 = vld [vmem:[#allocation2 + $0x68] sm:$0xff]
  %v2365 = vld [vmem:[#allocation2 + $0x70] sm:$0xff]
  %v2366 = vld [vmem:[#allocation2 + $0x78] sm:$0xff]
  %v2367 = vld [vmem:[#allocation2 + $0x80] sm:$0xff]
  %v2368 = vld [vmem:[#allocation2 + $0x88] sm:$0xff]
  %v2369 = vld [vmem:[#allocation2 + $0x90] sm:$0xff]
  %v2370 = vld [vmem:[#allocation2 + $0x98] sm:$0xff]
  %v2371 = vld [vmem:[#allocation2 + $0xa0] sm:$0xff]
  %v2372 = vld [vmem:[#allocation2 + $0xa8] sm:$0xff]
  %v2373 = vld [vmem:[#allocation2 + $0xb0] sm:$0xff]
  %v2374 = vld [vmem:[#allocation2 + $0xb8] sm:$0xff]
  %v2375 = vld [vmem:[#allocation2 + $0xc0] sm:$0xff]
  %v2376 = vld [vmem:[#allocation2 + $0xc8] sm:$0xff]
  %v2377 = vld [vmem:[#allocation2 + $0xd0] sm:$0xff]
  %v2378 = vld [vmem:[#allocation2 + $0xd8] sm:$0xff]
  %v2379 = vld [vmem:[#allocation2 + $0xe0] sm:$0xff]
  %v2380 = vld [vmem:[#allocation2 + $0xe8] sm:$0xff]
  %v2381 = vld [vmem:[#allocation2 + $0xf0] sm:$0xff]
  %v2382 = vld [vmem:[#allocation2 + $0xf8] sm:$0xff]
  %v2383 = vpack.c.bf16 %v2336, %v2335
  %v2384 = vpack.c.bf16 %v2338, %v2337
  %v2385 = vpack.c.bf16 %v2340, %v2339
  %v2386 = vpack.c.bf16 %v2342, %v2341
  %v2387 = vpack.c.bf16 %v2344, %v2343
  %v2388 = vpack.c.bf16 %v2346, %v2345
  %v2389 = vpack.c.bf16 %v2348, %v2347
  %v2390 = vpack.c.bf16 %v2350, %v2349
  %s2391 = scalar_lea.vmem %s2, 64
  %v2392 = vld [vmem:[%s2391] sm:$0xff]
  %v2393 = vld [vmem:[%s2391 + $0x8] sm:$0xff]
  %v2394 = vld [vmem:[%s2391 + $0x10] sm:$0xff]
  %v2395 = vld [vmem:[%s2391 + $0x18] sm:$0xff]
  %2404 = vrot.lane.b32.xlu0 %v2383, 32
  %v2405 = vpop.permute.xlu0 %2404
  %2406 = vrot.lane.b32.xlu0 %v2384, 32
  %v2407 = vpop.permute.xlu0 %2406
  %2408 = vrot.lane.b32.xlu0 %v2385, 32
  %v2409 = vpop.permute.xlu0 %2408
  %2410 = vrot.lane.b32.xlu0 %v2386, 32
  %v2411 = vpop.permute.xlu0 %2410
  %2412 = vrot.lane.b32.xlu0 %v2387, 32
  %v2413 = vpop.permute.xlu0 %2412
  %2414 = vrot.lane.b32.xlu0 %v2388, 32
  %v2415 = vpop.permute.xlu0 %2414
  %2416 = vrot.lane.b32.xlu0 %v2389, 32
  %v2417 = vpop.permute.xlu0 %2416
  %2418 = vrot.lane.b32.xlu0 %v2390, 32
  %v2419 = vpop.permute.xlu0 %2418
  %v2424 = vunpack.c.l.b16 %v2392
  %v2425 = vunpack.c.h.b16 %v2392
  %v2426 = vunpack.c.l.b16 %v2393
  %v2427 = vunpack.c.h.b16 %v2393
  %v2428 = vunpack.c.l.b16 %v2394
  %v2429 = vunpack.c.h.b16 %v2394
  %v2430 = vunpack.c.l.b16 %v2395
  %v2431 = vunpack.c.h.b16 %v2395
  %v2432 = vpack.c.b16 %v2426, %v2424
  %v2433 = vpack.c.b16 %v2427, %v2425
  %v2434 = vpack.c.b16 %v2430, %v2428
  %v2435 = vpack.c.b16 %v2431, %v2429
  %v2441 = vsel %vm83, %v2405, 0
  %v2444 = vsel %vm83, %v2407, 0
  %v2447 = vsel %vm83, %v2409, 0
  %v2450 = vsel %vm83, %v2411, 0
  %v2453 = vsel %vm83, %v2413, 0
  %v2456 = vsel %vm83, %v2415, 0
  %v2459 = vsel %vm83, %v2417, 0
  %v2462 = vsel %vm83, %v2419, 0
  %2464 = vmatprep.subr.bf16.mxu0 %v2433
  %2465 = vmatpush1.bf16.msra.mxu0 %v2432
  %2466 = vmatprep.subr.bf16.mxu0 %v2435
  %2467 = vmatpush1.bf16.msra.mxu0 %v2434
  %2468 = vmatprep.subr.bf16.mxu0 0
  %2469 = vmatpush1.bf16.msra.mxu0 0
  %2470 = vmatprep.subr.bf16.mxu0 0
  %2471 = vmatpush1.bf16.msra.mxu0 0
  %2472 = vmatprep.subr.bf16.mxu0 0
  %2473 = vmatpush1.bf16.msra.mxu0 0
  %2474 = vmatprep.subr.bf16.mxu0 0
  %2475 = vmatpush1.bf16.msra.mxu0 0
  %2476 = vmatprep.subr.bf16.mxu0 0
  %2477 = vmatpush1.bf16.msra.mxu0 0
  %2478 = vmatprep.subr.bf16.mxu0 0
  %2479 = vmatpush1.bf16.msra.mxu0 0
  %2480 = vmatprep.subr.bf16.mxu0 0
  %2481 = vmatpush1.bf16.msra.mxu0 0
  %2482 = vmatprep.subr.bf16.mxu0 0
  %2483 = vmatpush1.bf16.msra.mxu0 0
  %2484 = vmatprep.subr.bf16.mxu0 0
  %2485 = vmatpush1.bf16.msra.mxu0 0
  %2486 = vmatprep.subr.bf16.mxu0 0
  %2487 = vmatpush1.bf16.msra.mxu0 0
  %2488 = vmatprep.subr.bf16.mxu0 0
  %2489 = vmatpush1.bf16.msra.mxu0 0
  %2490 = vmatprep.subr.bf16.mxu0 0
  %2491 = vmatpush1.bf16.msra.mxu0 0
  %2492 = vmatprep.subr.bf16.mxu0 0
  %2493 = vmatpush1.bf16.msra.mxu0 0
  %2494 = vmatprep.subr.bf16.mxu0 0
  %2495 = vmatpush1.bf16.msra.mxu0 0
  %2496 = vmatprep.mubr.bf16.mxu0 0
  %2497 = vmatmul.mubr.bf16.gmra.mrb[0].mxu0 %v2441
  %v2498 = vpop.f32.mrb[0].mxu0
  %v2499 = vadd.f32 0.0, %v2498
  %v2500 = vpop.f32.mrb[0].mxu0
  %v2501 = vadd.f32 0.0, %v2500
  %v2502 = vpop.f32.mrb[0].mxu0
  %v2503 = vadd.f32 0.0, %v2502
  %v2504 = vpop.f32.mrb[0].mxu0
  %v2505 = vadd.f32 0.0, %v2504
  %2506 = vmatprep.mubr.bf16.mxu0 0
  %2507 = vmatmul.mubr.bf16.gmra.mrb[0].mxu0 %v2444
  %v2508 = vpop.f32.mrb[0].mxu0
  %v2509 = vadd.f32 0.0, %v2508
  %v2510 = vpop.f32.mrb[0].mxu0
  %v2511 = vadd.f32 0.0, %v2510
  %v2512 = vpop.f32.mrb[0].mxu0
  %v2513 = vadd.f32 0.0, %v2512
  %v2514 = vpop.f32.mrb[0].mxu0
  %v2515 = vadd.f32 0.0, %v2514
  %2516 = vmatprep.mubr.bf16.mxu0 0
  %2517 = vmatmul.mubr.bf16.gmra.mrb[0].mxu0 %v2447
  %v2518 = vpop.f32.mrb[0].mxu0
  %v2519 = vadd.f32 0.0, %v2518
  %v2520 = vpop.f32.mrb[0].mxu0
  %v2521 = vadd.f32 0.0, %v2520
  %v2522 = vpop.f32.mrb[0].mxu0
  %v2523 = vadd.f32 0.0, %v2522
  %v2524 = vpop.f32.mrb[0].mxu0
  %v2525 = vadd.f32 0.0, %v2524
  %2526 = vmatprep.mubr.bf16.mxu0 0
  %2527 = vmatmul.mubr.bf16.gmra.mrb[0].mxu0 %v2450
  %v2528 = vpop.f32.mrb[0].mxu0
  %v2529 = vadd.f32 0.0, %v2528
  %v2530 = vpop.f32.mrb[0].mxu0
  %v2531 = vadd.f32 0.0, %v2530
  %v2532 = vpop.f32.mrb[0].mxu0
  %v2533 = vadd.f32 0.0, %v2532
  %v2534 = vpop.f32.mrb[0].mxu0
  %v2535 = vadd.f32 0.0, %v2534
  %2536 = vmatprep.mubr.bf16.mxu0 0
  %2537 = vmatmul.mubr.bf16.gmra.mrb[0].mxu0 %v2453
  %v2538 = vpop.f32.mrb[0].mxu0
  %v2539 = vadd.f32 0.0, %v2538
  %v2540 = vpop.f32.mrb[0].mxu0
  %v2541 = vadd.f32 0.0, %v2540
  %v2542 = vpop.f32.mrb[0].mxu0
  %v2543 = vadd.f32 0.0, %v2542
  %v2544 = vpop.f32.mrb[0].mxu0
  %v2545 = vadd.f32 0.0, %v2544
  %2546 = vmatprep.mubr.bf16.mxu0 0
  %2547 = vmatmul.mubr.bf16.gmra.mrb[0].mxu0 %v2456
  %v2548 = vpop.f32.mrb[0].mxu0
  %v2549 = vadd.f32 0.0, %v2548
  %v2550 = vpop.f32.mrb[0].mxu0
  %v2551 = vadd.f32 0.0, %v2550
  %v2552 = vpop.f32.mrb[0].mxu0
  %v2553 = vadd.f32 0.0, %v2552
  %v2554 = vpop.f32.mrb[0].mxu0
  %v2555 = vadd.f32 0.0, %v2554
  %2556 = vmatprep.mubr.bf16.mxu0 0
  %2557 = vmatmul.mubr.bf16.gmra.mrb[0].mxu0 %v2459
  %v2558 = vpop.f32.mrb[0].mxu0
  %v2559 = vadd.f32 0.0, %v2558
  %v2560 = vpop.f32.mrb[0].mxu0
  %v2561 = vadd.f32 0.0, %v2560
  %v2562 = vpop.f32.mrb[0].mxu0
  %v2563 = vadd.f32 0.0, %v2562
  %v2564 = vpop.f32.mrb[0].mxu0
  %v2565 = vadd.f32 0.0, %v2564
  %2566 = vmatprep.mubr.bf16.mxu0 0
  %2567 = vmatmul.mubr.bf16.gmra.mrb[0].mxu0 %v2462
  %v2568 = vpop.f32.mrb[0].mxu0
  %v2569 = vadd.f32 0.0, %v2568
  %v2570 = vpop.f32.mrb[0].mxu0
  %v2571 = vadd.f32 0.0, %v2570
  %v2572 = vpop.f32.mrb[0].mxu0
  %v2573 = vadd.f32 0.0, %v2572
  %v2574 = vpop.f32.mrb[0].mxu0
  %v2575 = vadd.f32 0.0, %v2574
  %2576 = vdwg.mxu0
  %v2577 = vadd.f32 %v2351, %v2499
  %v2578 = vadd.f32 %v2352, %v2501
  %v2579 = vadd.f32 %v2353, %v2503
  %v2580 = vadd.f32 %v2354, %v2505
  %v2581 = vadd.f32 %v2355, %v2509
  %v2582 = vadd.f32 %v2356, %v2511
  %v2583 = vadd.f32 %v2357, %v2513
  %v2584 = vadd.f32 %v2358, %v2515
  %v2585 = vadd.f32 %v2359, %v2519
  %v2586 = vadd.f32 %v2360, %v2521
  %v2587 = vadd.f32 %v2361, %v2523
  %v2588 = vadd.f32 %v2362, %v2525
  %v2589 = vadd.f32 %v2363, %v2529
  %v2590 = vadd.f32 %v2364, %v2531
  %v2591 = vadd.f32 %v2365, %v2533
  %v2592 = vadd.f32 %v2366, %v2535
  %v2593 = vadd.f32 %v2367, %v2539
  %v2594 = vadd.f32 %v2368, %v2541
  %v2595 = vadd.f32 %v2369, %v2543
  %v2596 = vadd.f32 %v2370, %v2545
  %v2597 = vadd.f32 %v2371, %v2549
  %v2598 = vadd.f32 %v2372, %v2551
  %v2599 = vadd.f32 %v2373, %v2553
  %v2600 = vadd.f32 %v2374, %v2555
  %v2601 = vadd.f32 %v2375, %v2559
  %v2602 = vadd.f32 %v2376, %v2561
  %v2603 = vadd.f32 %v2377, %v2563
  %v2604 = vadd.f32 %v2378, %v2565
  %v2605 = vadd.f32 %v2379, %v2569
  %v2606 = vadd.f32 %v2380, %v2571
  %v2607 = vadd.f32 %v2381, %v2573
  %v2608 = vadd.f32 %v2382, %v2575
  %2609 = vst [vmem:[#allocation2] sm:$0xff] %v2577
  %2610 = vst [vmem:[#allocation2 + $0x8] sm:$0xff] %v2578
  %2611 = vst [vmem:[#allocation2 + $0x10] sm:$0xff] %v2579
  %2612 = vst [vmem:[#allocation2 + $0x18] sm:$0xff] %v2580
  %2613 = vst [vmem:[#allocation2 + $0x20] sm:$0xff] %v2581
  %2614 = vst [vmem:[#allocation2 + $0x28] sm:$0xff] %v2582
  %2615 = vst [vmem:[#allocation2 + $0x30] sm:$0xff] %v2583
  %2616 = vst [vmem:[#allocation2 + $0x38] sm:$0xff] %v2584
  %2617 = vst [vmem:[#allocation2 + $0x40] sm:$0xff] %v2585
  %2618 = vst [vmem:[#allocation2 + $0x48] sm:$0xff] %v2586
  %2619 = vst [vmem:[#allocation2 + $0x50] sm:$0xff] %v2587
  %2620 = vst [vmem:[#allocation2 + $0x58] sm:$0xff] %v2588
  %2621 = vst [vmem:[#allocation2 + $0x60] sm:$0xff] %v2589
  %2622 = vst [vmem:[#allocation2 + $0x68] sm:$0xff] %v2590
  %2623 = vst [vmem:[#allocation2 + $0x70] sm:$0xff] %v2591
  %2624 = vst [vmem:[#allocation2 + $0x78] sm:$0xff] %v2592
  %2625 = vst [vmem:[#allocation2 + $0x80] sm:$0xff] %v2593
  %2626 = vst [vmem:[#allocation2 + $0x88] sm:$0xff] %v2594
  %2627 = vst [vmem:[#allocation2 + $0x90] sm:$0xff] %v2595
  %2628 = vst [vmem:[#allocation2 + $0x98] sm:$0xff] %v2596
  %2629 = vst [vmem:[#allocation2 + $0xa0] sm:$0xff] %v2597
  %2630 = vst [vmem:[#allocation2 + $0xa8] sm:$0xff] %v2598
  %2631 = vst [vmem:[#allocation2 + $0xb0] sm:$0xff] %v2599
  %2632 = vst [vmem:[#allocation2 + $0xb8] sm:$0xff] %v2600
  %2633 = vst [vmem:[#allocation2 + $0xc0] sm:$0xff] %v2601
  %2634 = vst [vmem:[#allocation2 + $0xc8] sm:$0xff] %v2602
  %2635 = vst [vmem:[#allocation2 + $0xd0] sm:$0xff] %v2603
  %2636 = vst [vmem:[#allocation2 + $0xd8] sm:$0xff] %v2604
  %2637 = vst [vmem:[#allocation2 + $0xe0] sm:$0xff] %v2605
  %2638 = vst [vmem:[#allocation2 + $0xe8] sm:$0xff] %v2606
  %2639 = vst [vmem:[#allocation2 + $0xf0] sm:$0xff] %v2607
  %2640 = vst [vmem:[#allocation2 + $0xf8] sm:$0xff] %v2608
  %s2641 = scalar_lea.vmem %s0, 384
  %v2642 = vld [vmem:[%s2641] sm:$0xff]
  %v2643 = vld [vmem:[%s2641 + $0x8] sm:$0xff]
  %v2644 = vld [vmem:[%s2641 + $0x10] sm:$0xff]
  %v2645 = vld [vmem:[%s2641 + $0x18] sm:$0xff]
  %v2646 = vld [vmem:[%s2641 + $0x20] sm:$0xff]
  %v2647 = vld [vmem:[%s2641 + $0x28] sm:$0xff]
  %v2648 = vld [vmem:[%s2641 + $0x30] sm:$0xff]
  %v2649 = vld [vmem:[%s2641 + $0x38] sm:$0xff]
  %v2650 = vld [vmem:[%s2641 + $0x40] sm:$0xff]
  %v2651 = vld [vmem:[%s2641 + $0x48] sm:$0xff]
  %v2652 = vld [vmem:[%s2641 + $0x50] sm:$0xff]
  %v2653 = vld [vmem:[%s2641 + $0x58] sm:$0xff]
  %v2654 = vld [vmem:[%s2641 + $0x60] sm:$0xff]
  %v2655 = vld [vmem:[%s2641 + $0x68] sm:$0xff]
  %v2656 = vld [vmem:[%s2641 + $0x70] sm:$0xff]
  %v2657 = vld [vmem:[%s2641 + $0x78] sm:$0xff]
  %2674 = vrot.lane.b32.xlu0 %v2335, 32
  %v2675 = vpop.permute.xlu0 %2674
  %2676 = vrot.lane.b32.xlu0 %v2336, 32
  %v2677 = vpop.permute.xlu0 %2676
  %2678 = vrot.lane.b32.xlu0 %v2337, 32
  %v2679 = vpop.permute.xlu0 %2678
  %2680 = vrot.lane.b32.xlu0 %v2338, 32
  %v2681 = vpop.permute.xlu0 %2680
  %2682 = vrot.lane.b32.xlu0 %v2339, 32
  %v2683 = vpop.permute.xlu0 %2682
  %2684 = vrot.lane.b32.xlu0 %v2340, 32
  %v2685 = vpop.permute.xlu0 %2684
  %2686 = vrot.lane.b32.xlu0 %v2341, 32
  %v2687 = vpop.permute.xlu0 %2686
  %2688 = vrot.lane.b32.xlu0 %v2342, 32
  %v2689 = vpop.permute.xlu0 %2688
  %2690 = vrot.lane.b32.xlu0 %v2343, 32
  %v2691 = vpop.permute.xlu0 %2690
  %2692 = vrot.lane.b32.xlu0 %v2344, 32
  %v2693 = vpop.permute.xlu0 %2692
  %2694 = vrot.lane.b32.xlu0 %v2345, 32
  %v2695 = vpop.permute.xlu0 %2694
  %2696 = vrot.lane.b32.xlu0 %v2346, 32
  %v2697 = vpop.permute.xlu0 %2696
  %2698 = vrot.lane.b32.xlu0 %v2347, 32
  %v2699 = vpop.permute.xlu0 %2698
  %2700 = vrot.lane.b32.xlu0 %v2348, 32
  %v2701 = vpop.permute.xlu0 %2700
  %2702 = vrot.lane.b32.xlu0 %v2349, 32
  %v2703 = vpop.permute.xlu0 %2702
  %2704 = vrot.lane.b32.xlu0 %v2350, 32
  %v2705 = vpop.permute.xlu0 %2704
  %v2706 = vsel %vm83, %v2675, 0
  %v2708 = vsel %vm83, %v2677, 0
  %v2710 = vsel %vm83, %v2679, 0
  %v2712 = vsel %vm83, %v2681, 0
  %v2714 = vsel %vm83, %v2683, 0
  %v2716 = vsel %vm83, %v2685, 0
  %v2718 = vsel %vm83, %v2687, 0
  %v2720 = vsel %vm83, %v2689, 0
  %v2722 = vsel %vm83, %v2691, 0
  %v2724 = vsel %vm83, %v2693, 0
  %v2726 = vsel %vm83, %v2695, 0
  %v2728 = vsel %vm83, %v2697, 0
  %v2730 = vsel %vm83, %v2699, 0
  %v2732 = vsel %vm83, %v2701, 0
  %v2734 = vsel %vm83, %v2703, 0
  %v2736 = vsel %vm83, %v2705, 0
  %2738 = vmatprep.subr.mxu0 0.0
  %2739 = vmatpush1.msra.mxu0 %v31
  %2740 = vmatprep.subr.mxu0 0.0
  %2741 = vmatpush1.msra.mxu0 %v32
  %2742 = vmatprep.subr.mxu0 0.0
  %2743 = vmatpush1.msra.mxu0 %v33
  %2744 = vmatprep.subr.mxu0 0.0
  %2745 = vmatpush1.msra.mxu0 %v34
  %2746 = vmatprep.subr.mxu0 0.0
  %2747 = vmatpush1.msra.mxu0 0.0
  %2748 = vmatprep.subr.mxu0 0.0
  %2749 = vmatpush1.msra.mxu0 0.0
  %2750 = vmatprep.subr.mxu0 0.0
  %2751 = vmatpush1.msra.mxu0 0.0
  %2752 = vmatprep.subr.mxu0 0.0
  %2753 = vmatpush1.msra.mxu0 0.0
  %2754 = vmatprep.subr.mxu0 0.0
  %2755 = vmatpush1.msra.mxu0 0.0
  %2756 = vmatprep.subr.mxu0 0.0
  %2757 = vmatpush1.msra.mxu0 0.0
  %2758 = vmatprep.subr.mxu0 0.0
  %2759 = vmatpush1.msra.mxu0 0.0
  %2760 = vmatprep.subr.mxu0 0.0
  %2761 = vmatpush1.msra.mxu0 0.0
  %2762 = vmatprep.subr.mxu0 0.0
  %2763 = vmatpush1.msra.mxu0 0.0
  %2764 = vmatprep.subr.mxu0 0.0
  %2765 = vmatpush1.msra.mxu0 0.0
  %2766 = vmatprep.subr.mxu0 0.0
  %2767 = vmatpush1.msra.mxu0 0.0
  %2768 = vmatprep.subr.mxu0 0.0
  %2769 = vmatpush1.msra.mxu0 0.0
  %2770 = vmatprep.subr.mxu0 0.0
  %2771 = vmatpush1.msra.mxu0 0.0
  %2772 = vmatprep.subr.mxu0 0.0
  %2773 = vmatpush1.msra.mxu0 0.0
  %2774 = vmatprep.subr.mxu0 0.0
  %2775 = vmatpush1.msra.mxu0 0.0
  %2776 = vmatprep.subr.mxu0 0.0
  %2777 = vmatpush1.msra.mxu0 0.0
  %2778 = vmatprep.subr.mxu0 0.0
  %2779 = vmatpush1.msra.mxu0 0.0
  %2780 = vmatprep.subr.mxu0 0.0
  %2781 = vmatpush1.msra.mxu0 0.0
  %2782 = vmatprep.subr.mxu0 0.0
  %2783 = vmatpush1.msra.mxu0 0.0
  %2784 = vmatprep.subr.mxu0 0.0
  %2785 = vmatpush1.msra.mxu0 0.0
  %2786 = vmatprep.subr.mxu0 0.0
  %2787 = vmatpush1.msra.mxu0 0.0
  %2788 = vmatprep.subr.mxu0 0.0
  %2789 = vmatpush1.msra.mxu0 0.0
  %2790 = vmatprep.subr.mxu0 0.0
  %2791 = vmatpush1.msra.mxu0 0.0
  %2792 = vmatprep.subr.mxu0 0.0
  %2793 = vmatpush1.msra.mxu0 0.0
  %2794 = vmatprep.subr.mxu0 0.0
  %2795 = vmatpush1.msra.mxu0 0.0
  %2796 = vmatprep.subr.mxu0 0.0
  %2797 = vmatpush1.msra.mxu0 0.0
  %2798 = vmatprep.subr.mxu0 0.0
  %2799 = vmatpush1.msra.mxu0 0.0
  %2800 = vmatprep.subr.mxu0 0.0
  %2801 = vmatpush1.msra.mxu0 0.0
  %2802 = vmatprep.mubr.f32.mxu0 0.0
  %2803 = vmatmul.mubr.f32.gmra.mrb[0].mxu0 %v2706
  %v2804 = vpop.f32.mrb[0].mxu0
  %v2805 = vadd.f32 0.0, %v2804
  %v2806 = vpop.f32.mrb[0].mxu0
  %2807 = vmatprep.mubr.f32.mxu0 0.0
  %2808 = vmatmul.mubr.f32.gmra.mrb[0].mxu0 %v2708
  %v2809 = vpop.f32.mrb[0].mxu0
  %v2810 = vadd.f32 0.0, %v2809
  %v2811 = vpop.f32.mrb[0].mxu0
  %2812 = vmatprep.mubr.f32.mxu0 0.0
  %2813 = vmatmul.mubr.f32.gmra.mrb[0].mxu0 %v2710
  %v2814 = vpop.f32.mrb[0].mxu0
  %v2815 = vadd.f32 0.0, %v2814
  %v2816 = vpop.f32.mrb[0].mxu0
  %2817 = vmatprep.mubr.f32.mxu0 0.0
  %2818 = vmatmul.mubr.f32.gmra.mrb[0].mxu0 %v2712
  %v2819 = vpop.f32.mrb[0].mxu0
  %v2820 = vadd.f32 0.0, %v2819
  %v2821 = vpop.f32.mrb[0].mxu0
  %2822 = vmatprep.mubr.f32.mxu0 0.0
  %2823 = vmatmul.mubr.f32.gmra.mrb[0].mxu0 %v2714
  %v2824 = vpop.f32.mrb[0].mxu0
  %v2825 = vadd.f32 0.0, %v2824
  %v2826 = vpop.f32.mrb[0].mxu0
  %2827 = vmatprep.mubr.f32.mxu0 0.0
  %2828 = vmatmul.mubr.f32.gmra.mrb[0].mxu0 %v2716
  %v2829 = vpop.f32.mrb[0].mxu0
  %v2830 = vadd.f32 0.0, %v2829
  %v2831 = vpop.f32.mrb[0].mxu0
  %2832 = vmatprep.mubr.f32.mxu0 0.0
  %2833 = vmatmul.mubr.f32.gmra.mrb[0].mxu0 %v2718
  %v2834 = vpop.f32.mrb[0].mxu0
  %v2835 = vadd.f32 0.0, %v2834
  %v2836 = vpop.f32.mrb[0].mxu0
  %2837 = vmatprep.mubr.f32.mxu0 0.0
  %2838 = vmatmul.mubr.f32.gmra.mrb[0].mxu0 %v2720
  %v2839 = vpop.f32.mrb[0].mxu0
  %v2840 = vadd.f32 0.0, %v2839
  %v2841 = vpop.f32.mrb[0].mxu0
  %2842 = vmatprep.mubr.f32.mxu0 0.0
  %2843 = vmatmul.mubr.f32.gmra.mrb[0].mxu0 %v2722
  %v2844 = vpop.f32.mrb[0].mxu0
  %v2845 = vadd.f32 0.0, %v2844
  %v2846 = vpop.f32.mrb[0].mxu0
  %2847 = vmatprep.mubr.f32.mxu0 0.0
  %2848 = vmatmul.mubr.f32.gmra.mrb[0].mxu0 %v2724
  %v2849 = vpop.f32.mrb[0].mxu0
  %v2850 = vadd.f32 0.0, %v2849
  %v2851 = vpop.f32.mrb[0].mxu0
  %2852 = vmatprep.mubr.f32.mxu0 0.0
  %2853 = vmatmul.mubr.f32.gmra.mrb[0].mxu0 %v2726
  %v2854 = vpop.f32.mrb[0].mxu0
  %v2855 = vadd.f32 0.0, %v2854
  %v2856 = vpop.f32.mrb[0].mxu0
  %2857 = vmatprep.mubr.f32.mxu0 0.0
  %2858 = vmatmul.mubr.f32.gmra.mrb[0].mxu0 %v2728
  %v2859 = vpop.f32.mrb[0].mxu0
  %v2860 = vadd.f32 0.0, %v2859
  %v2861 = vpop.f32.mrb[0].mxu0
  %2862 = vmatprep.mubr.f32.mxu0 0.0
  %2863 = vmatmul.mubr.f32.gmra.mrb[0].mxu0 %v2730
  %v2864 = vpop.f32.mrb[0].mxu0
  %v2865 = vadd.f32 0.0, %v2864
  %v2866 = vpop.f32.mrb[0].mxu0
  %2867 = vmatprep.mubr.f32.mxu0 0.0
  %2868 = vmatmul.mubr.f32.gmra.mrb[0].mxu0 %v2732
  %v2869 = vpop.f32.mrb[0].mxu0
  %v2870 = vadd.f32 0.0, %v2869
  %v2871 = vpop.f32.mrb[0].mxu0
  %2872 = vmatprep.mubr.f32.mxu0 0.0
  %2873 = vmatmul.mubr.f32.gmra.mrb[0].mxu0 %v2734
  %v2874 = vpop.f32.mrb[0].mxu0
  %v2875 = vadd.f32 0.0, %v2874
  %v2876 = vpop.f32.mrb[0].mxu0
  %2877 = vmatprep.mubr.f32.mxu0 0.0
  %2878 = vmatmul.mubr.f32.gmra.mrb[0].mxu0 %v2736
  %v2879 = vpop.f32.mrb[0].mxu0
  %v2880 = vadd.f32 0.0, %v2879
  %v2881 = vpop.f32.mrb[0].mxu0
  %2882 = vdwg.mxu0
  %v2883 = vadd.f32 %v2642, %v2805
  %v2884 = vadd.f32 %v2643, %v2810
  %v2885 = vadd.f32 %v2644, %v2815
  %v2886 = vadd.f32 %v2645, %v2820
  %v2887 = vadd.f32 %v2646, %v2825
  %v2888 = vadd.f32 %v2647, %v2830
  %v2889 = vadd.f32 %v2648, %v2835
  %v2890 = vadd.f32 %v2649, %v2840
  %v2891 = vadd.f32 %v2650, %v2845
  %v2892 = vadd.f32 %v2651, %v2850
  %v2893 = vadd.f32 %v2652, %v2855
  %v2894 = vadd.f32 %v2653, %v2860
  %v2895 = vadd.f32 %v2654, %v2865
  %v2896 = vadd.f32 %v2655, %v2870
  %v2897 = vadd.f32 %v2656, %v2875
  %v2898 = vadd.f32 %v2657, %v2880
  %v2899 = vmul.f32 %v2883, %v29
  %v2900 = vmul.f32 %v2884, %v29
  %v2901 = vmul.f32 %v2885, %v29
  %v2902 = vmul.f32 %v2886, %v29
  %v2903 = vmul.f32 %v2887, %v29
  %v2904 = vmul.f32 %v2888, %v29
  %v2905 = vmul.f32 %v2889, %v29
  %v2906 = vmul.f32 %v2890, %v29
  %v2907 = vmul.f32 %v2891, %v29
  %v2908 = vmul.f32 %v2892, %v29
  %v2909 = vmul.f32 %v2893, %v29
  %v2910 = vmul.f32 %v2894, %v29
  %v2911 = vmul.f32 %v2895, %v29
  %v2912 = vmul.f32 %v2896, %v29
  %v2913 = vmul.f32 %v2897, %v29
  %v2914 = vmul.f32 %v2898, %v29
  %v2915 = vtanh.pop %v2899
  %v2916 = vtanh.pop %v2900
  %v2917 = vtanh.pop %v2901
  %v2918 = vtanh.pop %v2902
  %v2919 = vtanh.pop %v2903
  %v2920 = vtanh.pop %v2904
  %v2921 = vtanh.pop %v2905
  %v2922 = vtanh.pop %v2906
  %v2923 = vtanh.pop %v2907
  %v2924 = vtanh.pop %v2908
  %v2925 = vtanh.pop %v2909
  %v2926 = vtanh.pop %v2910
  %v2927 = vtanh.pop %v2911
  %v2928 = vtanh.pop %v2912
  %v2929 = vtanh.pop %v2913
  %v2930 = vtanh.pop %v2914
  %v2931 = vmul.f32 %v2915, %v29
  %v2932 = vmul.f32 %v2916, %v29
  %v2933 = vmul.f32 %v2917, %v29
  %v2934 = vmul.f32 %v2918, %v29
  %v2935 = vmul.f32 %v2919, %v29
  %v2936 = vmul.f32 %v2920, %v29
  %v2937 = vmul.f32 %v2921, %v29
  %v2938 = vmul.f32 %v2922, %v29
  %v2939 = vmul.f32 %v2923, %v29
  %v2940 = vmul.f32 %v2924, %v29
  %v2941 = vmul.f32 %v2925, %v29
  %v2942 = vmul.f32 %v2926, %v29
  %v2943 = vmul.f32 %v2927, %v29
  %v2944 = vmul.f32 %v2928, %v29
  %v2945 = vmul.f32 %v2929, %v29
  %v2946 = vmul.f32 %v2930, %v29
  %v2947 = vadd.f32 %v2931, %v30
  %v2948 = vadd.f32 %v2932, %v30
  %v2949 = vadd.f32 %v2933, %v30
  %v2950 = vadd.f32 %v2934, %v30
  %v2951 = vadd.f32 %v2935, %v30
  %v2952 = vadd.f32 %v2936, %v30
  %v2953 = vadd.f32 %v2937, %v30
  %v2954 = vadd.f32 %v2938, %v30
  %v2955 = vadd.f32 %v2939, %v30
  %v2956 = vadd.f32 %v2940, %v30
  %v2957 = vadd.f32 %v2941, %v30
  %v2958 = vadd.f32 %v2942, %v30
  %v2959 = vadd.f32 %v2943, %v30
  %v2960 = vadd.f32 %v2944, %v30
  %v2961 = vadd.f32 %v2945, %v30
  %v2962 = vadd.f32 %v2946, %v30
  %v2963 = vmul.f32 %v2947, %v2239
  %v2964 = vmul.f32 %v2948, %v2240
  %v2965 = vmul.f32 %v2949, %v2241
  %v2966 = vmul.f32 %v2950, %v2242
  %v2967 = vmul.f32 %v2951, %v2243
  %v2968 = vmul.f32 %v2952, %v2244
  %v2969 = vmul.f32 %v2953, %v2245
  %v2970 = vmul.f32 %v2954, %v2246
  %v2971 = vmul.f32 %v2955, %v2247
  %v2972 = vmul.f32 %v2956, %v2248
  %v2973 = vmul.f32 %v2957, %v2249
  %v2974 = vmul.f32 %v2958, %v2250
  %v2975 = vmul.f32 %v2959, %v2251
  %v2976 = vmul.f32 %v2960, %v2252
  %v2977 = vmul.f32 %v2961, %v2253
  %v2978 = vmul.f32 %v2962, %v2254
  %2995 = vrot.lane.b32.xlu0 %v2947, 64
  %v2996 = vpop.permute.xlu0 %2995
  %2997 = vrot.lane.b32.xlu0 %v2948, 64
  %v2998 = vpop.permute.xlu0 %2997
  %2999 = vrot.lane.b32.xlu0 %v2949, 64
  %v3000 = vpop.permute.xlu0 %2999
  %3001 = vrot.lane.b32.xlu0 %v2950, 64
  %v3002 = vpop.permute.xlu0 %3001
  %3003 = vrot.lane.b32.xlu0 %v2951, 64
  %v3004 = vpop.permute.xlu0 %3003
  %3005 = vrot.lane.b32.xlu0 %v2952, 64
  %v3006 = vpop.permute.xlu0 %3005
  %3007 = vrot.lane.b32.xlu0 %v2953, 64
  %v3008 = vpop.permute.xlu0 %3007
  %3009 = vrot.lane.b32.xlu0 %v2954, 64
  %v3010 = vpop.permute.xlu0 %3009
  %3011 = vrot.lane.b32.xlu0 %v2955, 64
  %v3012 = vpop.permute.xlu0 %3011
  %3013 = vrot.lane.b32.xlu0 %v2956, 64
  %v3014 = vpop.permute.xlu0 %3013
  %3015 = vrot.lane.b32.xlu0 %v2957, 64
  %v3016 = vpop.permute.xlu0 %3015
  %3017 = vrot.lane.b32.xlu0 %v2958, 64
  %v3018 = vpop.permute.xlu0 %3017
  %3019 = vrot.lane.b32.xlu0 %v2959, 64
  %v3020 = vpop.permute.xlu0 %3019
  %3021 = vrot.lane.b32.xlu0 %v2960, 64
  %v3022 = vpop.permute.xlu0 %3021
  %3023 = vrot.lane.b32.xlu0 %v2961, 64
  %v3024 = vpop.permute.xlu0 %3023
  %3025 = vrot.lane.b32.xlu0 %v2962, 64
  %v3026 = vpop.permute.xlu0 %3025
  %v3043 = vmul.f32 %v2947, %v2996
  %v3044 = vmul.f32 %v2948, %v2998
  %v3045 = vmul.f32 %v2949, %v3000
  %v3046 = vmul.f32 %v2950, %v3002
  %v3047 = vmul.f32 %v2951, %v3004
  %v3048 = vmul.f32 %v2952, %v3006
  %v3049 = vmul.f32 %v2953, %v3008
  %v3050 = vmul.f32 %v2954, %v3010
  %v3051 = vmul.f32 %v2955, %v3012
  %v3052 = vmul.f32 %v2956, %v3014
  %v3053 = vmul.f32 %v2957, %v3016
  %v3054 = vmul.f32 %v2958, %v3018
  %v3055 = vmul.f32 %v2959, %v3020
  %v3056 = vmul.f32 %v2960, %v3022
  %v3057 = vmul.f32 %v2961, %v3024
  %v3058 = vmul.f32 %v2962, %v3026
  %3075 = vrot.lane.b32.xlu0 %v3043, 32
  %v3076 = vpop.permute.xlu0 %3075
  %3077 = vrot.lane.b32.xlu0 %v3044, 32
  %v3078 = vpop.permute.xlu0 %3077
  %3079 = vrot.lane.b32.xlu0 %v3045, 32
  %v3080 = vpop.permute.xlu0 %3079
  %3081 = vrot.lane.b32.xlu0 %v3046, 32
  %v3082 = vpop.permute.xlu0 %3081
  %3083 = vrot.lane.b32.xlu0 %v3047, 32
  %v3084 = vpop.permute.xlu0 %3083
  %3085 = vrot.lane.b32.xlu0 %v3048, 32
  %v3086 = vpop.permute.xlu0 %3085
  %3087 = vrot.lane.b32.xlu0 %v3049, 32
  %v3088 = vpop.permute.xlu0 %3087
  %3089 = vrot.lane.b32.xlu0 %v3050, 32
  %v3090 = vpop.permute.xlu0 %3089
  %3091 = vrot.lane.b32.xlu0 %v3051, 32
  %v3092 = vpop.permute.xlu0 %3091
  %3093 = vrot.lane.b32.xlu0 %v3052, 32
  %v3094 = vpop.permute.xlu0 %3093
  %3095 = vrot.lane.b32.xlu0 %v3053, 32
  %v3096 = vpop.permute.xlu0 %3095
  %3097 = vrot.lane.b32.xlu0 %v3054, 32
  %v3098 = vpop.permute.xlu0 %3097
  %3099 = vrot.lane.b32.xlu0 %v3055, 32
  %v3100 = vpop.permute.xlu0 %3099
  %3101 = vrot.lane.b32.xlu0 %v3056, 32
  %v3102 = vpop.permute.xlu0 %3101
  %3103 = vrot.lane.b32.xlu0 %v3057, 32
  %v3104 = vpop.permute.xlu0 %3103
  %3105 = vrot.lane.b32.xlu0 %v3058, 32
  %v3106 = vpop.permute.xlu0 %3105
  %v3123 = vadd.f32 %v2963, %v3076
  %v3124 = vadd.f32 %v2964, %v3078
  %v3125 = vadd.f32 %v2965, %v3080
  %v3126 = vadd.f32 %v2966, %v3082
  %v3127 = vadd.f32 %v2967, %v3084
  %v3128 = vadd.f32 %v2968, %v3086
  %v3129 = vadd.f32 %v2969, %v3088
  %v3130 = vadd.f32 %v2970, %v3090
  %v3131 = vadd.f32 %v2971, %v3092
  %v3132 = vadd.f32 %v2972, %v3094
  %v3133 = vadd.f32 %v2973, %v3096
  %v3134 = vadd.f32 %v2974, %v3098
  %v3135 = vadd.f32 %v2975, %v3100
  %v3136 = vadd.f32 %v2976, %v3102
  %v3137 = vadd.f32 %v2977, %v3104
  %v3138 = vadd.f32 %v2978, %v3106
  %v3139 = vtanh.pop %v3123
  %v3140 = vtanh.pop %v3124
  %v3141 = vtanh.pop %v3125
  %v3142 = vtanh.pop %v3126
  %v3143 = vtanh.pop %v3127
  %v3144 = vtanh.pop %v3128
  %v3145 = vtanh.pop %v3129
  %v3146 = vtanh.pop %v3130
  %v3147 = vtanh.pop %v3131
  %v3148 = vtanh.pop %v3132
  %v3149 = vtanh.pop %v3133
  %v3150 = vtanh.pop %v3134
  %v3151 = vtanh.pop %v3135
  %v3152 = vtanh.pop %v3136
  %v3153 = vtanh.pop %v3137
  %v3154 = vtanh.pop %v3138
  %3171 = vrot.lane.b32.xlu0 %v3139, 64
  %v3172 = vpop.permute.xlu0 %3171
  %3173 = vrot.lane.b32.xlu0 %v3140, 64
  %v3174 = vpop.permute.xlu0 %3173
  %3175 = vrot.lane.b32.xlu0 %v3141, 64
  %v3176 = vpop.permute.xlu0 %3175
  %3177 = vrot.lane.b32.xlu0 %v3142, 64
  %v3178 = vpop.permute.xlu0 %3177
  %3179 = vrot.lane.b32.xlu0 %v3143, 64
  %v3180 = vpop.permute.xlu0 %3179
  %3181 = vrot.lane.b32.xlu0 %v3144, 64
  %v3182 = vpop.permute.xlu0 %3181
  %3183 = vrot.lane.b32.xlu0 %v3145, 64
  %v3184 = vpop.permute.xlu0 %3183
  %3185 = vrot.lane.b32.xlu0 %v3146, 64
  %v3186 = vpop.permute.xlu0 %3185
  %3187 = vrot.lane.b32.xlu0 %v3147, 64
  %v3188 = vpop.permute.xlu0 %3187
  %3189 = vrot.lane.b32.xlu0 %v3148, 64
  %v3190 = vpop.permute.xlu0 %3189
  %3191 = vrot.lane.b32.xlu0 %v3149, 64
  %v3192 = vpop.permute.xlu0 %3191
  %3193 = vrot.lane.b32.xlu0 %v3150, 64
  %v3194 = vpop.permute.xlu0 %3193
  %3195 = vrot.lane.b32.xlu0 %v3151, 64
  %v3196 = vpop.permute.xlu0 %3195
  %3197 = vrot.lane.b32.xlu0 %v3152, 64
  %v3198 = vpop.permute.xlu0 %3197
  %3199 = vrot.lane.b32.xlu0 %v3153, 64
  %v3200 = vpop.permute.xlu0 %3199
  %3201 = vrot.lane.b32.xlu0 %v3154, 64
  %v3202 = vpop.permute.xlu0 %3201
  %v3219 = vmul.f32 %v2947, %v3172
  %v3220 = vmul.f32 %v2948, %v3174
  %v3221 = vmul.f32 %v2949, %v3176
  %v3222 = vmul.f32 %v2950, %v3178
  %v3223 = vmul.f32 %v2951, %v3180
  %v3224 = vmul.f32 %v2952, %v3182
  %v3225 = vmul.f32 %v2953, %v3184
  %v3226 = vmul.f32 %v2954, %v3186
  %v3227 = vmul.f32 %v2955, %v3188
  %v3228 = vmul.f32 %v2956, %v3190
  %v3229 = vmul.f32 %v2957, %v3192
  %v3230 = vmul.f32 %v2958, %v3194
  %v3231 = vmul.f32 %v2959, %v3196
  %v3232 = vmul.f32 %v2960, %v3198
  %v3233 = vmul.f32 %v2961, %v3200
  %v3234 = vmul.f32 %v2962, %v3202
  %v3235 = vld [vmem:[#allocation2] sm:$0xff]
  %v3236 = vld [vmem:[#allocation2 + $0x8] sm:$0xff]
  %v3237 = vld [vmem:[#allocation2 + $0x10] sm:$0xff]
  %v3238 = vld [vmem:[#allocation2 + $0x18] sm:$0xff]
  %v3239 = vld [vmem:[#allocation2 + $0x20] sm:$0xff]
  %v3240 = vld [vmem:[#allocation2 + $0x28] sm:$0xff]
  %v3241 = vld [vmem:[#allocation2 + $0x30] sm:$0xff]
  %v3242 = vld [vmem:[#allocation2 + $0x38] sm:$0xff]
  %v3243 = vld [vmem:[#allocation2 + $0x40] sm:$0xff]
  %v3244 = vld [vmem:[#allocation2 + $0x48] sm:$0xff]
  %v3245 = vld [vmem:[#allocation2 + $0x50] sm:$0xff]
  %v3246 = vld [vmem:[#allocation2 + $0x58] sm:$0xff]
  %v3247 = vld [vmem:[#allocation2 + $0x60] sm:$0xff]
  %v3248 = vld [vmem:[#allocation2 + $0x68] sm:$0xff]
  %v3249 = vld [vmem:[#allocation2 + $0x70] sm:$0xff]
  %v3250 = vld [vmem:[#allocation2 + $0x78] sm:$0xff]
  %v3251 = vld [vmem:[#allocation2 + $0x80] sm:$0xff]
  %v3252 = vld [vmem:[#allocation2 + $0x88] sm:$0xff]
  %v3253 = vld [vmem:[#allocation2 + $0x90] sm:$0xff]
  %v3254 = vld [vmem:[#allocation2 + $0x98] sm:$0xff]
  %v3255 = vld [vmem:[#allocation2 + $0xa0] sm:$0xff]
  %v3256 = vld [vmem:[#allocation2 + $0xa8] sm:$0xff]
  %v3257 = vld [vmem:[#allocation2 + $0xb0] sm:$0xff]
  %v3258 = vld [vmem:[#allocation2 + $0xb8] sm:$0xff]
  %v3259 = vld [vmem:[#allocation2 + $0xc0] sm:$0xff]
  %v3260 = vld [vmem:[#allocation2 + $0xc8] sm:$0xff]
  %v3261 = vld [vmem:[#allocation2 + $0xd0] sm:$0xff]
  %v3262 = vld [vmem:[#allocation2 + $0xd8] sm:$0xff]
  %v3263 = vld [vmem:[#allocation2 + $0xe0] sm:$0xff]
  %v3264 = vld [vmem:[#allocation2 + $0xe8] sm:$0xff]
  %v3265 = vld [vmem:[#allocation2 + $0xf0] sm:$0xff]
  %v3266 = vld [vmem:[#allocation2 + $0xf8] sm:$0xff]
  %v3267 = vpack.c.bf16 %v3220, %v3219
  %v3268 = vpack.c.bf16 %v3222, %v3221
  %v3269 = vpack.c.bf16 %v3224, %v3223
  %v3270 = vpack.c.bf16 %v3226, %v3225
  %v3271 = vpack.c.bf16 %v3228, %v3227
  %v3272 = vpack.c.bf16 %v3230, %v3229
  %v3273 = vpack.c.bf16 %v3232, %v3231
  %v3274 = vpack.c.bf16 %v3234, %v3233
  %s3275 = scalar_lea.vmem %s2, 96
  %v3276 = vld [vmem:[%s3275] sm:$0xff]
  %v3277 = vld [vmem:[%s3275 + $0x8] sm:$0xff]
  %v3278 = vld [vmem:[%s3275 + $0x10] sm:$0xff]
  %v3279 = vld [vmem:[%s3275 + $0x18] sm:$0xff]
  %3288 = vrot.lane.b32.xlu0 %v3267, 32
  %v3289 = vpop.permute.xlu0 %3288
  %3290 = vrot.lane.b32.xlu0 %v3268, 32
  %v3291 = vpop.permute.xlu0 %3290
  %3292 = vrot.lane.b32.xlu0 %v3269, 32
  %v3293 = vpop.permute.xlu0 %3292
  %3294 = vrot.lane.b32.xlu0 %v3270, 32
  %v3295 = vpop.permute.xlu0 %3294
  %3296 = vrot.lane.b32.xlu0 %v3271, 32
  %v3297 = vpop.permute.xlu0 %3296
  %3298 = vrot.lane.b32.xlu0 %v3272, 32
  %v3299 = vpop.permute.xlu0 %3298
  %3300 = vrot.lane.b32.xlu0 %v3273, 32
  %v3301 = vpop.permute.xlu0 %3300
  %3302 = vrot.lane.b32.xlu0 %v3274, 32
  %v3303 = vpop.permute.xlu0 %3302
  %v3308 = vunpack.c.l.b16 %v3276
  %v3309 = vunpack.c.h.b16 %v3276
  %v3310 = vunpack.c.l.b16 %v3277
  %v3311 = vunpack.c.h.b16 %v3277
  %v3312 = vunpack.c.l.b16 %v3278
  %v3313 = vunpack.c.h.b16 %v3278
  %v3314 = vunpack.c.l.b16 %v3279
  %v3315 = vunpack.c.h.b16 %v3279
  %v3316 = vpack.c.b16 %v3310, %v3308
  %v3317 = vpack.c.b16 %v3311, %v3309
  %v3318 = vpack.c.b16 %v3314, %v3312
  %v3319 = vpack.c.b16 %v3315, %v3313
  %v3325 = vsel %vm83, %v3289, 0
  %v3328 = vsel %vm83, %v3291, 0
  %v3331 = vsel %vm83, %v3293, 0
  %v3334 = vsel %vm83, %v3295, 0
  %v3337 = vsel %vm83, %v3297, 0
  %v3340 = vsel %vm83, %v3299, 0
  %v3343 = vsel %vm83, %v3301, 0
  %v3346 = vsel %vm83, %v3303, 0
  %3348 = vmatprep.subr.bf16.mxu0 %v3317
  %3349 = vmatpush1.bf16.msra.mxu0 %v3316
  %3350 = vmatprep.subr.bf16.mxu0 %v3319
  %3351 = vmatpush1.bf16.msra.mxu0 %v3318
  %3352 = vmatprep.subr.bf16.mxu0 0
  %3353 = vmatpush1.bf16.msra.mxu0 0
  %3354 = vmatprep.subr.bf16.mxu0 0
  %3355 = vmatpush1.bf16.msra.mxu0 0
  %3356 = vmatprep.subr.bf16.mxu0 0
  %3357 = vmatpush1.bf16.msra.mxu0 0
  %3358 = vmatprep.subr.bf16.mxu0 0
  %3359 = vmatpush1.bf16.msra.mxu0 0
  %3360 = vmatprep.subr.bf16.mxu0 0
  %3361 = vmatpush1.bf16.msra.mxu0 0
  %3362 = vmatprep.subr.bf16.mxu0 0
  %3363 = vmatpush1.bf16.msra.mxu0 0
  %3364 = vmatprep.subr.bf16.mxu0 0
  %3365 = vmatpush1.bf16.msra.mxu0 0
  %3366 = vmatprep.subr.bf16.mxu0 0
  %3367 = vmatpush1.bf16.msra.mxu0 0
  %3368 = vmatprep.subr.bf16.mxu0 0
  %3369 = vmatpush1.bf16.msra.mxu0 0
  %3370 = vmatprep.subr.bf16.mxu0 0
  %3371 = vmatpush1.bf16.msra.mxu0 0
  %3372 = vmatprep.subr.bf16.mxu0 0
  %3373 = vmatpush1.bf16.msra.mxu0 0
  %3374 = vmatprep.subr.bf16.mxu0 0
  %3375 = vmatpush1.bf16.msra.mxu0 0
  %3376 = vmatprep.subr.bf16.mxu0 0
  %3377 = vmatpush1.bf16.msra.mxu0 0
  %3378 = vmatprep.subr.bf16.mxu0 0
  %3379 = vmatpush1.bf16.msra.mxu0 0
  %3380 = vmatprep.mubr.bf16.mxu0 0
  %3381 = vmatmul.mubr.bf16.gmra.mrb[0].mxu0 %v3325
  %v3382 = vpop.f32.mrb[0].mxu0
  %v3383 = vadd.f32 0.0, %v3382
  %v3384 = vpop.f32.mrb[0].mxu0
  %v3385 = vadd.f32 0.0, %v3384
  %v3386 = vpop.f32.mrb[0].mxu0
  %v3387 = vadd.f32 0.0, %v3386
  %v3388 = vpop.f32.mrb[0].mxu0
  %v3389 = vadd.f32 0.0, %v3388
  %3390 = vmatprep.mubr.bf16.mxu0 0
  %3391 = vmatmul.mubr.bf16.gmra.mrb[0].mxu0 %v3328
  %v3392 = vpop.f32.mrb[0].mxu0
  %v3393 = vadd.f32 0.0, %v3392
  %v3394 = vpop.f32.mrb[0].mxu0
  %v3395 = vadd.f32 0.0, %v3394
  %v3396 = vpop.f32.mrb[0].mxu0
  %v3397 = vadd.f32 0.0, %v3396
  %v3398 = vpop.f32.mrb[0].mxu0
  %v3399 = vadd.f32 0.0, %v3398
  %3400 = vmatprep.mubr.bf16.mxu0 0
  %3401 = vmatmul.mubr.bf16.gmra.mrb[0].mxu0 %v3331
  %v3402 = vpop.f32.mrb[0].mxu0
  %v3403 = vadd.f32 0.0, %v3402
  %v3404 = vpop.f32.mrb[0].mxu0
  %v3405 = vadd.f32 0.0, %v3404
  %v3406 = vpop.f32.mrb[0].mxu0
  %v3407 = vadd.f32 0.0, %v3406
  %v3408 = vpop.f32.mrb[0].mxu0
  %v3409 = vadd.f32 0.0, %v3408
  %3410 = vmatprep.mubr.bf16.mxu0 0
  %3411 = vmatmul.mubr.bf16.gmra.mrb[0].mxu0 %v3334
  %v3412 = vpop.f32.mrb[0].mxu0
  %v3413 = vadd.f32 0.0, %v3412
  %v3414 = vpop.f32.mrb[0].mxu0
  %v3415 = vadd.f32 0.0, %v3414
  %v3416 = vpop.f32.mrb[0].mxu0
  %v3417 = vadd.f32 0.0, %v3416
  %v3418 = vpop.f32.mrb[0].mxu0
  %v3419 = vadd.f32 0.0, %v3418
  %3420 = vmatprep.mubr.bf16.mxu0 0
  %3421 = vmatmul.mubr.bf16.gmra.mrb[0].mxu0 %v3337
  %v3422 = vpop.f32.mrb[0].mxu0
  %v3423 = vadd.f32 0.0, %v3422
  %v3424 = vpop.f32.mrb[0].mxu0
  %v3425 = vadd.f32 0.0, %v3424
  %v3426 = vpop.f32.mrb[0].mxu0
  %v3427 = vadd.f32 0.0, %v3426
  %v3428 = vpop.f32.mrb[0].mxu0
  %v3429 = vadd.f32 0.0, %v3428
  %3430 = vmatprep.mubr.bf16.mxu0 0
  %3431 = vmatmul.mubr.bf16.gmra.mrb[0].mxu0 %v3340
  %v3432 = vpop.f32.mrb[0].mxu0
  %v3433 = vadd.f32 0.0, %v3432
  %v3434 = vpop.f32.mrb[0].mxu0
  %v3435 = vadd.f32 0.0, %v3434
  %v3436 = vpop.f32.mrb[0].mxu0
  %v3437 = vadd.f32 0.0, %v3436
  %v3438 = vpop.f32.mrb[0].mxu0
  %v3439 = vadd.f32 0.0, %v3438
  %3440 = vmatprep.mubr.bf16.mxu0 0
  %3441 = vmatmul.mubr.bf16.gmra.mrb[0].mxu0 %v3343
  %v3442 = vpop.f32.mrb[0].mxu0
  %v3443 = vadd.f32 0.0, %v3442
  %v3444 = vpop.f32.mrb[0].mxu0
  %v3445 = vadd.f32 0.0, %v3444
  %v3446 = vpop.f32.mrb[0].mxu0
  %v3447 = vadd.f32 0.0, %v3446
  %v3448 = vpop.f32.mrb[0].mxu0
  %v3449 = vadd.f32 0.0, %v3448
  %3450 = vmatprep.mubr.bf16.mxu0 0
  %3451 = vmatmul.mubr.bf16.gmra.mrb[0].mxu0 %v3346
  %v3452 = vpop.f32.mrb[0].mxu0
  %v3453 = vadd.f32 0.0, %v3452
  %v3454 = vpop.f32.mrb[0].mxu0
  %v3455 = vadd.f32 0.0, %v3454
  %v3456 = vpop.f32.mrb[0].mxu0
  %v3457 = vadd.f32 0.0, %v3456
  %v3458 = vpop.f32.mrb[0].mxu0
  %v3459 = vadd.f32 0.0, %v3458
  %3460 = vdwg.mxu0
  %v3461 = vadd.f32 %v3235, %v3383
  %v3462 = vadd.f32 %v3236, %v3385
  %v3463 = vadd.f32 %v3237, %v3387
  %v3464 = vadd.f32 %v3238, %v3389
  %v3465 = vadd.f32 %v3239, %v3393
  %v3466 = vadd.f32 %v3240, %v3395
  %v3467 = vadd.f32 %v3241, %v3397
  %v3468 = vadd.f32 %v3242, %v3399
  %v3469 = vadd.f32 %v3243, %v3403
  %v3470 = vadd.f32 %v3244, %v3405
  %v3471 = vadd.f32 %v3245, %v3407
  %v3472 = vadd.f32 %v3246, %v3409
  %v3473 = vadd.f32 %v3247, %v3413
  %v3474 = vadd.f32 %v3248, %v3415
  %v3475 = vadd.f32 %v3249, %v3417
  %v3476 = vadd.f32 %v3250, %v3419
  %v3477 = vadd.f32 %v3251, %v3423
  %v3478 = vadd.f32 %v3252, %v3425
  %v3479 = vadd.f32 %v3253, %v3427
  %v3480 = vadd.f32 %v3254, %v3429
  %v3481 = vadd.f32 %v3255, %v3433
  %v3482 = vadd.f32 %v3256, %v3435
  %v3483 = vadd.f32 %v3257, %v3437
  %v3484 = vadd.f32 %v3258, %v3439
  %v3485 = vadd.f32 %v3259, %v3443
  %v3486 = vadd.f32 %v3260, %v3445
  %v3487 = vadd.f32 %v3261, %v3447
  %v3488 = vadd.f32 %v3262, %v3449
  %v3489 = vadd.f32 %v3263, %v3453
  %v3490 = vadd.f32 %v3264, %v3455
  %v3491 = vadd.f32 %v3265, %v3457
  %v3492 = vadd.f32 %v3266, %v3459
  %3493 = vst [vmem:[#allocation2] sm:$0xff] %v3461
  %3494 = vst [vmem:[#allocation2 + $0x8] sm:$0xff] %v3462
  %3495 = vst [vmem:[#allocation2 + $0x10] sm:$0xff] %v3463
  %3496 = vst [vmem:[#allocation2 + $0x18] sm:$0xff] %v3464
  %3497 = vst [vmem:[#allocation2 + $0x20] sm:$0xff] %v3465
  %3498 = vst [vmem:[#allocation2 + $0x28] sm:$0xff] %v3466
  %3499 = vst [vmem:[#allocation2 + $0x30] sm:$0xff] %v3467
  %3500 = vst [vmem:[#allocation2 + $0x38] sm:$0xff] %v3468
  %3501 = vst [vmem:[#allocation2 + $0x40] sm:$0xff] %v3469
  %3502 = vst [vmem:[#allocation2 + $0x48] sm:$0xff] %v3470
  %3503 = vst [vmem:[#allocation2 + $0x50] sm:$0xff] %v3471
  %3504 = vst [vmem:[#allocation2 + $0x58] sm:$0xff] %v3472
  %3505 = vst [vmem:[#allocation2 + $0x60] sm:$0xff] %v3473
  %3506 = vst [vmem:[#allocation2 + $0x68] sm:$0xff] %v3474
  %3507 = vst [vmem:[#allocation2 + $0x70] sm:$0xff] %v3475
  %3508 = vst [vmem:[#allocation2 + $0x78] sm:$0xff] %v3476
  %3509 = vst [vmem:[#allocation2 + $0x80] sm:$0xff] %v3477
  %3510 = vst [vmem:[#allocation2 + $0x88] sm:$0xff] %v3478
  %3511 = vst [vmem:[#allocation2 + $0x90] sm:$0xff] %v3479
  %3512 = vst [vmem:[#allocation2 + $0x98] sm:$0xff] %v3480
  %3513 = vst [vmem:[#allocation2 + $0xa0] sm:$0xff] %v3481
  %3514 = vst [vmem:[#allocation2 + $0xa8] sm:$0xff] %v3482
  %3515 = vst [vmem:[#allocation2 + $0xb0] sm:$0xff] %v3483
  %3516 = vst [vmem:[#allocation2 + $0xb8] sm:$0xff] %v3484
  %3517 = vst [vmem:[#allocation2 + $0xc0] sm:$0xff] %v3485
  %3518 = vst [vmem:[#allocation2 + $0xc8] sm:$0xff] %v3486
  %3519 = vst [vmem:[#allocation2 + $0xd0] sm:$0xff] %v3487
  %3520 = vst [vmem:[#allocation2 + $0xd8] sm:$0xff] %v3488
  %3521 = vst [vmem:[#allocation2 + $0xe0] sm:$0xff] %v3489
  %3522 = vst [vmem:[#allocation2 + $0xe8] sm:$0xff] %v3490
  %3523 = vst [vmem:[#allocation2 + $0xf0] sm:$0xff] %v3491
  %3524 = vst [vmem:[#allocation2 + $0xf8] sm:$0xff] %v3492
  %s3525 = scalar_lea.vmem %s0, 512
  %v3526 = vld [vmem:[%s3525] sm:$0xff]
  %v3527 = vld [vmem:[%s3525 + $0x8] sm:$0xff]
  %v3528 = vld [vmem:[%s3525 + $0x10] sm:$0xff]
  %v3529 = vld [vmem:[%s3525 + $0x18] sm:$0xff]
  %v3530 = vld [vmem:[%s3525 + $0x20] sm:$0xff]
  %v3531 = vld [vmem:[%s3525 + $0x28] sm:$0xff]
  %v3532 = vld [vmem:[%s3525 + $0x30] sm:$0xff]
  %v3533 = vld [vmem:[%s3525 + $0x38] sm:$0xff]
  %v3534 = vld [vmem:[%s3525 + $0x40] sm:$0xff]
  %v3535 = vld [vmem:[%s3525 + $0x48] sm:$0xff]
  %v3536 = vld [vmem:[%s3525 + $0x50] sm:$0xff]
  %v3537 = vld [vmem:[%s3525 + $0x58] sm:$0xff]
  %v3538 = vld [vmem:[%s3525 + $0x60] sm:$0xff]
  %v3539 = vld [vmem:[%s3525 + $0x68] sm:$0xff]
  %v3540 = vld [vmem:[%s3525 + $0x70] sm:$0xff]
  %v3541 = vld [vmem:[%s3525 + $0x78] sm:$0xff]
  %3558 = vrot.lane.b32.xlu0 %v3219, 32
  %v3559 = vpop.permute.xlu0 %3558
  %3560 = vrot.lane.b32.xlu0 %v3220, 32
  %v3561 = vpop.permute.xlu0 %3560
  %3562 = vrot.lane.b32.xlu0 %v3221, 32
  %v3563 = vpop.permute.xlu0 %3562
  %3564 = vrot.lane.b32.xlu0 %v3222, 32
  %v3565 = vpop.permute.xlu0 %3564
  %3566 = vrot.lane.b32.xlu0 %v3223, 32
  %v3567 = vpop.permute.xlu0 %3566
  %3568 = vrot.lane.b32.xlu0 %v3224, 32
  %v3569 = vpop.permute.xlu0 %3568
  %3570 = vrot.lane.b32.xlu0 %v3225, 32
  %v3571 = vpop.permute.xlu0 %3570
  %3572 = vrot.lane.b32.xlu0 %v3226, 32
  %v3573 = vpop.permute.xlu0 %3572
  %3574 = vrot.lane.b32.xlu0 %v3227, 32
  %v3575 = vpop.permute.xlu0 %3574
  %3576 = vrot.lane.b32.xlu0 %v3228, 32
  %v3577 = vpop.permute.xlu0 %3576
  %3578 = vrot.lane.b32.xlu0 %v3229, 32
  %v3579 = vpop.permute.xlu0 %3578
  %3580 = vrot.lane.b32.xlu0 %v3230, 32
  %v3581 = vpop.permute.xlu0 %3580
  %3582 = vrot.lane.b32.xlu0 %v3231, 32
  %v3583 = vpop.permute.xlu0 %3582
  %3584 = vrot.lane.b32.xlu0 %v3232, 32
  %v3585 = vpop.permute.xlu0 %3584
  %3586 = vrot.lane.b32.xlu0 %v3233, 32
  %v3587 = vpop.permute.xlu0 %3586
  %3588 = vrot.lane.b32.xlu0 %v3234, 32
  %v3589 = vpop.permute.xlu0 %3588
  %v3590 = vsel %vm83, %v3559, 0
  %v3592 = vsel %vm83, %v3561, 0
  %v3594 = vsel %vm83, %v3563, 0
  %v3596 = vsel %vm83, %v3565, 0
  %v3598 = vsel %vm83, %v3567, 0
  %v3600 = vsel %vm83, %v3569, 0
  %v3602 = vsel %vm83, %v3571, 0
  %v3604 = vsel %vm83, %v3573, 0
  %v3606 = vsel %vm83, %v3575, 0
  %v3608 = vsel %vm83, %v3577, 0
  %v3610 = vsel %vm83, %v3579, 0
  %v3612 = vsel %vm83, %v3581, 0
  %v3614 = vsel %vm83, %v3583, 0
  %v3616 = vsel %vm83, %v3585, 0
  %v3618 = vsel %vm83, %v3587, 0
  %v3620 = vsel %vm83, %v3589, 0
  %3622 = vmatprep.subr.mxu0 0.0
  %3623 = vmatpush1.msra.mxu0 %v31
  %3624 = vmatprep.subr.mxu0 0.0
  %3625 = vmatpush1.msra.mxu0 %v32
  %3626 = vmatprep.subr.mxu0 0.0
  %3627 = vmatpush1.msra.mxu0 %v33
  %3628 = vmatprep.subr.mxu0 0.0
  %3629 = vmatpush1.msra.mxu0 %v34
  %3630 = vmatprep.subr.mxu0 0.0
  %3631 = vmatpush1.msra.mxu0 0.0
  %3632 = vmatprep.subr.mxu0 0.0
  %3633 = vmatpush1.msra.mxu0 0.0
  %3634 = vmatprep.subr.mxu0 0.0
  %3635 = vmatpush1.msra.mxu0 0.0
  %3636 = vmatprep.subr.mxu0 0.0
  %3637 = vmatpush1.msra.mxu0 0.0
  %3638 = vmatprep.subr.mxu0 0.0
  %3639 = vmatpush1.msra.mxu0 0.0
  %3640 = vmatprep.subr.mxu0 0.0
  %3641 = vmatpush1.msra.mxu0 0.0
  %3642 = vmatprep.subr.mxu0 0.0
  %3643 = vmatpush1.msra.mxu0 0.0
  %3644 = vmatprep.subr.mxu0 0.0
  %3645 = vmatpush1.msra.mxu0 0.0
  %3646 = vmatprep.subr.mxu0 0.0
  %3647 = vmatpush1.msra.mxu0 0.0
  %3648 = vmatprep.subr.mxu0 0.0
  %3649 = vmatpush1.msra.mxu0 0.0
  %3650 = vmatprep.subr.mxu0 0.0
  %3651 = vmatpush1.msra.mxu0 0.0
  %3652 = vmatprep.subr.mxu0 0.0
  %3653 = vmatpush1.msra.mxu0 0.0
  %3654 = vmatprep.subr.mxu0 0.0
  %3655 = vmatpush1.msra.mxu0 0.0
  %3656 = vmatprep.subr.mxu0 0.0
  %3657 = vmatpush1.msra.mxu0 0.0
  %3658 = vmatprep.subr.mxu0 0.0
  %3659 = vmatpush1.msra.mxu0 0.0
  %3660 = vmatprep.subr.mxu0 0.0
  %3661 = vmatpush1.msra.mxu0 0.0
  %3662 = vmatprep.subr.mxu0 0.0
  %3663 = vmatpush1.msra.mxu0 0.0
  %3664 = vmatprep.subr.mxu0 0.0
  %3665 = vmatpush1.msra.mxu0 0.0
  %3666 = vmatprep.subr.mxu0 0.0
  %3667 = vmatpush1.msra.mxu0 0.0
  %3668 = vmatprep.subr.mxu0 0.0
  %3669 = vmatpush1.msra.mxu0 0.0
  %3670 = vmatprep.subr.mxu0 0.0
  %3671 = vmatpush1.msra.mxu0 0.0
  %3672 = vmatprep.subr.mxu0 0.0
  %3673 = vmatpush1.msra.mxu0 0.0
  %3674 = vmatprep.subr.mxu0 0.0
  %3675 = vmatpush1.msra.mxu0 0.0
  %3676 = vmatprep.subr.mxu0 0.0
  %3677 = vmatpush1.msra.mxu0 0.0
  %3678 = vmatprep.subr.mxu0 0.0
  %3679 = vmatpush1.msra.mxu0 0.0
  %3680 = vmatprep.subr.mxu0 0.0
  %3681 = vmatpush1.msra.mxu0 0.0
  %3682 = vmatprep.subr.mxu0 0.0
  %3683 = vmatpush1.msra.mxu0 0.0
  %3684 = vmatprep.subr.mxu0 0.0
  %3685 = vmatpush1.msra.mxu0 0.0
  %3686 = vmatprep.mubr.f32.mxu0 0.0
  %3687 = vmatmul.mubr.f32.gmra.mrb[0].mxu0 %v3590
  %v3688 = vpop.f32.mrb[0].mxu0
  %v3689 = vadd.f32 0.0, %v3688
  %v3690 = vpop.f32.mrb[0].mxu0
  %3691 = vmatprep.mubr.f32.mxu0 0.0
  %3692 = vmatmul.mubr.f32.gmra.mrb[0].mxu0 %v3592
  %v3693 = vpop.f32.mrb[0].mxu0
  %v3694 = vadd.f32 0.0, %v3693
  %v3695 = vpop.f32.mrb[0].mxu0
  %3696 = vmatprep.mubr.f32.mxu0 0.0
  %3697 = vmatmul.mubr.f32.gmra.mrb[0].mxu0 %v3594
  %v3698 = vpop.f32.mrb[0].mxu0
  %v3699 = vadd.f32 0.0, %v3698
  %v3700 = vpop.f32.mrb[0].mxu0
  %3701 = vmatprep.mubr.f32.mxu0 0.0
  %3702 = vmatmul.mubr.f32.gmra.mrb[0].mxu0 %v3596
  %v3703 = vpop.f32.mrb[0].mxu0
  %v3704 = vadd.f32 0.0, %v3703
  %v3705 = vpop.f32.mrb[0].mxu0
  %3706 = vmatprep.mubr.f32.mxu0 0.0
  %3707 = vmatmul.mubr.f32.gmra.mrb[0].mxu0 %v3598
  %v3708 = vpop.f32.mrb[0].mxu0
  %v3709 = vadd.f32 0.0, %v3708
  %v3710 = vpop.f32.mrb[0].mxu0
  %3711 = vmatprep.mubr.f32.mxu0 0.0
  %3712 = vmatmul.mubr.f32.gmra.mrb[0].mxu0 %v3600
  %v3713 = vpop.f32.mrb[0].mxu0
  %v3714 = vadd.f32 0.0, %v3713
  %v3715 = vpop.f32.mrb[0].mxu0
  %3716 = vmatprep.mubr.f32.mxu0 0.0
  %3717 = vmatmul.mubr.f32.gmra.mrb[0].mxu0 %v3602
  %v3718 = vpop.f32.mrb[0].mxu0
  %v3719 = vadd.f32 0.0, %v3718
  %v3720 = vpop.f32.mrb[0].mxu0
  %3721 = vmatprep.mubr.f32.mxu0 0.0
  %3722 = vmatmul.mubr.f32.gmra.mrb[0].mxu0 %v3604
  %v3723 = vpop.f32.mrb[0].mxu0
  %v3724 = vadd.f32 0.0, %v3723
  %v3725 = vpop.f32.mrb[0].mxu0
  %3726 = vmatprep.mubr.f32.mxu0 0.0
  %3727 = vmatmul.mubr.f32.gmra.mrb[0].mxu0 %v3606
  %v3728 = vpop.f32.mrb[0].mxu0
  %v3729 = vadd.f32 0.0, %v3728
  %v3730 = vpop.f32.mrb[0].mxu0
  %3731 = vmatprep.mubr.f32.mxu0 0.0
  %3732 = vmatmul.mubr.f32.gmra.mrb[0].mxu0 %v3608
  %v3733 = vpop.f32.mrb[0].mxu0
  %v3734 = vadd.f32 0.0, %v3733
  %v3735 = vpop.f32.mrb[0].mxu0
  %3736 = vmatprep.mubr.f32.mxu0 0.0
  %3737 = vmatmul.mubr.f32.gmra.mrb[0].mxu0 %v3610
  %v3738 = vpop.f32.mrb[0].mxu0
  %v3739 = vadd.f32 0.0, %v3738
  %v3740 = vpop.f32.mrb[0].mxu0
  %3741 = vmatprep.mubr.f32.mxu0 0.0
  %3742 = vmatmul.mubr.f32.gmra.mrb[0].mxu0 %v3612
  %v3743 = vpop.f32.mrb[0].mxu0
  %v3744 = vadd.f32 0.0, %v3743
  %v3745 = vpop.f32.mrb[0].mxu0
  %3746 = vmatprep.mubr.f32.mxu0 0.0
  %3747 = vmatmul.mubr.f32.gmra.mrb[0].mxu0 %v3614
  %v3748 = vpop.f32.mrb[0].mxu0
  %v3749 = vadd.f32 0.0, %v3748
  %v3750 = vpop.f32.mrb[0].mxu0
  %3751 = vmatprep.mubr.f32.mxu0 0.0
  %3752 = vmatmul.mubr.f32.gmra.mrb[0].mxu0 %v3616
  %v3753 = vpop.f32.mrb[0].mxu0
  %v3754 = vadd.f32 0.0, %v3753
  %v3755 = vpop.f32.mrb[0].mxu0
  %3756 = vmatprep.mubr.f32.mxu0 0.0
  %3757 = vmatmul.mubr.f32.gmra.mrb[0].mxu0 %v3618
  %v3758 = vpop.f32.mrb[0].mxu0
  %v3759 = vadd.f32 0.0, %v3758
  %v3760 = vpop.f32.mrb[0].mxu0
  %3761 = vmatprep.mubr.f32.mxu0 0.0
  %3762 = vmatmul.mubr.f32.gmra.mrb[0].mxu0 %v3620
  %v3763 = vpop.f32.mrb[0].mxu0
  %v3764 = vadd.f32 0.0, %v3763
  %v3765 = vpop.f32.mrb[0].mxu0
  %3766 = vdwg.mxu0
  %v3767 = vadd.f32 %v3526, %v3689
  %v3768 = vadd.f32 %v3527, %v3694
  %v3769 = vadd.f32 %v3528, %v3699
  %v3770 = vadd.f32 %v3529, %v3704
  %v3771 = vadd.f32 %v3530, %v3709
  %v3772 = vadd.f32 %v3531, %v3714
  %v3773 = vadd.f32 %v3532, %v3719
  %v3774 = vadd.f32 %v3533, %v3724
  %v3775 = vadd.f32 %v3534, %v3729
  %v3776 = vadd.f32 %v3535, %v3734
  %v3777 = vadd.f32 %v3536, %v3739
  %v3778 = vadd.f32 %v3537, %v3744
  %v3779 = vadd.f32 %v3538, %v3749
  %v3780 = vadd.f32 %v3539, %v3754
  %v3781 = vadd.f32 %v3540, %v3759
  %v3782 = vadd.f32 %v3541, %v3764
  %v3783 = vmul.f32 %v3767, %v29
  %v3784 = vmul.f32 %v3768, %v29
  %v3785 = vmul.f32 %v3769, %v29
  %v3786 = vmul.f32 %v3770, %v29
  %v3787 = vmul.f32 %v3771, %v29
  %v3788 = vmul.f32 %v3772, %v29
  %v3789 = vmul.f32 %v3773, %v29
  %v3790 = vmul.f32 %v3774, %v29
  %v3791 = vmul.f32 %v3775, %v29
  %v3792 = vmul.f32 %v3776, %v29
  %v3793 = vmul.f32 %v3777, %v29
  %v3794 = vmul.f32 %v3778, %v29
  %v3795 = vmul.f32 %v3779, %v29
  %v3796 = vmul.f32 %v3780, %v29
  %v3797 = vmul.f32 %v3781, %v29
  %v3798 = vmul.f32 %v3782, %v29
  %v3799 = vtanh.pop %v3783
  %v3800 = vtanh.pop %v3784
  %v3801 = vtanh.pop %v3785
  %v3802 = vtanh.pop %v3786
  %v3803 = vtanh.pop %v3787
  %v3804 = vtanh.pop %v3788
  %v3805 = vtanh.pop %v3789
  %v3806 = vtanh.pop %v3790
  %v3807 = vtanh.pop %v3791
  %v3808 = vtanh.pop %v3792
  %v3809 = vtanh.pop %v3793
  %v3810 = vtanh.pop %v3794
  %v3811 = vtanh.pop %v3795
  %v3812 = vtanh.pop %v3796
  %v3813 = vtanh.pop %v3797
  %v3814 = vtanh.pop %v3798
  %v3815 = vmul.f32 %v3799, %v29
  %v3816 = vmul.f32 %v3800, %v29
  %v3817 = vmul.f32 %v3801, %v29
  %v3818 = vmul.f32 %v3802, %v29
  %v3819 = vmul.f32 %v3803, %v29
  %v3820 = vmul.f32 %v3804, %v29
  %v3821 = vmul.f32 %v3805, %v29
  %v3822 = vmul.f32 %v3806, %v29
  %v3823 = vmul.f32 %v3807, %v29
  %v3824 = vmul.f32 %v3808, %v29
  %v3825 = vmul.f32 %v3809, %v29
  %v3826 = vmul.f32 %v3810, %v29
  %v3827 = vmul.f32 %v3811, %v29
  %v3828 = vmul.f32 %v3812, %v29
  %v3829 = vmul.f32 %v3813, %v29
  %v3830 = vmul.f32 %v3814, %v29
  %v3831 = vadd.f32 %v3815, %v30
  %v3832 = vadd.f32 %v3816, %v30
  %v3833 = vadd.f32 %v3817, %v30
  %v3834 = vadd.f32 %v3818, %v30
  %v3835 = vadd.f32 %v3819, %v30
  %v3836 = vadd.f32 %v3820, %v30
  %v3837 = vadd.f32 %v3821, %v30
  %v3838 = vadd.f32 %v3822, %v30
  %v3839 = vadd.f32 %v3823, %v30
  %v3840 = vadd.f32 %v3824, %v30
  %v3841 = vadd.f32 %v3825, %v30
  %v3842 = vadd.f32 %v3826, %v30
  %v3843 = vadd.f32 %v3827, %v30
  %v3844 = vadd.f32 %v3828, %v30
  %v3845 = vadd.f32 %v3829, %v30
  %v3846 = vadd.f32 %v3830, %v30
  %v3847 = vmul.f32 %v3831, %v3123
  %v3848 = vmul.f32 %v3832, %v3124
  %v3849 = vmul.f32 %v3833, %v3125
  %v3850 = vmul.f32 %v3834, %v3126
  %v3851 = vmul.f32 %v3835, %v3127
  %v3852 = vmul.f32 %v3836, %v3128
  %v3853 = vmul.f32 %v3837, %v3129
  %v3854 = vmul.f32 %v3838, %v3130
  %v3855 = vmul.f32 %v3839, %v3131
  %v3856 = vmul.f32 %v3840, %v3132
  %v3857 = vmul.f32 %v3841, %v3133
  %v3858 = vmul.f32 %v3842, %v3134
  %v3859 = vmul.f32 %v3843, %v3135
  %v3860 = vmul.f32 %v3844, %v3136
  %v3861 = vmul.f32 %v3845, %v3137
  %v3862 = vmul.f32 %v3846, %v3138
  %3879 = vrot.lane.b32.xlu0 %v3831, 64
  %v3880 = vpop.permute.xlu0 %3879
  %3881 = vrot.lane.b32.xlu0 %v3832, 64
  %v3882 = vpop.permute.xlu0 %3881
  %3883 = vrot.lane.b32.xlu0 %v3833, 64
  %v3884 = vpop.permute.xlu0 %3883
  %3885 = vrot.lane.b32.xlu0 %v3834, 64
  %v3886 = vpop.permute.xlu0 %3885
  %3887 = vrot.lane.b32.xlu0 %v3835, 64
  %v3888 = vpop.permute.xlu0 %3887
  %3889 = vrot.lane.b32.xlu0 %v3836, 64
  %v3890 = vpop.permute.xlu0 %3889
  %3891 = vrot.lane.b32.xlu0 %v3837, 64
  %v3892 = vpop.permute.xlu0 %3891
  %3893 = vrot.lane.b32.xlu0 %v3838, 64
  %v3894 = vpop.permute.xlu0 %3893
  %3895 = vrot.lane.b32.xlu0 %v3839, 64
  %v3896 = vpop.permute.xlu0 %3895
  %3897 = vrot.lane.b32.xlu0 %v3840, 64
  %v3898 = vpop.permute.xlu0 %3897
  %3899 = vrot.lane.b32.xlu0 %v3841, 64
  %v3900 = vpop.permute.xlu0 %3899
  %3901 = vrot.lane.b32.xlu0 %v3842, 64
  %v3902 = vpop.permute.xlu0 %3901
  %3903 = vrot.lane.b32.xlu0 %v3843, 64
  %v3904 = vpop.permute.xlu0 %3903
  %3905 = vrot.lane.b32.xlu0 %v3844, 64
  %v3906 = vpop.permute.xlu0 %3905
  %3907 = vrot.lane.b32.xlu0 %v3845, 64
  %v3908 = vpop.permute.xlu0 %3907
  %3909 = vrot.lane.b32.xlu0 %v3846, 64
  %v3910 = vpop.permute.xlu0 %3909
  %v3927 = vmul.f32 %v3831, %v3880
  %v3928 = vmul.f32 %v3832, %v3882
  %v3929 = vmul.f32 %v3833, %v3884
  %v3930 = vmul.f32 %v3834, %v3886
  %v3931 = vmul.f32 %v3835, %v3888
  %v3932 = vmul.f32 %v3836, %v3890
  %v3933 = vmul.f32 %v3837, %v3892
  %v3934 = vmul.f32 %v3838, %v3894
  %v3935 = vmul.f32 %v3839, %v3896
  %v3936 = vmul.f32 %v3840, %v3898
  %v3937 = vmul.f32 %v3841, %v3900
  %v3938 = vmul.f32 %v3842, %v3902
  %v3939 = vmul.f32 %v3843, %v3904
  %v3940 = vmul.f32 %v3844, %v3906
  %v3941 = vmul.f32 %v3845, %v3908
  %v3942 = vmul.f32 %v3846, %v3910
  %3959 = vrot.lane.b32.xlu0 %v3927, 32
  %v3960 = vpop.permute.xlu0 %3959
  %3961 = vrot.lane.b32.xlu0 %v3928, 32
  %v3962 = vpop.permute.xlu0 %3961
  %3963 = vrot.lane.b32.xlu0 %v3929, 32
  %v3964 = vpop.permute.xlu0 %3963
  %3965 = vrot.lane.b32.xlu0 %v3930, 32
  %v3966 = vpop.permute.xlu0 %3965
  %3967 = vrot.lane.b32.xlu0 %v3931, 32
  %v3968 = vpop.permute.xlu0 %3967
  %3969 = vrot.lane.b32.xlu0 %v3932, 32
  %v3970 = vpop.permute.xlu0 %3969
  %3971 = vrot.lane.b32.xlu0 %v3933, 32
  %v3972 = vpop.permute.xlu0 %3971
  %3973 = vrot.lane.b32.xlu0 %v3934, 32
  %v3974 = vpop.permute.xlu0 %3973
  %3975 = vrot.lane.b32.xlu0 %v3935, 32
  %v3976 = vpop.permute.xlu0 %3975
  %3977 = vrot.lane.b32.xlu0 %v3936, 32
  %v3978 = vpop.permute.xlu0 %3977
  %3979 = vrot.lane.b32.xlu0 %v3937, 32
  %v3980 = vpop.permute.xlu0 %3979
  %3981 = vrot.lane.b32.xlu0 %v3938, 32
  %v3982 = vpop.permute.xlu0 %3981
  %3983 = vrot.lane.b32.xlu0 %v3939, 32
  %v3984 = vpop.permute.xlu0 %3983
  %3985 = vrot.lane.b32.xlu0 %v3940, 32
  %v3986 = vpop.permute.xlu0 %3985
  %3987 = vrot.lane.b32.xlu0 %v3941, 32
  %v3988 = vpop.permute.xlu0 %3987
  %3989 = vrot.lane.b32.xlu0 %v3942, 32
  %v3990 = vpop.permute.xlu0 %3989
  %v4007 = vadd.f32 %v3847, %v3960
  %v4008 = vadd.f32 %v3848, %v3962
  %v4009 = vadd.f32 %v3849, %v3964
  %v4010 = vadd.f32 %v3850, %v3966
  %v4011 = vadd.f32 %v3851, %v3968
  %v4012 = vadd.f32 %v3852, %v3970
  %v4013 = vadd.f32 %v3853, %v3972
  %v4014 = vadd.f32 %v3854, %v3974
  %v4015 = vadd.f32 %v3855, %v3976
  %v4016 = vadd.f32 %v3856, %v3978
  %v4017 = vadd.f32 %v3857, %v3980
  %v4018 = vadd.f32 %v3858, %v3982
  %v4019 = vadd.f32 %v3859, %v3984
  %v4020 = vadd.f32 %v3860, %v3986
  %v4021 = vadd.f32 %v3861, %v3988
  %v4022 = vadd.f32 %v3862, %v3990
  %v4023 = vtanh.pop %v4007
  %v4024 = vtanh.pop %v4008
  %v4025 = vtanh.pop %v4009
  %v4026 = vtanh.pop %v4010
  %v4027 = vtanh.pop %v4011
  %v4028 = vtanh.pop %v4012
  %v4029 = vtanh.pop %v4013
  %v4030 = vtanh.pop %v4014
  %v4031 = vtanh.pop %v4015
  %v4032 = vtanh.pop %v4016
  %v4033 = vtanh.pop %v4017
  %v4034 = vtanh.pop %v4018
  %v4035 = vtanh.pop %v4019
  %v4036 = vtanh.pop %v4020
  %v4037 = vtanh.pop %v4021
  %v4038 = vtanh.pop %v4022
  %4055 = vrot.lane.b32.xlu0 %v4023, 64
  %v4056 = vpop.permute.xlu0 %4055
  %4057 = vrot.lane.b32.xlu0 %v4024, 64
  %v4058 = vpop.permute.xlu0 %4057
  %4059 = vrot.lane.b32.xlu0 %v4025, 64
  %v4060 = vpop.permute.xlu0 %4059
  %4061 = vrot.lane.b32.xlu0 %v4026, 64
  %v4062 = vpop.permute.xlu0 %4061
  %4063 = vrot.lane.b32.xlu0 %v4027, 64
  %v4064 = vpop.permute.xlu0 %4063
  %4065 = vrot.lane.b32.xlu0 %v4028, 64
  %v4066 = vpop.permute.xlu0 %4065
  %4067 = vrot.lane.b32.xlu0 %v4029, 64
  %v4068 = vpop.permute.xlu0 %4067
  %4069 = vrot.lane.b32.xlu0 %v4030, 64
  %v4070 = vpop.permute.xlu0 %4069
  %4071 = vrot.lane.b32.xlu0 %v4031, 64
  %v4072 = vpop.permute.xlu0 %4071
  %4073 = vrot.lane.b32.xlu0 %v4032, 64
  %v4074 = vpop.permute.xlu0 %4073
  %4075 = vrot.lane.b32.xlu0 %v4033, 64
  %v4076 = vpop.permute.xlu0 %4075
  %4077 = vrot.lane.b32.xlu0 %v4034, 64
  %v4078 = vpop.permute.xlu0 %4077
  %4079 = vrot.lane.b32.xlu0 %v4035, 64
  %v4080 = vpop.permute.xlu0 %4079
  %4081 = vrot.lane.b32.xlu0 %v4036, 64
  %v4082 = vpop.permute.xlu0 %4081
  %4083 = vrot.lane.b32.xlu0 %v4037, 64
  %v4084 = vpop.permute.xlu0 %4083
  %4085 = vrot.lane.b32.xlu0 %v4038, 64
  %v4086 = vpop.permute.xlu0 %4085
  %v4103 = vmul.f32 %v3831, %v4056
  %v4104 = vmul.f32 %v3832, %v4058
  %v4105 = vmul.f32 %v3833, %v4060
  %v4106 = vmul.f32 %v3834, %v4062
  %v4107 = vmul.f32 %v3835, %v4064
  %v4108 = vmul.f32 %v3836, %v4066
  %v4109 = vmul.f32 %v3837, %v4068
  %v4110 = vmul.f32 %v3838, %v4070
  %v4111 = vmul.f32 %v3839, %v4072
  %v4112 = vmul.f32 %v3840, %v4074
  %v4113 = vmul.f32 %v3841, %v4076
  %v4114 = vmul.f32 %v3842, %v4078
  %v4115 = vmul.f32 %v3843, %v4080
  %v4116 = vmul.f32 %v3844, %v4082
  %v4117 = vmul.f32 %v3845, %v4084
  %v4118 = vmul.f32 %v3846, %v4086
  %v4119 = vld [vmem:[#allocation2] sm:$0xff]
  %v4120 = vld [vmem:[#allocation2 + $0x8] sm:$0xff]
  %v4121 = vld [vmem:[#allocation2 + $0x10] sm:$0xff]
  %v4122 = vld [vmem:[#allocation2 + $0x18] sm:$0xff]
  %v4123 = vld [vmem:[#allocation2 + $0x20] sm:$0xff]
  %v4124 = vld [vmem:[#allocation2 + $0x28] sm:$0xff]
  %v4125 = vld [vmem:[#allocation2 + $0x30] sm:$0xff]
  %v4126 = vld [vmem:[#allocation2 + $0x38] sm:$0xff]
  %v4127 = vld [vmem:[#allocation2 + $0x40] sm:$0xff]
  %v4128 = vld [vmem:[#allocation2 + $0x48] sm:$0xff]
  %v4129 = vld [vmem:[#allocation2 + $0x50] sm:$0xff]
  %v4130 = vld [vmem:[#allocation2 + $0x58] sm:$0xff]
  %v4131 = vld [vmem:[#allocation2 + $0x60] sm:$0xff]
  %v4132 = vld [vmem:[#allocation2 + $0x68] sm:$0xff]
  %v4133 = vld [vmem:[#allocation2 + $0x70] sm:$0xff]
  %v4134 = vld [vmem:[#allocation2 + $0x78] sm:$0xff]
  %v4135 = vld [vmem:[#allocation2 + $0x80] sm:$0xff]
  %v4136 = vld [vmem:[#allocation2 + $0x88] sm:$0xff]
  %v4137 = vld [vmem:[#allocation2 + $0x90] sm:$0xff]
  %v4138 = vld [vmem:[#allocation2 + $0x98] sm:$0xff]
  %v4139 = vld [vmem:[#allocation2 + $0xa0] sm:$0xff]
  %v4140 = vld [vmem:[#allocation2 + $0xa8] sm:$0xff]
  %v4141 = vld [vmem:[#allocation2 + $0xb0] sm:$0xff]
  %v4142 = vld [vmem:[#allocation2 + $0xb8] sm:$0xff]
  %v4143 = vld [vmem:[#allocation2 + $0xc0] sm:$0xff]
  %v4144 = vld [vmem:[#allocation2 + $0xc8] sm:$0xff]
  %v4145 = vld [vmem:[#allocation2 + $0xd0] sm:$0xff]
  %v4146 = vld [vmem:[#allocation2 + $0xd8] sm:$0xff]
  %v4147 = vld [vmem:[#allocation2 + $0xe0] sm:$0xff]
  %v4148 = vld [vmem:[#allocation2 + $0xe8] sm:$0xff]
  %v4149 = vld [vmem:[#allocation2 + $0xf0] sm:$0xff]
  %v4150 = vld [vmem:[#allocation2 + $0xf8] sm:$0xff]
  %v4151 = vpack.c.bf16 %v4104, %v4103
  %v4152 = vpack.c.bf16 %v4106, %v4105
  %v4153 = vpack.c.bf16 %v4108, %v4107
  %v4154 = vpack.c.bf16 %v4110, %v4109
  %v4155 = vpack.c.bf16 %v4112, %v4111
  %v4156 = vpack.c.bf16 %v4114, %v4113
  %v4157 = vpack.c.bf16 %v4116, %v4115
  %v4158 = vpack.c.bf16 %v4118, %v4117
  %s4159 = scalar_lea.vmem %s2, 128
  %v4160 = vld [vmem:[%s4159] sm:$0xff]
  %v4161 = vld [vmem:[%s4159 + $0x8] sm:$0xff]
  %v4162 = vld [vmem:[%s4159 + $0x10] sm:$0xff]
  %v4163 = vld [vmem:[%s4159 + $0x18] sm:$0xff]
  %4172 = vrot.lane.b32.xlu0 %v4151, 32
  %v4173 = vpop.permute.xlu0 %4172
  %4174 = vrot.lane.b32.xlu0 %v4152, 32
  %v4175 = vpop.permute.xlu0 %4174
  %4176 = vrot.lane.b32.xlu0 %v4153, 32
  %v4177 = vpop.permute.xlu0 %4176
  %4178 = vrot.lane.b32.xlu0 %v4154, 32
  %v4179 = vpop.permute.xlu0 %4178
  %4180 = vrot.lane.b32.xlu0 %v4155, 32
  %v4181 = vpop.permute.xlu0 %4180
  %4182 = vrot.lane.b32.xlu0 %v4156, 32
  %v4183 = vpop.permute.xlu0 %4182
  %4184 = vrot.lane.b32.xlu0 %v4157, 32
  %v4185 = vpop.permute.xlu0 %4184
  %4186 = vrot.lane.b32.xlu0 %v4158, 32
  %v4187 = vpop.permute.xlu0 %4186
  %v4192 = vunpack.c.l.b16 %v4160
  %v4193 = vunpack.c.h.b16 %v4160
  %v4194 = vunpack.c.l.b16 %v4161
  %v4195 = vunpack.c.h.b16 %v4161
  %v4196 = vunpack.c.l.b16 %v4162
  %v4197 = vunpack.c.h.b16 %v4162
  %v4198 = vunpack.c.l.b16 %v4163
  %v4199 = vunpack.c.h.b16 %v4163
  %v4200 = vpack.c.b16 %v4194, %v4192
  %v4201 = vpack.c.b16 %v4195, %v4193
  %v4202 = vpack.c.b16 %v4198, %v4196
  %v4203 = vpack.c.b16 %v4199, %v4197
  %v4209 = vsel %vm83, %v4173, 0
  %v4212 = vsel %vm83, %v4175, 0
  %v4215 = vsel %vm83, %v4177, 0
  %v4218 = vsel %vm83, %v4179, 0
  %v4221 = vsel %vm83, %v4181, 0
  %v4224 = vsel %vm83, %v4183, 0
  %v4227 = vsel %vm83, %v4185, 0
  %v4230 = vsel %vm83, %v4187, 0
  %4232 = vmatprep.subr.bf16.mxu0 %v4201
  %4233 = vmatpush1.bf16.msra.mxu0 %v4200
  %4234 = vmatprep.subr.bf16.mxu0 %v4203
  %4235 = vmatpush1.bf16.msra.mxu0 %v4202
  %4236 = vmatprep.subr.bf16.mxu0 0
  %4237 = vmatpush1.bf16.msra.mxu0 0
  %4238 = vmatprep.subr.bf16.mxu0 0
  %4239 = vmatpush1.bf16.msra.mxu0 0
  %4240 = vmatprep.subr.bf16.mxu0 0
  %4241 = vmatpush1.bf16.msra.mxu0 0
  %4242 = vmatprep.subr.bf16.mxu0 0
  %4243 = vmatpush1.bf16.msra.mxu0 0
  %4244 = vmatprep.subr.bf16.mxu0 0
  %4245 = vmatpush1.bf16.msra.mxu0 0
  %4246 = vmatprep.subr.bf16.mxu0 0
  %4247 = vmatpush1.bf16.msra.mxu0 0
  %4248 = vmatprep.subr.bf16.mxu0 0
  %4249 = vmatpush1.bf16.msra.mxu0 0
  %4250 = vmatprep.subr.bf16.mxu0 0
  %4251 = vmatpush1.bf16.msra.mxu0 0
  %4252 = vmatprep.subr.bf16.mxu0 0
  %4253 = vmatpush1.bf16.msra.mxu0 0
  %4254 = vmatprep.subr.bf16.mxu0 0
  %4255 = vmatpush1.bf16.msra.mxu0 0
  %4256 = vmatprep.subr.bf16.mxu0 0
  %4257 = vmatpush1.bf16.msra.mxu0 0
  %4258 = vmatprep.subr.bf16.mxu0 0
  %4259 = vmatpush1.bf16.msra.mxu0 0
  %4260 = vmatprep.subr.bf16.mxu0 0
  %4261 = vmatpush1.bf16.msra.mxu0 0
  %4262 = vmatprep.subr.bf16.mxu0 0
  %4263 = vmatpush1.bf16.msra.mxu0 0
  %4264 = vmatprep.mubr.bf16.mxu0 0
  %4265 = vmatmul.mubr.bf16.gmra.mrb[0].mxu0 %v4209
  %v4266 = vpop.f32.mrb[0].mxu0
  %v4267 = vadd.f32 0.0, %v4266
  %v4268 = vpop.f32.mrb[0].mxu0
  %v4269 = vadd.f32 0.0, %v4268
  %v4270 = vpop.f32.mrb[0].mxu0
  %v4271 = vadd.f32 0.0, %v4270
  %v4272 = vpop.f32.mrb[0].mxu0
  %v4273 = vadd.f32 0.0, %v4272
  %4274 = vmatprep.mubr.bf16.mxu0 0
  %4275 = vmatmul.mubr.bf16.gmra.mrb[0].mxu0 %v4212
  %v4276 = vpop.f32.mrb[0].mxu0
  %v4277 = vadd.f32 0.0, %v4276
  %v4278 = vpop.f32.mrb[0].mxu0
  %v4279 = vadd.f32 0.0, %v4278
  %v4280 = vpop.f32.mrb[0].mxu0
  %v4281 = vadd.f32 0.0, %v4280
  %v4282 = vpop.f32.mrb[0].mxu0
  %v4283 = vadd.f32 0.0, %v4282
  %4284 = vmatprep.mubr.bf16.mxu0 0
  %4285 = vmatmul.mubr.bf16.gmra.mrb[0].mxu0 %v4215
  %v4286 = vpop.f32.mrb[0].mxu0
  %v4287 = vadd.f32 0.0, %v4286
  %v4288 = vpop.f32.mrb[0].mxu0
  %v4289 = vadd.f32 0.0, %v4288
  %v4290 = vpop.f32.mrb[0].mxu0
  %v4291 = vadd.f32 0.0, %v4290
  %v4292 = vpop.f32.mrb[0].mxu0
  %v4293 = vadd.f32 0.0, %v4292
  %4294 = vmatprep.mubr.bf16.mxu0 0
  %4295 = vmatmul.mubr.bf16.gmra.mrb[0].mxu0 %v4218
  %v4296 = vpop.f32.mrb[0].mxu0
  %v4297 = vadd.f32 0.0, %v4296
  %v4298 = vpop.f32.mrb[0].mxu0
  %v4299 = vadd.f32 0.0, %v4298
  %v4300 = vpop.f32.mrb[0].mxu0
  %v4301 = vadd.f32 0.0, %v4300
  %v4302 = vpop.f32.mrb[0].mxu0
  %v4303 = vadd.f32 0.0, %v4302
  %4304 = vmatprep.mubr.bf16.mxu0 0
  %4305 = vmatmul.mubr.bf16.gmra.mrb[0].mxu0 %v4221
  %v4306 = vpop.f32.mrb[0].mxu0
  %v4307 = vadd.f32 0.0, %v4306
  %v4308 = vpop.f32.mrb[0].mxu0
  %v4309 = vadd.f32 0.0, %v4308
  %v4310 = vpop.f32.mrb[0].mxu0
  %v4311 = vadd.f32 0.0, %v4310
  %v4312 = vpop.f32.mrb[0].mxu0
  %v4313 = vadd.f32 0.0, %v4312
  %4314 = vmatprep.mubr.bf16.mxu0 0
  %4315 = vmatmul.mubr.bf16.gmra.mrb[0].mxu0 %v4224
  %v4316 = vpop.f32.mrb[0].mxu0
  %v4317 = vadd.f32 0.0, %v4316
  %v4318 = vpop.f32.mrb[0].mxu0
  %v4319 = vadd.f32 0.0, %v4318
  %v4320 = vpop.f32.mrb[0].mxu0
  %v4321 = vadd.f32 0.0, %v4320
  %v4322 = vpop.f32.mrb[0].mxu0
  %v4323 = vadd.f32 0.0, %v4322
  %4324 = vmatprep.mubr.bf16.mxu0 0
  %4325 = vmatmul.mubr.bf16.gmra.mrb[0].mxu0 %v4227
  %v4326 = vpop.f32.mrb[0].mxu0
  %v4327 = vadd.f32 0.0, %v4326
  %v4328 = vpop.f32.mrb[0].mxu0
  %v4329 = vadd.f32 0.0, %v4328
  %v4330 = vpop.f32.mrb[0].mxu0
  %v4331 = vadd.f32 0.0, %v4330
  %v4332 = vpop.f32.mrb[0].mxu0
  %v4333 = vadd.f32 0.0, %v4332
  %4334 = vmatprep.mubr.bf16.mxu0 0
  %4335 = vmatmul.mubr.bf16.gmra.mrb[0].mxu0 %v4230
  %v4336 = vpop.f32.mrb[0].mxu0
  %v4337 = vadd.f32 0.0, %v4336
  %v4338 = vpop.f32.mrb[0].mxu0
  %v4339 = vadd.f32 0.0, %v4338
  %v4340 = vpop.f32.mrb[0].mxu0
  %v4341 = vadd.f32 0.0, %v4340
  %v4342 = vpop.f32.mrb[0].mxu0
  %v4343 = vadd.f32 0.0, %v4342
  %4344 = vdwg.mxu0
  %v4345 = vadd.f32 %v4119, %v4267
  %v4346 = vadd.f32 %v4120, %v4269
  %v4347 = vadd.f32 %v4121, %v4271
  %v4348 = vadd.f32 %v4122, %v4273
  %v4349 = vadd.f32 %v4123, %v4277
  %v4350 = vadd.f32 %v4124, %v4279
  %v4351 = vadd.f32 %v4125, %v4281
  %v4352 = vadd.f32 %v4126, %v4283
  %v4353 = vadd.f32 %v4127, %v4287
  %v4354 = vadd.f32 %v4128, %v4289
  %v4355 = vadd.f32 %v4129, %v4291
  %v4356 = vadd.f32 %v4130, %v4293
  %v4357 = vadd.f32 %v4131, %v4297
  %v4358 = vadd.f32 %v4132, %v4299
  %v4359 = vadd.f32 %v4133, %v4301
  %v4360 = vadd.f32 %v4134, %v4303
  %v4361 = vadd.f32 %v4135, %v4307
  %v4362 = vadd.f32 %v4136, %v4309
  %v4363 = vadd.f32 %v4137, %v4311
  %v4364 = vadd.f32 %v4138, %v4313
  %v4365 = vadd.f32 %v4139, %v4317
  %v4366 = vadd.f32 %v4140, %v4319
  %v4367 = vadd.f32 %v4141, %v4321
  %v4368 = vadd.f32 %v4142, %v4323
  %v4369 = vadd.f32 %v4143, %v4327
  %v4370 = vadd.f32 %v4144, %v4329
  %v4371 = vadd.f32 %v4145, %v4331
  %v4372 = vadd.f32 %v4146, %v4333
  %v4373 = vadd.f32 %v4147, %v4337
  %v4374 = vadd.f32 %v4148, %v4339
  %v4375 = vadd.f32 %v4149, %v4341
  %v4376 = vadd.f32 %v4150, %v4343
  %4377 = vst [vmem:[#allocation2] sm:$0xff] %v4345
  %4378 = vst [vmem:[#allocation2 + $0x8] sm:$0xff] %v4346
  %4379 = vst [vmem:[#allocation2 + $0x10] sm:$0xff] %v4347
  %4380 = vst [vmem:[#allocation2 + $0x18] sm:$0xff] %v4348
  %4381 = vst [vmem:[#allocation2 + $0x20] sm:$0xff] %v4349
  %4382 = vst [vmem:[#allocation2 + $0x28] sm:$0xff] %v4350
  %4383 = vst [vmem:[#allocation2 + $0x30] sm:$0xff] %v4351
  %4384 = vst [vmem:[#allocation2 + $0x38] sm:$0xff] %v4352
  %4385 = vst [vmem:[#allocation2 + $0x40] sm:$0xff] %v4353
  %4386 = vst [vmem:[#allocation2 + $0x48] sm:$0xff] %v4354
  %4387 = vst [vmem:[#allocation2 + $0x50] sm:$0xff] %v4355
  %4388 = vst [vmem:[#allocation2 + $0x58] sm:$0xff] %v4356
  %4389 = vst [vmem:[#allocation2 + $0x60] sm:$0xff] %v4357
  %4390 = vst [vmem:[#allocation2 + $0x68] sm:$0xff] %v4358
  %4391 = vst [vmem:[#allocation2 + $0x70] sm:$0xff] %v4359
  %4392 = vst [vmem:[#allocation2 + $0x78] sm:$0xff] %v4360
  %4393 = vst [vmem:[#allocation2 + $0x80] sm:$0xff] %v4361
  %4394 = vst [vmem:[#allocation2 + $0x88] sm:$0xff] %v4362
  %4395 = vst [vmem:[#allocation2 + $0x90] sm:$0xff] %v4363
  %4396 = vst [vmem:[#allocation2 + $0x98] sm:$0xff] %v4364
  %4397 = vst [vmem:[#allocation2 + $0xa0] sm:$0xff] %v4365
  %4398 = vst [vmem:[#allocation2 + $0xa8] sm:$0xff] %v4366
  %4399 = vst [vmem:[#allocation2 + $0xb0] sm:$0xff] %v4367
  %4400 = vst [vmem:[#allocation2 + $0xb8] sm:$0xff] %v4368
  %4401 = vst [vmem:[#allocation2 + $0xc0] sm:$0xff] %v4369
  %4402 = vst [vmem:[#allocation2 + $0xc8] sm:$0xff] %v4370
  %4403 = vst [vmem:[#allocation2 + $0xd0] sm:$0xff] %v4371
  %4404 = vst [vmem:[#allocation2 + $0xd8] sm:$0xff] %v4372
  %4405 = vst [vmem:[#allocation2 + $0xe0] sm:$0xff] %v4373
  %4406 = vst [vmem:[#allocation2 + $0xe8] sm:$0xff] %v4374
  %4407 = vst [vmem:[#allocation2 + $0xf0] sm:$0xff] %v4375
  %4408 = vst [vmem:[#allocation2 + $0xf8] sm:$0xff] %v4376
  %s4409 = scalar_lea.vmem %s0, 640
  %v4410 = vld [vmem:[%s4409] sm:$0xff]
  %v4411 = vld [vmem:[%s4409 + $0x8] sm:$0xff]
  %v4412 = vld [vmem:[%s4409 + $0x10] sm:$0xff]
  %v4413 = vld [vmem:[%s4409 + $0x18] sm:$0xff]
  %v4414 = vld [vmem:[%s4409 + $0x20] sm:$0xff]
  %v4415 = vld [vmem:[%s4409 + $0x28] sm:$0xff]
  %v4416 = vld [vmem:[%s4409 + $0x30] sm:$0xff]
  %v4417 = vld [vmem:[%s4409 + $0x38] sm:$0xff]
  %v4418 = vld [vmem:[%s4409 + $0x40] sm:$0xff]
  %v4419 = vld [vmem:[%s4409 + $0x48] sm:$0xff]
  %v4420 = vld [vmem:[%s4409 + $0x50] sm:$0xff]
  %v4421 = vld [vmem:[%s4409 + $0x58] sm:$0xff]
  %v4422 = vld [vmem:[%s4409 + $0x60] sm:$0xff]
  %v4423 = vld [vmem:[%s4409 + $0x68] sm:$0xff]
  %v4424 = vld [vmem:[%s4409 + $0x70] sm:$0xff]
  %v4425 = vld [vmem:[%s4409 + $0x78] sm:$0xff]
  %4442 = vrot.lane.b32.xlu0 %v4103, 32
  %v4443 = vpop.permute.xlu0 %4442
  %4444 = vrot.lane.b32.xlu0 %v4104, 32
  %v4445 = vpop.permute.xlu0 %4444
  %4446 = vrot.lane.b32.xlu0 %v4105, 32
  %v4447 = vpop.permute.xlu0 %4446
  %4448 = vrot.lane.b32.xlu0 %v4106, 32
  %v4449 = vpop.permute.xlu0 %4448
  %4450 = vrot.lane.b32.xlu0 %v4107, 32
  %v4451 = vpop.permute.xlu0 %4450
  %4452 = vrot.lane.b32.xlu0 %v4108, 32
  %v4453 = vpop.permute.xlu0 %4452
  %4454 = vrot.lane.b32.xlu0 %v4109, 32
  %v4455 = vpop.permute.xlu0 %4454
  %4456 = vrot.lane.b32.xlu0 %v4110, 32
  %v4457 = vpop.permute.xlu0 %4456
  %4458 = vrot.lane.b32.xlu0 %v4111, 32
  %v4459 = vpop.permute.xlu0 %4458
  %4460 = vrot.lane.b32.xlu0 %v4112, 32
  %v4461 = vpop.permute.xlu0 %4460
  %4462 = vrot.lane.b32.xlu0 %v4113, 32
  %v4463 = vpop.permute.xlu0 %4462
  %4464 = vrot.lane.b32.xlu0 %v4114, 32
  %v4465 = vpop.permute.xlu0 %4464
  %4466 = vrot.lane.b32.xlu0 %v4115, 32
  %v4467 = vpop.permute.xlu0 %4466
  %4468 = vrot.lane.b32.xlu0 %v4116, 32
  %v4469 = vpop.permute.xlu0 %4468
  %4470 = vrot.lane.b32.xlu0 %v4117, 32
  %v4471 = vpop.permute.xlu0 %4470
  %4472 = vrot.lane.b32.xlu0 %v4118, 32
  %v4473 = vpop.permute.xlu0 %4472
  %v4474 = vsel %vm83, %v4443, 0
  %v4476 = vsel %vm83, %v4445, 0
  %v4478 = vsel %vm83, %v4447, 0
  %v4480 = vsel %vm83, %v4449, 0
  %v4482 = vsel %vm83, %v4451, 0
  %v4484 = vsel %vm83, %v4453, 0
  %v4486 = vsel %vm83, %v4455, 0
  %v4488 = vsel %vm83, %v4457, 0
  %v4490 = vsel %vm83, %v4459, 0
  %v4492 = vsel %vm83, %v4461, 0
  %v4494 = vsel %vm83, %v4463, 0
  %v4496 = vsel %vm83, %v4465, 0
  %v4498 = vsel %vm83, %v4467, 0
  %v4500 = vsel %vm83, %v4469, 0
  %v4502 = vsel %vm83, %v4471, 0
  %v4504 = vsel %vm83, %v4473, 0
  %4506 = vmatprep.subr.mxu0 0.0
  %4507 = vmatpush1.msra.mxu0 %v31
  %4508 = vmatprep.subr.mxu0 0.0
  %4509 = vmatpush1.msra.mxu0 %v32
  %4510 = vmatprep.subr.mxu0 0.0
  %4511 = vmatpush1.msra.mxu0 %v33
  %4512 = vmatprep.subr.mxu0 0.0
  %4513 = vmatpush1.msra.mxu0 %v34
  %4514 = vmatprep.subr.mxu0 0.0
  %4515 = vmatpush1.msra.mxu0 0.0
  %4516 = vmatprep.subr.mxu0 0.0
  %4517 = vmatpush1.msra.mxu0 0.0
  %4518 = vmatprep.subr.mxu0 0.0
  %4519 = vmatpush1.msra.mxu0 0.0
  %4520 = vmatprep.subr.mxu0 0.0
  %4521 = vmatpush1.msra.mxu0 0.0
  %4522 = vmatprep.subr.mxu0 0.0
  %4523 = vmatpush1.msra.mxu0 0.0
  %4524 = vmatprep.subr.mxu0 0.0
  %4525 = vmatpush1.msra.mxu0 0.0
  %4526 = vmatprep.subr.mxu0 0.0
  %4527 = vmatpush1.msra.mxu0 0.0
  %4528 = vmatprep.subr.mxu0 0.0
  %4529 = vmatpush1.msra.mxu0 0.0
  %4530 = vmatprep.subr.mxu0 0.0
  %4531 = vmatpush1.msra.mxu0 0.0
  %4532 = vmatprep.subr.mxu0 0.0
  %4533 = vmatpush1.msra.mxu0 0.0
  %4534 = vmatprep.subr.mxu0 0.0
  %4535 = vmatpush1.msra.mxu0 0.0
  %4536 = vmatprep.subr.mxu0 0.0
  %4537 = vmatpush1.msra.mxu0 0.0
  %4538 = vmatprep.subr.mxu0 0.0
  %4539 = vmatpush1.msra.mxu0 0.0
  %4540 = vmatprep.subr.mxu0 0.0
  %4541 = vmatpush1.msra.mxu0 0.0
  %4542 = vmatprep.subr.mxu0 0.0
  %4543 = vmatpush1.msra.mxu0 0.0
  %4544 = vmatprep.subr.mxu0 0.0
  %4545 = vmatpush1.msra.mxu0 0.0
  %4546 = vmatprep.subr.mxu0 0.0
  %4547 = vmatpush1.msra.mxu0 0.0
  %4548 = vmatprep.subr.mxu0 0.0
  %4549 = vmatpush1.msra.mxu0 0.0
  %4550 = vmatprep.subr.mxu0 0.0
  %4551 = vmatpush1.msra.mxu0 0.0
  %4552 = vmatprep.subr.mxu0 0.0
  %4553 = vmatpush1.msra.mxu0 0.0
  %4554 = vmatprep.subr.mxu0 0.0
  %4555 = vmatpush1.msra.mxu0 0.0
  %4556 = vmatprep.subr.mxu0 0.0
  %4557 = vmatpush1.msra.mxu0 0.0
  %4558 = vmatprep.subr.mxu0 0.0
  %4559 = vmatpush1.msra.mxu0 0.0
  %4560 = vmatprep.subr.mxu0 0.0
  %4561 = vmatpush1.msra.mxu0 0.0
  %4562 = vmatprep.subr.mxu0 0.0
  %4563 = vmatpush1.msra.mxu0 0.0
  %4564 = vmatprep.subr.mxu0 0.0
  %4565 = vmatpush1.msra.mxu0 0.0
  %4566 = vmatprep.subr.mxu0 0.0
  %4567 = vmatpush1.msra.mxu0 0.0
  %4568 = vmatprep.subr.mxu0 0.0
  %4569 = vmatpush1.msra.mxu0 0.0
  %4570 = vmatprep.mubr.f32.mxu0 0.0
  %4571 = vmatmul.mubr.f32.gmra.mrb[0].mxu0 %v4474
  %v4572 = vpop.f32.mrb[0].mxu0
  %v4573 = vadd.f32 0.0, %v4572
  %v4574 = vpop.f32.mrb[0].mxu0
  %4575 = vmatprep.mubr.f32.mxu0 0.0
  %4576 = vmatmul.mubr.f32.gmra.mrb[0].mxu0 %v4476
  %v4577 = vpop.f32.mrb[0].mxu0
  %v4578 = vadd.f32 0.0, %v4577
  %v4579 = vpop.f32.mrb[0].mxu0
  %4580 = vmatprep.mubr.f32.mxu0 0.0
  %4581 = vmatmul.mubr.f32.gmra.mrb[0].mxu0 %v4478
  %v4582 = vpop.f32.mrb[0].mxu0
  %v4583 = vadd.f32 0.0, %v4582
  %v4584 = vpop.f32.mrb[0].mxu0
  %4585 = vmatprep.mubr.f32.mxu0 0.0
  %4586 = vmatmul.mubr.f32.gmra.mrb[0].mxu0 %v4480
  %v4587 = vpop.f32.mrb[0].mxu0
  %v4588 = vadd.f32 0.0, %v4587
  %v4589 = vpop.f32.mrb[0].mxu0
  %4590 = vmatprep.mubr.f32.mxu0 0.0
  %4591 = vmatmul.mubr.f32.gmra.mrb[0].mxu0 %v4482
  %v4592 = vpop.f32.mrb[0].mxu0
  %v4593 = vadd.f32 0.0, %v4592
  %v4594 = vpop.f32.mrb[0].mxu0
  %4595 = vmatprep.mubr.f32.mxu0 0.0
  %4596 = vmatmul.mubr.f32.gmra.mrb[0].mxu0 %v4484
  %v4597 = vpop.f32.mrb[0].mxu0
  %v4598 = vadd.f32 0.0, %v4597
  %v4599 = vpop.f32.mrb[0].mxu0
  %4600 = vmatprep.mubr.f32.mxu0 0.0
  %4601 = vmatmul.mubr.f32.gmra.mrb[0].mxu0 %v4486
  %v4602 = vpop.f32.mrb[0].mxu0
  %v4603 = vadd.f32 0.0, %v4602
  %v4604 = vpop.f32.mrb[0].mxu0
  %4605 = vmatprep.mubr.f32.mxu0 0.0
  %4606 = vmatmul.mubr.f32.gmra.mrb[0].mxu0 %v4488
  %v4607 = vpop.f32.mrb[0].mxu0
  %v4608 = vadd.f32 0.0, %v4607
  %v4609 = vpop.f32.mrb[0].mxu0
  %4610 = vmatprep.mubr.f32.mxu0 0.0
  %4611 = vmatmul.mubr.f32.gmra.mrb[0].mxu0 %v4490
  %v4612 = vpop.f32.mrb[0].mxu0
  %v4613 = vadd.f32 0.0, %v4612
  %v4614 = vpop.f32.mrb[0].mxu0
  %4615 = vmatprep.mubr.f32.mxu0 0.0
  %4616 = vmatmul.mubr.f32.gmra.mrb[0].mxu0 %v4492
  %v4617 = vpop.f32.mrb[0].mxu0
  %v4618 = vadd.f32 0.0, %v4617
  %v4619 = vpop.f32.mrb[0].mxu0
  %4620 = vmatprep.mubr.f32.mxu0 0.0
  %4621 = vmatmul.mubr.f32.gmra.mrb[0].mxu0 %v4494
  %v4622 = vpop.f32.mrb[0].mxu0
  %v4623 = vadd.f32 0.0, %v4622
  %v4624 = vpop.f32.mrb[0].mxu0
  %4625 = vmatprep.mubr.f32.mxu0 0.0
  %4626 = vmatmul.mubr.f32.gmra.mrb[0].mxu0 %v4496
  %v4627 = vpop.f32.mrb[0].mxu0
  %v4628 = vadd.f32 0.0, %v4627
  %v4629 = vpop.f32.mrb[0].mxu0
  %4630 = vmatprep.mubr.f32.mxu0 0.0
  %4631 = vmatmul.mubr.f32.gmra.mrb[0].mxu0 %v4498
  %v4632 = vpop.f32.mrb[0].mxu0
  %v4633 = vadd.f32 0.0, %v4632
  %v4634 = vpop.f32.mrb[0].mxu0
  %4635 = vmatprep.mubr.f32.mxu0 0.0
  %4636 = vmatmul.mubr.f32.gmra.mrb[0].mxu0 %v4500
  %v4637 = vpop.f32.mrb[0].mxu0
  %v4638 = vadd.f32 0.0, %v4637
  %v4639 = vpop.f32.mrb[0].mxu0
  %4640 = vmatprep.mubr.f32.mxu0 0.0
  %4641 = vmatmul.mubr.f32.gmra.mrb[0].mxu0 %v4502
  %v4642 = vpop.f32.mrb[0].mxu0
  %v4643 = vadd.f32 0.0, %v4642
  %v4644 = vpop.f32.mrb[0].mxu0
  %4645 = vmatprep.mubr.f32.mxu0 0.0
  %4646 = vmatmul.mubr.f32.gmra.mrb[0].mxu0 %v4504
  %v4647 = vpop.f32.mrb[0].mxu0
  %v4648 = vadd.f32 0.0, %v4647
  %v4649 = vpop.f32.mrb[0].mxu0
  %4650 = vdwg.mxu0
  %v4651 = vadd.f32 %v4410, %v4573
  %v4652 = vadd.f32 %v4411, %v4578
  %v4653 = vadd.f32 %v4412, %v4583
  %v4654 = vadd.f32 %v4413, %v4588
  %v4655 = vadd.f32 %v4414, %v4593
  %v4656 = vadd.f32 %v4415, %v4598
  %v4657 = vadd.f32 %v4416, %v4603
  %v4658 = vadd.f32 %v4417, %v4608
  %v4659 = vadd.f32 %v4418, %v4613
  %v4660 = vadd.f32 %v4419, %v4618
  %v4661 = vadd.f32 %v4420, %v4623
  %v4662 = vadd.f32 %v4421, %v4628
  %v4663 = vadd.f32 %v4422, %v4633
  %v4664 = vadd.f32 %v4423, %v4638
  %v4665 = vadd.f32 %v4424, %v4643
  %v4666 = vadd.f32 %v4425, %v4648
  %v4667 = vmul.f32 %v4651, %v29
  %v4668 = vmul.f32 %v4652, %v29
  %v4669 = vmul.f32 %v4653, %v29
  %v4670 = vmul.f32 %v4654, %v29
  %v4671 = vmul.f32 %v4655, %v29
  %v4672 = vmul.f32 %v4656, %v29
  %v4673 = vmul.f32 %v4657, %v29
  %v4674 = vmul.f32 %v4658, %v29
  %v4675 = vmul.f32 %v4659, %v29
  %v4676 = vmul.f32 %v4660, %v29
  %v4677 = vmul.f32 %v4661, %v29
  %v4678 = vmul.f32 %v4662, %v29
  %v4679 = vmul.f32 %v4663, %v29
  %v4680 = vmul.f32 %v4664, %v29
  %v4681 = vmul.f32 %v4665, %v29
  %v4682 = vmul.f32 %v4666, %v29
  %v4683 = vtanh.pop %v4667
  %v4684 = vtanh.pop %v4668
  %v4685 = vtanh.pop %v4669
  %v4686 = vtanh.pop %v4670
  %v4687 = vtanh.pop %v4671
  %v4688 = vtanh.pop %v4672
  %v4689 = vtanh.pop %v4673
  %v4690 = vtanh.pop %v4674
  %v4691 = vtanh.pop %v4675
  %v4692 = vtanh.pop %v4676
  %v4693 = vtanh.pop %v4677
  %v4694 = vtanh.pop %v4678
  %v4695 = vtanh.pop %v4679
  %v4696 = vtanh.pop %v4680
  %v4697 = vtanh.pop %v4681
  %v4698 = vtanh.pop %v4682
  %v4699 = vmul.f32 %v4683, %v29
  %v4700 = vmul.f32 %v4684, %v29
  %v4701 = vmul.f32 %v4685, %v29
  %v4702 = vmul.f32 %v4686, %v29
  %v4703 = vmul.f32 %v4687, %v29
  %v4704 = vmul.f32 %v4688, %v29
  %v4705 = vmul.f32 %v4689, %v29
  %v4706 = vmul.f32 %v4690, %v29
  %v4707 = vmul.f32 %v4691, %v29
  %v4708 = vmul.f32 %v4692, %v29
  %v4709 = vmul.f32 %v4693, %v29
  %v4710 = vmul.f32 %v4694, %v29
  %v4711 = vmul.f32 %v4695, %v29
  %v4712 = vmul.f32 %v4696, %v29
  %v4713 = vmul.f32 %v4697, %v29
  %v4714 = vmul.f32 %v4698, %v29
  %v4715 = vadd.f32 %v4699, %v30
  %v4716 = vadd.f32 %v4700, %v30
  %v4717 = vadd.f32 %v4701, %v30
  %v4718 = vadd.f32 %v4702, %v30
  %v4719 = vadd.f32 %v4703, %v30
  %v4720 = vadd.f32 %v4704, %v30
  %v4721 = vadd.f32 %v4705, %v30
  %v4722 = vadd.f32 %v4706, %v30
  %v4723 = vadd.f32 %v4707, %v30
  %v4724 = vadd.f32 %v4708, %v30
  %v4725 = vadd.f32 %v4709, %v30
  %v4726 = vadd.f32 %v4710, %v30
  %v4727 = vadd.f32 %v4711, %v30
  %v4728 = vadd.f32 %v4712, %v30
  %v4729 = vadd.f32 %v4713, %v30
  %v4730 = vadd.f32 %v4714, %v30
  %v4731 = vmul.f32 %v4715, %v4007
  %v4732 = vmul.f32 %v4716, %v4008
  %v4733 = vmul.f32 %v4717, %v4009
  %v4734 = vmul.f32 %v4718, %v4010
  %v4735 = vmul.f32 %v4719, %v4011
  %v4736 = vmul.f32 %v4720, %v4012
  %v4737 = vmul.f32 %v4721, %v4013
  %v4738 = vmul.f32 %v4722, %v4014
  %v4739 = vmul.f32 %v4723, %v4015
  %v4740 = vmul.f32 %v4724, %v4016
  %v4741 = vmul.f32 %v4725, %v4017
  %v4742 = vmul.f32 %v4726, %v4018
  %v4743 = vmul.f32 %v4727, %v4019
  %v4744 = vmul.f32 %v4728, %v4020
  %v4745 = vmul.f32 %v4729, %v4021
  %v4746 = vmul.f32 %v4730, %v4022
  %4763 = vrot.lane.b32.xlu0 %v4715, 64
  %v4764 = vpop.permute.xlu0 %4763
  %4765 = vrot.lane.b32.xlu0 %v4716, 64
  %v4766 = vpop.permute.xlu0 %4765
  %4767 = vrot.lane.b32.xlu0 %v4717, 64
  %v4768 = vpop.permute.xlu0 %4767
  %4769 = vrot.lane.b32.xlu0 %v4718, 64
  %v4770 = vpop.permute.xlu0 %4769
  %4771 = vrot.lane.b32.xlu0 %v4719, 64
  %v4772 = vpop.permute.xlu0 %4771
  %4773 = vrot.lane.b32.xlu0 %v4720, 64
  %v4774 = vpop.permute.xlu0 %4773
  %4775 = vrot.lane.b32.xlu0 %v4721, 64
  %v4776 = vpop.permute.xlu0 %4775
  %4777 = vrot.lane.b32.xlu0 %v4722, 64
  %v4778 = vpop.permute.xlu0 %4777
  %4779 = vrot.lane.b32.xlu0 %v4723, 64
  %v4780 = vpop.permute.xlu0 %4779
  %4781 = vrot.lane.b32.xlu0 %v4724, 64
  %v4782 = vpop.permute.xlu0 %4781
  %4783 = vrot.lane.b32.xlu0 %v4725, 64
  %v4784 = vpop.permute.xlu0 %4783
  %4785 = vrot.lane.b32.xlu0 %v4726, 64
  %v4786 = vpop.permute.xlu0 %4785
  %4787 = vrot.lane.b32.xlu0 %v4727, 64
  %v4788 = vpop.permute.xlu0 %4787
  %4789 = vrot.lane.b32.xlu0 %v4728, 64
  %v4790 = vpop.permute.xlu0 %4789
  %4791 = vrot.lane.b32.xlu0 %v4729, 64
  %v4792 = vpop.permute.xlu0 %4791
  %4793 = vrot.lane.b32.xlu0 %v4730, 64
  %v4794 = vpop.permute.xlu0 %4793
  %v4811 = vmul.f32 %v4715, %v4764
  %v4812 = vmul.f32 %v4716, %v4766
  %v4813 = vmul.f32 %v4717, %v4768
  %v4814 = vmul.f32 %v4718, %v4770
  %v4815 = vmul.f32 %v4719, %v4772
  %v4816 = vmul.f32 %v4720, %v4774
  %v4817 = vmul.f32 %v4721, %v4776
  %v4818 = vmul.f32 %v4722, %v4778
  %v4819 = vmul.f32 %v4723, %v4780
  %v4820 = vmul.f32 %v4724, %v4782
  %v4821 = vmul.f32 %v4725, %v4784
  %v4822 = vmul.f32 %v4726, %v4786
  %v4823 = vmul.f32 %v4727, %v4788
  %v4824 = vmul.f32 %v4728, %v4790
  %v4825 = vmul.f32 %v4729, %v4792
  %v4826 = vmul.f32 %v4730, %v4794
  %4843 = vrot.lane.b32.xlu0 %v4811, 32
  %v4844 = vpop.permute.xlu0 %4843
  %4845 = vrot.lane.b32.xlu0 %v4812, 32
  %v4846 = vpop.permute.xlu0 %4845
  %4847 = vrot.lane.b32.xlu0 %v4813, 32
  %v4848 = vpop.permute.xlu0 %4847
  %4849 = vrot.lane.b32.xlu0 %v4814, 32
  %v4850 = vpop.permute.xlu0 %4849
  %4851 = vrot.lane.b32.xlu0 %v4815, 32
  %v4852 = vpop.permute.xlu0 %4851
  %4853 = vrot.lane.b32.xlu0 %v4816, 32
  %v4854 = vpop.permute.xlu0 %4853
  %4855 = vrot.lane.b32.xlu0 %v4817, 32
  %v4856 = vpop.permute.xlu0 %4855
  %4857 = vrot.lane.b32.xlu0 %v4818, 32
  %v4858 = vpop.permute.xlu0 %4857
  %4859 = vrot.lane.b32.xlu0 %v4819, 32
  %v4860 = vpop.permute.xlu0 %4859
  %4861 = vrot.lane.b32.xlu0 %v4820, 32
  %v4862 = vpop.permute.xlu0 %4861
  %4863 = vrot.lane.b32.xlu0 %v4821, 32
  %v4864 = vpop.permute.xlu0 %4863
  %4865 = vrot.lane.b32.xlu0 %v4822, 32
  %v4866 = vpop.permute.xlu0 %4865
  %4867 = vrot.lane.b32.xlu0 %v4823, 32
  %v4868 = vpop.permute.xlu0 %4867
  %4869 = vrot.lane.b32.xlu0 %v4824, 32
  %v4870 = vpop.permute.xlu0 %4869
  %4871 = vrot.lane.b32.xlu0 %v4825, 32
  %v4872 = vpop.permute.xlu0 %4871
  %4873 = vrot.lane.b32.xlu0 %v4826, 32
  %v4874 = vpop.permute.xlu0 %4873
  %v4891 = vadd.f32 %v4731, %v4844
  %v4892 = vadd.f32 %v4732, %v4846
  %v4893 = vadd.f32 %v4733, %v4848
  %v4894 = vadd.f32 %v4734, %v4850
  %v4895 = vadd.f32 %v4735, %v4852
  %v4896 = vadd.f32 %v4736, %v4854
  %v4897 = vadd.f32 %v4737, %v4856
  %v4898 = vadd.f32 %v4738, %v4858
  %v4899 = vadd.f32 %v4739, %v4860
  %v4900 = vadd.f32 %v4740, %v4862
  %v4901 = vadd.f32 %v4741, %v4864
  %v4902 = vadd.f32 %v4742, %v4866
  %v4903 = vadd.f32 %v4743, %v4868
  %v4904 = vadd.f32 %v4744, %v4870
  %v4905 = vadd.f32 %v4745, %v4872
  %v4906 = vadd.f32 %v4746, %v4874
  %v4907 = vtanh.pop %v4891
  %v4908 = vtanh.pop %v4892
  %v4909 = vtanh.pop %v4893
  %v4910 = vtanh.pop %v4894
  %v4911 = vtanh.pop %v4895
  %v4912 = vtanh.pop %v4896
  %v4913 = vtanh.pop %v4897
  %v4914 = vtanh.pop %v4898
  %v4915 = vtanh.pop %v4899
  %v4916 = vtanh.pop %v4900
  %v4917 = vtanh.pop %v4901
  %v4918 = vtanh.pop %v4902
  %v4919 = vtanh.pop %v4903
  %v4920 = vtanh.pop %v4904
  %v4921 = vtanh.pop %v4905
  %v4922 = vtanh.pop %v4906
  %4939 = vrot.lane.b32.xlu0 %v4907, 64
  %v4940 = vpop.permute.xlu0 %4939
  %4941 = vrot.lane.b32.xlu0 %v4908, 64
  %v4942 = vpop.permute.xlu0 %4941
  %4943 = vrot.lane.b32.xlu0 %v4909, 64
  %v4944 = vpop.permute.xlu0 %4943
  %4945 = vrot.lane.b32.xlu0 %v4910, 64
  %v4946 = vpop.permute.xlu0 %4945
  %4947 = vrot.lane.b32.xlu0 %v4911, 64
  %v4948 = vpop.permute.xlu0 %4947
  %4949 = vrot.lane.b32.xlu0 %v4912, 64
  %v4950 = vpop.permute.xlu0 %4949
  %4951 = vrot.lane.b32.xlu0 %v4913, 64
  %v4952 = vpop.permute.xlu0 %4951
  %4953 = vrot.lane.b32.xlu0 %v4914, 64
  %v4954 = vpop.permute.xlu0 %4953
  %4955 = vrot.lane.b32.xlu0 %v4915, 64
  %v4956 = vpop.permute.xlu0 %4955
  %4957 = vrot.lane.b32.xlu0 %v4916, 64
  %v4958 = vpop.permute.xlu0 %4957
  %4959 = vrot.lane.b32.xlu0 %v4917, 64
  %v4960 = vpop.permute.xlu0 %4959
  %4961 = vrot.lane.b32.xlu0 %v4918, 64
  %v4962 = vpop.permute.xlu0 %4961
  %4963 = vrot.lane.b32.xlu0 %v4919, 64
  %v4964 = vpop.permute.xlu0 %4963
  %4965 = vrot.lane.b32.xlu0 %v4920, 64
  %v4966 = vpop.permute.xlu0 %4965
  %4967 = vrot.lane.b32.xlu0 %v4921, 64
  %v4968 = vpop.permute.xlu0 %4967
  %4969 = vrot.lane.b32.xlu0 %v4922, 64
  %v4970 = vpop.permute.xlu0 %4969
  %v4987 = vmul.f32 %v4715, %v4940
  %v4988 = vmul.f32 %v4716, %v4942
  %v4989 = vmul.f32 %v4717, %v4944
  %v4990 = vmul.f32 %v4718, %v4946
  %v4991 = vmul.f32 %v4719, %v4948
  %v4992 = vmul.f32 %v4720, %v4950
  %v4993 = vmul.f32 %v4721, %v4952
  %v4994 = vmul.f32 %v4722, %v4954
  %v4995 = vmul.f32 %v4723, %v4956
  %v4996 = vmul.f32 %v4724, %v4958
  %v4997 = vmul.f32 %v4725, %v4960
  %v4998 = vmul.f32 %v4726, %v4962
  %v4999 = vmul.f32 %v4727, %v4964
  %v5000 = vmul.f32 %v4728, %v4966
  %v5001 = vmul.f32 %v4729, %v4968
  %v5002 = vmul.f32 %v4730, %v4970
  %v5003 = vld [vmem:[#allocation2] sm:$0xff]
  %v5004 = vld [vmem:[#allocation2 + $0x8] sm:$0xff]
  %v5005 = vld [vmem:[#allocation2 + $0x10] sm:$0xff]
  %v5006 = vld [vmem:[#allocation2 + $0x18] sm:$0xff]
  %v5007 = vld [vmem:[#allocation2 + $0x20] sm:$0xff]
  %v5008 = vld [vmem:[#allocation2 + $0x28] sm:$0xff]
  %v5009 = vld [vmem:[#allocation2 + $0x30] sm:$0xff]
  %v5010 = vld [vmem:[#allocation2 + $0x38] sm:$0xff]
  %v5011 = vld [vmem:[#allocation2 + $0x40] sm:$0xff]
  %v5012 = vld [vmem:[#allocation2 + $0x48] sm:$0xff]
  %v5013 = vld [vmem:[#allocation2 + $0x50] sm:$0xff]
  %v5014 = vld [vmem:[#allocation2 + $0x58] sm:$0xff]
  %v5015 = vld [vmem:[#allocation2 + $0x60] sm:$0xff]
  %v5016 = vld [vmem:[#allocation2 + $0x68] sm:$0xff]
  %v5017 = vld [vmem:[#allocation2 + $0x70] sm:$0xff]
  %v5018 = vld [vmem:[#allocation2 + $0x78] sm:$0xff]
  %v5019 = vld [vmem:[#allocation2 + $0x80] sm:$0xff]
  %v5020 = vld [vmem:[#allocation2 + $0x88] sm:$0xff]
  %v5021 = vld [vmem:[#allocation2 + $0x90] sm:$0xff]
  %v5022 = vld [vmem:[#allocation2 + $0x98] sm:$0xff]
  %v5023 = vld [vmem:[#allocation2 + $0xa0] sm:$0xff]
  %v5024 = vld [vmem:[#allocation2 + $0xa8] sm:$0xff]
  %v5025 = vld [vmem:[#allocation2 + $0xb0] sm:$0xff]
  %v5026 = vld [vmem:[#allocation2 + $0xb8] sm:$0xff]
  %v5027 = vld [vmem:[#allocation2 + $0xc0] sm:$0xff]
  %v5028 = vld [vmem:[#allocation2 + $0xc8] sm:$0xff]
  %v5029 = vld [vmem:[#allocation2 + $0xd0] sm:$0xff]
  %v5030 = vld [vmem:[#allocation2 + $0xd8] sm:$0xff]
  %v5031 = vld [vmem:[#allocation2 + $0xe0] sm:$0xff]
  %v5032 = vld [vmem:[#allocation2 + $0xe8] sm:$0xff]
  %v5033 = vld [vmem:[#allocation2 + $0xf0] sm:$0xff]
  %v5034 = vld [vmem:[#allocation2 + $0xf8] sm:$0xff]
  %v5035 = vpack.c.bf16 %v4988, %v4987
  %v5036 = vpack.c.bf16 %v4990, %v4989
  %v5037 = vpack.c.bf16 %v4992, %v4991
  %v5038 = vpack.c.bf16 %v4994, %v4993
  %v5039 = vpack.c.bf16 %v4996, %v4995
  %v5040 = vpack.c.bf16 %v4998, %v4997
  %v5041 = vpack.c.bf16 %v5000, %v4999
  %v5042 = vpack.c.bf16 %v5002, %v5001
  %s5043 = scalar_lea.vmem %s2, 160
  %v5044 = vld [vmem:[%s5043] sm:$0xff]
  %v5045 = vld [vmem:[%s5043 + $0x8] sm:$0xff]
  %v5046 = vld [vmem:[%s5043 + $0x10] sm:$0xff]
  %v5047 = vld [vmem:[%s5043 + $0x18] sm:$0xff]
  %5056 = vrot.lane.b32.xlu0 %v5035, 32
  %v5057 = vpop.permute.xlu0 %5056
  %5058 = vrot.lane.b32.xlu0 %v5036, 32
  %v5059 = vpop.permute.xlu0 %5058
  %5060 = vrot.lane.b32.xlu0 %v5037, 32
  %v5061 = vpop.permute.xlu0 %5060
  %5062 = vrot.lane.b32.xlu0 %v5038, 32
  %v5063 = vpop.permute.xlu0 %5062
  %5064 = vrot.lane.b32.xlu0 %v5039, 32
  %v5065 = vpop.permute.xlu0 %5064
  %5066 = vrot.lane.b32.xlu0 %v5040, 32
  %v5067 = vpop.permute.xlu0 %5066
  %5068 = vrot.lane.b32.xlu0 %v5041, 32
  %v5069 = vpop.permute.xlu0 %5068
  %5070 = vrot.lane.b32.xlu0 %v5042, 32
  %v5071 = vpop.permute.xlu0 %5070
  %v5076 = vunpack.c.l.b16 %v5044
  %v5077 = vunpack.c.h.b16 %v5044
  %v5078 = vunpack.c.l.b16 %v5045
  %v5079 = vunpack.c.h.b16 %v5045
  %v5080 = vunpack.c.l.b16 %v5046
  %v5081 = vunpack.c.h.b16 %v5046
  %v5082 = vunpack.c.l.b16 %v5047
  %v5083 = vunpack.c.h.b16 %v5047
  %v5084 = vpack.c.b16 %v5078, %v5076
  %v5085 = vpack.c.b16 %v5079, %v5077
  %v5086 = vpack.c.b16 %v5082, %v5080
  %v5087 = vpack.c.b16 %v5083, %v5081
  %v5093 = vsel %vm83, %v5057, 0
  %v5096 = vsel %vm83, %v5059, 0
  %v5099 = vsel %vm83, %v5061, 0
  %v5102 = vsel %vm83, %v5063, 0
  %v5105 = vsel %vm83, %v5065, 0
  %v5108 = vsel %vm83, %v5067, 0
  %v5111 = vsel %vm83, %v5069, 0
  %v5114 = vsel %vm83, %v5071, 0
  %5116 = vmatprep.subr.bf16.mxu0 %v5085
  %5117 = vmatpush1.bf16.msra.mxu0 %v5084
  %5118 = vmatprep.subr.bf16.mxu0 %v5087
  %5119 = vmatpush1.bf16.msra.mxu0 %v5086
  %5120 = vmatprep.subr.bf16.mxu0 0
  %5121 = vmatpush1.bf16.msra.mxu0 0
  %5122 = vmatprep.subr.bf16.mxu0 0
  %5123 = vmatpush1.bf16.msra.mxu0 0
  %5124 = vmatprep.subr.bf16.mxu0 0
  %5125 = vmatpush1.bf16.msra.mxu0 0
  %5126 = vmatprep.subr.bf16.mxu0 0
  %5127 = vmatpush1.bf16.msra.mxu0 0
  %5128 = vmatprep.subr.bf16.mxu0 0
  %5129 = vmatpush1.bf16.msra.mxu0 0
  %5130 = vmatprep.subr.bf16.mxu0 0
  %5131 = vmatpush1.bf16.msra.mxu0 0
  %5132 = vmatprep.subr.bf16.mxu0 0
  %5133 = vmatpush1.bf16.msra.mxu0 0
  %5134 = vmatprep.subr.bf16.mxu0 0
  %5135 = vmatpush1.bf16.msra.mxu0 0
  %5136 = vmatprep.subr.bf16.mxu0 0
  %5137 = vmatpush1.bf16.msra.mxu0 0
  %5138 = vmatprep.subr.bf16.mxu0 0
  %5139 = vmatpush1.bf16.msra.mxu0 0
  %5140 = vmatprep.subr.bf16.mxu0 0
  %5141 = vmatpush1.bf16.msra.mxu0 0
  %5142 = vmatprep.subr.bf16.mxu0 0
  %5143 = vmatpush1.bf16.msra.mxu0 0
  %5144 = vmatprep.subr.bf16.mxu0 0
  %5145 = vmatpush1.bf16.msra.mxu0 0
  %5146 = vmatprep.subr.bf16.mxu0 0
  %5147 = vmatpush1.bf16.msra.mxu0 0
  %5148 = vmatprep.mubr.bf16.mxu0 0
  %5149 = vmatmul.mubr.bf16.gmra.mrb[0].mxu0 %v5093
  %v5150 = vpop.f32.mrb[0].mxu0
  %v5151 = vadd.f32 0.0, %v5150
  %v5152 = vpop.f32.mrb[0].mxu0
  %v5153 = vadd.f32 0.0, %v5152
  %v5154 = vpop.f32.mrb[0].mxu0
  %v5155 = vadd.f32 0.0, %v5154
  %v5156 = vpop.f32.mrb[0].mxu0
  %v5157 = vadd.f32 0.0, %v5156
  %5158 = vmatprep.mubr.bf16.mxu0 0
  %5159 = vmatmul.mubr.bf16.gmra.mrb[0].mxu0 %v5096
  %v5160 = vpop.f32.mrb[0].mxu0
  %v5161 = vadd.f32 0.0, %v5160
  %v5162 = vpop.f32.mrb[0].mxu0
  %v5163 = vadd.f32 0.0, %v5162
  %v5164 = vpop.f32.mrb[0].mxu0
  %v5165 = vadd.f32 0.0, %v5164
  %v5166 = vpop.f32.mrb[0].mxu0
  %v5167 = vadd.f32 0.0, %v5166
  %5168 = vmatprep.mubr.bf16.mxu0 0
  %5169 = vmatmul.mubr.bf16.gmra.mrb[0].mxu0 %v5099
  %v5170 = vpop.f32.mrb[0].mxu0
  %v5171 = vadd.f32 0.0, %v5170
  %v5172 = vpop.f32.mrb[0].mxu0
  %v5173 = vadd.f32 0.0, %v5172
  %v5174 = vpop.f32.mrb[0].mxu0
  %v5175 = vadd.f32 0.0, %v5174
  %v5176 = vpop.f32.mrb[0].mxu0
  %v5177 = vadd.f32 0.0, %v5176
  %5178 = vmatprep.mubr.bf16.mxu0 0
  %5179 = vmatmul.mubr.bf16.gmra.mrb[0].mxu0 %v5102
  %v5180 = vpop.f32.mrb[0].mxu0
  %v5181 = vadd.f32 0.0, %v5180
  %v5182 = vpop.f32.mrb[0].mxu0
  %v5183 = vadd.f32 0.0, %v5182
  %v5184 = vpop.f32.mrb[0].mxu0
  %v5185 = vadd.f32 0.0, %v5184
  %v5186 = vpop.f32.mrb[0].mxu0
  %v5187 = vadd.f32 0.0, %v5186
  %5188 = vmatprep.mubr.bf16.mxu0 0
  %5189 = vmatmul.mubr.bf16.gmra.mrb[0].mxu0 %v5105
  %v5190 = vpop.f32.mrb[0].mxu0
  %v5191 = vadd.f32 0.0, %v5190
  %v5192 = vpop.f32.mrb[0].mxu0
  %v5193 = vadd.f32 0.0, %v5192
  %v5194 = vpop.f32.mrb[0].mxu0
  %v5195 = vadd.f32 0.0, %v5194
  %v5196 = vpop.f32.mrb[0].mxu0
  %v5197 = vadd.f32 0.0, %v5196
  %5198 = vmatprep.mubr.bf16.mxu0 0
  %5199 = vmatmul.mubr.bf16.gmra.mrb[0].mxu0 %v5108
  %v5200 = vpop.f32.mrb[0].mxu0
  %v5201 = vadd.f32 0.0, %v5200
  %v5202 = vpop.f32.mrb[0].mxu0
  %v5203 = vadd.f32 0.0, %v5202
  %v5204 = vpop.f32.mrb[0].mxu0
  %v5205 = vadd.f32 0.0, %v5204
  %v5206 = vpop.f32.mrb[0].mxu0
  %v5207 = vadd.f32 0.0, %v5206
  %5208 = vmatprep.mubr.bf16.mxu0 0
  %5209 = vmatmul.mubr.bf16.gmra.mrb[0].mxu0 %v5111
  %v5210 = vpop.f32.mrb[0].mxu0
  %v5211 = vadd.f32 0.0, %v5210
  %v5212 = vpop.f32.mrb[0].mxu0
  %v5213 = vadd.f32 0.0, %v5212
  %v5214 = vpop.f32.mrb[0].mxu0
  %v5215 = vadd.f32 0.0, %v5214
  %v5216 = vpop.f32.mrb[0].mxu0
  %v5217 = vadd.f32 0.0, %v5216
  %5218 = vmatprep.mubr.bf16.mxu0 0
  %5219 = vmatmul.mubr.bf16.gmra.mrb[0].mxu0 %v5114
  %v5220 = vpop.f32.mrb[0].mxu0
  %v5221 = vadd.f32 0.0, %v5220
  %v5222 = vpop.f32.mrb[0].mxu0
  %v5223 = vadd.f32 0.0, %v5222
  %v5224 = vpop.f32.mrb[0].mxu0
  %v5225 = vadd.f32 0.0, %v5224
  %v5226 = vpop.f32.mrb[0].mxu0
  %v5227 = vadd.f32 0.0, %v5226
  %5228 = vdwg.mxu0
  %v5229 = vadd.f32 %v5003, %v5151
  %v5230 = vadd.f32 %v5004, %v5153
  %v5231 = vadd.f32 %v5005, %v5155
  %v5232 = vadd.f32 %v5006, %v5157
  %v5233 = vadd.f32 %v5007, %v5161
  %v5234 = vadd.f32 %v5008, %v5163
  %v5235 = vadd.f32 %v5009, %v5165
  %v5236 = vadd.f32 %v5010, %v5167
  %v5237 = vadd.f32 %v5011, %v5171
  %v5238 = vadd.f32 %v5012, %v5173
  %v5239 = vadd.f32 %v5013, %v5175
  %v5240 = vadd.f32 %v5014, %v5177
  %v5241 = vadd.f32 %v5015, %v5181
  %v5242 = vadd.f32 %v5016, %v5183
  %v5243 = vadd.f32 %v5017, %v5185
  %v5244 = vadd.f32 %v5018, %v5187
  %v5245 = vadd.f32 %v5019, %v5191
  %v5246 = vadd.f32 %v5020, %v5193
  %v5247 = vadd.f32 %v5021, %v5195
  %v5248 = vadd.f32 %v5022, %v5197
  %v5249 = vadd.f32 %v5023, %v5201
  %v5250 = vadd.f32 %v5024, %v5203
  %v5251 = vadd.f32 %v5025, %v5205
  %v5252 = vadd.f32 %v5026, %v5207
  %v5253 = vadd.f32 %v5027, %v5211
  %v5254 = vadd.f32 %v5028, %v5213
  %v5255 = vadd.f32 %v5029, %v5215
  %v5256 = vadd.f32 %v5030, %v5217
  %v5257 = vadd.f32 %v5031, %v5221
  %v5258 = vadd.f32 %v5032, %v5223
  %v5259 = vadd.f32 %v5033, %v5225
  %v5260 = vadd.f32 %v5034, %v5227
  %5261 = vst [vmem:[#allocation2] sm:$0xff] %v5229
  %5262 = vst [vmem:[#allocation2 + $0x8] sm:$0xff] %v5230
  %5263 = vst [vmem:[#allocation2 + $0x10] sm:$0xff] %v5231
  %5264 = vst [vmem:[#allocation2 + $0x18] sm:$0xff] %v5232
  %5265 = vst [vmem:[#allocation2 + $0x20] sm:$0xff] %v5233
  %5266 = vst [vmem:[#allocation2 + $0x28] sm:$0xff] %v5234
  %5267 = vst [vmem:[#allocation2 + $0x30] sm:$0xff] %v5235
  %5268 = vst [vmem:[#allocation2 + $0x38] sm:$0xff] %v5236
  %5269 = vst [vmem:[#allocation2 + $0x40] sm:$0xff] %v5237
  %5270 = vst [vmem:[#allocation2 + $0x48] sm:$0xff] %v5238
  %5271 = vst [vmem:[#allocation2 + $0x50] sm:$0xff] %v5239
  %5272 = vst [vmem:[#allocation2 + $0x58] sm:$0xff] %v5240
  %5273 = vst [vmem:[#allocation2 + $0x60] sm:$0xff] %v5241
  %5274 = vst [vmem:[#allocation2 + $0x68] sm:$0xff] %v5242
  %5275 = vst [vmem:[#allocation2 + $0x70] sm:$0xff] %v5243
  %5276 = vst [vmem:[#allocation2 + $0x78] sm:$0xff] %v5244
  %5277 = vst [vmem:[#allocation2 + $0x80] sm:$0xff] %v5245
  %5278 = vst [vmem:[#allocation2 + $0x88] sm:$0xff] %v5246
  %5279 = vst [vmem:[#allocation2 + $0x90] sm:$0xff] %v5247
  %5280 = vst [vmem:[#allocation2 + $0x98] sm:$0xff] %v5248
  %5281 = vst [vmem:[#allocation2 + $0xa0] sm:$0xff] %v5249
  %5282 = vst [vmem:[#allocation2 + $0xa8] sm:$0xff] %v5250
  %5283 = vst [vmem:[#allocation2 + $0xb0] sm:$0xff] %v5251
  %5284 = vst [vmem:[#allocation2 + $0xb8] sm:$0xff] %v5252
  %5285 = vst [vmem:[#allocation2 + $0xc0] sm:$0xff] %v5253
  %5286 = vst [vmem:[#allocation2 + $0xc8] sm:$0xff] %v5254
  %5287 = vst [vmem:[#allocation2 + $0xd0] sm:$0xff] %v5255
  %5288 = vst [vmem:[#allocation2 + $0xd8] sm:$0xff] %v5256
  %5289 = vst [vmem:[#allocation2 + $0xe0] sm:$0xff] %v5257
  %5290 = vst [vmem:[#allocation2 + $0xe8] sm:$0xff] %v5258
  %5291 = vst [vmem:[#allocation2 + $0xf0] sm:$0xff] %v5259
  %5292 = vst [vmem:[#allocation2 + $0xf8] sm:$0xff] %v5260
  %s5293 = scalar_lea.vmem %s0, 768
  %v5294 = vld [vmem:[%s5293] sm:$0xff]
  %v5295 = vld [vmem:[%s5293 + $0x8] sm:$0xff]
  %v5296 = vld [vmem:[%s5293 + $0x10] sm:$0xff]
  %v5297 = vld [vmem:[%s5293 + $0x18] sm:$0xff]
  %v5298 = vld [vmem:[%s5293 + $0x20] sm:$0xff]
  %v5299 = vld [vmem:[%s5293 + $0x28] sm:$0xff]
  %v5300 = vld [vmem:[%s5293 + $0x30] sm:$0xff]
  %v5301 = vld [vmem:[%s5293 + $0x38] sm:$0xff]
  %v5302 = vld [vmem:[%s5293 + $0x40] sm:$0xff]
  %v5303 = vld [vmem:[%s5293 + $0x48] sm:$0xff]
  %v5304 = vld [vmem:[%s5293 + $0x50] sm:$0xff]
  %v5305 = vld [vmem:[%s5293 + $0x58] sm:$0xff]
  %v5306 = vld [vmem:[%s5293 + $0x60] sm:$0xff]
  %v5307 = vld [vmem:[%s5293 + $0x68] sm:$0xff]
  %v5308 = vld [vmem:[%s5293 + $0x70] sm:$0xff]
  %v5309 = vld [vmem:[%s5293 + $0x78] sm:$0xff]
  %5326 = vrot.lane.b32.xlu0 %v4987, 32
  %v5327 = vpop.permute.xlu0 %5326
  %5328 = vrot.lane.b32.xlu0 %v4988, 32
  %v5329 = vpop.permute.xlu0 %5328
  %5330 = vrot.lane.b32.xlu0 %v4989, 32
  %v5331 = vpop.permute.xlu0 %5330
  %5332 = vrot.lane.b32.xlu0 %v4990, 32
  %v5333 = vpop.permute.xlu0 %5332
  %5334 = vrot.lane.b32.xlu0 %v4991, 32
  %v5335 = vpop.permute.xlu0 %5334
  %5336 = vrot.lane.b32.xlu0 %v4992, 32
  %v5337 = vpop.permute.xlu0 %5336
  %5338 = vrot.lane.b32.xlu0 %v4993, 32
  %v5339 = vpop.permute.xlu0 %5338
  %5340 = vrot.lane.b32.xlu0 %v4994, 32
  %v5341 = vpop.permute.xlu0 %5340
  %5342 = vrot.lane.b32.xlu0 %v4995, 32
  %v5343 = vpop.permute.xlu0 %5342
  %5344 = vrot.lane.b32.xlu0 %v4996, 32
  %v5345 = vpop.permute.xlu0 %5344
  %5346 = vrot.lane.b32.xlu0 %v4997, 32
  %v5347 = vpop.permute.xlu0 %5346
  %5348 = vrot.lane.b32.xlu0 %v4998, 32
  %v5349 = vpop.permute.xlu0 %5348
  %5350 = vrot.lane.b32.xlu0 %v4999, 32
  %v5351 = vpop.permute.xlu0 %5350
  %5352 = vrot.lane.b32.xlu0 %v5000, 32
  %v5353 = vpop.permute.xlu0 %5352
  %5354 = vrot.lane.b32.xlu0 %v5001, 32
  %v5355 = vpop.permute.xlu0 %5354
  %5356 = vrot.lane.b32.xlu0 %v5002, 32
  %v5357 = vpop.permute.xlu0 %5356
  %v5358 = vsel %vm83, %v5327, 0
  %v5360 = vsel %vm83, %v5329, 0
  %v5362 = vsel %vm83, %v5331, 0
  %v5364 = vsel %vm83, %v5333, 0
  %v5366 = vsel %vm83, %v5335, 0
  %v5368 = vsel %vm83, %v5337, 0
  %v5370 = vsel %vm83, %v5339, 0
  %v5372 = vsel %vm83, %v5341, 0
  %v5374 = vsel %vm83, %v5343, 0
  %v5376 = vsel %vm83, %v5345, 0
  %v5378 = vsel %vm83, %v5347, 0
  %v5380 = vsel %vm83, %v5349, 0
  %v5382 = vsel %vm83, %v5351, 0
  %v5384 = vsel %vm83, %v5353, 0
  %v5386 = vsel %vm83, %v5355, 0
  %v5388 = vsel %vm83, %v5357, 0
  %5390 = vmatprep.subr.mxu0 0.0
  %5391 = vmatpush1.msra.mxu0 %v31
  %5392 = vmatprep.subr.mxu0 0.0
  %5393 = vmatpush1.msra.mxu0 %v32
  %5394 = vmatprep.subr.mxu0 0.0
  %5395 = vmatpush1.msra.mxu0 %v33
  %5396 = vmatprep.subr.mxu0 0.0
  %5397 = vmatpush1.msra.mxu0 %v34
  %5398 = vmatprep.subr.mxu0 0.0
  %5399 = vmatpush1.msra.mxu0 0.0
  %5400 = vmatprep.subr.mxu0 0.0
  %5401 = vmatpush1.msra.mxu0 0.0
  %5402 = vmatprep.subr.mxu0 0.0
  %5403 = vmatpush1.msra.mxu0 0.0
  %5404 = vmatprep.subr.mxu0 0.0
  %5405 = vmatpush1.msra.mxu0 0.0
  %5406 = vmatprep.subr.mxu0 0.0
  %5407 = vmatpush1.msra.mxu0 0.0
  %5408 = vmatprep.subr.mxu0 0.0
  %5409 = vmatpush1.msra.mxu0 0.0
  %5410 = vmatprep.subr.mxu0 0.0
  %5411 = vmatpush1.msra.mxu0 0.0
  %5412 = vmatprep.subr.mxu0 0.0
  %5413 = vmatpush1.msra.mxu0 0.0
  %5414 = vmatprep.subr.mxu0 0.0
  %5415 = vmatpush1.msra.mxu0 0.0
  %5416 = vmatprep.subr.mxu0 0.0
  %5417 = vmatpush1.msra.mxu0 0.0
  %5418 = vmatprep.subr.mxu0 0.0
  %5419 = vmatpush1.msra.mxu0 0.0
  %5420 = vmatprep.subr.mxu0 0.0
  %5421 = vmatpush1.msra.mxu0 0.0
  %5422 = vmatprep.subr.mxu0 0.0
  %5423 = vmatpush1.msra.mxu0 0.0
  %5424 = vmatprep.subr.mxu0 0.0
  %5425 = vmatpush1.msra.mxu0 0.0
  %5426 = vmatprep.subr.mxu0 0.0
  %5427 = vmatpush1.msra.mxu0 0.0
  %5428 = vmatprep.subr.mxu0 0.0
  %5429 = vmatpush1.msra.mxu0 0.0
  %5430 = vmatprep.subr.mxu0 0.0
  %5431 = vmatpush1.msra.mxu0 0.0
  %5432 = vmatprep.subr.mxu0 0.0
  %5433 = vmatpush1.msra.mxu0 0.0
  %5434 = vmatprep.subr.mxu0 0.0
  %5435 = vmatpush1.msra.mxu0 0.0
  %5436 = vmatprep.subr.mxu0 0.0
  %5437 = vmatpush1.msra.mxu0 0.0
  %5438 = vmatprep.subr.mxu0 0.0
  %5439 = vmatpush1.msra.mxu0 0.0
  %5440 = vmatprep.subr.mxu0 0.0
  %5441 = vmatpush1.msra.mxu0 0.0
  %5442 = vmatprep.subr.mxu0 0.0
  %5443 = vmatpush1.msra.mxu0 0.0
  %5444 = vmatprep.subr.mxu0 0.0
  %5445 = vmatpush1.msra.mxu0 0.0
  %5446 = vmatprep.subr.mxu0 0.0
  %5447 = vmatpush1.msra.mxu0 0.0
  %5448 = vmatprep.subr.mxu0 0.0
  %5449 = vmatpush1.msra.mxu0 0.0
  %5450 = vmatprep.subr.mxu0 0.0
  %5451 = vmatpush1.msra.mxu0 0.0
  %5452 = vmatprep.subr.mxu0 0.0
  %5453 = vmatpush1.msra.mxu0 0.0
  %5454 = vmatprep.mubr.f32.mxu0 0.0
  %5455 = vmatmul.mubr.f32.gmra.mrb[0].mxu0 %v5358
  %v5456 = vpop.f32.mrb[0].mxu0
  %v5457 = vadd.f32 0.0, %v5456
  %v5458 = vpop.f32.mrb[0].mxu0
  %5459 = vmatprep.mubr.f32.mxu0 0.0
  %5460 = vmatmul.mubr.f32.gmra.mrb[0].mxu0 %v5360
  %v5461 = vpop.f32.mrb[0].mxu0
  %v5462 = vadd.f32 0.0, %v5461
  %v5463 = vpop.f32.mrb[0].mxu0
  %5464 = vmatprep.mubr.f32.mxu0 0.0
  %5465 = vmatmul.mubr.f32.gmra.mrb[0].mxu0 %v5362
  %v5466 = vpop.f32.mrb[0].mxu0
  %v5467 = vadd.f32 0.0, %v5466
  %v5468 = vpop.f32.mrb[0].mxu0
  %5469 = vmatprep.mubr.f32.mxu0 0.0
  %5470 = vmatmul.mubr.f32.gmra.mrb[0].mxu0 %v5364
  %v5471 = vpop.f32.mrb[0].mxu0
  %v5472 = vadd.f32 0.0, %v5471
  %v5473 = vpop.f32.mrb[0].mxu0
  %5474 = vmatprep.mubr.f32.mxu0 0.0
  %5475 = vmatmul.mubr.f32.gmra.mrb[0].mxu0 %v5366
  %v5476 = vpop.f32.mrb[0].mxu0
  %v5477 = vadd.f32 0.0, %v5476
  %v5478 = vpop.f32.mrb[0].mxu0
  %5479 = vmatprep.mubr.f32.mxu0 0.0
  %5480 = vmatmul.mubr.f32.gmra.mrb[0].mxu0 %v5368
  %v5481 = vpop.f32.mrb[0].mxu0
  %v5482 = vadd.f32 0.0, %v5481
  %v5483 = vpop.f32.mrb[0].mxu0
  %5484 = vmatprep.mubr.f32.mxu0 0.0
  %5485 = vmatmul.mubr.f32.gmra.mrb[0].mxu0 %v5370
  %v5486 = vpop.f32.mrb[0].mxu0
  %v5487 = vadd.f32 0.0, %v5486
  %v5488 = vpop.f32.mrb[0].mxu0
  %5489 = vmatprep.mubr.f32.mxu0 0.0
  %5490 = vmatmul.mubr.f32.gmra.mrb[0].mxu0 %v5372
  %v5491 = vpop.f32.mrb[0].mxu0
  %v5492 = vadd.f32 0.0, %v5491
  %v5493 = vpop.f32.mrb[0].mxu0
  %5494 = vmatprep.mubr.f32.mxu0 0.0
  %5495 = vmatmul.mubr.f32.gmra.mrb[0].mxu0 %v5374
  %v5496 = vpop.f32.mrb[0].mxu0
  %v5497 = vadd.f32 0.0, %v5496
  %v5498 = vpop.f32.mrb[0].mxu0
  %5499 = vmatprep.mubr.f32.mxu0 0.0
  %5500 = vmatmul.mubr.f32.gmra.mrb[0].mxu0 %v5376
  %v5501 = vpop.f32.mrb[0].mxu0
  %v5502 = vadd.f32 0.0, %v5501
  %v5503 = vpop.f32.mrb[0].mxu0
  %5504 = vmatprep.mubr.f32.mxu0 0.0
  %5505 = vmatmul.mubr.f32.gmra.mrb[0].mxu0 %v5378
  %v5506 = vpop.f32.mrb[0].mxu0
  %v5507 = vadd.f32 0.0, %v5506
  %v5508 = vpop.f32.mrb[0].mxu0
  %5509 = vmatprep.mubr.f32.mxu0 0.0
  %5510 = vmatmul.mubr.f32.gmra.mrb[0].mxu0 %v5380
  %v5511 = vpop.f32.mrb[0].mxu0
  %v5512 = vadd.f32 0.0, %v5511
  %v5513 = vpop.f32.mrb[0].mxu0
  %5514 = vmatprep.mubr.f32.mxu0 0.0
  %5515 = vmatmul.mubr.f32.gmra.mrb[0].mxu0 %v5382
  %v5516 = vpop.f32.mrb[0].mxu0
  %v5517 = vadd.f32 0.0, %v5516
  %v5518 = vpop.f32.mrb[0].mxu0
  %5519 = vmatprep.mubr.f32.mxu0 0.0
  %5520 = vmatmul.mubr.f32.gmra.mrb[0].mxu0 %v5384
  %v5521 = vpop.f32.mrb[0].mxu0
  %v5522 = vadd.f32 0.0, %v5521
  %v5523 = vpop.f32.mrb[0].mxu0
  %5524 = vmatprep.mubr.f32.mxu0 0.0
  %5525 = vmatmul.mubr.f32.gmra.mrb[0].mxu0 %v5386
  %v5526 = vpop.f32.mrb[0].mxu0
  %v5527 = vadd.f32 0.0, %v5526
  %v5528 = vpop.f32.mrb[0].mxu0
  %5529 = vmatprep.mubr.f32.mxu0 0.0
  %5530 = vmatmul.mubr.f32.gmra.mrb[0].mxu0 %v5388
  %v5531 = vpop.f32.mrb[0].mxu0
  %v5532 = vadd.f32 0.0, %v5531
  %v5533 = vpop.f32.mrb[0].mxu0
  %5534 = vdwg.mxu0
  %v5535 = vadd.f32 %v5294, %v5457
  %v5536 = vadd.f32 %v5295, %v5462
  %v5537 = vadd.f32 %v5296, %v5467
  %v5538 = vadd.f32 %v5297, %v5472
  %v5539 = vadd.f32 %v5298, %v5477
  %v5540 = vadd.f32 %v5299, %v5482
  %v5541 = vadd.f32 %v5300, %v5487
  %v5542 = vadd.f32 %v5301, %v5492
  %v5543 = vadd.f32 %v5302, %v5497
  %v5544 = vadd.f32 %v5303, %v5502
  %v5545 = vadd.f32 %v5304, %v5507
  %v5546 = vadd.f32 %v5305, %v5512
  %v5547 = vadd.f32 %v5306, %v5517
  %v5548 = vadd.f32 %v5307, %v5522
  %v5549 = vadd.f32 %v5308, %v5527
  %v5550 = vadd.f32 %v5309, %v5532
  %v5551 = vmul.f32 %v5535, %v29
  %v5552 = vmul.f32 %v5536, %v29
  %v5553 = vmul.f32 %v5537, %v29
  %v5554 = vmul.f32 %v5538, %v29
  %v5555 = vmul.f32 %v5539, %v29
  %v5556 = vmul.f32 %v5540, %v29
  %v5557 = vmul.f32 %v5541, %v29
  %v5558 = vmul.f32 %v5542, %v29
  %v5559 = vmul.f32 %v5543, %v29
  %v5560 = vmul.f32 %v5544, %v29
  %v5561 = vmul.f32 %v5545, %v29
  %v5562 = vmul.f32 %v5546, %v29
  %v5563 = vmul.f32 %v5547, %v29
  %v5564 = vmul.f32 %v5548, %v29
  %v5565 = vmul.f32 %v5549, %v29
  %v5566 = vmul.f32 %v5550, %v29
  %v5567 = vtanh.pop %v5551
  %v5568 = vtanh.pop %v5552
  %v5569 = vtanh.pop %v5553
  %v5570 = vtanh.pop %v5554
  %v5571 = vtanh.pop %v5555
  %v5572 = vtanh.pop %v5556
  %v5573 = vtanh.pop %v5557
  %v5574 = vtanh.pop %v5558
  %v5575 = vtanh.pop %v5559
  %v5576 = vtanh.pop %v5560
  %v5577 = vtanh.pop %v5561
  %v5578 = vtanh.pop %v5562
  %v5579 = vtanh.pop %v5563
  %v5580 = vtanh.pop %v5564
  %v5581 = vtanh.pop %v5565
  %v5582 = vtanh.pop %v5566
  %v5583 = vmul.f32 %v5567, %v29
  %v5584 = vmul.f32 %v5568, %v29
  %v5585 = vmul.f32 %v5569, %v29
  %v5586 = vmul.f32 %v5570, %v29
  %v5587 = vmul.f32 %v5571, %v29
  %v5588 = vmul.f32 %v5572, %v29
  %v5589 = vmul.f32 %v5573, %v29
  %v5590 = vmul.f32 %v5574, %v29
  %v5591 = vmul.f32 %v5575, %v29
  %v5592 = vmul.f32 %v5576, %v29
  %v5593 = vmul.f32 %v5577, %v29
  %v5594 = vmul.f32 %v5578, %v29
  %v5595 = vmul.f32 %v5579, %v29
  %v5596 = vmul.f32 %v5580, %v29
  %v5597 = vmul.f32 %v5581, %v29
  %v5598 = vmul.f32 %v5582, %v29
  %v5599 = vadd.f32 %v5583, %v30
  %v5600 = vadd.f32 %v5584, %v30
  %v5601 = vadd.f32 %v5585, %v30
  %v5602 = vadd.f32 %v5586, %v30
  %v5603 = vadd.f32 %v5587, %v30
  %v5604 = vadd.f32 %v5588, %v30
  %v5605 = vadd.f32 %v5589, %v30
  %v5606 = vadd.f32 %v5590, %v30
  %v5607 = vadd.f32 %v5591, %v30
  %v5608 = vadd.f32 %v5592, %v30
  %v5609 = vadd.f32 %v5593, %v30
  %v5610 = vadd.f32 %v5594, %v30
  %v5611 = vadd.f32 %v5595, %v30
  %v5612 = vadd.f32 %v5596, %v30
  %v5613 = vadd.f32 %v5597, %v30
  %v5614 = vadd.f32 %v5598, %v30
  %v5615 = vmul.f32 %v5599, %v4891
  %v5616 = vmul.f32 %v5600, %v4892
  %v5617 = vmul.f32 %v5601, %v4893
  %v5618 = vmul.f32 %v5602, %v4894
  %v5619 = vmul.f32 %v5603, %v4895
  %v5620 = vmul.f32 %v5604, %v4896
  %v5621 = vmul.f32 %v5605, %v4897
  %v5622 = vmul.f32 %v5606, %v4898
  %v5623 = vmul.f32 %v5607, %v4899
  %v5624 = vmul.f32 %v5608, %v4900
  %v5625 = vmul.f32 %v5609, %v4901
  %v5626 = vmul.f32 %v5610, %v4902
  %v5627 = vmul.f32 %v5611, %v4903
  %v5628 = vmul.f32 %v5612, %v4904
  %v5629 = vmul.f32 %v5613, %v4905
  %v5630 = vmul.f32 %v5614, %v4906
  %5647 = vrot.lane.b32.xlu0 %v5599, 64
  %v5648 = vpop.permute.xlu0 %5647
  %5649 = vrot.lane.b32.xlu0 %v5600, 64
  %v5650 = vpop.permute.xlu0 %5649
  %5651 = vrot.lane.b32.xlu0 %v5601, 64
  %v5652 = vpop.permute.xlu0 %5651
  %5653 = vrot.lane.b32.xlu0 %v5602, 64
  %v5654 = vpop.permute.xlu0 %5653
  %5655 = vrot.lane.b32.xlu0 %v5603, 64
  %v5656 = vpop.permute.xlu0 %5655
  %5657 = vrot.lane.b32.xlu0 %v5604, 64
  %v5658 = vpop.permute.xlu0 %5657
  %5659 = vrot.lane.b32.xlu0 %v5605, 64
  %v5660 = vpop.permute.xlu0 %5659
  %5661 = vrot.lane.b32.xlu0 %v5606, 64
  %v5662 = vpop.permute.xlu0 %5661
  %5663 = vrot.lane.b32.xlu0 %v5607, 64
  %v5664 = vpop.permute.xlu0 %5663
  %5665 = vrot.lane.b32.xlu0 %v5608, 64
  %v5666 = vpop.permute.xlu0 %5665
  %5667 = vrot.lane.b32.xlu0 %v5609, 64
  %v5668 = vpop.permute.xlu0 %5667
  %5669 = vrot.lane.b32.xlu0 %v5610, 64
  %v5670 = vpop.permute.xlu0 %5669
  %5671 = vrot.lane.b32.xlu0 %v5611, 64
  %v5672 = vpop.permute.xlu0 %5671
  %5673 = vrot.lane.b32.xlu0 %v5612, 64
  %v5674 = vpop.permute.xlu0 %5673
  %5675 = vrot.lane.b32.xlu0 %v5613, 64
  %v5676 = vpop.permute.xlu0 %5675
  %5677 = vrot.lane.b32.xlu0 %v5614, 64
  %v5678 = vpop.permute.xlu0 %5677
  %v5695 = vmul.f32 %v5599, %v5648
  %v5696 = vmul.f32 %v5600, %v5650
  %v5697 = vmul.f32 %v5601, %v5652
  %v5698 = vmul.f32 %v5602, %v5654
  %v5699 = vmul.f32 %v5603, %v5656
  %v5700 = vmul.f32 %v5604, %v5658
  %v5701 = vmul.f32 %v5605, %v5660
  %v5702 = vmul.f32 %v5606, %v5662
  %v5703 = vmul.f32 %v5607, %v5664
  %v5704 = vmul.f32 %v5608, %v5666
  %v5705 = vmul.f32 %v5609, %v5668
  %v5706 = vmul.f32 %v5610, %v5670
  %v5707 = vmul.f32 %v5611, %v5672
  %v5708 = vmul.f32 %v5612, %v5674
  %v5709 = vmul.f32 %v5613, %v5676
  %v5710 = vmul.f32 %v5614, %v5678
  %5727 = vrot.lane.b32.xlu0 %v5695, 32
  %v5728 = vpop.permute.xlu0 %5727
  %5729 = vrot.lane.b32.xlu0 %v5696, 32
  %v5730 = vpop.permute.xlu0 %5729
  %5731 = vrot.lane.b32.xlu0 %v5697, 32
  %v5732 = vpop.permute.xlu0 %5731
  %5733 = vrot.lane.b32.xlu0 %v5698, 32
  %v5734 = vpop.permute.xlu0 %5733
  %5735 = vrot.lane.b32.xlu0 %v5699, 32
  %v5736 = vpop.permute.xlu0 %5735
  %5737 = vrot.lane.b32.xlu0 %v5700, 32
  %v5738 = vpop.permute.xlu0 %5737
  %5739 = vrot.lane.b32.xlu0 %v5701, 32
  %v5740 = vpop.permute.xlu0 %5739
  %5741 = vrot.lane.b32.xlu0 %v5702, 32
  %v5742 = vpop.permute.xlu0 %5741
  %5743 = vrot.lane.b32.xlu0 %v5703, 32
  %v5744 = vpop.permute.xlu0 %5743
  %5745 = vrot.lane.b32.xlu0 %v5704, 32
  %v5746 = vpop.permute.xlu0 %5745
  %5747 = vrot.lane.b32.xlu0 %v5705, 32
  %v5748 = vpop.permute.xlu0 %5747
  %5749 = vrot.lane.b32.xlu0 %v5706, 32
  %v5750 = vpop.permute.xlu0 %5749
  %5751 = vrot.lane.b32.xlu0 %v5707, 32
  %v5752 = vpop.permute.xlu0 %5751
  %5753 = vrot.lane.b32.xlu0 %v5708, 32
  %v5754 = vpop.permute.xlu0 %5753
  %5755 = vrot.lane.b32.xlu0 %v5709, 32
  %v5756 = vpop.permute.xlu0 %5755
  %5757 = vrot.lane.b32.xlu0 %v5710, 32
  %v5758 = vpop.permute.xlu0 %5757
  %v5775 = vadd.f32 %v5615, %v5728
  %v5776 = vadd.f32 %v5616, %v5730
  %v5777 = vadd.f32 %v5617, %v5732
  %v5778 = vadd.f32 %v5618, %v5734
  %v5779 = vadd.f32 %v5619, %v5736
  %v5780 = vadd.f32 %v5620, %v5738
  %v5781 = vadd.f32 %v5621, %v5740
  %v5782 = vadd.f32 %v5622, %v5742
  %v5783 = vadd.f32 %v5623, %v5744
  %v5784 = vadd.f32 %v5624, %v5746
  %v5785 = vadd.f32 %v5625, %v5748
  %v5786 = vadd.f32 %v5626, %v5750
  %v5787 = vadd.f32 %v5627, %v5752
  %v5788 = vadd.f32 %v5628, %v5754
  %v5789 = vadd.f32 %v5629, %v5756
  %v5790 = vadd.f32 %v5630, %v5758
  %v5791 = vtanh.pop %v5775
  %v5792 = vtanh.pop %v5776
  %v5793 = vtanh.pop %v5777
  %v5794 = vtanh.pop %v5778
  %v5795 = vtanh.pop %v5779
  %v5796 = vtanh.pop %v5780
  %v5797 = vtanh.pop %v5781
  %v5798 = vtanh.pop %v5782
  %v5799 = vtanh.pop %v5783
  %v5800 = vtanh.pop %v5784
  %v5801 = vtanh.pop %v5785
  %v5802 = vtanh.pop %v5786
  %v5803 = vtanh.pop %v5787
  %v5804 = vtanh.pop %v5788
  %v5805 = vtanh.pop %v5789
  %v5806 = vtanh.pop %v5790
  %5823 = vrot.lane.b32.xlu0 %v5791, 64
  %v5824 = vpop.permute.xlu0 %5823
  %5825 = vrot.lane.b32.xlu0 %v5792, 64
  %v5826 = vpop.permute.xlu0 %5825
  %5827 = vrot.lane.b32.xlu0 %v5793, 64
  %v5828 = vpop.permute.xlu0 %5827
  %5829 = vrot.lane.b32.xlu0 %v5794, 64
  %v5830 = vpop.permute.xlu0 %5829
  %5831 = vrot.lane.b32.xlu0 %v5795, 64
  %v5832 = vpop.permute.xlu0 %5831
  %5833 = vrot.lane.b32.xlu0 %v5796, 64
  %v5834 = vpop.permute.xlu0 %5833
  %5835 = vrot.lane.b32.xlu0 %v5797, 64
  %v5836 = vpop.permute.xlu0 %5835
  %5837 = vrot.lane.b32.xlu0 %v5798, 64
  %v5838 = vpop.permute.xlu0 %5837
  %5839 = vrot.lane.b32.xlu0 %v5799, 64
  %v5840 = vpop.permute.xlu0 %5839
  %5841 = vrot.lane.b32.xlu0 %v5800, 64
  %v5842 = vpop.permute.xlu0 %5841
  %5843 = vrot.lane.b32.xlu0 %v5801, 64
  %v5844 = vpop.permute.xlu0 %5843
  %5845 = vrot.lane.b32.xlu0 %v5802, 64
  %v5846 = vpop.permute.xlu0 %5845
  %5847 = vrot.lane.b32.xlu0 %v5803, 64
  %v5848 = vpop.permute.xlu0 %5847
  %5849 = vrot.lane.b32.xlu0 %v5804, 64
  %v5850 = vpop.permute.xlu0 %5849
  %5851 = vrot.lane.b32.xlu0 %v5805, 64
  %v5852 = vpop.permute.xlu0 %5851
  %5853 = vrot.lane.b32.xlu0 %v5806, 64
  %v5854 = vpop.permute.xlu0 %5853
  %v5871 = vmul.f32 %v5599, %v5824
  %v5872 = vmul.f32 %v5600, %v5826
  %v5873 = vmul.f32 %v5601, %v5828
  %v5874 = vmul.f32 %v5602, %v5830
  %v5875 = vmul.f32 %v5603, %v5832
  %v5876 = vmul.f32 %v5604, %v5834
  %v5877 = vmul.f32 %v5605, %v5836
  %v5878 = vmul.f32 %v5606, %v5838
  %v5879 = vmul.f32 %v5607, %v5840
  %v5880 = vmul.f32 %v5608, %v5842
  %v5881 = vmul.f32 %v5609, %v5844
  %v5882 = vmul.f32 %v5610, %v5846
  %v5883 = vmul.f32 %v5611, %v5848
  %v5884 = vmul.f32 %v5612, %v5850
  %v5885 = vmul.f32 %v5613, %v5852
  %v5886 = vmul.f32 %v5614, %v5854
  %v5887 = vld [vmem:[#allocation2] sm:$0xff]
  %v5888 = vld [vmem:[#allocation2 + $0x8] sm:$0xff]
  %v5889 = vld [vmem:[#allocation2 + $0x10] sm:$0xff]
  %v5890 = vld [vmem:[#allocation2 + $0x18] sm:$0xff]
  %v5891 = vld [vmem:[#allocation2 + $0x20] sm:$0xff]
  %v5892 = vld [vmem:[#allocation2 + $0x28] sm:$0xff]
  %v5893 = vld [vmem:[#allocation2 + $0x30] sm:$0xff]
  %v5894 = vld [vmem:[#allocation2 + $0x38] sm:$0xff]
  %v5895 = vld [vmem:[#allocation2 + $0x40] sm:$0xff]
  %v5896 = vld [vmem:[#allocation2 + $0x48] sm:$0xff]
  %v5897 = vld [vmem:[#allocation2 + $0x50] sm:$0xff]
  %v5898 = vld [vmem:[#allocation2 + $0x58] sm:$0xff]
  %v5899 = vld [vmem:[#allocation2 + $0x60] sm:$0xff]
  %v5900 = vld [vmem:[#allocation2 + $0x68] sm:$0xff]
  %v5901 = vld [vmem:[#allocation2 + $0x70] sm:$0xff]
  %v5902 = vld [vmem:[#allocation2 + $0x78] sm:$0xff]
  %v5903 = vld [vmem:[#allocation2 + $0x80] sm:$0xff]
  %v5904 = vld [vmem:[#allocation2 + $0x88] sm:$0xff]
  %v5905 = vld [vmem:[#allocation2 + $0x90] sm:$0xff]
  %v5906 = vld [vmem:[#allocation2 + $0x98] sm:$0xff]
  %v5907 = vld [vmem:[#allocation2 + $0xa0] sm:$0xff]
  %v5908 = vld [vmem:[#allocation2 + $0xa8] sm:$0xff]
  %v5909 = vld [vmem:[#allocation2 + $0xb0] sm:$0xff]
  %v5910 = vld [vmem:[#allocation2 + $0xb8] sm:$0xff]
  %v5911 = vld [vmem:[#allocation2 + $0xc0] sm:$0xff]
  %v5912 = vld [vmem:[#allocation2 + $0xc8] sm:$0xff]
  %v5913 = vld [vmem:[#allocation2 + $0xd0] sm:$0xff]
  %v5914 = vld [vmem:[#allocation2 + $0xd8] sm:$0xff]
  %v5915 = vld [vmem:[#allocation2 + $0xe0] sm:$0xff]
  %v5916 = vld [vmem:[#allocation2 + $0xe8] sm:$0xff]
  %v5917 = vld [vmem:[#allocation2 + $0xf0] sm:$0xff]
  %v5918 = vld [vmem:[#allocation2 + $0xf8] sm:$0xff]
  %v5919 = vpack.c.bf16 %v5872, %v5871
  %v5920 = vpack.c.bf16 %v5874, %v5873
  %v5921 = vpack.c.bf16 %v5876, %v5875
  %v5922 = vpack.c.bf16 %v5878, %v5877
  %v5923 = vpack.c.bf16 %v5880, %v5879
  %v5924 = vpack.c.bf16 %v5882, %v5881
  %v5925 = vpack.c.bf16 %v5884, %v5883
  %v5926 = vpack.c.bf16 %v5886, %v5885
  %s5927 = scalar_lea.vmem %s2, 192
  %v5928 = vld [vmem:[%s5927] sm:$0xff]
  %v5929 = vld [vmem:[%s5927 + $0x8] sm:$0xff]
  %v5930 = vld [vmem:[%s5927 + $0x10] sm:$0xff]
  %v5931 = vld [vmem:[%s5927 + $0x18] sm:$0xff]
  %5940 = vrot.lane.b32.xlu0 %v5919, 32
  %v5941 = vpop.permute.xlu0 %5940
  %5942 = vrot.lane.b32.xlu0 %v5920, 32
  %v5943 = vpop.permute.xlu0 %5942
  %5944 = vrot.lane.b32.xlu0 %v5921, 32
  %v5945 = vpop.permute.xlu0 %5944
  %5946 = vrot.lane.b32.xlu0 %v5922, 32
  %v5947 = vpop.permute.xlu0 %5946
  %5948 = vrot.lane.b32.xlu0 %v5923, 32
  %v5949 = vpop.permute.xlu0 %5948
  %5950 = vrot.lane.b32.xlu0 %v5924, 32
  %v5951 = vpop.permute.xlu0 %5950
  %5952 = vrot.lane.b32.xlu0 %v5925, 32
  %v5953 = vpop.permute.xlu0 %5952
  %5954 = vrot.lane.b32.xlu0 %v5926, 32
  %v5955 = vpop.permute.xlu0 %5954
  %v5960 = vunpack.c.l.b16 %v5928
  %v5961 = vunpack.c.h.b16 %v5928
  %v5962 = vunpack.c.l.b16 %v5929
  %v5963 = vunpack.c.h.b16 %v5929
  %v5964 = vunpack.c.l.b16 %v5930
  %v5965 = vunpack.c.h.b16 %v5930
  %v5966 = vunpack.c.l.b16 %v5931
  %v5967 = vunpack.c.h.b16 %v5931
  %v5968 = vpack.c.b16 %v5962, %v5960
  %v5969 = vpack.c.b16 %v5963, %v5961
  %v5970 = vpack.c.b16 %v5966, %v5964
  %v5971 = vpack.c.b16 %v5967, %v5965
  %v5977 = vsel %vm83, %v5941, 0
  %v5980 = vsel %vm83, %v5943, 0
  %v5983 = vsel %vm83, %v5945, 0
  %v5986 = vsel %vm83, %v5947, 0
  %v5989 = vsel %vm83, %v5949, 0
  %v5992 = vsel %vm83, %v5951, 0
  %v5995 = vsel %vm83, %v5953, 0
  %v5998 = vsel %vm83, %v5955, 0
  %6000 = vmatprep.subr.bf16.mxu0 %v5969
  %6001 = vmatpush1.bf16.msra.mxu0 %v5968
  %6002 = vmatprep.subr.bf16.mxu0 %v5971
  %6003 = vmatpush1.bf16.msra.mxu0 %v5970
  %6004 = vmatprep.subr.bf16.mxu0 0
  %6005 = vmatpush1.bf16.msra.mxu0 0
  %6006 = vmatprep.subr.bf16.mxu0 0
  %6007 = vmatpush1.bf16.msra.mxu0 0
  %6008 = vmatprep.subr.bf16.mxu0 0
  %6009 = vmatpush1.bf16.msra.mxu0 0
  %6010 = vmatprep.subr.bf16.mxu0 0
  %6011 = vmatpush1.bf16.msra.mxu0 0
  %6012 = vmatprep.subr.bf16.mxu0 0
  %6013 = vmatpush1.bf16.msra.mxu0 0
  %6014 = vmatprep.subr.bf16.mxu0 0
  %6015 = vmatpush1.bf16.msra.mxu0 0
  %6016 = vmatprep.subr.bf16.mxu0 0
  %6017 = vmatpush1.bf16.msra.mxu0 0
  %6018 = vmatprep.subr.bf16.mxu0 0
  %6019 = vmatpush1.bf16.msra.mxu0 0
  %6020 = vmatprep.subr.bf16.mxu0 0
  %6021 = vmatpush1.bf16.msra.mxu0 0
  %6022 = vmatprep.subr.bf16.mxu0 0
  %6023 = vmatpush1.bf16.msra.mxu0 0
  %6024 = vmatprep.subr.bf16.mxu0 0
  %6025 = vmatpush1.bf16.msra.mxu0 0
  %6026 = vmatprep.subr.bf16.mxu0 0
  %6027 = vmatpush1.bf16.msra.mxu0 0
  %6028 = vmatprep.subr.bf16.mxu0 0
  %6029 = vmatpush1.bf16.msra.mxu0 0
  %6030 = vmatprep.subr.bf16.mxu0 0
  %6031 = vmatpush1.bf16.msra.mxu0 0
  %6032 = vmatprep.mubr.bf16.mxu0 0
  %6033 = vmatmul.mubr.bf16.gmra.mrb[0].mxu0 %v5977
  %v6034 = vpop.f32.mrb[0].mxu0
  %v6035 = vadd.f32 0.0, %v6034
  %v6036 = vpop.f32.mrb[0].mxu0
  %v6037 = vadd.f32 0.0, %v6036
  %v6038 = vpop.f32.mrb[0].mxu0
  %v6039 = vadd.f32 0.0, %v6038
  %v6040 = vpop.f32.mrb[0].mxu0
  %v6041 = vadd.f32 0.0, %v6040
  %6042 = vmatprep.mubr.bf16.mxu0 0
  %6043 = vmatmul.mubr.bf16.gmra.mrb[0].mxu0 %v5980
  %v6044 = vpop.f32.mrb[0].mxu0
  %v6045 = vadd.f32 0.0, %v6044
  %v6046 = vpop.f32.mrb[0].mxu0
  %v6047 = vadd.f32 0.0, %v6046
  %v6048 = vpop.f32.mrb[0].mxu0
  %v6049 = vadd.f32 0.0, %v6048
  %v6050 = vpop.f32.mrb[0].mxu0
  %v6051 = vadd.f32 0.0, %v6050
  %6052 = vmatprep.mubr.bf16.mxu0 0
  %6053 = vmatmul.mubr.bf16.gmra.mrb[0].mxu0 %v5983
  %v6054 = vpop.f32.mrb[0].mxu0
  %v6055 = vadd.f32 0.0, %v6054
  %v6056 = vpop.f32.mrb[0].mxu0
  %v6057 = vadd.f32 0.0, %v6056
  %v6058 = vpop.f32.mrb[0].mxu0
  %v6059 = vadd.f32 0.0, %v6058
  %v6060 = vpop.f32.mrb[0].mxu0
  %v6061 = vadd.f32 0.0, %v6060
  %6062 = vmatprep.mubr.bf16.mxu0 0
  %6063 = vmatmul.mubr.bf16.gmra.mrb[0].mxu0 %v5986
  %v6064 = vpop.f32.mrb[0].mxu0
  %v6065 = vadd.f32 0.0, %v6064
  %v6066 = vpop.f32.mrb[0].mxu0
  %v6067 = vadd.f32 0.0, %v6066
  %v6068 = vpop.f32.mrb[0].mxu0
  %v6069 = vadd.f32 0.0, %v6068
  %v6070 = vpop.f32.mrb[0].mxu0
  %v6071 = vadd.f32 0.0, %v6070
  %6072 = vmatprep.mubr.bf16.mxu0 0
  %6073 = vmatmul.mubr.bf16.gmra.mrb[0].mxu0 %v5989
  %v6074 = vpop.f32.mrb[0].mxu0
  %v6075 = vadd.f32 0.0, %v6074
  %v6076 = vpop.f32.mrb[0].mxu0
  %v6077 = vadd.f32 0.0, %v6076
  %v6078 = vpop.f32.mrb[0].mxu0
  %v6079 = vadd.f32 0.0, %v6078
  %v6080 = vpop.f32.mrb[0].mxu0
  %v6081 = vadd.f32 0.0, %v6080
  %6082 = vmatprep.mubr.bf16.mxu0 0
  %6083 = vmatmul.mubr.bf16.gmra.mrb[0].mxu0 %v5992
  %v6084 = vpop.f32.mrb[0].mxu0
  %v6085 = vadd.f32 0.0, %v6084
  %v6086 = vpop.f32.mrb[0].mxu0
  %v6087 = vadd.f32 0.0, %v6086
  %v6088 = vpop.f32.mrb[0].mxu0
  %v6089 = vadd.f32 0.0, %v6088
  %v6090 = vpop.f32.mrb[0].mxu0
  %v6091 = vadd.f32 0.0, %v6090
  %6092 = vmatprep.mubr.bf16.mxu0 0
  %6093 = vmatmul.mubr.bf16.gmra.mrb[0].mxu0 %v5995
  %v6094 = vpop.f32.mrb[0].mxu0
  %v6095 = vadd.f32 0.0, %v6094
  %v6096 = vpop.f32.mrb[0].mxu0
  %v6097 = vadd.f32 0.0, %v6096
  %v6098 = vpop.f32.mrb[0].mxu0
  %v6099 = vadd.f32 0.0, %v6098
  %v6100 = vpop.f32.mrb[0].mxu0
  %v6101 = vadd.f32 0.0, %v6100
  %6102 = vmatprep.mubr.bf16.mxu0 0
  %6103 = vmatmul.mubr.bf16.gmra.mrb[0].mxu0 %v5998
  %v6104 = vpop.f32.mrb[0].mxu0
  %v6105 = vadd.f32 0.0, %v6104
  %v6106 = vpop.f32.mrb[0].mxu0
  %v6107 = vadd.f32 0.0, %v6106
  %v6108 = vpop.f32.mrb[0].mxu0
  %v6109 = vadd.f32 0.0, %v6108
  %v6110 = vpop.f32.mrb[0].mxu0
  %v6111 = vadd.f32 0.0, %v6110
  %6112 = vdwg.mxu0
  %v6113 = vadd.f32 %v5887, %v6035
  %v6114 = vadd.f32 %v5888, %v6037
  %v6115 = vadd.f32 %v5889, %v6039
  %v6116 = vadd.f32 %v5890, %v6041
  %v6117 = vadd.f32 %v5891, %v6045
  %v6118 = vadd.f32 %v5892, %v6047
  %v6119 = vadd.f32 %v5893, %v6049
  %v6120 = vadd.f32 %v5894, %v6051
  %v6121 = vadd.f32 %v5895, %v6055
  %v6122 = vadd.f32 %v5896, %v6057
  %v6123 = vadd.f32 %v5897, %v6059
  %v6124 = vadd.f32 %v5898, %v6061
  %v6125 = vadd.f32 %v5899, %v6065
  %v6126 = vadd.f32 %v5900, %v6067
  %v6127 = vadd.f32 %v5901, %v6069
  %v6128 = vadd.f32 %v5902, %v6071
  %v6129 = vadd.f32 %v5903, %v6075
  %v6130 = vadd.f32 %v5904, %v6077
  %v6131 = vadd.f32 %v5905, %v6079
  %v6132 = vadd.f32 %v5906, %v6081
  %v6133 = vadd.f32 %v5907, %v6085
  %v6134 = vadd.f32 %v5908, %v6087
  %v6135 = vadd.f32 %v5909, %v6089
  %v6136 = vadd.f32 %v5910, %v6091
  %v6137 = vadd.f32 %v5911, %v6095
  %v6138 = vadd.f32 %v5912, %v6097
  %v6139 = vadd.f32 %v5913, %v6099
  %v6140 = vadd.f32 %v5914, %v6101
  %v6141 = vadd.f32 %v5915, %v6105
  %v6142 = vadd.f32 %v5916, %v6107
  %v6143 = vadd.f32 %v5917, %v6109
  %v6144 = vadd.f32 %v5918, %v6111
  %6145 = vst [vmem:[#allocation2] sm:$0xff] %v6113
  %6146 = vst [vmem:[#allocation2 + $0x8] sm:$0xff] %v6114
  %6147 = vst [vmem:[#allocation2 + $0x10] sm:$0xff] %v6115
  %6148 = vst [vmem:[#allocation2 + $0x18] sm:$0xff] %v6116
  %6149 = vst [vmem:[#allocation2 + $0x20] sm:$0xff] %v6117
  %6150 = vst [vmem:[#allocation2 + $0x28] sm:$0xff] %v6118
  %6151 = vst [vmem:[#allocation2 + $0x30] sm:$0xff] %v6119
  %6152 = vst [vmem:[#allocation2 + $0x38] sm:$0xff] %v6120
  %6153 = vst [vmem:[#allocation2 + $0x40] sm:$0xff] %v6121
  %6154 = vst [vmem:[#allocation2 + $0x48] sm:$0xff] %v6122
  %6155 = vst [vmem:[#allocation2 + $0x50] sm:$0xff] %v6123
  %6156 = vst [vmem:[#allocation2 + $0x58] sm:$0xff] %v6124
  %6157 = vst [vmem:[#allocation2 + $0x60] sm:$0xff] %v6125
  %6158 = vst [vmem:[#allocation2 + $0x68] sm:$0xff] %v6126
  %6159 = vst [vmem:[#allocation2 + $0x70] sm:$0xff] %v6127
  %6160 = vst [vmem:[#allocation2 + $0x78] sm:$0xff] %v6128
  %6161 = vst [vmem:[#allocation2 + $0x80] sm:$0xff] %v6129
  %6162 = vst [vmem:[#allocation2 + $0x88] sm:$0xff] %v6130
  %6163 = vst [vmem:[#allocation2 + $0x90] sm:$0xff] %v6131
  %6164 = vst [vmem:[#allocation2 + $0x98] sm:$0xff] %v6132
  %6165 = vst [vmem:[#allocation2 + $0xa0] sm:$0xff] %v6133
  %6166 = vst [vmem:[#allocation2 + $0xa8] sm:$0xff] %v6134
  %6167 = vst [vmem:[#allocation2 + $0xb0] sm:$0xff] %v6135
  %6168 = vst [vmem:[#allocation2 + $0xb8] sm:$0xff] %v6136
  %6169 = vst [vmem:[#allocation2 + $0xc0] sm:$0xff] %v6137
  %6170 = vst [vmem:[#allocation2 + $0xc8] sm:$0xff] %v6138
  %6171 = vst [vmem:[#allocation2 + $0xd0] sm:$0xff] %v6139
  %6172 = vst [vmem:[#allocation2 + $0xd8] sm:$0xff] %v6140
  %6173 = vst [vmem:[#allocation2 + $0xe0] sm:$0xff] %v6141
  %6174 = vst [vmem:[#allocation2 + $0xe8] sm:$0xff] %v6142
  %6175 = vst [vmem:[#allocation2 + $0xf0] sm:$0xff] %v6143
  %6176 = vst [vmem:[#allocation2 + $0xf8] sm:$0xff] %v6144
  %s6177 = scalar_lea.vmem %s0, 896
  %v6178 = vld [vmem:[%s6177] sm:$0xff]
  %v6179 = vld [vmem:[%s6177 + $0x8] sm:$0xff]
  %v6180 = vld [vmem:[%s6177 + $0x10] sm:$0xff]
  %v6181 = vld [vmem:[%s6177 + $0x18] sm:$0xff]
  %v6182 = vld [vmem:[%s6177 + $0x20] sm:$0xff]
  %v6183 = vld [vmem:[%s6177 + $0x28] sm:$0xff]
  %v6184 = vld [vmem:[%s6177 + $0x30] sm:$0xff]
  %v6185 = vld [vmem:[%s6177 + $0x38] sm:$0xff]
  %v6186 = vld [vmem:[%s6177 + $0x40] sm:$0xff]
  %v6187 = vld [vmem:[%s6177 + $0x48] sm:$0xff]
  %v6188 = vld [vmem:[%s6177 + $0x50] sm:$0xff]
  %v6189 = vld [vmem:[%s6177 + $0x58] sm:$0xff]
  %v6190 = vld [vmem:[%s6177 + $0x60] sm:$0xff]
  %v6191 = vld [vmem:[%s6177 + $0x68] sm:$0xff]
  %v6192 = vld [vmem:[%s6177 + $0x70] sm:$0xff]
  %v6193 = vld [vmem:[%s6177 + $0x78] sm:$0xff]
  %6210 = vrot.lane.b32.xlu0 %v5871, 32
  %v6211 = vpop.permute.xlu0 %6210
  %6212 = vrot.lane.b32.xlu0 %v5872, 32
  %v6213 = vpop.permute.xlu0 %6212
  %6214 = vrot.lane.b32.xlu0 %v5873, 32
  %v6215 = vpop.permute.xlu0 %6214
  %6216 = vrot.lane.b32.xlu0 %v5874, 32
  %v6217 = vpop.permute.xlu0 %6216
  %6218 = vrot.lane.b32.xlu0 %v5875, 32
  %v6219 = vpop.permute.xlu0 %6218
  %6220 = vrot.lane.b32.xlu0 %v5876, 32
  %v6221 = vpop.permute.xlu0 %6220
  %6222 = vrot.lane.b32.xlu0 %v5877, 32
  %v6223 = vpop.permute.xlu0 %6222
  %6224 = vrot.lane.b32.xlu0 %v5878, 32
  %v6225 = vpop.permute.xlu0 %6224
  %6226 = vrot.lane.b32.xlu0 %v5879, 32
  %v6227 = vpop.permute.xlu0 %6226
  %6228 = vrot.lane.b32.xlu0 %v5880, 32
  %v6229 = vpop.permute.xlu0 %6228
  %6230 = vrot.lane.b32.xlu0 %v5881, 32
  %v6231 = vpop.permute.xlu0 %6230
  %6232 = vrot.lane.b32.xlu0 %v5882, 32
  %v6233 = vpop.permute.xlu0 %6232
  %6234 = vrot.lane.b32.xlu0 %v5883, 32
  %v6235 = vpop.permute.xlu0 %6234
  %6236 = vrot.lane.b32.xlu0 %v5884, 32
  %v6237 = vpop.permute.xlu0 %6236
  %6238 = vrot.lane.b32.xlu0 %v5885, 32
  %v6239 = vpop.permute.xlu0 %6238
  %6240 = vrot.lane.b32.xlu0 %v5886, 32
  %v6241 = vpop.permute.xlu0 %6240
  %v6242 = vsel %vm83, %v6211, 0
  %v6244 = vsel %vm83, %v6213, 0
  %v6246 = vsel %vm83, %v6215, 0
  %v6248 = vsel %vm83, %v6217, 0
  %v6250 = vsel %vm83, %v6219, 0
  %v6252 = vsel %vm83, %v6221, 0
  %v6254 = vsel %vm83, %v6223, 0
  %v6256 = vsel %vm83, %v6225, 0
  %v6258 = vsel %vm83, %v6227, 0
  %v6260 = vsel %vm83, %v6229, 0
  %v6262 = vsel %vm83, %v6231, 0
  %v6264 = vsel %vm83, %v6233, 0
  %v6266 = vsel %vm83, %v6235, 0
  %v6268 = vsel %vm83, %v6237, 0
  %v6270 = vsel %vm83, %v6239, 0
  %v6272 = vsel %vm83, %v6241, 0
  %6274 = vmatprep.subr.mxu0 0.0
  %6275 = vmatpush1.msra.mxu0 %v31
  %6276 = vmatprep.subr.mxu0 0.0
  %6277 = vmatpush1.msra.mxu0 %v32
  %6278 = vmatprep.subr.mxu0 0.0
  %6279 = vmatpush1.msra.mxu0 %v33
  %6280 = vmatprep.subr.mxu0 0.0
  %6281 = vmatpush1.msra.mxu0 %v34
  %6282 = vmatprep.subr.mxu0 0.0
  %6283 = vmatpush1.msra.mxu0 0.0
  %6284 = vmatprep.subr.mxu0 0.0
  %6285 = vmatpush1.msra.mxu0 0.0
  %6286 = vmatprep.subr.mxu0 0.0
  %6287 = vmatpush1.msra.mxu0 0.0
  %6288 = vmatprep.subr.mxu0 0.0
  %6289 = vmatpush1.msra.mxu0 0.0
  %6290 = vmatprep.subr.mxu0 0.0
  %6291 = vmatpush1.msra.mxu0 0.0
  %6292 = vmatprep.subr.mxu0 0.0
  %6293 = vmatpush1.msra.mxu0 0.0
  %6294 = vmatprep.subr.mxu0 0.0
  %6295 = vmatpush1.msra.mxu0 0.0
  %6296 = vmatprep.subr.mxu0 0.0
  %6297 = vmatpush1.msra.mxu0 0.0
  %6298 = vmatprep.subr.mxu0 0.0
  %6299 = vmatpush1.msra.mxu0 0.0
  %6300 = vmatprep.subr.mxu0 0.0
  %6301 = vmatpush1.msra.mxu0 0.0
  %6302 = vmatprep.subr.mxu0 0.0
  %6303 = vmatpush1.msra.mxu0 0.0
  %6304 = vmatprep.subr.mxu0 0.0
  %6305 = vmatpush1.msra.mxu0 0.0
  %6306 = vmatprep.subr.mxu0 0.0
  %6307 = vmatpush1.msra.mxu0 0.0
  %6308 = vmatprep.subr.mxu0 0.0
  %6309 = vmatpush1.msra.mxu0 0.0
  %6310 = vmatprep.subr.mxu0 0.0
  %6311 = vmatpush1.msra.mxu0 0.0
  %6312 = vmatprep.subr.mxu0 0.0
  %6313 = vmatpush1.msra.mxu0 0.0
  %6314 = vmatprep.subr.mxu0 0.0
  %6315 = vmatpush1.msra.mxu0 0.0
  %6316 = vmatprep.subr.mxu0 0.0
  %6317 = vmatpush1.msra.mxu0 0.0
  %6318 = vmatprep.subr.mxu0 0.0
  %6319 = vmatpush1.msra.mxu0 0.0
  %6320 = vmatprep.subr.mxu0 0.0
  %6321 = vmatpush1.msra.mxu0 0.0
  %6322 = vmatprep.subr.mxu0 0.0
  %6323 = vmatpush1.msra.mxu0 0.0
  %6324 = vmatprep.subr.mxu0 0.0
  %6325 = vmatpush1.msra.mxu0 0.0
  %6326 = vmatprep.subr.mxu0 0.0
  %6327 = vmatpush1.msra.mxu0 0.0
  %6328 = vmatprep.subr.mxu0 0.0
  %6329 = vmatpush1.msra.mxu0 0.0
  %6330 = vmatprep.subr.mxu0 0.0
  %6331 = vmatpush1.msra.mxu0 0.0
  %6332 = vmatprep.subr.mxu0 0.0
  %6333 = vmatpush1.msra.mxu0 0.0
  %6334 = vmatprep.subr.mxu0 0.0
  %6335 = vmatpush1.msra.mxu0 0.0
  %6336 = vmatprep.subr.mxu0 0.0
  %6337 = vmatpush1.msra.mxu0 0.0
  %6338 = vmatprep.mubr.f32.mxu0 0.0
  %6339 = vmatmul.mubr.f32.gmra.mrb[0].mxu0 %v6242
  %v6340 = vpop.f32.mrb[0].mxu0
  %v6341 = vadd.f32 0.0, %v6340
  %v6342 = vpop.f32.mrb[0].mxu0
  %6343 = vmatprep.mubr.f32.mxu0 0.0
  %6344 = vmatmul.mubr.f32.gmra.mrb[0].mxu0 %v6244
  %v6345 = vpop.f32.mrb[0].mxu0
  %v6346 = vadd.f32 0.0, %v6345
  %v6347 = vpop.f32.mrb[0].mxu0
  %6348 = vmatprep.mubr.f32.mxu0 0.0
  %6349 = vmatmul.mubr.f32.gmra.mrb[0].mxu0 %v6246
  %v6350 = vpop.f32.mrb[0].mxu0
  %v6351 = vadd.f32 0.0, %v6350
  %v6352 = vpop.f32.mrb[0].mxu0
  %6353 = vmatprep.mubr.f32.mxu0 0.0
  %6354 = vmatmul.mubr.f32.gmra.mrb[0].mxu0 %v6248
  %v6355 = vpop.f32.mrb[0].mxu0
  %v6356 = vadd.f32 0.0, %v6355
  %v6357 = vpop.f32.mrb[0].mxu0
  %6358 = vmatprep.mubr.f32.mxu0 0.0
  %6359 = vmatmul.mubr.f32.gmra.mrb[0].mxu0 %v6250
  %v6360 = vpop.f32.mrb[0].mxu0
  %v6361 = vadd.f32 0.0, %v6360
  %v6362 = vpop.f32.mrb[0].mxu0
  %6363 = vmatprep.mubr.f32.mxu0 0.0
  %6364 = vmatmul.mubr.f32.gmra.mrb[0].mxu0 %v6252
  %v6365 = vpop.f32.mrb[0].mxu0
  %v6366 = vadd.f32 0.0, %v6365
  %v6367 = vpop.f32.mrb[0].mxu0
  %6368 = vmatprep.mubr.f32.mxu0 0.0
  %6369 = vmatmul.mubr.f32.gmra.mrb[0].mxu0 %v6254
  %v6370 = vpop.f32.mrb[0].mxu0
  %v6371 = vadd.f32 0.0, %v6370
  %v6372 = vpop.f32.mrb[0].mxu0
  %6373 = vmatprep.mubr.f32.mxu0 0.0
  %6374 = vmatmul.mubr.f32.gmra.mrb[0].mxu0 %v6256
  %v6375 = vpop.f32.mrb[0].mxu0
  %v6376 = vadd.f32 0.0, %v6375
  %v6377 = vpop.f32.mrb[0].mxu0
  %6378 = vmatprep.mubr.f32.mxu0 0.0
  %6379 = vmatmul.mubr.f32.gmra.mrb[0].mxu0 %v6258
  %v6380 = vpop.f32.mrb[0].mxu0
  %v6381 = vadd.f32 0.0, %v6380
  %v6382 = vpop.f32.mrb[0].mxu0
  %6383 = vmatprep.mubr.f32.mxu0 0.0
  %6384 = vmatmul.mubr.f32.gmra.mrb[0].mxu0 %v6260
  %v6385 = vpop.f32.mrb[0].mxu0
  %v6386 = vadd.f32 0.0, %v6385
  %v6387 = vpop.f32.mrb[0].mxu0
  %6388 = vmatprep.mubr.f32.mxu0 0.0
  %6389 = vmatmul.mubr.f32.gmra.mrb[0].mxu0 %v6262
  %v6390 = vpop.f32.mrb[0].mxu0
  %v6391 = vadd.f32 0.0, %v6390
  %v6392 = vpop.f32.mrb[0].mxu0
  %6393 = vmatprep.mubr.f32.mxu0 0.0
  %6394 = vmatmul.mubr.f32.gmra.mrb[0].mxu0 %v6264
  %v6395 = vpop.f32.mrb[0].mxu0
  %v6396 = vadd.f32 0.0, %v6395
  %v6397 = vpop.f32.mrb[0].mxu0
  %6398 = vmatprep.mubr.f32.mxu0 0.0
  %6399 = vmatmul.mubr.f32.gmra.mrb[0].mxu0 %v6266
  %v6400 = vpop.f32.mrb[0].mxu0
  %v6401 = vadd.f32 0.0, %v6400
  %v6402 = vpop.f32.mrb[0].mxu0
  %6403 = vmatprep.mubr.f32.mxu0 0.0
  %6404 = vmatmul.mubr.f32.gmra.mrb[0].mxu0 %v6268
  %v6405 = vpop.f32.mrb[0].mxu0
  %v6406 = vadd.f32 0.0, %v6405
  %v6407 = vpop.f32.mrb[0].mxu0
  %6408 = vmatprep.mubr.f32.mxu0 0.0
  %6409 = vmatmul.mubr.f32.gmra.mrb[0].mxu0 %v6270
  %v6410 = vpop.f32.mrb[0].mxu0
  %v6411 = vadd.f32 0.0, %v6410
  %v6412 = vpop.f32.mrb[0].mxu0
  %6413 = vmatprep.mubr.f32.mxu0 0.0
  %6414 = vmatmul.mubr.f32.gmra.mrb[0].mxu0 %v6272
  %v6415 = vpop.f32.mrb[0].mxu0
  %v6416 = vadd.f32 0.0, %v6415
  %v6417 = vpop.f32.mrb[0].mxu0
  %6418 = vdwg.mxu0
  %v6419 = vadd.f32 %v6178, %v6341
  %v6420 = vadd.f32 %v6179, %v6346
  %v6421 = vadd.f32 %v6180, %v6351
  %v6422 = vadd.f32 %v6181, %v6356
  %v6423 = vadd.f32 %v6182, %v6361
  %v6424 = vadd.f32 %v6183, %v6366
  %v6425 = vadd.f32 %v6184, %v6371
  %v6426 = vadd.f32 %v6185, %v6376
  %v6427 = vadd.f32 %v6186, %v6381
  %v6428 = vadd.f32 %v6187, %v6386
  %v6429 = vadd.f32 %v6188, %v6391
  %v6430 = vadd.f32 %v6189, %v6396
  %v6431 = vadd.f32 %v6190, %v6401
  %v6432 = vadd.f32 %v6191, %v6406
  %v6433 = vadd.f32 %v6192, %v6411
  %v6434 = vadd.f32 %v6193, %v6416
  %v6435 = vmul.f32 %v6419, %v29
  %v6436 = vmul.f32 %v6420, %v29
  %v6437 = vmul.f32 %v6421, %v29
  %v6438 = vmul.f32 %v6422, %v29
  %v6439 = vmul.f32 %v6423, %v29
  %v6440 = vmul.f32 %v6424, %v29
  %v6441 = vmul.f32 %v6425, %v29
  %v6442 = vmul.f32 %v6426, %v29
  %v6443 = vmul.f32 %v6427, %v29
  %v6444 = vmul.f32 %v6428, %v29
  %v6445 = vmul.f32 %v6429, %v29
  %v6446 = vmul.f32 %v6430, %v29
  %v6447 = vmul.f32 %v6431, %v29
  %v6448 = vmul.f32 %v6432, %v29
  %v6449 = vmul.f32 %v6433, %v29
  %v6450 = vmul.f32 %v6434, %v29
  %v6451 = vtanh.pop %v6435
  %v6452 = vtanh.pop %v6436
  %v6453 = vtanh.pop %v6437
  %v6454 = vtanh.pop %v6438
  %v6455 = vtanh.pop %v6439
  %v6456 = vtanh.pop %v6440
  %v6457 = vtanh.pop %v6441
  %v6458 = vtanh.pop %v6442
  %v6459 = vtanh.pop %v6443
  %v6460 = vtanh.pop %v6444
  %v6461 = vtanh.pop %v6445
  %v6462 = vtanh.pop %v6446
  %v6463 = vtanh.pop %v6447
  %v6464 = vtanh.pop %v6448
  %v6465 = vtanh.pop %v6449
  %v6466 = vtanh.pop %v6450
  %v6467 = vmul.f32 %v6451, %v29
  %v6468 = vmul.f32 %v6452, %v29
  %v6469 = vmul.f32 %v6453, %v29
  %v6470 = vmul.f32 %v6454, %v29
  %v6471 = vmul.f32 %v6455, %v29
  %v6472 = vmul.f32 %v6456, %v29
  %v6473 = vmul.f32 %v6457, %v29
  %v6474 = vmul.f32 %v6458, %v29
  %v6475 = vmul.f32 %v6459, %v29
  %v6476 = vmul.f32 %v6460, %v29
  %v6477 = vmul.f32 %v6461, %v29
  %v6478 = vmul.f32 %v6462, %v29
  %v6479 = vmul.f32 %v6463, %v29
  %v6480 = vmul.f32 %v6464, %v29
  %v6481 = vmul.f32 %v6465, %v29
  %v6482 = vmul.f32 %v6466, %v29
  %v6483 = vadd.f32 %v6467, %v30
  %v6484 = vadd.f32 %v6468, %v30
  %v6485 = vadd.f32 %v6469, %v30
  %v6486 = vadd.f32 %v6470, %v30
  %v6487 = vadd.f32 %v6471, %v30
  %v6488 = vadd.f32 %v6472, %v30
  %v6489 = vadd.f32 %v6473, %v30
  %v6490 = vadd.f32 %v6474, %v30
  %v6491 = vadd.f32 %v6475, %v30
  %v6492 = vadd.f32 %v6476, %v30
  %v6493 = vadd.f32 %v6477, %v30
  %v6494 = vadd.f32 %v6478, %v30
  %v6495 = vadd.f32 %v6479, %v30
  %v6496 = vadd.f32 %v6480, %v30
  %v6497 = vadd.f32 %v6481, %v30
  %v6498 = vadd.f32 %v6482, %v30
  %v6499 = vmul.f32 %v6483, %v5775
  %v6500 = vmul.f32 %v6484, %v5776
  %v6501 = vmul.f32 %v6485, %v5777
  %v6502 = vmul.f32 %v6486, %v5778
  %v6503 = vmul.f32 %v6487, %v5779
  %v6504 = vmul.f32 %v6488, %v5780
  %v6505 = vmul.f32 %v6489, %v5781
  %v6506 = vmul.f32 %v6490, %v5782
  %v6507 = vmul.f32 %v6491, %v5783
  %v6508 = vmul.f32 %v6492, %v5784
  %v6509 = vmul.f32 %v6493, %v5785
  %v6510 = vmul.f32 %v6494, %v5786
  %v6511 = vmul.f32 %v6495, %v5787
  %v6512 = vmul.f32 %v6496, %v5788
  %v6513 = vmul.f32 %v6497, %v5789
  %v6514 = vmul.f32 %v6498, %v5790
  %6531 = vrot.lane.b32.xlu0 %v6483, 64
  %v6532 = vpop.permute.xlu0 %6531
  %6533 = vrot.lane.b32.xlu0 %v6484, 64
  %v6534 = vpop.permute.xlu0 %6533
  %6535 = vrot.lane.b32.xlu0 %v6485, 64
  %v6536 = vpop.permute.xlu0 %6535
  %6537 = vrot.lane.b32.xlu0 %v6486, 64
  %v6538 = vpop.permute.xlu0 %6537
  %6539 = vrot.lane.b32.xlu0 %v6487, 64
  %v6540 = vpop.permute.xlu0 %6539
  %6541 = vrot.lane.b32.xlu0 %v6488, 64
  %v6542 = vpop.permute.xlu0 %6541
  %6543 = vrot.lane.b32.xlu0 %v6489, 64
  %v6544 = vpop.permute.xlu0 %6543
  %6545 = vrot.lane.b32.xlu0 %v6490, 64
  %v6546 = vpop.permute.xlu0 %6545
  %6547 = vrot.lane.b32.xlu0 %v6491, 64
  %v6548 = vpop.permute.xlu0 %6547
  %6549 = vrot.lane.b32.xlu0 %v6492, 64
  %v6550 = vpop.permute.xlu0 %6549
  %6551 = vrot.lane.b32.xlu0 %v6493, 64
  %v6552 = vpop.permute.xlu0 %6551
  %6553 = vrot.lane.b32.xlu0 %v6494, 64
  %v6554 = vpop.permute.xlu0 %6553
  %6555 = vrot.lane.b32.xlu0 %v6495, 64
  %v6556 = vpop.permute.xlu0 %6555
  %6557 = vrot.lane.b32.xlu0 %v6496, 64
  %v6558 = vpop.permute.xlu0 %6557
  %6559 = vrot.lane.b32.xlu0 %v6497, 64
  %v6560 = vpop.permute.xlu0 %6559
  %6561 = vrot.lane.b32.xlu0 %v6498, 64
  %v6562 = vpop.permute.xlu0 %6561
  %v6579 = vmul.f32 %v6483, %v6532
  %v6580 = vmul.f32 %v6484, %v6534
  %v6581 = vmul.f32 %v6485, %v6536
  %v6582 = vmul.f32 %v6486, %v6538
  %v6583 = vmul.f32 %v6487, %v6540
  %v6584 = vmul.f32 %v6488, %v6542
  %v6585 = vmul.f32 %v6489, %v6544
  %v6586 = vmul.f32 %v6490, %v6546
  %v6587 = vmul.f32 %v6491, %v6548
  %v6588 = vmul.f32 %v6492, %v6550
  %v6589 = vmul.f32 %v6493, %v6552
  %v6590 = vmul.f32 %v6494, %v6554
  %v6591 = vmul.f32 %v6495, %v6556
  %v6592 = vmul.f32 %v6496, %v6558
  %v6593 = vmul.f32 %v6497, %v6560
  %v6594 = vmul.f32 %v6498, %v6562
  %6611 = vrot.lane.b32.xlu0 %v6579, 32
  %v6612 = vpop.permute.xlu0 %6611
  %6613 = vrot.lane.b32.xlu0 %v6580, 32
  %v6614 = vpop.permute.xlu0 %6613
  %6615 = vrot.lane.b32.xlu0 %v6581, 32
  %v6616 = vpop.permute.xlu0 %6615
  %6617 = vrot.lane.b32.xlu0 %v6582, 32
  %v6618 = vpop.permute.xlu0 %6617
  %6619 = vrot.lane.b32.xlu0 %v6583, 32
  %v6620 = vpop.permute.xlu0 %6619
  %6621 = vrot.lane.b32.xlu0 %v6584, 32
  %v6622 = vpop.permute.xlu0 %6621
  %6623 = vrot.lane.b32.xlu0 %v6585, 32
  %v6624 = vpop.permute.xlu0 %6623
  %6625 = vrot.lane.b32.xlu0 %v6586, 32
  %v6626 = vpop.permute.xlu0 %6625
  %6627 = vrot.lane.b32.xlu0 %v6587, 32
  %v6628 = vpop.permute.xlu0 %6627
  %6629 = vrot.lane.b32.xlu0 %v6588, 32
  %v6630 = vpop.permute.xlu0 %6629
  %6631 = vrot.lane.b32.xlu0 %v6589, 32
  %v6632 = vpop.permute.xlu0 %6631
  %6633 = vrot.lane.b32.xlu0 %v6590, 32
  %v6634 = vpop.permute.xlu0 %6633
  %6635 = vrot.lane.b32.xlu0 %v6591, 32
  %v6636 = vpop.permute.xlu0 %6635
  %6637 = vrot.lane.b32.xlu0 %v6592, 32
  %v6638 = vpop.permute.xlu0 %6637
  %6639 = vrot.lane.b32.xlu0 %v6593, 32
  %v6640 = vpop.permute.xlu0 %6639
  %6641 = vrot.lane.b32.xlu0 %v6594, 32
  %v6642 = vpop.permute.xlu0 %6641
  %v6659 = vadd.f32 %v6499, %v6612
  %v6660 = vadd.f32 %v6500, %v6614
  %v6661 = vadd.f32 %v6501, %v6616
  %v6662 = vadd.f32 %v6502, %v6618
  %v6663 = vadd.f32 %v6503, %v6620
  %v6664 = vadd.f32 %v6504, %v6622
  %v6665 = vadd.f32 %v6505, %v6624
  %v6666 = vadd.f32 %v6506, %v6626
  %v6667 = vadd.f32 %v6507, %v6628
  %v6668 = vadd.f32 %v6508, %v6630
  %v6669 = vadd.f32 %v6509, %v6632
  %v6670 = vadd.f32 %v6510, %v6634
  %v6671 = vadd.f32 %v6511, %v6636
  %v6672 = vadd.f32 %v6512, %v6638
  %v6673 = vadd.f32 %v6513, %v6640
  %v6674 = vadd.f32 %v6514, %v6642
  %v6675 = vtanh.pop %v6659
  %v6676 = vtanh.pop %v6660
  %v6677 = vtanh.pop %v6661
  %v6678 = vtanh.pop %v6662
  %v6679 = vtanh.pop %v6663
  %v6680 = vtanh.pop %v6664
  %v6681 = vtanh.pop %v6665
  %v6682 = vtanh.pop %v6666
  %v6683 = vtanh.pop %v6667
  %v6684 = vtanh.pop %v6668
  %v6685 = vtanh.pop %v6669
  %v6686 = vtanh.pop %v6670
  %v6687 = vtanh.pop %v6671
  %v6688 = vtanh.pop %v6672
  %v6689 = vtanh.pop %v6673
  %v6690 = vtanh.pop %v6674
  %6707 = vrot.lane.b32.xlu0 %v6675, 64
  %v6708 = vpop.permute.xlu0 %6707
  %6709 = vrot.lane.b32.xlu0 %v6676, 64
  %v6710 = vpop.permute.xlu0 %6709
  %6711 = vrot.lane.b32.xlu0 %v6677, 64
  %v6712 = vpop.permute.xlu0 %6711
  %6713 = vrot.lane.b32.xlu0 %v6678, 64
  %v6714 = vpop.permute.xlu0 %6713
  %6715 = vrot.lane.b32.xlu0 %v6679, 64
  %v6716 = vpop.permute.xlu0 %6715
  %6717 = vrot.lane.b32.xlu0 %v6680, 64
  %v6718 = vpop.permute.xlu0 %6717
  %6719 = vrot.lane.b32.xlu0 %v6681, 64
  %v6720 = vpop.permute.xlu0 %6719
  %6721 = vrot.lane.b32.xlu0 %v6682, 64
  %v6722 = vpop.permute.xlu0 %6721
  %6723 = vrot.lane.b32.xlu0 %v6683, 64
  %v6724 = vpop.permute.xlu0 %6723
  %6725 = vrot.lane.b32.xlu0 %v6684, 64
  %v6726 = vpop.permute.xlu0 %6725
  %6727 = vrot.lane.b32.xlu0 %v6685, 64
  %v6728 = vpop.permute.xlu0 %6727
  %6729 = vrot.lane.b32.xlu0 %v6686, 64
  %v6730 = vpop.permute.xlu0 %6729
  %6731 = vrot.lane.b32.xlu0 %v6687, 64
  %v6732 = vpop.permute.xlu0 %6731
  %6733 = vrot.lane.b32.xlu0 %v6688, 64
  %v6734 = vpop.permute.xlu0 %6733
  %6735 = vrot.lane.b32.xlu0 %v6689, 64
  %v6736 = vpop.permute.xlu0 %6735
  %6737 = vrot.lane.b32.xlu0 %v6690, 64
  %v6738 = vpop.permute.xlu0 %6737
  %v6755 = vmul.f32 %v6483, %v6708
  %v6756 = vmul.f32 %v6484, %v6710
  %v6757 = vmul.f32 %v6485, %v6712
  %v6758 = vmul.f32 %v6486, %v6714
  %v6759 = vmul.f32 %v6487, %v6716
  %v6760 = vmul.f32 %v6488, %v6718
  %v6761 = vmul.f32 %v6489, %v6720
  %v6762 = vmul.f32 %v6490, %v6722
  %v6763 = vmul.f32 %v6491, %v6724
  %v6764 = vmul.f32 %v6492, %v6726
  %v6765 = vmul.f32 %v6493, %v6728
  %v6766 = vmul.f32 %v6494, %v6730
  %v6767 = vmul.f32 %v6495, %v6732
  %v6768 = vmul.f32 %v6496, %v6734
  %v6769 = vmul.f32 %v6497, %v6736
  %v6770 = vmul.f32 %v6498, %v6738
  %v6771 = vld [vmem:[#allocation2] sm:$0xff]
  %v6772 = vld [vmem:[#allocation2 + $0x8] sm:$0xff]
  %v6773 = vld [vmem:[#allocation2 + $0x10] sm:$0xff]
  %v6774 = vld [vmem:[#allocation2 + $0x18] sm:$0xff]
  %v6775 = vld [vmem:[#allocation2 + $0x20] sm:$0xff]
  %v6776 = vld [vmem:[#allocation2 + $0x28] sm:$0xff]
  %v6777 = vld [vmem:[#allocation2 + $0x30] sm:$0xff]
  %v6778 = vld [vmem:[#allocation2 + $0x38] sm:$0xff]
  %v6779 = vld [vmem:[#allocation2 + $0x40] sm:$0xff]
  %v6780 = vld [vmem:[#allocation2 + $0x48] sm:$0xff]
  %v6781 = vld [vmem:[#allocation2 + $0x50] sm:$0xff]
  %v6782 = vld [vmem:[#allocation2 + $0x58] sm:$0xff]
  %v6783 = vld [vmem:[#allocation2 + $0x60] sm:$0xff]
  %v6784 = vld [vmem:[#allocation2 + $0x68] sm:$0xff]
  %v6785 = vld [vmem:[#allocation2 + $0x70] sm:$0xff]
  %v6786 = vld [vmem:[#allocation2 + $0x78] sm:$0xff]
  %v6787 = vld [vmem:[#allocation2 + $0x80] sm:$0xff]
  %v6788 = vld [vmem:[#allocation2 + $0x88] sm:$0xff]
  %v6789 = vld [vmem:[#allocation2 + $0x90] sm:$0xff]
  %v6790 = vld [vmem:[#allocation2 + $0x98] sm:$0xff]
  %v6791 = vld [vmem:[#allocation2 + $0xa0] sm:$0xff]
  %v6792 = vld [vmem:[#allocation2 + $0xa8] sm:$0xff]
  %v6793 = vld [vmem:[#allocation2 + $0xb0] sm:$0xff]
  %v6794 = vld [vmem:[#allocation2 + $0xb8] sm:$0xff]
  %v6795 = vld [vmem:[#allocation2 + $0xc0] sm:$0xff]
  %v6796 = vld [vmem:[#allocation2 + $0xc8] sm:$0xff]
  %v6797 = vld [vmem:[#allocation2 + $0xd0] sm:$0xff]
  %v6798 = vld [vmem:[#allocation2 + $0xd8] sm:$0xff]
  %v6799 = vld [vmem:[#allocation2 + $0xe0] sm:$0xff]
  %v6800 = vld [vmem:[#allocation2 + $0xe8] sm:$0xff]
  %v6801 = vld [vmem:[#allocation2 + $0xf0] sm:$0xff]
  %v6802 = vld [vmem:[#allocation2 + $0xf8] sm:$0xff]
  %v6803 = vpack.c.bf16 %v6756, %v6755
  %v6804 = vpack.c.bf16 %v6758, %v6757
  %v6805 = vpack.c.bf16 %v6760, %v6759
  %v6806 = vpack.c.bf16 %v6762, %v6761
  %v6807 = vpack.c.bf16 %v6764, %v6763
  %v6808 = vpack.c.bf16 %v6766, %v6765
  %v6809 = vpack.c.bf16 %v6768, %v6767
  %v6810 = vpack.c.bf16 %v6770, %v6769
  %s6811 = scalar_lea.vmem %s2, 224
  %v6812 = vld [vmem:[%s6811] sm:$0xff]
  %v6813 = vld [vmem:[%s6811 + $0x8] sm:$0xff]
  %v6814 = vld [vmem:[%s6811 + $0x10] sm:$0xff]
  %v6815 = vld [vmem:[%s6811 + $0x18] sm:$0xff]
  %6824 = vrot.lane.b32.xlu0 %v6803, 32
  %v6825 = vpop.permute.xlu0 %6824
  %6826 = vrot.lane.b32.xlu0 %v6804, 32
  %v6827 = vpop.permute.xlu0 %6826
  %6828 = vrot.lane.b32.xlu0 %v6805, 32
  %v6829 = vpop.permute.xlu0 %6828
  %6830 = vrot.lane.b32.xlu0 %v6806, 32
  %v6831 = vpop.permute.xlu0 %6830
  %6832 = vrot.lane.b32.xlu0 %v6807, 32
  %v6833 = vpop.permute.xlu0 %6832
  %6834 = vrot.lane.b32.xlu0 %v6808, 32
  %v6835 = vpop.permute.xlu0 %6834
  %6836 = vrot.lane.b32.xlu0 %v6809, 32
  %v6837 = vpop.permute.xlu0 %6836
  %6838 = vrot.lane.b32.xlu0 %v6810, 32
  %v6839 = vpop.permute.xlu0 %6838
  %v6844 = vunpack.c.l.b16 %v6812
  %v6845 = vunpack.c.h.b16 %v6812
  %v6846 = vunpack.c.l.b16 %v6813
  %v6847 = vunpack.c.h.b16 %v6813
  %v6848 = vunpack.c.l.b16 %v6814
  %v6849 = vunpack.c.h.b16 %v6814
  %v6850 = vunpack.c.l.b16 %v6815
  %v6851 = vunpack.c.h.b16 %v6815
  %v6852 = vpack.c.b16 %v6846, %v6844
  %v6853 = vpack.c.b16 %v6847, %v6845
  %v6854 = vpack.c.b16 %v6850, %v6848
  %v6855 = vpack.c.b16 %v6851, %v6849
  %v6861 = vsel %vm83, %v6825, 0
  %v6864 = vsel %vm83, %v6827, 0
  %v6867 = vsel %vm83, %v6829, 0
  %v6870 = vsel %vm83, %v6831, 0
  %v6873 = vsel %vm83, %v6833, 0
  %v6876 = vsel %vm83, %v6835, 0
  %v6879 = vsel %vm83, %v6837, 0
  %v6882 = vsel %vm83, %v6839, 0
  %6884 = vmatprep.subr.bf16.mxu0 %v6853
  %6885 = vmatpush1.bf16.msra.mxu0 %v6852
  %6886 = vmatprep.subr.bf16.mxu0 %v6855
  %6887 = vmatpush1.bf16.msra.mxu0 %v6854
  %6888 = vmatprep.subr.bf16.mxu0 0
  %6889 = vmatpush1.bf16.msra.mxu0 0
  %6890 = vmatprep.subr.bf16.mxu0 0
  %6891 = vmatpush1.bf16.msra.mxu0 0
  %6892 = vmatprep.subr.bf16.mxu0 0
  %6893 = vmatpush1.bf16.msra.mxu0 0
  %6894 = vmatprep.subr.bf16.mxu0 0
  %6895 = vmatpush1.bf16.msra.mxu0 0
  %6896 = vmatprep.subr.bf16.mxu0 0
  %6897 = vmatpush1.bf16.msra.mxu0 0
  %6898 = vmatprep.subr.bf16.mxu0 0
  %6899 = vmatpush1.bf16.msra.mxu0 0
  %6900 = vmatprep.subr.bf16.mxu0 0
  %6901 = vmatpush1.bf16.msra.mxu0 0
  %6902 = vmatprep.subr.bf16.mxu0 0
  %6903 = vmatpush1.bf16.msra.mxu0 0
  %6904 = vmatprep.subr.bf16.mxu0 0
  %6905 = vmatpush1.bf16.msra.mxu0 0
  %6906 = vmatprep.subr.bf16.mxu0 0
  %6907 = vmatpush1.bf16.msra.mxu0 0
  %6908 = vmatprep.subr.bf16.mxu0 0
  %6909 = vmatpush1.bf16.msra.mxu0 0
  %6910 = vmatprep.subr.bf16.mxu0 0
  %6911 = vmatpush1.bf16.msra.mxu0 0
  %6912 = vmatprep.subr.bf16.mxu0 0
  %6913 = vmatpush1.bf16.msra.mxu0 0
  %6914 = vmatprep.subr.bf16.mxu0 0
  %6915 = vmatpush1.bf16.msra.mxu0 0
  %6916 = vmatprep.mubr.bf16.mxu0 0
  %6917 = vmatmul.mubr.bf16.gmra.mrb[0].mxu0 %v6861
  %v6918 = vpop.f32.mrb[0].mxu0
  %v6919 = vadd.f32 0.0, %v6918
  %v6920 = vpop.f32.mrb[0].mxu0
  %v6921 = vadd.f32 0.0, %v6920
  %v6922 = vpop.f32.mrb[0].mxu0
  %v6923 = vadd.f32 0.0, %v6922
  %v6924 = vpop.f32.mrb[0].mxu0
  %v6925 = vadd.f32 0.0, %v6924
  %6926 = vmatprep.mubr.bf16.mxu0 0
  %6927 = vmatmul.mubr.bf16.gmra.mrb[0].mxu0 %v6864
  %v6928 = vpop.f32.mrb[0].mxu0
  %v6929 = vadd.f32 0.0, %v6928
  %v6930 = vpop.f32.mrb[0].mxu0
  %v6931 = vadd.f32 0.0, %v6930
  %v6932 = vpop.f32.mrb[0].mxu0
  %v6933 = vadd.f32 0.0, %v6932
  %v6934 = vpop.f32.mrb[0].mxu0
  %v6935 = vadd.f32 0.0, %v6934
  %6936 = vmatprep.mubr.bf16.mxu0 0
  %6937 = vmatmul.mubr.bf16.gmra.mrb[0].mxu0 %v6867
  %v6938 = vpop.f32.mrb[0].mxu0
  %v6939 = vadd.f32 0.0, %v6938
  %v6940 = vpop.f32.mrb[0].mxu0
  %v6941 = vadd.f32 0.0, %v6940
  %v6942 = vpop.f32.mrb[0].mxu0
  %v6943 = vadd.f32 0.0, %v6942
  %v6944 = vpop.f32.mrb[0].mxu0
  %v6945 = vadd.f32 0.0, %v6944
  %6946 = vmatprep.mubr.bf16.mxu0 0
  %6947 = vmatmul.mubr.bf16.gmra.mrb[0].mxu0 %v6870
  %v6948 = vpop.f32.mrb[0].mxu0
  %v6949 = vadd.f32 0.0, %v6948
  %v6950 = vpop.f32.mrb[0].mxu0
  %v6951 = vadd.f32 0.0, %v6950
  %v6952 = vpop.f32.mrb[0].mxu0
  %v6953 = vadd.f32 0.0, %v6952
  %v6954 = vpop.f32.mrb[0].mxu0
  %v6955 = vadd.f32 0.0, %v6954
  %6956 = vmatprep.mubr.bf16.mxu0 0
  %6957 = vmatmul.mubr.bf16.gmra.mrb[0].mxu0 %v6873
  %v6958 = vpop.f32.mrb[0].mxu0
  %v6959 = vadd.f32 0.0, %v6958
  %v6960 = vpop.f32.mrb[0].mxu0
  %v6961 = vadd.f32 0.0, %v6960
  %v6962 = vpop.f32.mrb[0].mxu0
  %v6963 = vadd.f32 0.0, %v6962
  %v6964 = vpop.f32.mrb[0].mxu0
  %v6965 = vadd.f32 0.0, %v6964
  %6966 = vmatprep.mubr.bf16.mxu0 0
  %6967 = vmatmul.mubr.bf16.gmra.mrb[0].mxu0 %v6876
  %v6968 = vpop.f32.mrb[0].mxu0
  %v6969 = vadd.f32 0.0, %v6968
  %v6970 = vpop.f32.mrb[0].mxu0
  %v6971 = vadd.f32 0.0, %v6970
  %v6972 = vpop.f32.mrb[0].mxu0
  %v6973 = vadd.f32 0.0, %v6972
  %v6974 = vpop.f32.mrb[0].mxu0
  %v6975 = vadd.f32 0.0, %v6974
  %6976 = vmatprep.mubr.bf16.mxu0 0
  %6977 = vmatmul.mubr.bf16.gmra.mrb[0].mxu0 %v6879
  %v6978 = vpop.f32.mrb[0].mxu0
  %v6979 = vadd.f32 0.0, %v6978
  %v6980 = vpop.f32.mrb[0].mxu0
  %v6981 = vadd.f32 0.0, %v6980
  %v6982 = vpop.f32.mrb[0].mxu0
  %v6983 = vadd.f32 0.0, %v6982
  %v6984 = vpop.f32.mrb[0].mxu0
  %v6985 = vadd.f32 0.0, %v6984
  %6986 = vmatprep.mubr.bf16.mxu0 0
  %6987 = vmatmul.mubr.bf16.gmra.mrb[0].mxu0 %v6882
  %v6988 = vpop.f32.mrb[0].mxu0
  %v6989 = vadd.f32 0.0, %v6988
  %v6990 = vpop.f32.mrb[0].mxu0
  %v6991 = vadd.f32 0.0, %v6990
  %v6992 = vpop.f32.mrb[0].mxu0
  %v6993 = vadd.f32 0.0, %v6992
  %v6994 = vpop.f32.mrb[0].mxu0
  %v6995 = vadd.f32 0.0, %v6994
  %6996 = vdwg.mxu0
  %v6997 = vadd.f32 %v6771, %v6919
  %v6998 = vadd.f32 %v6772, %v6921
  %v6999 = vadd.f32 %v6773, %v6923
  %v7000 = vadd.f32 %v6774, %v6925
  %v7001 = vadd.f32 %v6775, %v6929
  %v7002 = vadd.f32 %v6776, %v6931
  %v7003 = vadd.f32 %v6777, %v6933
  %v7004 = vadd.f32 %v6778, %v6935
  %v7005 = vadd.f32 %v6779, %v6939
  %v7006 = vadd.f32 %v6780, %v6941
  %v7007 = vadd.f32 %v6781, %v6943
  %v7008 = vadd.f32 %v6782, %v6945
  %v7009 = vadd.f32 %v6783, %v6949
  %v7010 = vadd.f32 %v6784, %v6951
  %v7011 = vadd.f32 %v6785, %v6953
  %v7012 = vadd.f32 %v6786, %v6955
  %v7013 = vadd.f32 %v6787, %v6959
  %v7014 = vadd.f32 %v6788, %v6961
  %v7015 = vadd.f32 %v6789, %v6963
  %v7016 = vadd.f32 %v6790, %v6965
  %v7017 = vadd.f32 %v6791, %v6969
  %v7018 = vadd.f32 %v6792, %v6971
  %v7019 = vadd.f32 %v6793, %v6973
  %v7020 = vadd.f32 %v6794, %v6975
  %v7021 = vadd.f32 %v6795, %v6979
  %v7022 = vadd.f32 %v6796, %v6981
  %v7023 = vadd.f32 %v6797, %v6983
  %v7024 = vadd.f32 %v6798, %v6985
  %v7025 = vadd.f32 %v6799, %v6989
  %v7026 = vadd.f32 %v6800, %v6991
  %v7027 = vadd.f32 %v6801, %v6993
  %v7028 = vadd.f32 %v6802, %v6995
  %7029 = vst [vmem:[#allocation2] sm:$0xff] %v6997
  %7030 = vst [vmem:[#allocation2 + $0x8] sm:$0xff] %v6998
  %7031 = vst [vmem:[#allocation2 + $0x10] sm:$0xff] %v6999
  %7032 = vst [vmem:[#allocation2 + $0x18] sm:$0xff] %v7000
  %7033 = vst [vmem:[#allocation2 + $0x20] sm:$0xff] %v7001
  %7034 = vst [vmem:[#allocation2 + $0x28] sm:$0xff] %v7002
  %7035 = vst [vmem:[#allocation2 + $0x30] sm:$0xff] %v7003
  %7036 = vst [vmem:[#allocation2 + $0x38] sm:$0xff] %v7004
  %7037 = vst [vmem:[#allocation2 + $0x40] sm:$0xff] %v7005
  %7038 = vst [vmem:[#allocation2 + $0x48] sm:$0xff] %v7006
  %7039 = vst [vmem:[#allocation2 + $0x50] sm:$0xff] %v7007
  %7040 = vst [vmem:[#allocation2 + $0x58] sm:$0xff] %v7008
  %7041 = vst [vmem:[#allocation2 + $0x60] sm:$0xff] %v7009
  %7042 = vst [vmem:[#allocation2 + $0x68] sm:$0xff] %v7010
  %7043 = vst [vmem:[#allocation2 + $0x70] sm:$0xff] %v7011
  %7044 = vst [vmem:[#allocation2 + $0x78] sm:$0xff] %v7012
  %7045 = vst [vmem:[#allocation2 + $0x80] sm:$0xff] %v7013
  %7046 = vst [vmem:[#allocation2 + $0x88] sm:$0xff] %v7014
  %7047 = vst [vmem:[#allocation2 + $0x90] sm:$0xff] %v7015
  %7048 = vst [vmem:[#allocation2 + $0x98] sm:$0xff] %v7016
  %7049 = vst [vmem:[#allocation2 + $0xa0] sm:$0xff] %v7017
  %7050 = vst [vmem:[#allocation2 + $0xa8] sm:$0xff] %v7018
  %7051 = vst [vmem:[#allocation2 + $0xb0] sm:$0xff] %v7019
  %7052 = vst [vmem:[#allocation2 + $0xb8] sm:$0xff] %v7020
  %7053 = vst [vmem:[#allocation2 + $0xc0] sm:$0xff] %v7021
  %7054 = vst [vmem:[#allocation2 + $0xc8] sm:$0xff] %v7022
  %7055 = vst [vmem:[#allocation2 + $0xd0] sm:$0xff] %v7023
  %7056 = vst [vmem:[#allocation2 + $0xd8] sm:$0xff] %v7024
  %7057 = vst [vmem:[#allocation2 + $0xe0] sm:$0xff] %v7025
  %7058 = vst [vmem:[#allocation2 + $0xe8] sm:$0xff] %v7026
  %7059 = vst [vmem:[#allocation2 + $0xf0] sm:$0xff] %v7027
  %7060 = vst [vmem:[#allocation2 + $0xf8] sm:$0xff] %v7028
  %v7061 = vld [vmem:[#allocation2] sm:$0xff]
  %v7062 = vld [vmem:[#allocation2 + $0x8] sm:$0xff]
  %v7063 = vld [vmem:[#allocation2 + $0x10] sm:$0xff]
  %v7064 = vld [vmem:[#allocation2 + $0x18] sm:$0xff]
  %v7065 = vld [vmem:[#allocation2 + $0x20] sm:$0xff]
  %v7066 = vld [vmem:[#allocation2 + $0x28] sm:$0xff]
  %v7067 = vld [vmem:[#allocation2 + $0x30] sm:$0xff]
  %v7068 = vld [vmem:[#allocation2 + $0x38] sm:$0xff]
  %v7069 = vld [vmem:[#allocation2 + $0x40] sm:$0xff]
  %v7070 = vld [vmem:[#allocation2 + $0x48] sm:$0xff]
  %v7071 = vld [vmem:[#allocation2 + $0x50] sm:$0xff]
  %v7072 = vld [vmem:[#allocation2 + $0x58] sm:$0xff]
  %v7073 = vld [vmem:[#allocation2 + $0x60] sm:$0xff]
  %v7074 = vld [vmem:[#allocation2 + $0x68] sm:$0xff]
  %v7075 = vld [vmem:[#allocation2 + $0x70] sm:$0xff]
  %v7076 = vld [vmem:[#allocation2 + $0x78] sm:$0xff]
  %v7077 = vld [vmem:[#allocation2 + $0x80] sm:$0xff]
  %v7078 = vld [vmem:[#allocation2 + $0x88] sm:$0xff]
  %v7079 = vld [vmem:[#allocation2 + $0x90] sm:$0xff]
  %v7080 = vld [vmem:[#allocation2 + $0x98] sm:$0xff]
  %v7081 = vld [vmem:[#allocation2 + $0xa0] sm:$0xff]
  %v7082 = vld [vmem:[#allocation2 + $0xa8] sm:$0xff]
  %v7083 = vld [vmem:[#allocation2 + $0xb0] sm:$0xff]
  %v7084 = vld [vmem:[#allocation2 + $0xb8] sm:$0xff]
  %v7085 = vld [vmem:[#allocation2 + $0xc0] sm:$0xff]
  %v7086 = vld [vmem:[#allocation2 + $0xc8] sm:$0xff]
  %v7087 = vld [vmem:[#allocation2 + $0xd0] sm:$0xff]
  %v7088 = vld [vmem:[#allocation2 + $0xd8] sm:$0xff]
  %v7089 = vld [vmem:[#allocation2 + $0xe0] sm:$0xff]
  %v7090 = vld [vmem:[#allocation2 + $0xe8] sm:$0xff]
  %v7091 = vld [vmem:[#allocation2 + $0xf0] sm:$0xff]
  %v7092 = vld [vmem:[#allocation2 + $0xf8] sm:$0xff]
  %v7093 = vld [vmem:[%s3] sm:$0x3]
  %v7095 = vlaneseq
  %v7096 = vshrl.u32 %v7095, 7
  %v7097 = vsub.s32 0, %v7096
  %v7098 = vrot.slane %v7093, %v7097
  %v7099 = vlaneseq
  %v7100 = vshrl.u32 %v7099, 7
  %v7101 = vsub.s32 1, %v7100
  %v7102 = vrot.slane %v7093, %v7101
  %v7105 = vadd.f32 %v7061, %v7098
  %v7106 = vadd.f32 %v7062, %v7102
  %v7107 = vadd.f32 %v7063, %v7098
  %v7108 = vadd.f32 %v7064, %v7102
  %v7109 = vadd.f32 %v7065, %v7098
  %v7110 = vadd.f32 %v7066, %v7102
  %v7111 = vadd.f32 %v7067, %v7098
  %v7112 = vadd.f32 %v7068, %v7102
  %v7113 = vadd.f32 %v7069, %v7098
  %v7114 = vadd.f32 %v7070, %v7102
  %v7115 = vadd.f32 %v7071, %v7098
  %v7116 = vadd.f32 %v7072, %v7102
  %v7117 = vadd.f32 %v7073, %v7098
  %v7118 = vadd.f32 %v7074, %v7102
  %v7119 = vadd.f32 %v7075, %v7098
  %v7120 = vadd.f32 %v7076, %v7102
  %v7121 = vadd.f32 %v7077, %v7098
  %v7122 = vadd.f32 %v7078, %v7102
  %v7123 = vadd.f32 %v7079, %v7098
  %v7124 = vadd.f32 %v7080, %v7102
  %v7125 = vadd.f32 %v7081, %v7098
  %v7126 = vadd.f32 %v7082, %v7102
  %v7127 = vadd.f32 %v7083, %v7098
  %v7128 = vadd.f32 %v7084, %v7102
  %v7129 = vadd.f32 %v7085, %v7098
  %v7130 = vadd.f32 %v7086, %v7102
  %v7131 = vadd.f32 %v7087, %v7098
  %v7132 = vadd.f32 %v7088, %v7102
  %v7133 = vadd.f32 %v7089, %v7098
  %v7134 = vadd.f32 %v7090, %v7102
  %v7135 = vadd.f32 %v7091, %v7098
  %v7136 = vadd.f32 %v7092, %v7102
  %v7137 = vmax.f32 %v7105, 0.0
  %v7138 = vmax.f32 %v7106, 0.0
  %v7139 = vmax.f32 %v7107, 0.0
  %v7140 = vmax.f32 %v7108, 0.0
  %v7141 = vmax.f32 %v7109, 0.0
  %v7142 = vmax.f32 %v7110, 0.0
  %v7143 = vmax.f32 %v7111, 0.0
  %v7144 = vmax.f32 %v7112, 0.0
  %v7145 = vmax.f32 %v7113, 0.0
  %v7146 = vmax.f32 %v7114, 0.0
  %v7147 = vmax.f32 %v7115, 0.0
  %v7148 = vmax.f32 %v7116, 0.0
  %v7149 = vmax.f32 %v7117, 0.0
  %v7150 = vmax.f32 %v7118, 0.0
  %v7151 = vmax.f32 %v7119, 0.0
  %v7152 = vmax.f32 %v7120, 0.0
  %v7153 = vmax.f32 %v7121, 0.0
  %v7154 = vmax.f32 %v7122, 0.0
  %v7155 = vmax.f32 %v7123, 0.0
  %v7156 = vmax.f32 %v7124, 0.0
  %v7157 = vmax.f32 %v7125, 0.0
  %v7158 = vmax.f32 %v7126, 0.0
  %v7159 = vmax.f32 %v7127, 0.0
  %v7160 = vmax.f32 %v7128, 0.0
  %v7161 = vmax.f32 %v7129, 0.0
  %v7162 = vmax.f32 %v7130, 0.0
  %v7163 = vmax.f32 %v7131, 0.0
  %v7164 = vmax.f32 %v7132, 0.0
  %v7165 = vmax.f32 %v7133, 0.0
  %v7166 = vmax.f32 %v7134, 0.0
  %v7167 = vmax.f32 %v7135, 0.0
  %v7168 = vmax.f32 %v7136, 0.0
  %v7169 = vpack.c.bf16 %v7139, %v7137
  %v7170 = vpack.c.bf16 %v7140, %v7138
  %v7171 = vpack.c.bf16 %v7143, %v7141
  %v7172 = vpack.c.bf16 %v7144, %v7142
  %v7173 = vpack.c.bf16 %v7147, %v7145
  %v7174 = vpack.c.bf16 %v7148, %v7146
  %v7175 = vpack.c.bf16 %v7151, %v7149
  %v7176 = vpack.c.bf16 %v7152, %v7150
  %v7177 = vpack.c.bf16 %v7155, %v7153
  %v7178 = vpack.c.bf16 %v7156, %v7154
  %v7179 = vpack.c.bf16 %v7159, %v7157
  %v7180 = vpack.c.bf16 %v7160, %v7158
  %v7181 = vpack.c.bf16 %v7163, %v7161
  %v7182 = vpack.c.bf16 %v7164, %v7162
  %v7183 = vpack.c.bf16 %v7167, %v7165
  %v7184 = vpack.c.bf16 %v7168, %v7166
  %v7185 = vld [vmem:[%s4] sm:$0xf]
  %v7186 = vld [vmem:[%s4 + $0x4] sm:$0xf]
  %v7187 = vld [vmem:[%s4 + $0x8] sm:$0xf]
  %v7188 = vld [vmem:[%s4 + $0xc] sm:$0xf]
  %v7189 = vld [vmem:[%s4 + $0x10] sm:$0xf]
  %v7190 = vld [vmem:[%s4 + $0x14] sm:$0xf]
  %v7191 = vld [vmem:[%s4 + $0x18] sm:$0xf]
  %v7192 = vld [vmem:[%s4 + $0x1c] sm:$0xf]
  %v7193 = vld [vmem:[%s4 + $0x20] sm:$0xf]
  %v7194 = vld [vmem:[%s4 + $0x24] sm:$0xf]
  %v7195 = vld [vmem:[%s4 + $0x28] sm:$0xf]
  %v7196 = vld [vmem:[%s4 + $0x2c] sm:$0xf]
  %v7197 = vld [vmem:[%s4 + $0x30] sm:$0xf]
  %v7198 = vld [vmem:[%s4 + $0x34] sm:$0xf]
  %v7199 = vld [vmem:[%s4 + $0x38] sm:$0xf]
  %v7200 = vld [vmem:[%s4 + $0x3c] sm:$0xf]
  %v7201 = vld [vmem:[%s4 + $0x40] sm:$0xf]
  %v7202 = vld [vmem:[%s4 + $0x44] sm:$0xf]
  %v7203 = vld [vmem:[%s4 + $0x48] sm:$0xf]
  %v7204 = vld [vmem:[%s4 + $0x4c] sm:$0xf]
  %v7205 = vld [vmem:[%s4 + $0x50] sm:$0xf]
  %v7206 = vld [vmem:[%s4 + $0x54] sm:$0xf]
  %v7207 = vld [vmem:[%s4 + $0x58] sm:$0xf]
  %v7208 = vld [vmem:[%s4 + $0x5c] sm:$0xf]
  %v7209 = vld [vmem:[%s4 + $0x60] sm:$0xf]
  %v7210 = vld [vmem:[%s4 + $0x64] sm:$0xf]
  %v7211 = vld [vmem:[%s4 + $0x68] sm:$0xf]
  %v7212 = vld [vmem:[%s4 + $0x6c] sm:$0xf]
  %v7213 = vld [vmem:[%s4 + $0x70] sm:$0xf]
  %v7214 = vld [vmem:[%s4 + $0x74] sm:$0xf]
  %v7215 = vld [vmem:[%s4 + $0x78] sm:$0xf]
  %v7216 = vld [vmem:[%s4 + $0x7c] sm:$0xf]
  %v7217 = vld [vmem:[%s5] sm:$0x1]
  %v7219 = vlaneseq
  %v7220 = vshrl.u32 %v7219, 7
  %v7221 = vsub.s32 0, %v7220
  %v7222 = vrot.slane %v7217, %v7221
  %v7256 = vunpack.c.l.b16 %v7185
  %v7257 = vunpack.c.l.b16 %v7186
  %v7258 = vunpack.c.l.b16 %v7187
  %v7259 = vunpack.c.l.b16 %v7188
  %v7260 = vunpack.c.l.b16 %v7189
  %v7261 = vunpack.c.l.b16 %v7190
  %v7262 = vunpack.c.l.b16 %v7191
  %v7263 = vunpack.c.l.b16 %v7192
  %v7264 = vunpack.c.l.b16 %v7193
  %v7265 = vunpack.c.l.b16 %v7194
  %v7266 = vunpack.c.l.b16 %v7195
  %v7267 = vunpack.c.l.b16 %v7196
  %v7268 = vunpack.c.l.b16 %v7197
  %v7269 = vunpack.c.l.b16 %v7198
  %v7270 = vunpack.c.l.b16 %v7199
  %v7271 = vunpack.c.l.b16 %v7200
  %v7272 = vunpack.c.l.b16 %v7201
  %v7273 = vunpack.c.l.b16 %v7202
  %v7274 = vunpack.c.l.b16 %v7203
  %v7275 = vunpack.c.l.b16 %v7204
  %v7276 = vunpack.c.l.b16 %v7205
  %v7277 = vunpack.c.l.b16 %v7206
  %v7278 = vunpack.c.l.b16 %v7207
  %v7279 = vunpack.c.l.b16 %v7208
  %v7280 = vunpack.c.l.b16 %v7209
  %v7281 = vunpack.c.l.b16 %v7210
  %v7282 = vunpack.c.l.b16 %v7211
  %v7283 = vunpack.c.l.b16 %v7212
  %v7284 = vunpack.c.l.b16 %v7213
  %v7285 = vunpack.c.l.b16 %v7214
  %v7286 = vunpack.c.l.b16 %v7215
  %v7287 = vunpack.c.l.b16 %v7216
  %v7288 = vpack.c.b16 %v7257, %v7256
  %v7289 = vpack.c.b16 %v7259, %v7258
  %v7290 = vpack.c.b16 %v7261, %v7260
  %v7291 = vpack.c.b16 %v7263, %v7262
  %v7292 = vpack.c.b16 %v7265, %v7264
  %v7293 = vpack.c.b16 %v7267, %v7266
  %v7294 = vpack.c.b16 %v7269, %v7268
  %v7295 = vpack.c.b16 %v7271, %v7270
  %v7296 = vpack.c.b16 %v7273, %v7272
  %v7297 = vpack.c.b16 %v7275, %v7274
  %v7298 = vpack.c.b16 %v7277, %v7276
  %v7299 = vpack.c.b16 %v7279, %v7278
  %v7300 = vpack.c.b16 %v7281, %v7280
  %v7301 = vpack.c.b16 %v7283, %v7282
  %v7302 = vpack.c.b16 %v7285, %v7284
  %v7303 = vpack.c.b16 %v7287, %v7286
  %7320 = vmatprep.subr.bf16.mxu0 0
  %7321 = vmatpush1.bf16.msra.mxu0 %v7288
  %7322 = vmatprep.subr.bf16.mxu0 0
  %7323 = vmatpush1.bf16.msra.mxu0 %v7289
  %7324 = vmatprep.subr.bf16.mxu0 0
  %7325 = vmatpush1.bf16.msra.mxu0 %v7290
  %7326 = vmatprep.subr.bf16.mxu0 0
  %7327 = vmatpush1.bf16.msra.mxu0 %v7291
  %7328 = vmatprep.subr.bf16.mxu0 0
  %7329 = vmatpush1.bf16.msra.mxu0 %v7292
  %7330 = vmatprep.subr.bf16.mxu0 0
  %7331 = vmatpush1.bf16.msra.mxu0 %v7293
  %7332 = vmatprep.subr.bf16.mxu0 0
  %7333 = vmatpush1.bf16.msra.mxu0 %v7294
  %7334 = vmatprep.subr.bf16.mxu0 0
  %7335 = vmatpush1.bf16.msra.mxu0 %v7295
  %7336 = vmatprep.subr.bf16.mxu0 0
  %7337 = vmatpush1.bf16.msra.mxu0 %v7296
  %7338 = vmatprep.subr.bf16.mxu0 0
  %7339 = vmatpush1.bf16.msra.mxu0 %v7297
  %7340 = vmatprep.subr.bf16.mxu0 0
  %7341 = vmatpush1.bf16.msra.mxu0 %v7298
  %7342 = vmatprep.subr.bf16.mxu0 0
  %7343 = vmatpush1.bf16.msra.mxu0 %v7299
  %7344 = vmatprep.subr.bf16.mxu0 0
  %7345 = vmatpush1.bf16.msra.mxu0 %v7300
  %7346 = vmatprep.subr.bf16.mxu0 0
  %7347 = vmatpush1.bf16.msra.mxu0 %v7301
  %7348 = vmatprep.subr.bf16.mxu0 0
  %7349 = vmatpush1.bf16.msra.mxu0 %v7302
  %7350 = vmatprep.subr.bf16.mxu0 0
  %7351 = vmatpush1.bf16.msra.mxu0 %v7303
  %7352 = vmatprep.mubr.bf16.mxu0 %v7170
  %7353 = vmatmul.mubr.bf16.gmra.mrb[0].mxu0 %v7169
  %v7354 = vpop.f32.mrb[0].mxu0
  %v7355 = vadd.f32 %v7222, %v7354
  %v7356 = vpop.f32.mrb[0].mxu0
  %v7357 = vpop.f32.mrb[0].mxu0
  %v7358 = vadd.f32 %v7222, %v7357
  %v7359 = vpop.f32.mrb[0].mxu0
  %7360 = vmatprep.mubr.bf16.mxu0 %v7172
  %7361 = vmatmul.mubr.bf16.gmra.mrb[0].mxu0 %v7171
  %v7362 = vpop.f32.mrb[0].mxu0
  %v7363 = vadd.f32 %v7222, %v7362
  %v7364 = vpop.f32.mrb[0].mxu0
  %v7365 = vpop.f32.mrb[0].mxu0
  %v7366 = vadd.f32 %v7222, %v7365
  %v7367 = vpop.f32.mrb[0].mxu0
  %7368 = vmatprep.mubr.bf16.mxu0 %v7174
  %7369 = vmatmul.mubr.bf16.gmra.mrb[0].mxu0 %v7173
  %v7370 = vpop.f32.mrb[0].mxu0
  %v7371 = vadd.f32 %v7222, %v7370
  %v7372 = vpop.f32.mrb[0].mxu0
  %v7373 = vpop.f32.mrb[0].mxu0
  %v7374 = vadd.f32 %v7222, %v7373
  %v7375 = vpop.f32.mrb[0].mxu0
  %7376 = vmatprep.mubr.bf16.mxu0 %v7176
  %7377 = vmatmul.mubr.bf16.gmra.mrb[0].mxu0 %v7175
  %v7378 = vpop.f32.mrb[0].mxu0
  %v7379 = vadd.f32 %v7222, %v7378
  %v7380 = vpop.f32.mrb[0].mxu0
  %v7381 = vpop.f32.mrb[0].mxu0
  %v7382 = vadd.f32 %v7222, %v7381
  %v7383 = vpop.f32.mrb[0].mxu0
  %7384 = vmatprep.mubr.bf16.mxu0 %v7178
  %7385 = vmatmul.mubr.bf16.gmra.mrb[0].mxu0 %v7177
  %v7386 = vpop.f32.mrb[0].mxu0
  %v7387 = vadd.f32 %v7222, %v7386
  %v7388 = vpop.f32.mrb[0].mxu0
  %v7389 = vpop.f32.mrb[0].mxu0
  %v7390 = vadd.f32 %v7222, %v7389
  %v7391 = vpop.f32.mrb[0].mxu0
  %7392 = vmatprep.mubr.bf16.mxu0 %v7180
  %7393 = vmatmul.mubr.bf16.gmra.mrb[0].mxu0 %v7179
  %v7394 = vpop.f32.mrb[0].mxu0
  %v7395 = vadd.f32 %v7222, %v7394
  %v7396 = vpop.f32.mrb[0].mxu0
  %v7397 = vpop.f32.mrb[0].mxu0
  %v7398 = vadd.f32 %v7222, %v7397
  %v7399 = vpop.f32.mrb[0].mxu0
  %7400 = vmatprep.mubr.bf16.mxu0 %v7182
  %7401 = vmatmul.mubr.bf16.gmra.mrb[0].mxu0 %v7181
  %v7402 = vpop.f32.mrb[0].mxu0
  %v7403 = vadd.f32 %v7222, %v7402
  %v7404 = vpop.f32.mrb[0].mxu0
  %v7405 = vpop.f32.mrb[0].mxu0
  %v7406 = vadd.f32 %v7222, %v7405
  %v7407 = vpop.f32.mrb[0].mxu0
  %7408 = vmatprep.mubr.bf16.mxu0 %v7184
  %7409 = vmatmul.mubr.bf16.gmra.mrb[0].mxu0 %v7183
  %v7410 = vpop.f32.mrb[0].mxu0
  %v7411 = vadd.f32 %v7222, %v7410
  %v7412 = vpop.f32.mrb[0].mxu0
  %v7413 = vpop.f32.mrb[0].mxu0
  %v7414 = vadd.f32 %v7222, %v7413
  %v7415 = vpop.f32.mrb[0].mxu0
  %7416 = vdwg.mxu0
  %7417 = vmax.xlane.f32.xlu0 %v7355
  %v7418 = vpop.xlane.xlu0 %7417
  %7419 = vmax.xlane.f32.xlu0 %v7358
  %v7420 = vpop.xlane.xlu0 %7419
  %7421 = vmax.xlane.f32.xlu0 %v7363
  %v7422 = vpop.xlane.xlu0 %7421
  %7423 = vmax.xlane.f32.xlu0 %v7366
  %v7424 = vpop.xlane.xlu0 %7423
  %7425 = vmax.xlane.f32.xlu0 %v7371
  %v7426 = vpop.xlane.xlu0 %7425
  %7427 = vmax.xlane.f32.xlu0 %v7374
  %v7428 = vpop.xlane.xlu0 %7427
  %7429 = vmax.xlane.f32.xlu0 %v7379
  %v7430 = vpop.xlane.xlu0 %7429
  %7431 = vmax.xlane.f32.xlu0 %v7382
  %v7432 = vpop.xlane.xlu0 %7431
  %7433 = vmax.xlane.f32.xlu0 %v7387
  %v7434 = vpop.xlane.xlu0 %7433
  %7435 = vmax.xlane.f32.xlu0 %v7390
  %v7436 = vpop.xlane.xlu0 %7435
  %7437 = vmax.xlane.f32.xlu0 %v7395
  %v7438 = vpop.xlane.xlu0 %7437
  %7439 = vmax.xlane.f32.xlu0 %v7398
  %v7440 = vpop.xlane.xlu0 %7439
  %7441 = vmax.xlane.f32.xlu0 %v7403
  %v7442 = vpop.xlane.xlu0 %7441
  %7443 = vmax.xlane.f32.xlu0 %v7406
  %v7444 = vpop.xlane.xlu0 %7443
  %7445 = vmax.xlane.f32.xlu0 %v7411
  %v7446 = vpop.xlane.xlu0 %7445
  %7447 = vmax.xlane.f32.xlu0 %v7414
  %v7448 = vpop.xlane.xlu0 %7447
  %v7449 = vsub.f32 %v7355, %v7418
  %v7450 = vsub.f32 %v7358, %v7420
  %v7451 = vsub.f32 %v7363, %v7422
  %v7452 = vsub.f32 %v7366, %v7424
  %v7453 = vsub.f32 %v7371, %v7426
  %v7454 = vsub.f32 %v7374, %v7428
  %v7455 = vsub.f32 %v7379, %v7430
  %v7456 = vsub.f32 %v7382, %v7432
  %v7457 = vsub.f32 %v7387, %v7434
  %v7458 = vsub.f32 %v7390, %v7436
  %v7459 = vsub.f32 %v7395, %v7438
  %v7460 = vsub.f32 %v7398, %v7440
  %v7461 = vsub.f32 %v7403, %v7442
  %v7462 = vsub.f32 %v7406, %v7444
  %v7463 = vsub.f32 %v7411, %v7446
  %v7464 = vsub.f32 %v7414, %v7448
  %v7465 = vmul.f32 %v7449, 1.442695
  %v7466 = vpow.pop %v7465
  %v7467 = vmul.f32 %v7450, 1.442695
  %v7468 = vpow.pop %v7467
  %v7469 = vmul.f32 %v7451, 1.442695
  %v7470 = vpow.pop %v7469
  %v7471 = vmul.f32 %v7452, 1.442695
  %v7472 = vpow.pop %v7471
  %v7473 = vmul.f32 %v7453, 1.442695
  %v7474 = vpow.pop %v7473
  %v7475 = vmul.f32 %v7454, 1.442695
  %v7476 = vpow.pop %v7475
  %v7477 = vmul.f32 %v7455, 1.442695
  %v7478 = vpow.pop %v7477
  %v7479 = vmul.f32 %v7456, 1.442695
  %v7480 = vpow.pop %v7479
  %v7481 = vmul.f32 %v7457, 1.442695
  %v7482 = vpow.pop %v7481
  %v7483 = vmul.f32 %v7458, 1.442695
  %v7484 = vpow.pop %v7483
  %v7485 = vmul.f32 %v7459, 1.442695
  %v7486 = vpow.pop %v7485
  %v7487 = vmul.f32 %v7460, 1.442695
  %v7488 = vpow.pop %v7487
  %v7489 = vmul.f32 %v7461, 1.442695
  %v7490 = vpow.pop %v7489
  %v7491 = vmul.f32 %v7462, 1.442695
  %v7492 = vpow.pop %v7491
  %v7493 = vmul.f32 %v7463, 1.442695
  %v7494 = vpow.pop %v7493
  %v7495 = vmul.f32 %v7464, 1.442695
  %v7496 = vpow.pop %v7495
  %7497 = vadd.xlane.f32.xlu0 %v7466
  %v7498 = vpop.xlane.xlu0 %7497
  %7499 = vadd.xlane.f32.xlu0 %v7468
  %v7500 = vpop.xlane.xlu0 %7499
  %7501 = vadd.xlane.f32.xlu0 %v7470
  %v7502 = vpop.xlane.xlu0 %7501
  %7503 = vadd.xlane.f32.xlu0 %v7472
  %v7504 = vpop.xlane.xlu0 %7503
  %7505 = vadd.xlane.f32.xlu0 %v7474
  %v7506 = vpop.xlane.xlu0 %7505
  %7507 = vadd.xlane.f32.xlu0 %v7476
  %v7508 = vpop.xlane.xlu0 %7507
  %7509 = vadd.xlane.f32.xlu0 %v7478
  %v7510 = vpop.xlane.xlu0 %7509
  %7511 = vadd.xlane.f32.xlu0 %v7480
  %v7512 = vpop.xlane.xlu0 %7511
  %7513 = vadd.xlane.f32.xlu0 %v7482
  %v7514 = vpop.xlane.xlu0 %7513
  %7515 = vadd.xlane.f32.xlu0 %v7484
  %v7516 = vpop.xlane.xlu0 %7515
  %7517 = vadd.xlane.f32.xlu0 %v7486
  %v7518 = vpop.xlane.xlu0 %7517
  %7519 = vadd.xlane.f32.xlu0 %v7488
  %v7520 = vpop.xlane.xlu0 %7519
  %7521 = vadd.xlane.f32.xlu0 %v7490
  %v7522 = vpop.xlane.xlu0 %7521
  %7523 = vadd.xlane.f32.xlu0 %v7492
  %v7524 = vpop.xlane.xlu0 %7523
  %7525 = vadd.xlane.f32.xlu0 %v7494
  %v7526 = vpop.xlane.xlu0 %7525
  %7527 = vadd.xlane.f32.xlu0 %v7496
  %v7528 = vpop.xlane.xlu0 %7527
  %v7529 = vrcp.pop %v7498
  %v7530 = vmul.f32 %v7466, %v7529
  %v7531 = vrcp.pop %v7500
  %v7532 = vmul.f32 %v7468, %v7531
  %v7533 = vrcp.pop %v7502
  %v7534 = vmul.f32 %v7470, %v7533
  %v7535 = vrcp.pop %v7504
  %v7536 = vmul.f32 %v7472, %v7535
  %v7537 = vrcp.pop %v7506
  %v7538 = vmul.f32 %v7474, %v7537
  %v7539 = vrcp.pop %v7508
  %v7540 = vmul.f32 %v7476, %v7539
  %v7541 = vrcp.pop %v7510
  %v7542 = vmul.f32 %v7478, %v7541
  %v7543 = vrcp.pop %v7512
  %v7544 = vmul.f32 %v7480, %v7543
  %v7545 = vrcp.pop %v7514
  %v7546 = vmul.f32 %v7482, %v7545
  %v7547 = vrcp.pop %v7516
  %v7548 = vmul.f32 %v7484, %v7547
  %v7549 = vrcp.pop %v7518
  %v7550 = vmul.f32 %v7486, %v7549
  %v7551 = vrcp.pop %v7520
  %v7552 = vmul.f32 %v7488, %v7551
  %v7553 = vrcp.pop %v7522
  %v7554 = vmul.f32 %v7490, %v7553
  %v7555 = vrcp.pop %v7524
  %v7556 = vmul.f32 %v7492, %v7555
  %v7557 = vrcp.pop %v7526
  %v7558 = vmul.f32 %v7494, %v7557
  %v7559 = vrcp.pop %v7528
  %v7560 = vmul.f32 %v7496, %v7559
  %7561 = vst [vmem:[%s6] sm:$0xff] %v7530
  %7562 = vst [vmem:[%s6 + $0x8] sm:$0xff] %v7532
  %7563 = vst [vmem:[%s6 + $0x10] sm:$0xff] %v7534
  %7564 = vst [vmem:[%s6 + $0x18] sm:$0xff] %v7536
  %7565 = vst [vmem:[%s6 + $0x20] sm:$0xff] %v7538
  %7566 = vst [vmem:[%s6 + $0x28] sm:$0xff] %v7540
  %7567 = vst [vmem:[%s6 + $0x30] sm:$0xff] %v7542
  %7568 = vst [vmem:[%s6 + $0x38] sm:$0xff] %v7544
  %7569 = vst [vmem:[%s6 + $0x40] sm:$0xff] %v7546
  %7570 = vst [vmem:[%s6 + $0x48] sm:$0xff] %v7548
  %7571 = vst [vmem:[%s6 + $0x50] sm:$0xff] %v7550
  %7572 = vst [vmem:[%s6 + $0x58] sm:$0xff] %v7552
  %7573 = vst [vmem:[%s6 + $0x60] sm:$0xff] %v7554
  %7574 = vst [vmem:[%s6 + $0x68] sm:$0xff] %v7556
  %7575 = vst [vmem:[%s6 + $0x70] sm:$0xff] %v7558
  %7576 = vst [vmem:[%s6 + $0x78] sm:$0xff] %v7560
  // Predicated region
  $region26: #{classification_rnn2_forward.1} parent=0 // pred_check
    _
  $region27: #{classification_rnn2_forward.1} parent=0 // pred_check_branch
    %7578 = sbr.rel (0) target = $region29
  $region28: #{classification_rnn2_forward.1} parent=0 // pred_region
    _
  $region29: #{classification_rnn2_forward.1} parent=0 // pred_fallthru
    _
  // Predicated region
  $region30: #{classification_rnn2_forward.1} parent=0 // pred_check
    _
  $region31: #{classification_rnn2_forward.1} parent=0 // pred_check_branch
    %7580 = sbr.rel (0) target = $region33
  $region32: #{classification_rnn2_forward.1} parent=0 // pred_region
    _
  $region33: #{classification_rnn2_forward.1} parent=0 // pred_fallthru
    _

</llo_original>
